<compile_context>
chip_gen: v7x
topology: tpu7x:2x2x1
jax: 0.10.0
libtpu: 0.0.40
codegen_flags: <defaults>
</compile_context>

<pallas_src>
import math
import functools

import jax
import jax.numpy as jnp
from jax.experimental import pallas as pl
from jax.experimental.pallas import tpu as pltpu

LANE = 128
# Keep the support matrix fully resident in VMEM when it is at most this big.
SUPPORT_RESIDENT_BYTES = 8 * 1024 * 1024


def _round_up(x, m):
    return (x + m - 1) // m * m


def _pad2d(a, rows, cols):
    r, c = a.shape
    if r == rows and c == cols:
        return a
    return jnp.pad(a, ((0, rows - r), (0, cols - c)))


# ---------------------------------------------------------------------------
# support = feat @ W  (hoisted, tiny: O(N * f_in * f_out))
# ---------------------------------------------------------------------------
def support_kernel(x_ref, w_ref, o_ref):
    o_ref[...] = jnp.dot(x_ref[...], w_ref[...],
                         preferred_element_type=jnp.float32)


def support_matmul(feat_p, w_p, *, tile):
    n_pad, f_in = feat_p.shape
    f_out = w_p.shape[1]
    return pl.pallas_call(
        support_kernel,
        out_shape=jax.ShapeDtypeStruct((n_pad, f_out), jnp.float32),
        grid_spec=pltpu.PrefetchScalarGridSpec(
            num_scalar_prefetch=0,
            grid=(n_pad // tile,),
            in_specs=[
                pl.BlockSpec((tile, f_in), lambda i: (i, 0)),
                pl.BlockSpec((f_in, f_out), lambda i: (0, 0)),
            ],
            out_specs=pl.BlockSpec((tile, f_out), lambda i: (i, 0)),
        ),
        compiler_params=pltpu.CompilerParams(
            dimension_semantics=("parallel",),
        ),
    )(feat_p, w_p)


# ---------------------------------------------------------------------------
# out = activation(adj @ support)  (the O(N^2) term, tiled over (row, k))
# ---------------------------------------------------------------------------
def gcn_layer_kernel(adj_ref, sup_ref, out_ref, *, activation, valid_cols,
                     support_resident, tk):
    """Row-block i, k-block k:  out[i] += adj[i, k] @ support[k].

    The output block (index (i, 0), f32) is the accumulator — it stays
    resident in VMEM across the k axis.  On the last k-block the activation
    (relu, or log_softmax masked to the first `valid_cols` columns) is
    applied in place.
    """
    k = pl.program_id(1)

    @pl.when(k == 0)
    def _():
        out_ref[...] = jnp.zeros_like(out_ref)

    if support_resident:
        start = pl.multiple_of(k * tk, tk)
        sup = sup_ref[pl.ds(start, tk), :]
    else:
        sup = sup_ref[...]

    out_ref[...] += jnp.dot(adj_ref[...], sup,
                            preferred_element_type=jnp.float32)

    @pl.when(k == pl.num_programs(1) - 1)
    def _():
        z = out_ref[...]
        if activation == "relu":
            out_ref[...] = jnp.maximum(z, 0.0).astype(out_ref.dtype)
        else:
            # masked log_softmax: padded class columns must not enter max/sum
            col = jax.lax.broadcasted_iota(jnp.int32, z.shape, 1)
            z = jnp.where(col < valid_cols, z, -1e30)
            z_max = jnp.max(z, axis=-1, keepdims=True)
            z_shift = z - z_max
            lse = jnp.log(jnp.sum(jnp.exp(z_shift), axis=-1, keepdims=True))
            out_ref[...] = (z_shift - lse).astype(out_ref.dtype)


def gcn_layer(adj_p, sup_p, *, activation, valid_cols, tile):
    n_pad = adj_p.shape[0]
    f_out = sup_p.shape[1]
    grid = (n_pad // tile, n_pad // tile)

    support_resident = (n_pad * f_out * 4) <= SUPPORT_RESIDENT_BYTES
    if support_resident:
        # Full support matrix resident in VMEM (constant block index -> one DMA).
        sup_spec = pl.BlockSpec((n_pad, f_out), lambda i, k: (0, 0))
    else:
        # Fallback for huge graphs: stream (tile, f_out) k-blocks.
        sup_spec = pl.BlockSpec((tile, f_out), lambda i, k: (k, 0))

    kernel = functools.partial(
        gcn_layer_kernel, activation=activation, valid_cols=valid_cols,
        support_resident=support_resident, tk=tile)

    flops = 2 * n_pad * n_pad * f_out
    sup_bytes = 4 * n_pad * f_out * (1 if support_resident else grid[0])
    bytes_accessed = 4 * n_pad * n_pad + sup_bytes + 4 * n_pad * f_out
    transcendentals = n_pad * f_out if activation == "log_softmax" else 0

    return pl.pallas_call(
        kernel,
        out_shape=jax.ShapeDtypeStruct((n_pad, f_out), jnp.float32),
        grid_spec=pltpu.PrefetchScalarGridSpec(
            num_scalar_prefetch=0,
            grid=grid,
            in_specs=[
                pl.BlockSpec((tile, tile), lambda i, k: (i, k)),  # adj block
                sup_spec,                                         # support
            ],
            out_specs=pl.BlockSpec((tile, f_out), lambda i, k: (i, 0)),
        ),
        compiler_params=pltpu.CompilerParams(
            dimension_semantics=("parallel", "arbitrary"),
        ),
        cost_estimate=pl.CostEstimate(
            flops=flops,
            transcendentals=transcendentals,
            bytes_accessed=bytes_accessed,
        ),
    )(adj_p, sup_p)


# ---------------------------------------------------------------------------
# Full 2-layer GCN forward
# ---------------------------------------------------------------------------
@functools.partial(jax.jit, static_argnames=("tile",))
def gcn_forward(x, adj, w1, w2, *, tile=None):
    n, in_c = x.shape
    hid_c = w1.shape[1]
    out_c = w2.shape[1]

    if tile is None:
        # 512 is near the HBM roofline and VMEM-safe on v5e/v6e/v7x; shrink
        # (to a multiple of 128) for tiny graphs so padding doesn't blow up.
        tile = min(512, _round_up(n, LANE))

    # Pad node count to the tile and feature dims to lane width (128) so every
    # block is (8,128)-aligned and stores are unmasked / lane-dense.
    n_pad = _round_up(n, tile)
    in_pad = _round_up(in_c, LANE)
    hid_pad = _round_up(hid_c, LANE)
    out_pad = _round_up(out_c, LANE)

    x_p = _pad2d(x, n_pad, in_pad)
    adj_p = _pad2d(adj, n_pad, n_pad)
    w1_p = _pad2d(w1, in_pad, hid_pad)
    w2_p = _pad2d(w2, hid_pad, out_pad)

    # layer 1: h = relu(adj @ (x @ W1))   (zero-padded rows/cols stay zero)
    s1 = support_matmul(x_p, w1_p, tile=tile)
    h = gcn_layer(adj_p, s1, activation="relu", valid_cols=hid_c, tile=tile)

    # F.dropout(training=False) == identity.

    # layer 2: log_softmax(adj @ (h @ W2)) over the true out_c classes only
    s2 = support_matmul(h, w2_p, tile=tile)
    z = gcn_layer(adj_p, s2, activation="log_softmax", valid_cols=out_c,
                  tile=tile)

    return z[:n, :out_c]


def init_gc_weight(key, in_channel, out_channel):
    """Matches GraphConvolution.reset_parameters: U(-stdv, stdv), stdv = 1/sqrt(out)."""
    stdv = 1.0 / math.sqrt(out_channel)
    return jax.random.uniform(
        key, (in_channel, out_channel), dtype=jnp.float32,
        minval=-stdv, maxval=stdv)


def reference_forward(x, adj, w1, w2):
    h = jnp.maximum(adj @ (x @ w1), 0.0)
    z = adj @ (h @ w2)
    return jax.nn.log_softmax(z, axis=1)


if __name__ == "__main__":
    key = jax.random.PRNGKey(0)
    k_x, k_adj, k_w1, k_w2 = jax.random.split(key, 4)

    # Synthetic graph: 1000 nodes (pads to 1024 -> (2,2) grid with 512 tiles,
    # exercising row padding, the k-reduction and the parallel row axis),
    # 16 input features, 32 hidden, 8 classes.
    num_nodes = 1000
    in_channel = 16
    hid_channel = 32
    out_channel = 8

    x = jax.random.normal(k_x, (num_nodes, in_channel), dtype=jnp.float32)

    # Symmetric dense adjacency (self loops + random edges), row-normalized.
    a = (jax.random.uniform(k_adj, (num_nodes, num_nodes)) < 0.05).astype(jnp.float32)
    a = jnp.maximum(a, a.T) + jnp.eye(num_nodes, dtype=jnp.float32)
    adj = a / jnp.sum(a, axis=1, keepdims=True)

    w1 = init_gc_weight(k_w1, in_channel, hid_channel)
    w2 = init_gc_weight(k_w2, hid_channel, out_channel)

    out = gcn_forward(x, adj, w1, w2)
    out = jax.block_until_ready(out)

    ref = reference_forward(x, adj, w1, w2)
    assert out.shape == (num_nodes, out_channel)
    assert jnp.allclose(out, ref, atol=1e-4, rtol=1e-4), "mismatch vs reference"

    print("KERNEL_OK")
</pallas_src>

<mosaic_0001>
module attributes {stable_mosaic.version = 11 : i64} {
  func.func @gcn_layer_kernel(%arg0: i32, %arg1: i32, %arg2: memref<512x512xf32, #tpu.memory_space<vmem>>, %arg3: memref<1024x128xf32, #tpu.memory_space<vmem>>, %arg4: memref<512x128xf32, #tpu.memory_space<vmem>>) attributes {dimension_semantics = [#tpu.dimension_semantics<parallel>, #tpu.dimension_semantics<arbitrary>], iteration_bounds = array<i64: 2, 2>, scalar_prefetch = 0 : i64, scratch_operands = 0 : i64, tpu.core_type = #tpu.core_type<tc>, window_params = [{transform_indices = @transform_0, window_bounds = array<i64: 512, 512>}, {pipeline_mode = #tpu.pipeline_mode<synchronous>, transform_indices = @transform_1, window_bounds = array<i64: 1024, 128>}, {transform_indices = @transform_2, window_bounds = array<i64: 512, 128>}]} {
    %c0_i32 = arith.constant 0 : i32
    %0 = arith.cmpi eq, %arg1, %c0_i32 : i32
    %1 = arith.extui %0 : i1 to i32
    %c0_i32_0 = arith.constant 0 : i32
    %2 = arith.cmpi ne, %1, %c0_i32_0 : i32
    scf.if %2 {
      %cst_8 = arith.constant 0.000000e+00 : f32
      %15 = vector.broadcast %cst_8 : f32 to vector<512x128xf32>
      %c0_9 = arith.constant 0 : index
      %c0_10 = arith.constant 0 : index
      %16 = vector.load %arg4[%c0_9, %c0_10] : memref<512x128xf32, #tpu.memory_space<vmem>>, vector<512x128xf32>
      tpu.vector_store %arg4[%c0_9, %c0_10], %15 {strides = array<i32>} : memref<512x128xf32, #tpu.memory_space<vmem>>, vector<512x128xf32>,
    } else {
    }
    %c512_i32 = arith.constant 512 : i32
    %3 = arith.muli %arg1, %c512_i32 : i32
    %4 = tpu.assume_multiple %3, 512 : i32
    %5 = arith.index_cast %4 : i32 to index
    %c0 = arith.constant 0 : index
    %6 = vector.load %arg3[%5, %c0] : memref<1024x128xf32, #tpu.memory_space<vmem>>, vector<512x128xf32>
    %c0_1 = arith.constant 0 : index
    %c0_2 = arith.constant 0 : index
    %7 = vector.load %arg4[%c0_1, %c0_2] : memref<512x128xf32, #tpu.memory_space<vmem>>, vector<512x128xf32>
    %c0_3 = arith.constant 0 : index
    %c0_4 = arith.constant 0 : index
    %8 = vector.load %arg2[%c0_3, %c0_4] : memref<512x512xf32, #tpu.memory_space<vmem>>, vector<512x512xf32>
    %cst = arith.constant dense<0.000000e+00> : vector<512x128xf32>
    %9 = tpu.matmul %8, %6, %cst {dimension_numbers = #tpu.dot_dimension_numbers<[1], [0], [0], [1], [0, 0, 1, 1], [], []>} : vector<512x512xf32>, vector<512x128xf32>, vector<512x128xf32> -> vector<512x128xf32>
    %10 = arith.addf %7, %9 : vector<512x128xf32>
    %c0_5 = arith.constant 0 : index
    %c0_6 = arith.constant 0 : index
    %11 = vector.load %arg4[%c0_5, %c0_6] : memref<512x128xf32, #tpu.memory_space<vmem>>, vector<512x128xf32>
    tpu.vector_store %arg4[%c0_5, %c0_6], %10 {strides = array<i32>} : memref<512x128xf32, #tpu.memory_space<vmem>>, vector<512x128xf32>,
    %c1_i32 = arith.constant 1 : i32
    %12 = arith.cmpi eq, %arg1, %c1_i32 : i32
    %13 = arith.extui %12 : i1 to i32
    %c0_i32_7 = arith.constant 0 : i32
    %14 = arith.cmpi ne, %13, %c0_i32_7 : i32
    scf.if %14 {
      %c0_8 = arith.constant 0 : index
      %c0_9 = arith.constant 0 : index
      %15 = vector.load %arg4[%c0_8, %c0_9] : memref<512x128xf32, #tpu.memory_space<vmem>>, vector<512x128xf32>
      %cst_10 = arith.constant 0.000000e+00 : f32
      %16 = vector.broadcast %cst_10 : f32 to vector<512x128xf32>
      %17 = arith.maximumf %15, %16 : vector<512x128xf32>
      %c0_11 = arith.constant 0 : index
      %c0_12 = arith.constant 0 : index
      %18 = vector.load %arg4[%c0_11, %c0_12] : memref<512x128xf32, #tpu.memory_space<vmem>>, vector<512x128xf32>
      tpu.vector_store %arg4[%c0_11, %c0_12], %17 {strides = array<i32>} : memref<512x128xf32, #tpu.memory_space<vmem>>, vector<512x128xf32>,
    } else {
    }
    return
  }
  func.func @transform_0(%arg0: i32, %arg1: i32) -> (i32, i32) {
    %c0_i32 = arith.constant 0 : i32
    return %arg0, %arg1 : i32, i32
  }
  func.func @transform_1(%arg0: i32, %arg1: i32) -> (i32, i32) {
    %c0_i32 = arith.constant 0 : i32
    %c0_i32_0 = arith.constant 0 : i32
    %c0_i32_1 = arith.constant 0 : i32
    return %c0_i32, %c0_i32_0 : i32, i32
  }
  func.func @transform_2(%arg0: i32, %arg1: i32) -> (i32, i32) {
    %c0_i32 = arith.constant 0 : i32
    %c0_i32_0 = arith.constant 0 : i32
    return %arg0, %c0_i32 : i32, i32
  }
}

module attributes {stable_mosaic.version = 11 : i64} {
  func.func @support_kernel(%arg0: i32, %arg1: memref<512x128xf32, #tpu.memory_space<vmem>>, %arg2: memref<128x128xf32, #tpu.memory_space<vmem>>, %arg3: memref<512x128xf32, #tpu.memory_space<vmem>>) attributes {dimension_semantics = [#tpu.dimension_semantics<parallel>], iteration_bounds = array<i64: 2>, scalar_prefetch = 0 : i64, scratch_operands = 0 : i64, tpu.core_type = #tpu.core_type<tc>, window_params = [{transform_indices = @transform_0, window_bounds = array<i64: 512, 128>}, {pipeline_mode = #tpu.pipeline_mode<synchronous>, transform_indices = @transform_1, window_bounds = array<i64: 128, 128>}, {transform_indices = @transform_2, window_bounds = array<i64: 512, 128>}]} {
    %c0 = arith.constant 0 : index
    %c0_0 = arith.constant 0 : index
    %0 = vector.load %arg1[%c0, %c0_0] : memref<512x128xf32, #tpu.memory_space<vmem>>, vector<512x128xf32>
    %c0_1 = arith.constant 0 : index
    %c0_2 = arith.constant 0 : index
    %1 = vector.load %arg2[%c0_1, %c0_2] : memref<128x128xf32, #tpu.memory_space<vmem>>, vector<128x128xf32>
    %cst = arith.constant dense<0.000000e+00> : vector<512x128xf32>
    %2 = tpu.matmul %0, %1, %cst {dimension_numbers = #tpu.dot_dimension_numbers<[1], [0], [0], [1], [0, 0, 1, 1], [], []>} : vector<512x128xf32>, vector<128x128xf32>, vector<512x128xf32> -> vector<512x128xf32>
    %c0_3 = arith.constant 0 : index
    %c0_4 = arith.constant 0 : index
    %3 = vector.load %arg3[%c0_3, %c0_4] : memref<512x128xf32, #tpu.memory_space<vmem>>, vector<512x128xf32>
    tpu.vector_store %arg3[%c0_3, %c0_4], %2 {strides = array<i32>} : memref<512x128xf32, #tpu.memory_space<vmem>>, vector<512x128xf32>,
    return
  }
  func.func @transform_0(%arg0: i32) -> (i32, i32) {
    %c0_i32 = arith.constant 0 : i32
    %c0_i32_0 = arith.constant 0 : i32
    return %arg0, %c0_i32 : i32, i32
  }
  func.func @transform_1(%arg0: i32) -> (i32, i32) {
    %c0_i32 = arith.constant 0 : i32
    %c0_i32_0 = arith.constant 0 : i32
    %c0_i32_1 = arith.constant 0 : i32
    return %c0_i32, %c0_i32_0 : i32, i32
  }
  func.func @transform_2(%arg0: i32) -> (i32, i32) {
    %c0_i32 = arith.constant 0 : i32
    %c0_i32_0 = arith.constant 0 : i32
    return %arg0, %c0_i32 : i32, i32
  }
}

module attributes {stable_mosaic.version = 11 : i64} {
  func.func @gcn_layer_kernel(%arg0: i32, %arg1: i32, %arg2: memref<512x512xf32, #tpu.memory_space<vmem>>, %arg3: memref<1024x128xf32, #tpu.memory_space<vmem>>, %arg4: memref<512x128xf32, #tpu.memory_space<vmem>>) attributes {dimension_semantics = [#tpu.dimension_semantics<parallel>, #tpu.dimension_semantics<arbitrary>], iteration_bounds = array<i64: 2, 2>, scalar_prefetch = 0 : i64, scratch_operands = 0 : i64, tpu.core_type = #tpu.core_type<tc>, window_params = [{transform_indices = @transform_0, window_bounds = array<i64: 512, 512>}, {pipeline_mode = #tpu.pipeline_mode<synchronous>, transform_indices = @transform_1, window_bounds = array<i64: 1024, 128>}, {transform_indices = @transform_2, window_bounds = array<i64: 512, 128>}]} {
    %c0_i32 = arith.constant 0 : i32
    %0 = arith.cmpi eq, %arg1, %c0_i32 : i32
    %1 = arith.extui %0 : i1 to i32
    %c0_i32_0 = arith.constant 0 : i32
    %2 = arith.cmpi ne, %1, %c0_i32_0 : i32
    scf.if %2 {
      %cst_8 = arith.constant 0.000000e+00 : f32
      %15 = vector.broadcast %cst_8 : f32 to vector<512x128xf32>
      %c0_9 = arith.constant 0 : index
      %c0_10 = arith.constant 0 : index
      %16 = vector.load %arg4[%c0_9, %c0_10] : memref<512x128xf32, #tpu.memory_space<vmem>>, vector<512x128xf32>
      tpu.vector_store %arg4[%c0_9, %c0_10], %15 {strides = array<i32>} : memref<512x128xf32, #tpu.memory_space<vmem>>, vector<512x128xf32>,
    } else {
    }
    %c512_i32 = arith.constant 512 : i32
    %3 = arith.muli %arg1, %c512_i32 : i32
    %4 = tpu.assume_multiple %3, 512 : i32
    %5 = arith.index_cast %4 : i32 to index
    %c0 = arith.constant 0 : index
    %6 = vector.load %arg3[%5, %c0] : memref<1024x128xf32, #tpu.memory_space<vmem>>, vector<512x128xf32>
    %c0_1 = arith.constant 0 : index
    %c0_2 = arith.constant 0 : index
    %7 = vector.load %arg4[%c0_1, %c0_2] : memref<512x128xf32, #tpu.memory_space<vmem>>, vector<512x128xf32>
    %c0_3 = arith.constant 0 : index
    %c0_4 = arith.constant 0 : index
    %8 = vector.load %arg2[%c0_3, %c0_4] : memref<512x512xf32, #tpu.memory_space<vmem>>, vector<512x512xf32>
    %cst = arith.constant dense<0.000000e+00> : vector<512x128xf32>
    %9 = tpu.matmul %8, %6, %cst {dimension_numbers = #tpu.dot_dimension_numbers<[1], [0], [0], [1], [0, 0, 1, 1], [], []>} : vector<512x512xf32>, vector<512x128xf32>, vector<512x128xf32> -> vector<512x128xf32>
    %10 = arith.addf %7, %9 : vector<512x128xf32>
    %c0_5 = arith.constant 0 : index
    %c0_6 = arith.constant 0 : index
    %11 = vector.load %arg4[%c0_5, %c0_6] : memref<512x128xf32, #tpu.memory_space<vmem>>, vector<512x128xf32>
    tpu.vector_store %arg4[%c0_5, %c0_6], %10 {strides = array<i32>} : memref<512x128xf32, #tpu.memory_space<vmem>>, vector<512x128xf32>,
    %c1_i32 = arith.constant 1 : i32
    %12 = arith.cmpi eq, %arg1, %c1_i32 : i32
    %13 = arith.extui %12 : i1 to i32
    %c0_i32_7 = arith.constant 0 : i32
    %14 = arith.cmpi ne, %13, %c0_i32_7 : i32
    scf.if %14 {
      %c0_8 = arith.constant 0 : index
      %c0_9 = arith.constant 0 : index
      %15 = vector.load %arg4[%c0_8, %c0_9] : memref<512x128xf32, #tpu.memory_space<vmem>>, vector<512x128xf32>
      %16 = tpu.iota {dimensions = array<i32: 1>} : vector<512x128xi32>
      %c8_i32 = arith.constant 8 : i32
      %17 = vector.broadcast %c8_i32 : i32 to vector<512x128xi32>
      %18 = arith.cmpi slt, %16, %17 : vector<512x128xi32>
      %cst_10 = arith.constant -1.000000e+30 : f32
      %19 = vector.broadcast %cst_10 : f32 to vector<512x128xf32>
      %20 = arith.select %18, %15, %19 : vector<512x128xi1>, vector<512x128xf32>
      %cst_11 = arith.constant dense<0xFF800000> : vector<512xf32>
      %21 = vector.multi_reduction <maximumf>, %20, %cst_11 [1] : vector<512x128xf32> to vector<512xf32>
      %22 = vector.shape_cast %21 : vector<512xf32> to vector<512x1xf32>
      %23 = vector.broadcast %22 : vector<512x1xf32> to vector<512x128xf32>
      %24 = arith.subf %20, %23 : vector<512x128xf32>
      %25 = math.exp %24 : vector<512x128xf32>
      %cst_12 = arith.constant dense<0.000000e+00> : vector<512xf32>
      %26 = vector.multi_reduction <add>, %25, %cst_12 [1] : vector<512x128xf32> to vector<512xf32>
      %27 = vector.shape_cast %26 : vector<512xf32> to vector<512x1xf32>
      %28 = math.log %27 : vector<512x1xf32>
      %29 = vector.broadcast %28 : vector<512x1xf32> to vector<512x128xf32>
      %30 = arith.subf %24, %29 : vector<512x128xf32>
      %c0_13 = arith.constant 0 : index
      %c0_14 = arith.constant 0 : index
      %31 = vector.load %arg4[%c0_13, %c0_14] : memref<512x128xf32, #tpu.memory_space<vmem>>, vector<512x128xf32>
      tpu.vector_store %arg4[%c0_13, %c0_14], %30 {strides = array<i32>} : memref<512x128xf32, #tpu.memory_space<vmem>>, vector<512x128xf32>,
    } else {
    }
    return
  }
  func.func @transform_0(%arg0: i32, %arg1: i32) -> (i32, i32) {
    %c0_i32 = arith.constant 0 : i32
    return %arg0, %arg1 : i32, i32
  }
  func.func @transform_1(%arg0: i32, %arg1: i32) -> (i32, i32) {
    %c0_i32 = arith.constant 0 : i32
    %c0_i32_0 = arith.constant 0 : i32
    %c0_i32_1 = arith.constant 0 : i32
    return %c0_i32, %c0_i32_0 : i32, i32
  }
  func.func @transform_2(%arg0: i32, %arg1: i32) -> (i32, i32) {
    %c0_i32 = arith.constant 0 : i32
    %c0_i32_0 = arith.constant 0 : i32
    return %arg0, %c0_i32 : i32, i32
  }
}

</mosaic_0001>

<llo_original>
// kernel: gcn_forward.4
$region0: #{gcn_forward.4}
  #allocation0 [shape = 'u32[]', space=smem, size = 0x4, offset = 0x4, fixed_abs, tag = 'smem constant byte address 0x4 - core index']
  #allocation1 [shape = 'u32[144,128]{1,0:T(1,128)}', space=vmem, size = 0x12000, scoped, tag = 'internal scratch']
  %s0 = inlined_call_operand.vmem [shape: f32[1024,128], index: 0, kind: input, shape index: {}]
  %s1 = inlined_call_operand.vmem [shape: f32[128,128], index: 1, kind: input, shape index: {}]
  %s2 = inlined_call_operand.vmem [shape: f32[1024,128], index: 2, kind: output, shape index: {}]
  %s3 = sld [smem:[#allocation0]]
  $region41: #{gcn_forward.4} parent=0
    _
  %s5 = ssub.s32 1, %s3
  %s6 = scalar_select 0, %s5, %s3
  loop: start=0, step=1, limit=4
  $region2: #{gcn_forward.4} parent=0 // loop_pre_header
    _
  $region3: #{gcn_forward.4} parent=0 // loop_header
    %s8 = sphi 0, %s12
    %p9 = scmp.ge.s32.totalorder %s8, 4
    %s18 = sphi 0, %s20
    %s21 = sphi 0, %s18
    %s22 = sphi 0, %s21
    %s38 = sphi 0, %s22
    %s42 = sphi 0, %s42
    %s44 = sphi 0, %s42
    %s45 = sphi 0, %s44
    %s59 = sphi 0, %s45
    %s65 = sphi 0, %s67
    %s68 = sphi 0, %s65
    %s69 = sphi 0, %s68
    %s85 = sphi 0, %s69
  $region4: #{gcn_forward.4} parent=0 // loop_header_branch
    %11 = sbr.rel (%p9) target = $region8
  $region5: #{gcn_forward.4} parent=0 // loop_body
    %s13 = ssub.s32 %s8, 1
    %s14 = ssub.s32 %s8, 2
    %s15 = sadd.s32 %s8, 1
    %s16 = ssub.s32 %s8, %s15
    %p17 = scmp.eq.s32.totalorder %s16, 0
    %s19 = sadd.s32 %s18, 1
    %s20 = scalar_select %p17, %s18, %s19
    %p23 = pneg %p17
    %p24 = scmp.eq.s32.totalorder %s8, 1
    %p25 = por %p23, %p24
    %p26 = scmp.ne.s32.totalorder %s18, %s21
    %p27 = scmp.eq.s32.totalorder %s8, 0
    %p28 = por %p26, %p27
    %p29 = scmp.ne.s32.totalorder %s18, %s21
    %p30 = scmp.eq.s32.totalorder %s13, 1
    %p31 = por %p29, %p30
    %p32 = scmp.ne.s32.totalorder %s21, %s22
    %p33 = scmp.eq.s32.totalorder %s13, 0
    %p34 = por %p32, %p33
    %p35 = scmp.ne.s32.totalorder %s21, %s22
    %p36 = scmp.eq.s32.totalorder %s14, 1
    %p37 = por %p35, %p36
    %p39 = scmp.ne.s32.totalorder %s22, %s38
    %p40 = scmp.eq.s32.totalorder %s14, 0
    %p41 = por %p39, %p40
    %s43 = sadd.s32 %s42, 1
    %p46 = scmp.eq.s32.totalorder %s8, 1
    %p47 = scmp.ne.s32.totalorder %s42, %s44
    %p48 = scmp.eq.s32.totalorder %s8, 0
    %p49 = por %p47, %p48
    %p50 = scmp.ne.s32.totalorder %s42, %s44
    %p51 = scmp.eq.s32.totalorder %s13, 1
    %p52 = por %p50, %p51
    %p53 = scmp.ne.s32.totalorder %s44, %s45
    %p54 = scmp.eq.s32.totalorder %s13, 0
    %p55 = por %p53, %p54
    %p56 = scmp.ne.s32.totalorder %s44, %s45
    %p57 = scmp.eq.s32.totalorder %s14, 1
    %p58 = por %p56, %p57
    %p60 = scmp.ne.s32.totalorder %s45, %s59
    %p61 = scmp.eq.s32.totalorder %s14, 0
    %p62 = por %p60, %p61
    %s63 = ssub.s32 %s8, %s15
    %p64 = scmp.eq.s32.totalorder %s63, 0
    %s66 = sadd.s32 %s65, 1
    %s67 = scalar_select %p64, %s65, %s66
    %p70 = pneg %p64
    %p71 = scmp.eq.s32.totalorder %s8, 1
    %p72 = por %p70, %p71
    %p73 = scmp.ne.s32.totalorder %s65, %s68
    %p74 = scmp.eq.s32.totalorder %s8, 0
    %p75 = por %p73, %p74
    %p76 = scmp.ne.s32.totalorder %s65, %s68
    %p77 = scmp.eq.s32.totalorder %s13, 1
    %p78 = por %p76, %p77
    %p79 = scmp.ne.s32.totalorder %s68, %s69
    %p80 = scmp.eq.s32.totalorder %s13, 0
    %p81 = por %p79, %p80
    %p82 = scmp.ne.s32.totalorder %s68, %s69
    %p83 = scmp.eq.s32.totalorder %s14, 1
    %p84 = por %p82, %p83
    %p86 = scmp.ne.s32.totalorder %s69, %s85
    %p87 = scmp.eq.s32.totalorder %s14, 0
    %p88 = por %p86, %p87
    %p89 = scmp.le.s32.totalorder 1, %s8
    %p90 = scmp.lt.s32.totalorder %s8, 3
    %p91 = pnand %p89, %p90
    %p92 = pneg %p91
    // Predicated region
    $region9: #{gcn_forward.4} parent=5 // pred_check
      _
    $region10: #{gcn_forward.4} parent=5 // pred_check_branch
      %94 = sbr.rel (%p91) target = $region12
    $region11: #{gcn_forward.4} parent=5 // pred_region
      %s95 = ssub.s32 %s8, 1
      // Predicated region
      $region13: #{gcn_forward.4} parent=11 // pred_check
        %p96 = pneg %p55
      $region14: #{gcn_forward.4} parent=11 // pred_check_branch
        %98 = sbr.rel (%p96) target = $region16
      $region15: #{gcn_forward.4} parent=11 // pred_region
        _
      $region16: #{gcn_forward.4} parent=11 // pred_fallthru
        _
    $region12: #{gcn_forward.4} parent=5 // pred_fallthru
      _
    %p99 = scmp.lt.s32.totalorder %s8, 2
    // Predicated region
    $region17: #{gcn_forward.4} parent=5 // pred_check
      %p100 = pneg %p99
    $region18: #{gcn_forward.4} parent=5 // pred_check_branch
      %102 = sbr.rel (%p100) target = $region20
    $region19: #{gcn_forward.4} parent=5 // pred_region
      // Predicated region
      $region21: #{gcn_forward.4} parent=19 // pred_check
        %p103 = pneg %p28
      $region22: #{gcn_forward.4} parent=19 // pred_check_branch
        %105 = sbr.rel (%p103) target = $region24
      $region23: #{gcn_forward.4} parent=19 // pred_region
        %s106 = smul.u32 64, %s8
        %p107 = scmp.lt.s32.totalorder %s106, 127
        %s108 = scalar_select %p107, %s106, 127
        %s109 = smul.addr %s108, 8
        %s110 = scalar_lea.vmem %s0, %s109
        %s111 = smul.u32 64, %s8
      $region24: #{gcn_forward.4} parent=19 // pred_fallthru
        _
    $region20: #{gcn_forward.4} parent=5 // pred_fallthru
      _
    %p112 = scmp.le.s32.totalorder 1, %s8
    %p113 = scmp.lt.s32.totalorder %s8, 3
    %p114 = pnand %p112, %p113
    %p115 = pneg %p114
    // Predicated region
    $region25: #{gcn_forward.4} parent=5 // pred_check
      _
    $region26: #{gcn_forward.4} parent=5 // pred_check_branch
      %117 = sbr.rel (%p114) target = $region28
    $region27: #{gcn_forward.4} parent=5 // pred_region
      %s118 = ssub.s32 %s8, 1
      %s119 = smul.u32 64, %s13
      %p120 = scmp.lt.s32.totalorder %s119, 127
      %s121 = scalar_select %p120, %s119, 127
      %s122 = smul.addr %s121, 8
      %s123 = scalar_lea.vmem %s0, %s122
      %p124 = pneg %p34
      %p125 = pneg %p31
      %p126 = pneg %p55
      %p127 = pneg %p52
      %p128 = pneg %p81
      %p129 = pneg %p78
      %s130 = smul.u32 64, %s13
      %p131 = scmp.lt.s32.totalorder %s130, 127
      %s132 = scalar_select %p131, %s130, 127
      %s133 = smul.addr %s132, 8
      %s134 = scalar_lea.vmem %s2, %s133
      %s135 = smul.u32 64, %s13
      %p136 = scmp.lt.s32.totalorder %s135, 127
      %s137 = scalar_select %p136, %s135, 127
      %s138 = smul.addr %s137, 8
      %s139 = scalar_lea.vmem %s0, %s138
      %s140 = smul.u32 64, %s13
      %s141 = smul.u32 64, %s13
      %p142 = scmp.lt.s32.totalorder %s141, 127
      %s143 = scalar_select %p142, %s141, 127
      %s144 = smul.addr %s143, 8
      %s145 = scalar_lea.vmem %s2, %s144
      %s146 = smul.u32 64, %s13
      %v147 = vld [vmem:[%s139] sm:$0xff]
      %v148 = vld [vmem:[%s139 + $0x8] sm:$0xff]
      %v149 = vld [vmem:[%s139 + $0x10] sm:$0xff]
      %v150 = vld [vmem:[%s139 + $0x18] sm:$0xff]
      %v151 = vld [vmem:[%s139 + $0x20] sm:$0xff]
      %v152 = vld [vmem:[%s139 + $0x28] sm:$0xff]
      %v153 = vld [vmem:[%s139 + $0x30] sm:$0xff]
      %v154 = vld [vmem:[%s139 + $0x38] sm:$0xff]
      %v155 = vld [vmem:[%s139 + $0x40] sm:$0xff]
      %v156 = vld [vmem:[%s139 + $0x48] sm:$0xff]
      %v157 = vld [vmem:[%s139 + $0x50] sm:$0xff]
      %v158 = vld [vmem:[%s139 + $0x58] sm:$0xff]
      %v159 = vld [vmem:[%s139 + $0x60] sm:$0xff]
      %v160 = vld [vmem:[%s139 + $0x68] sm:$0xff]
      %v161 = vld [vmem:[%s139 + $0x70] sm:$0xff]
      %v162 = vld [vmem:[%s139 + $0x78] sm:$0xff]
      %v163 = vld [vmem:[%s139 + $0x80] sm:$0xff]
      %v164 = vld [vmem:[%s139 + $0x88] sm:$0xff]
      %v165 = vld [vmem:[%s139 + $0x90] sm:$0xff]
      %v166 = vld [vmem:[%s139 + $0x98] sm:$0xff]
      %v167 = vld [vmem:[%s139 + $0xa0] sm:$0xff]
      %v168 = vld [vmem:[%s139 + $0xa8] sm:$0xff]
      %v169 = vld [vmem:[%s139 + $0xb0] sm:$0xff]
      %v170 = vld [vmem:[%s139 + $0xb8] sm:$0xff]
      %v171 = vld [vmem:[%s139 + $0xc0] sm:$0xff]
      %v172 = vld [vmem:[%s139 + $0xc8] sm:$0xff]
      %v173 = vld [vmem:[%s139 + $0xd0] sm:$0xff]
      %v174 = vld [vmem:[%s139 + $0xd8] sm:$0xff]
      %v175 = vld [vmem:[%s139 + $0xe0] sm:$0xff]
      %v176 = vld [vmem:[%s139 + $0xe8] sm:$0xff]
      %v177 = vld [vmem:[%s139 + $0xf0] sm:$0xff]
      %v178 = vld [vmem:[%s139 + $0xf8] sm:$0xff]
      %v179 = vld [vmem:[%s139 + $0x100] sm:$0xff]
      %v180 = vld [vmem:[%s139 + $0x108] sm:$0xff]
      %v181 = vld [vmem:[%s139 + $0x110] sm:$0xff]
      %v182 = vld [vmem:[%s139 + $0x118] sm:$0xff]
      %v183 = vld [vmem:[%s139 + $0x120] sm:$0xff]
      %v184 = vld [vmem:[%s139 + $0x128] sm:$0xff]
      %v185 = vld [vmem:[%s139 + $0x130] sm:$0xff]
      %v186 = vld [vmem:[%s139 + $0x138] sm:$0xff]
      %v187 = vld [vmem:[%s139 + $0x140] sm:$0xff]
      %v188 = vld [vmem:[%s139 + $0x148] sm:$0xff]
      %v189 = vld [vmem:[%s139 + $0x150] sm:$0xff]
      %v190 = vld [vmem:[%s139 + $0x158] sm:$0xff]
      %v191 = vld [vmem:[%s139 + $0x160] sm:$0xff]
      %v192 = vld [vmem:[%s139 + $0x168] sm:$0xff]
      %v193 = vld [vmem:[%s139 + $0x170] sm:$0xff]
      %v194 = vld [vmem:[%s139 + $0x178] sm:$0xff]
      %v195 = vld [vmem:[%s139 + $0x180] sm:$0xff]
      %v196 = vld [vmem:[%s139 + $0x188] sm:$0xff]
      %v197 = vld [vmem:[%s139 + $0x190] sm:$0xff]
      %v198 = vld [vmem:[%s139 + $0x198] sm:$0xff]
      %v199 = vld [vmem:[%s139 + $0x1a0] sm:$0xff]
      %v200 = vld [vmem:[%s139 + $0x1a8] sm:$0xff]
      %v201 = vld [vmem:[%s139 + $0x1b0] sm:$0xff]
      %v202 = vld [vmem:[%s139 + $0x1b8] sm:$0xff]
      %v203 = vld [vmem:[%s139 + $0x1c0] sm:$0xff]
      %v204 = vld [vmem:[%s139 + $0x1c8] sm:$0xff]
      %v205 = vld [vmem:[%s139 + $0x1d0] sm:$0xff]
      %v206 = vld [vmem:[%s139 + $0x1d8] sm:$0xff]
      %v207 = vld [vmem:[%s139 + $0x1e0] sm:$0xff]
      %v208 = vld [vmem:[%s139 + $0x1e8] sm:$0xff]
      %v209 = vld [vmem:[%s139 + $0x1f0] sm:$0xff]
      %v210 = vld [vmem:[%s139 + $0x1f8] sm:$0xff]
      %v211 = vld [vmem:[%s1] sm:$0xff]
      %v212 = vld [vmem:[%s1 + $0x8] sm:$0xff]
      %v213 = vld [vmem:[%s1 + $0x10] sm:$0xff]
      %v214 = vld [vmem:[%s1 + $0x18] sm:$0xff]
      %v215 = vld [vmem:[%s1 + $0x20] sm:$0xff]
      %v216 = vld [vmem:[%s1 + $0x28] sm:$0xff]
      %v217 = vld [vmem:[%s1 + $0x30] sm:$0xff]
      %v218 = vld [vmem:[%s1 + $0x38] sm:$0xff]
      %v219 = vld [vmem:[%s1 + $0x40] sm:$0xff]
      %v220 = vld [vmem:[%s1 + $0x48] sm:$0xff]
      %v221 = vld [vmem:[%s1 + $0x50] sm:$0xff]
      %v222 = vld [vmem:[%s1 + $0x58] sm:$0xff]
      %v223 = vld [vmem:[%s1 + $0x60] sm:$0xff]
      %v224 = vld [vmem:[%s1 + $0x68] sm:$0xff]
      %v225 = vld [vmem:[%s1 + $0x70] sm:$0xff]
      %v226 = vld [vmem:[%s1 + $0x78] sm:$0xff]
      %227 = vmatprep.subr.mxu0 0.0
      %228 = vmatpush1.msra.mxu0 %v211
      %229 = vmatprep.subr.mxu0 0.0
      %230 = vmatpush1.msra.mxu0 %v212
      %231 = vmatprep.subr.mxu0 0.0
      %232 = vmatpush1.msra.mxu0 %v213
      %233 = vmatprep.subr.mxu0 0.0
      %234 = vmatpush1.msra.mxu0 %v214
      %235 = vmatprep.subr.mxu0 0.0
      %236 = vmatpush1.msra.mxu0 %v215
      %237 = vmatprep.subr.mxu0 0.0
      %238 = vmatpush1.msra.mxu0 %v216
      %239 = vmatprep.subr.mxu0 0.0
      %240 = vmatpush1.msra.mxu0 %v217
      %241 = vmatprep.subr.mxu0 0.0
      %242 = vmatpush1.msra.mxu0 %v218
      %243 = vmatprep.subr.mxu0 0.0
      %244 = vmatpush1.msra.mxu0 %v219
      %245 = vmatprep.subr.mxu0 0.0
      %246 = vmatpush1.msra.mxu0 %v220
      %247 = vmatprep.subr.mxu0 0.0
      %248 = vmatpush1.msra.mxu0 %v221
      %249 = vmatprep.subr.mxu0 0.0
      %250 = vmatpush1.msra.mxu0 %v222
      %251 = vmatprep.subr.mxu0 0.0
      %252 = vmatpush1.msra.mxu0 %v223
      %253 = vmatprep.subr.mxu0 0.0
      %254 = vmatpush1.msra.mxu0 %v224
      %255 = vmatprep.subr.mxu0 0.0
      %256 = vmatpush1.msra.mxu0 %v225
      %257 = vmatprep.subr.mxu0 0.0
      %258 = vmatpush1.msra.mxu0 %v226
      %259 = vmatprep.subr.mxu0 0.0
      %260 = vmatpush1.msra.mxu0 0.0
      %261 = vmatprep.subr.mxu0 0.0
      %262 = vmatpush1.msra.mxu0 0.0
      %263 = vmatprep.subr.mxu0 0.0
      %264 = vmatpush1.msra.mxu0 0.0
      %265 = vmatprep.subr.mxu0 0.0
      %266 = vmatpush1.msra.mxu0 0.0
      %267 = vmatprep.subr.mxu0 0.0
      %268 = vmatpush1.msra.mxu0 0.0
      %269 = vmatprep.subr.mxu0 0.0
      %270 = vmatpush1.msra.mxu0 0.0
      %271 = vmatprep.subr.mxu0 0.0
      %272 = vmatpush1.msra.mxu0 0.0
      %273 = vmatprep.subr.mxu0 0.0
      %274 = vmatpush1.msra.mxu0 0.0
      %275 = vmatprep.subr.mxu0 0.0
      %276 = vmatpush1.msra.mxu0 0.0
      %277 = vmatprep.subr.mxu0 0.0
      %278 = vmatpush1.msra.mxu0 0.0
      %279 = vmatprep.subr.mxu0 0.0
      %280 = vmatpush1.msra.mxu0 0.0
      %281 = vmatprep.subr.mxu0 0.0
      %282 = vmatpush1.msra.mxu0 0.0
      %283 = vmatprep.subr.mxu0 0.0
      %284 = vmatpush1.msra.mxu0 0.0
      %285 = vmatprep.subr.mxu0 0.0
      %286 = vmatpush1.msra.mxu0 0.0
      %287 = vmatprep.subr.mxu0 0.0
      %288 = vmatpush1.msra.mxu0 0.0
      %289 = vmatprep.subr.mxu0 0.0
      %290 = vmatpush1.msra.mxu0 0.0
      %291 = vmatprep.mubr.f32.mxu0 0.0
      %292 = vmatmul.mubr.f32.gmra.mrb[0].mxu0 %v147
      %v293 = vpop.f32.mrb[0].mxu0
      %v294 = vadd.f32 0.0, %v293
      %v295 = vpop.f32.mrb[0].mxu0
      %296 = vmatprep.mubr.f32.mxu0 0.0
      %297 = vmatmul.mubr.f32.gmra.mrb[0].mxu0 %v148
      %v298 = vpop.f32.mrb[0].mxu0
      %v299 = vadd.f32 0.0, %v298
      %v300 = vpop.f32.mrb[0].mxu0
      %301 = vmatprep.mubr.f32.mxu0 0.0
      %302 = vmatmul.mubr.f32.gmra.mrb[0].mxu0 %v149
      %v303 = vpop.f32.mrb[0].mxu0
      %v304 = vadd.f32 0.0, %v303
      %v305 = vpop.f32.mrb[0].mxu0
      %306 = vmatprep.mubr.f32.mxu0 0.0
      %307 = vmatmul.mubr.f32.gmra.mrb[0].mxu0 %v150
      %v308 = vpop.f32.mrb[0].mxu0
      %v309 = vadd.f32 0.0, %v308
      %v310 = vpop.f32.mrb[0].mxu0
      %311 = vmatprep.mubr.f32.mxu0 0.0
      %312 = vmatmul.mubr.f32.gmra.mrb[0].mxu0 %v151
      %v313 = vpop.f32.mrb[0].mxu0
      %v314 = vadd.f32 0.0, %v313
      %v315 = vpop.f32.mrb[0].mxu0
      %316 = vmatprep.mubr.f32.mxu0 0.0
      %317 = vmatmul.mubr.f32.gmra.mrb[0].mxu0 %v152
      %v318 = vpop.f32.mrb[0].mxu0
      %v319 = vadd.f32 0.0, %v318
      %v320 = vpop.f32.mrb[0].mxu0
      %321 = vmatprep.mubr.f32.mxu0 0.0
      %322 = vmatmul.mubr.f32.gmra.mrb[0].mxu0 %v153
      %v323 = vpop.f32.mrb[0].mxu0
      %v324 = vadd.f32 0.0, %v323
      %v325 = vpop.f32.mrb[0].mxu0
      %326 = vmatprep.mubr.f32.mxu0 0.0
      %327 = vmatmul.mubr.f32.gmra.mrb[0].mxu0 %v154
      %v328 = vpop.f32.mrb[0].mxu0
      %v329 = vadd.f32 0.0, %v328
      %v330 = vpop.f32.mrb[0].mxu0
      %331 = vmatprep.mubr.f32.mxu0 0.0
      %332 = vmatmul.mubr.f32.gmra.mrb[0].mxu0 %v155
      %v333 = vpop.f32.mrb[0].mxu0
      %v334 = vadd.f32 0.0, %v333
      %v335 = vpop.f32.mrb[0].mxu0
      %336 = vmatprep.mubr.f32.mxu0 0.0
      %337 = vmatmul.mubr.f32.gmra.mrb[0].mxu0 %v156
      %v338 = vpop.f32.mrb[0].mxu0
      %v339 = vadd.f32 0.0, %v338
      %v340 = vpop.f32.mrb[0].mxu0
      %341 = vmatprep.mubr.f32.mxu0 0.0
      %342 = vmatmul.mubr.f32.gmra.mrb[0].mxu0 %v157
      %v343 = vpop.f32.mrb[0].mxu0
      %v344 = vadd.f32 0.0, %v343
      %v345 = vpop.f32.mrb[0].mxu0
      %346 = vmatprep.mubr.f32.mxu0 0.0
      %347 = vmatmul.mubr.f32.gmra.mrb[0].mxu0 %v158
      %v348 = vpop.f32.mrb[0].mxu0
      %v349 = vadd.f32 0.0, %v348
      %v350 = vpop.f32.mrb[0].mxu0
      %351 = vmatprep.mubr.f32.mxu0 0.0
      %352 = vmatmul.mubr.f32.gmra.mrb[0].mxu0 %v159
      %v353 = vpop.f32.mrb[0].mxu0
      %v354 = vadd.f32 0.0, %v353
      %v355 = vpop.f32.mrb[0].mxu0
      %356 = vmatprep.mubr.f32.mxu0 0.0
      %357 = vmatmul.mubr.f32.gmra.mrb[0].mxu0 %v160
      %v358 = vpop.f32.mrb[0].mxu0
      %v359 = vadd.f32 0.0, %v358
      %v360 = vpop.f32.mrb[0].mxu0
      %361 = vmatprep.mubr.f32.mxu0 0.0
      %362 = vmatmul.mubr.f32.gmra.mrb[0].mxu0 %v161
      %v363 = vpop.f32.mrb[0].mxu0
      %v364 = vadd.f32 0.0, %v363
      %v365 = vpop.f32.mrb[0].mxu0
      %366 = vmatprep.mubr.f32.mxu0 0.0
      %367 = vmatmul.mubr.f32.gmra.mrb[0].mxu0 %v162
      %v368 = vpop.f32.mrb[0].mxu0
      %v369 = vadd.f32 0.0, %v368
      %v370 = vpop.f32.mrb[0].mxu0
      %371 = vmatprep.mubr.f32.mxu0 0.0
      %372 = vmatmul.mubr.f32.gmra.mrb[0].mxu0 %v163
      %v373 = vpop.f32.mrb[0].mxu0
      %v374 = vadd.f32 0.0, %v373
      %v375 = vpop.f32.mrb[0].mxu0
      %376 = vmatprep.mubr.f32.mxu0 0.0
      %377 = vmatmul.mubr.f32.gmra.mrb[0].mxu0 %v164
      %v378 = vpop.f32.mrb[0].mxu0
      %v379 = vadd.f32 0.0, %v378
      %v380 = vpop.f32.mrb[0].mxu0
      %381 = vmatprep.mubr.f32.mxu0 0.0
      %382 = vmatmul.mubr.f32.gmra.mrb[0].mxu0 %v165
      %v383 = vpop.f32.mrb[0].mxu0
      %v384 = vadd.f32 0.0, %v383
      %v385 = vpop.f32.mrb[0].mxu0
      %386 = vmatprep.mubr.f32.mxu0 0.0
      %387 = vmatmul.mubr.f32.gmra.mrb[0].mxu0 %v166
      %v388 = vpop.f32.mrb[0].mxu0
      %v389 = vadd.f32 0.0, %v388
      %v390 = vpop.f32.mrb[0].mxu0
      %391 = vmatprep.mubr.f32.mxu0 0.0
      %392 = vmatmul.mubr.f32.gmra.mrb[0].mxu0 %v167
      %v393 = vpop.f32.mrb[0].mxu0
      %v394 = vadd.f32 0.0, %v393
      %v395 = vpop.f32.mrb[0].mxu0
      %396 = vmatprep.mubr.f32.mxu0 0.0
      %397 = vmatmul.mubr.f32.gmra.mrb[0].mxu0 %v168
      %v398 = vpop.f32.mrb[0].mxu0
      %v399 = vadd.f32 0.0, %v398
      %v400 = vpop.f32.mrb[0].mxu0
      %401 = vmatprep.mubr.f32.mxu0 0.0
      %402 = vmatmul.mubr.f32.gmra.mrb[0].mxu0 %v169
      %v403 = vpop.f32.mrb[0].mxu0
      %v404 = vadd.f32 0.0, %v403
      %v405 = vpop.f32.mrb[0].mxu0
      %406 = vmatprep.mubr.f32.mxu0 0.0
      %407 = vmatmul.mubr.f32.gmra.mrb[0].mxu0 %v170
      %v408 = vpop.f32.mrb[0].mxu0
      %v409 = vadd.f32 0.0, %v408
      %v410 = vpop.f32.mrb[0].mxu0
      %411 = vmatprep.mubr.f32.mxu0 0.0
      %412 = vmatmul.mubr.f32.gmra.mrb[0].mxu0 %v171
      %v413 = vpop.f32.mrb[0].mxu0
      %v414 = vadd.f32 0.0, %v413
      %v415 = vpop.f32.mrb[0].mxu0
      %416 = vmatprep.mubr.f32.mxu0 0.0
      %417 = vmatmul.mubr.f32.gmra.mrb[0].mxu0 %v172
      %v418 = vpop.f32.mrb[0].mxu0
      %v419 = vadd.f32 0.0, %v418
      %v420 = vpop.f32.mrb[0].mxu0
      %421 = vmatprep.mubr.f32.mxu0 0.0
      %422 = vmatmul.mubr.f32.gmra.mrb[0].mxu0 %v173
      %v423 = vpop.f32.mrb[0].mxu0
      %v424 = vadd.f32 0.0, %v423
      %v425 = vpop.f32.mrb[0].mxu0
      %426 = vmatprep.mubr.f32.mxu0 0.0
      %427 = vmatmul.mubr.f32.gmra.mrb[0].mxu0 %v174
      %v428 = vpop.f32.mrb[0].mxu0
      %v429 = vadd.f32 0.0, %v428
      %v430 = vpop.f32.mrb[0].mxu0
      %431 = vmatprep.mubr.f32.mxu0 0.0
      %432 = vmatmul.mubr.f32.gmra.mrb[0].mxu0 %v175
      %v433 = vpop.f32.mrb[0].mxu0
      %v434 = vadd.f32 0.0, %v433
      %v435 = vpop.f32.mrb[0].mxu0
      %436 = vmatprep.mubr.f32.mxu0 0.0
      %437 = vmatmul.mubr.f32.gmra.mrb[0].mxu0 %v176
      %v438 = vpop.f32.mrb[0].mxu0
      %v439 = vadd.f32 0.0, %v438
      %v440 = vpop.f32.mrb[0].mxu0
      %441 = vmatprep.mubr.f32.mxu0 0.0
      %442 = vmatmul.mubr.f32.gmra.mrb[0].mxu0 %v177
      %v443 = vpop.f32.mrb[0].mxu0
      %v444 = vadd.f32 0.0, %v443
      %v445 = vpop.f32.mrb[0].mxu0
      %446 = vmatprep.mubr.f32.mxu0 0.0
      %447 = vmatmul.mubr.f32.gmra.mrb[0].mxu0 %v178
      %v448 = vpop.f32.mrb[0].mxu0
      %v449 = vadd.f32 0.0, %v448
      %v450 = vpop.f32.mrb[0].mxu0
      %451 = vmatprep.mubr.f32.mxu0 0.0
      %452 = vmatmul.mubr.f32.gmra.mrb[0].mxu0 %v179
      %v453 = vpop.f32.mrb[0].mxu0
      %v454 = vadd.f32 0.0, %v453
      %v455 = vpop.f32.mrb[0].mxu0
      %456 = vmatprep.mubr.f32.mxu0 0.0
      %457 = vmatmul.mubr.f32.gmra.mrb[0].mxu0 %v180
      %v458 = vpop.f32.mrb[0].mxu0
      %v459 = vadd.f32 0.0, %v458
      %v460 = vpop.f32.mrb[0].mxu0
      %461 = vmatprep.mubr.f32.mxu0 0.0
      %462 = vmatmul.mubr.f32.gmra.mrb[0].mxu0 %v181
      %v463 = vpop.f32.mrb[0].mxu0
      %v464 = vadd.f32 0.0, %v463
      %v465 = vpop.f32.mrb[0].mxu0
      %466 = vmatprep.mubr.f32.mxu0 0.0
      %467 = vmatmul.mubr.f32.gmra.mrb[0].mxu0 %v182
      %v468 = vpop.f32.mrb[0].mxu0
      %v469 = vadd.f32 0.0, %v468
      %v470 = vpop.f32.mrb[0].mxu0
      %471 = vmatprep.mubr.f32.mxu0 0.0
      %472 = vmatmul.mubr.f32.gmra.mrb[0].mxu0 %v183
      %v473 = vpop.f32.mrb[0].mxu0
      %v474 = vadd.f32 0.0, %v473
      %v475 = vpop.f32.mrb[0].mxu0
      %476 = vmatprep.mubr.f32.mxu0 0.0
      %477 = vmatmul.mubr.f32.gmra.mrb[0].mxu0 %v184
      %v478 = vpop.f32.mrb[0].mxu0
      %v479 = vadd.f32 0.0, %v478
      %v480 = vpop.f32.mrb[0].mxu0
      %481 = vmatprep.mubr.f32.mxu0 0.0
      %482 = vmatmul.mubr.f32.gmra.mrb[0].mxu0 %v185
      %v483 = vpop.f32.mrb[0].mxu0
      %v484 = vadd.f32 0.0, %v483
      %v485 = vpop.f32.mrb[0].mxu0
      %486 = vmatprep.mubr.f32.mxu0 0.0
      %487 = vmatmul.mubr.f32.gmra.mrb[0].mxu0 %v186
      %v488 = vpop.f32.mrb[0].mxu0
      %v489 = vadd.f32 0.0, %v488
      %v490 = vpop.f32.mrb[0].mxu0
      %491 = vmatprep.mubr.f32.mxu0 0.0
      %492 = vmatmul.mubr.f32.gmra.mrb[0].mxu0 %v187
      %v493 = vpop.f32.mrb[0].mxu0
      %v494 = vadd.f32 0.0, %v493
      %v495 = vpop.f32.mrb[0].mxu0
      %496 = vmatprep.mubr.f32.mxu0 0.0
      %497 = vmatmul.mubr.f32.gmra.mrb[0].mxu0 %v188
      %v498 = vpop.f32.mrb[0].mxu0
      %v499 = vadd.f32 0.0, %v498
      %v500 = vpop.f32.mrb[0].mxu0
      %501 = vmatprep.mubr.f32.mxu0 0.0
      %502 = vmatmul.mubr.f32.gmra.mrb[0].mxu0 %v189
      %v503 = vpop.f32.mrb[0].mxu0
      %v504 = vadd.f32 0.0, %v503
      %v505 = vpop.f32.mrb[0].mxu0
      %506 = vmatprep.mubr.f32.mxu0 0.0
      %507 = vmatmul.mubr.f32.gmra.mrb[0].mxu0 %v190
      %v508 = vpop.f32.mrb[0].mxu0
      %v509 = vadd.f32 0.0, %v508
      %v510 = vpop.f32.mrb[0].mxu0
      %511 = vmatprep.mubr.f32.mxu0 0.0
      %512 = vmatmul.mubr.f32.gmra.mrb[0].mxu0 %v191
      %v513 = vpop.f32.mrb[0].mxu0
      %v514 = vadd.f32 0.0, %v513
      %v515 = vpop.f32.mrb[0].mxu0
      %516 = vmatprep.mubr.f32.mxu0 0.0
      %517 = vmatmul.mubr.f32.gmra.mrb[0].mxu0 %v192
      %v518 = vpop.f32.mrb[0].mxu0
      %v519 = vadd.f32 0.0, %v518
      %v520 = vpop.f32.mrb[0].mxu0
      %521 = vmatprep.mubr.f32.mxu0 0.0
      %522 = vmatmul.mubr.f32.gmra.mrb[0].mxu0 %v193
      %v523 = vpop.f32.mrb[0].mxu0
      %v524 = vadd.f32 0.0, %v523
      %v525 = vpop.f32.mrb[0].mxu0
      %526 = vmatprep.mubr.f32.mxu0 0.0
      %527 = vmatmul.mubr.f32.gmra.mrb[0].mxu0 %v194
      %v528 = vpop.f32.mrb[0].mxu0
      %v529 = vadd.f32 0.0, %v528
      %v530 = vpop.f32.mrb[0].mxu0
      %531 = vmatprep.mubr.f32.mxu0 0.0
      %532 = vmatmul.mubr.f32.gmra.mrb[0].mxu0 %v195
      %v533 = vpop.f32.mrb[0].mxu0
      %v534 = vadd.f32 0.0, %v533
      %v535 = vpop.f32.mrb[0].mxu0
      %536 = vmatprep.mubr.f32.mxu0 0.0
      %537 = vmatmul.mubr.f32.gmra.mrb[0].mxu0 %v196
      %v538 = vpop.f32.mrb[0].mxu0
      %v539 = vadd.f32 0.0, %v538
      %v540 = vpop.f32.mrb[0].mxu0
      %541 = vmatprep.mubr.f32.mxu0 0.0
      %542 = vmatmul.mubr.f32.gmra.mrb[0].mxu0 %v197
      %v543 = vpop.f32.mrb[0].mxu0
      %v544 = vadd.f32 0.0, %v543
      %v545 = vpop.f32.mrb[0].mxu0
      %546 = vmatprep.mubr.f32.mxu0 0.0
      %547 = vmatmul.mubr.f32.gmra.mrb[0].mxu0 %v198
      %v548 = vpop.f32.mrb[0].mxu0
      %v549 = vadd.f32 0.0, %v548
      %v550 = vpop.f32.mrb[0].mxu0
      %551 = vmatprep.mubr.f32.mxu0 0.0
      %552 = vmatmul.mubr.f32.gmra.mrb[0].mxu0 %v199
      %v553 = vpop.f32.mrb[0].mxu0
      %v554 = vadd.f32 0.0, %v553
      %v555 = vpop.f32.mrb[0].mxu0
      %556 = vmatprep.mubr.f32.mxu0 0.0
      %557 = vmatmul.mubr.f32.gmra.mrb[0].mxu0 %v200
      %v558 = vpop.f32.mrb[0].mxu0
      %v559 = vadd.f32 0.0, %v558
      %v560 = vpop.f32.mrb[0].mxu0
      %561 = vmatprep.mubr.f32.mxu0 0.0
      %562 = vmatmul.mubr.f32.gmra.mrb[0].mxu0 %v201
      %v563 = vpop.f32.mrb[0].mxu0
      %v564 = vadd.f32 0.0, %v563
      %v565 = vpop.f32.mrb[0].mxu0
      %566 = vmatprep.mubr.f32.mxu0 0.0
      %567 = vmatmul.mubr.f32.gmra.mrb[0].mxu0 %v202
      %v568 = vpop.f32.mrb[0].mxu0
      %v569 = vadd.f32 0.0, %v568
      %v570 = vpop.f32.mrb[0].mxu0
      %571 = vmatprep.mubr.f32.mxu0 0.0
      %572 = vmatmul.mubr.f32.gmra.mrb[0].mxu0 %v203
      %v573 = vpop.f32.mrb[0].mxu0
      %v574 = vadd.f32 0.0, %v573
      %v575 = vpop.f32.mrb[0].mxu0
      %576 = vmatprep.mubr.f32.mxu0 0.0
      %577 = vmatmul.mubr.f32.gmra.mrb[0].mxu0 %v204
      %v578 = vpop.f32.mrb[0].mxu0
      %v579 = vadd.f32 0.0, %v578
      %v580 = vpop.f32.mrb[0].mxu0
      %581 = vmatprep.mubr.f32.mxu0 0.0
      %582 = vmatmul.mubr.f32.gmra.mrb[0].mxu0 %v205
      %v583 = vpop.f32.mrb[0].mxu0
      %v584 = vadd.f32 0.0, %v583
      %v585 = vpop.f32.mrb[0].mxu0
      %586 = vmatprep.mubr.f32.mxu0 0.0
      %587 = vmatmul.mubr.f32.gmra.mrb[0].mxu0 %v206
      %v588 = vpop.f32.mrb[0].mxu0
      %v589 = vadd.f32 0.0, %v588
      %v590 = vpop.f32.mrb[0].mxu0
      %591 = vmatprep.mubr.f32.mxu0 0.0
      %592 = vmatmul.mubr.f32.gmra.mrb[0].mxu0 %v207
      %v593 = vpop.f32.mrb[0].mxu0
      %v594 = vadd.f32 0.0, %v593
      %v595 = vpop.f32.mrb[0].mxu0
      %596 = vmatprep.mubr.f32.mxu0 0.0
      %597 = vmatmul.mubr.f32.gmra.mrb[0].mxu0 %v208
      %v598 = vpop.f32.mrb[0].mxu0
      %v599 = vadd.f32 0.0, %v598
      %v600 = vpop.f32.mrb[0].mxu0
      %601 = vmatprep.mubr.f32.mxu0 0.0
      %602 = vmatmul.mubr.f32.gmra.mrb[0].mxu0 %v209
      %v603 = vpop.f32.mrb[0].mxu0
      %v604 = vadd.f32 0.0, %v603
      %v605 = vpop.f32.mrb[0].mxu0
      %606 = vmatprep.mubr.f32.mxu0 0.0
      %607 = vmatmul.mubr.f32.gmra.mrb[0].mxu0 %v210
      %v608 = vpop.f32.mrb[0].mxu0
      %v609 = vadd.f32 0.0, %v608
      %v610 = vpop.f32.mrb[0].mxu0
      %611 = vdwg.mxu0
      %612 = vst [vmem:[%s145] sm:$0xff] %v294
      %613 = vst [vmem:[%s145 + $0x8] sm:$0xff] %v299
      %614 = vst [vmem:[%s145 + $0x10] sm:$0xff] %v304
      %615 = vst [vmem:[%s145 + $0x18] sm:$0xff] %v309
      %616 = vst [vmem:[%s145 + $0x20] sm:$0xff] %v314
      %617 = vst [vmem:[%s145 + $0x28] sm:$0xff] %v319
      %618 = vst [vmem:[%s145 + $0x30] sm:$0xff] %v324
      %619 = vst [vmem:[%s145 + $0x38] sm:$0xff] %v329
      %620 = vst [vmem:[%s145 + $0x40] sm:$0xff] %v334
      %621 = vst [vmem:[%s145 + $0x48] sm:$0xff] %v339
      %622 = vst [vmem:[%s145 + $0x50] sm:$0xff] %v344
      %623 = vst [vmem:[%s145 + $0x58] sm:$0xff] %v349
      %624 = vst [vmem:[%s145 + $0x60] sm:$0xff] %v354
      %625 = vst [vmem:[%s145 + $0x68] sm:$0xff] %v359
      %626 = vst [vmem:[%s145 + $0x70] sm:$0xff] %v364
      %627 = vst [vmem:[%s145 + $0x78] sm:$0xff] %v369
      %628 = vst [vmem:[%s145 + $0x80] sm:$0xff] %v374
      %629 = vst [vmem:[%s145 + $0x88] sm:$0xff] %v379
      %630 = vst [vmem:[%s145 + $0x90] sm:$0xff] %v384
      %631 = vst [vmem:[%s145 + $0x98] sm:$0xff] %v389
      %632 = vst [vmem:[%s145 + $0xa0] sm:$0xff] %v394
      %633 = vst [vmem:[%s145 + $0xa8] sm:$0xff] %v399
      %634 = vst [vmem:[%s145 + $0xb0] sm:$0xff] %v404
      %635 = vst [vmem:[%s145 + $0xb8] sm:$0xff] %v409
      %636 = vst [vmem:[%s145 + $0xc0] sm:$0xff] %v414
      %637 = vst [vmem:[%s145 + $0xc8] sm:$0xff] %v419
      %638 = vst [vmem:[%s145 + $0xd0] sm:$0xff] %v424
      %639 = vst [vmem:[%s145 + $0xd8] sm:$0xff] %v429
      %640 = vst [vmem:[%s145 + $0xe0] sm:$0xff] %v434
      %641 = vst [vmem:[%s145 + $0xe8] sm:$0xff] %v439
      %642 = vst [vmem:[%s145 + $0xf0] sm:$0xff] %v444
      %643 = vst [vmem:[%s145 + $0xf8] sm:$0xff] %v449
      %644 = vst [vmem:[%s145 + $0x100] sm:$0xff] %v454
      %645 = vst [vmem:[%s145 + $0x108] sm:$0xff] %v459
      %646 = vst [vmem:[%s145 + $0x110] sm:$0xff] %v464
      %647 = vst [vmem:[%s145 + $0x118] sm:$0xff] %v469
      %648 = vst [vmem:[%s145 + $0x120] sm:$0xff] %v474
      %649 = vst [vmem:[%s145 + $0x128] sm:$0xff] %v479
      %650 = vst [vmem:[%s145 + $0x130] sm:$0xff] %v484
      %651 = vst [vmem:[%s145 + $0x138] sm:$0xff] %v489
      %652 = vst [vmem:[%s145 + $0x140] sm:$0xff] %v494
      %653 = vst [vmem:[%s145 + $0x148] sm:$0xff] %v499
      %654 = vst [vmem:[%s145 + $0x150] sm:$0xff] %v504
      %655 = vst [vmem:[%s145 + $0x158] sm:$0xff] %v509
      %656 = vst [vmem:[%s145 + $0x160] sm:$0xff] %v514
      %657 = vst [vmem:[%s145 + $0x168] sm:$0xff] %v519
      %658 = vst [vmem:[%s145 + $0x170] sm:$0xff] %v524
      %659 = vst [vmem:[%s145 + $0x178] sm:$0xff] %v529
      %660 = vst [vmem:[%s145 + $0x180] sm:$0xff] %v534
      %661 = vst [vmem:[%s145 + $0x188] sm:$0xff] %v539
      %662 = vst [vmem:[%s145 + $0x190] sm:$0xff] %v544
      %663 = vst [vmem:[%s145 + $0x198] sm:$0xff] %v549
      %664 = vst [vmem:[%s145 + $0x1a0] sm:$0xff] %v554
      %665 = vst [vmem:[%s145 + $0x1a8] sm:$0xff] %v559
      %666 = vst [vmem:[%s145 + $0x1b0] sm:$0xff] %v564
      %667 = vst [vmem:[%s145 + $0x1b8] sm:$0xff] %v569
      %668 = vst [vmem:[%s145 + $0x1c0] sm:$0xff] %v574
      %669 = vst [vmem:[%s145 + $0x1c8] sm:$0xff] %v579
      %670 = vst [vmem:[%s145 + $0x1d0] sm:$0xff] %v584
      %671 = vst [vmem:[%s145 + $0x1d8] sm:$0xff] %v589
      %672 = vst [vmem:[%s145 + $0x1e0] sm:$0xff] %v594
      %673 = vst [vmem:[%s145 + $0x1e8] sm:$0xff] %v599
      %674 = vst [vmem:[%s145 + $0x1f0] sm:$0xff] %v604
      %675 = vst [vmem:[%s145 + $0x1f8] sm:$0xff] %v609
      %s676 = smul.u32 64, %s13
      %p677 = scmp.lt.s32.totalorder %s676, 127
      %s678 = scalar_select %p677, %s676, 127
      %s679 = smul.addr %s678, 8
      %s680 = scalar_lea.vmem %s2, %s679
      // Predicated region
      $region29: #{gcn_forward.4} parent=27 // pred_check
        %p681 = pneg %p78
      $region30: #{gcn_forward.4} parent=27 // pred_check_branch
        %683 = sbr.rel (%p681) target = $region32
      $region31: #{gcn_forward.4} parent=27 // pred_region
        %s684 = smul.u32 64, %s13
      $region32: #{gcn_forward.4} parent=27 // pred_fallthru
        _
    $region28: #{gcn_forward.4} parent=5 // pred_fallthru
      _
    %p685 = scmp.le.s32.totalorder 2, %s8
    // Predicated region
    $region33: #{gcn_forward.4} parent=5 // pred_check
      %p686 = pneg %p685
    $region34: #{gcn_forward.4} parent=5 // pred_check_branch
      %688 = sbr.rel (%p686) target = $region36
    $region35: #{gcn_forward.4} parent=5 // pred_region
      %s689 = ssub.s32 %s8, 2
      // Predicated region
      $region37: #{gcn_forward.4} parent=35 // pred_check
        %p690 = pneg %p84
      $region38: #{gcn_forward.4} parent=35 // pred_check_branch
        %692 = sbr.rel (%p690) target = $region40
      $region39: #{gcn_forward.4} parent=35 // pred_region
        %s693 = smul.u32 64, %s14
        %p694 = scmp.lt.s32.totalorder %s693, 127
        %s695 = scalar_select %p694, %s693, 127
        %s696 = smul.addr %s695, 8
        %s697 = scalar_lea.vmem %s2, %s696
      $region40: #{gcn_forward.4} parent=35 // pred_fallthru
        _
    $region36: #{gcn_forward.4} parent=5 // pred_fallthru
      _
  $region6: #{gcn_forward.4} parent=0 // loop_footer
    %s12 = sadd.s32 1, %s8
  $region7: #{gcn_forward.4} parent=0 // loop_footer_branch
    %7 = sbr.rel target = $region3
  $region8: #{gcn_forward.4} parent=0 // loop_exit
    _

// kernel: gcn_forward.5
$region0: #{gcn_forward.5}
  #allocation0 [shape = 'u32[]', space=smem, size = 0x4, offset = 0x4, fixed_abs, tag = 'smem constant byte address 0x4 - core index']
  #allocation1 [shape = 'u32[144,128]{1,0:T(1,128)}', space=vmem, size = 0x12000, scoped, tag = 'internal scratch']
  %s0 = inlined_call_operand.vmem [shape: f32[1024,1024], index: 0, kind: input, shape index: {}]
  %s1 = inlined_call_operand.vmem [shape: f32[1024,128], index: 1, kind: input, shape index: {}]
  %s2 = inlined_call_operand.vmem [shape: f32[1024,128], index: 2, kind: output, shape index: {}]
  %s3 = sld [smem:[#allocation0]]
  $region72: #{gcn_forward.5} parent=0
    _
  %s5 = ssub.s32 1, %s3
  %s6 = scalar_select 0, %s5, %s3
  $region1: #{gcn_forward.5} parent=0
    #allocation2 [shape = 'u8[2097152]{0}', space=vmem, size = 0x200000, scoped, tag = 'input window, operand 0']
    loop: start=0, step=1, limit=6
    $region2: #{gcn_forward.5} parent=1 // loop_pre_header
      _
    $region3: #{gcn_forward.5} parent=1 // loop_header
      %s8 = sphi 0, %s12
      %p9 = scmp.ge.s32.totalorder %s8, 6
      %s15 = sphi 0, %s27
      %s16 = sphi 0, %s23
      %s17 = sphi 0, %s15
      %s18 = sphi 0, %s16
      %s19 = sphi 0, %s17
      %s20 = sphi 0, %s18
      %s32 = sphi 0, %s34
      %s35 = sphi 0, %s32
      %s36 = sphi 0, %s35
      %s52 = sphi 0, %s36
      %s56 = sphi 0, %s56
      %s58 = sphi 0, %s56
      %s59 = sphi 0, %s58
      %s73 = sphi 0, %s59
      %s79 = sphi 0, %s81
      %s82 = sphi 0, %s79
      %s83 = sphi 0, %s82
      %s99 = sphi 0, %s83
    $region4: #{gcn_forward.5} parent=1 // loop_header_branch
      %11 = sbr.rel (%p9) target = $region8
    $region5: #{gcn_forward.5} parent=1 // loop_body
      %s13 = ssub.s32 %s8, 1
      %s14 = ssub.s32 %s8, 2
      %s21 = sadd.s32 1, %s16
      %p22 = scmp.ge.s32.totalorder %s21, 2
      %s23 = scalar_select %p22, 0, %s21
      %s24 = sadd.s32 1, %s15
      %s25 = scalar_select %p22, %s24, %s15
      %p26 = scmp.ge.s32.totalorder %s25, 2
      %s27 = scalar_select %p26, 0, %s25
      %s28 = ssub.s32 %s15, %s27
      %s29 = ssub.s32 %s16, %s23
      %s30 = sor.u32 %s28, %s29
      %p31 = scmp.eq.s32.totalorder %s30, 0
      %s33 = sadd.s32 %s32, 1
      %s34 = scalar_select %p31, %s32, %s33
      %p37 = pneg %p31
      %p38 = scmp.eq.s32.totalorder %s8, 3
      %p39 = por %p37, %p38
      %p40 = scmp.ne.s32.totalorder %s32, %s35
      %p41 = scmp.eq.s32.totalorder %s8, 0
      %p42 = por %p40, %p41
      %p43 = scmp.ne.s32.totalorder %s32, %s35
      %p44 = scmp.eq.s32.totalorder %s13, 3
      %p45 = por %p43, %p44
      %p46 = scmp.ne.s32.totalorder %s35, %s36
      %p47 = scmp.eq.s32.totalorder %s13, 0
      %p48 = por %p46, %p47
      %p49 = scmp.ne.s32.totalorder %s35, %s36
      %p50 = scmp.eq.s32.totalorder %s14, 3
      %p51 = por %p49, %p50
      %p53 = scmp.ne.s32.totalorder %s36, %s52
      %p54 = scmp.eq.s32.totalorder %s14, 0
      %p55 = por %p53, %p54
      %s57 = sadd.s32 %s56, 1
      %p60 = scmp.eq.s32.totalorder %s8, 3
      %p61 = scmp.ne.s32.totalorder %s56, %s58
      %p62 = scmp.eq.s32.totalorder %s8, 0
      %p63 = por %p61, %p62
      %p64 = scmp.ne.s32.totalorder %s56, %s58
      %p65 = scmp.eq.s32.totalorder %s13, 3
      %p66 = por %p64, %p65
      %p67 = scmp.ne.s32.totalorder %s58, %s59
      %p68 = scmp.eq.s32.totalorder %s13, 0
      %p69 = por %p67, %p68
      %p70 = scmp.ne.s32.totalorder %s58, %s59
      %p71 = scmp.eq.s32.totalorder %s14, 3
      %p72 = por %p70, %p71
      %p74 = scmp.ne.s32.totalorder %s59, %s73
      %p75 = scmp.eq.s32.totalorder %s14, 0
      %p76 = por %p74, %p75
      %s77 = ssub.s32 %s15, %s27
      %p78 = scmp.eq.s32.totalorder %s77, 0
      %s80 = sadd.s32 %s79, 1
      %s81 = scalar_select %p78, %s79, %s80
      %p84 = pneg %p78
      %p85 = scmp.eq.s32.totalorder %s8, 3
      %p86 = por %p84, %p85
      %p87 = scmp.ne.s32.totalorder %s79, %s82
      %p88 = scmp.eq.s32.totalorder %s8, 0
      %p89 = por %p87, %p88
      %p90 = scmp.ne.s32.totalorder %s79, %s82
      %p91 = scmp.eq.s32.totalorder %s13, 3
      %p92 = por %p90, %p91
      %p93 = scmp.ne.s32.totalorder %s82, %s83
      %p94 = scmp.eq.s32.totalorder %s13, 0
      %p95 = por %p93, %p94
      %p96 = scmp.ne.s32.totalorder %s82, %s83
      %p97 = scmp.eq.s32.totalorder %s14, 3
      %p98 = por %p96, %p97
      %p100 = scmp.ne.s32.totalorder %s83, %s99
      %p101 = scmp.eq.s32.totalorder %s14, 0
      %p102 = por %p100, %p101
      %p103 = scmp.le.s32.totalorder 1, %s8
      %p104 = scmp.lt.s32.totalorder %s8, 5
      %p105 = pnand %p103, %p104
      %p106 = pneg %p105
      // Predicated region
      $region9: #{gcn_forward.5} parent=5 // pred_check
        _
      $region10: #{gcn_forward.5} parent=5 // pred_check_branch
        %108 = sbr.rel (%p105) target = $region12
      $region11: #{gcn_forward.5} parent=5 // pred_region
        %s109 = ssub.s32 %s8, 1
        // Predicated region
        $region13: #{gcn_forward.5} parent=11 // pred_check
          %p110 = pneg %p69
        $region14: #{gcn_forward.5} parent=11 // pred_check_branch
          %112 = sbr.rel (%p110) target = $region16
        $region15: #{gcn_forward.5} parent=11 // pred_region
          _
        $region16: #{gcn_forward.5} parent=11 // pred_fallthru
          _
      $region12: #{gcn_forward.5} parent=5 // pred_fallthru
        _
      %p113 = scmp.lt.s32.totalorder %s8, 4
      // Predicated region
      $region17: #{gcn_forward.5} parent=5 // pred_check
        %p114 = pneg %p113
      $region18: #{gcn_forward.5} parent=5 // pred_check_branch
        %116 = sbr.rel (%p114) target = $region20
      $region19: #{gcn_forward.5} parent=5 // pred_region
        // Predicated region
        $region21: #{gcn_forward.5} parent=19 // pred_check
          %p117 = pneg %p42
        $region22: #{gcn_forward.5} parent=19 // pred_check_branch
          %119 = sbr.rel (%p117) target = $region24
        $region23: #{gcn_forward.5} parent=19 // pred_region
          %s120 = sand.u32 %s32, 1
          %s121 = sand.u32 %s32, 1
          %s122 = smul.addr %s121, 2048
          %s123 = scalar_lea.vmem [#allocation2], %s122
          %s124 = smul.u32 64, %s15
          %s125 = smul.u32 4, %s16
          %s126 = smul.addr %s124, 8
          %s127 = sadd.s32 %s125, %s126
          %s128 = smul.addr %s127, 8
          %s129 = scalar_lea.vmem %s0, %s128
          // Predicated region
          $region25: #{gcn_forward.5} parent=23 // pred_check
            _
          $region26: #{gcn_forward.5} parent=23 // pred_check_branch
            %131 = sbr.rel (0) target = $region28
          $region27: #{gcn_forward.5} parent=23 // pred_region
            // Predicated region
            $region29: #{gcn_forward.5} parent=27 // pred_check
              _
            $region30: #{gcn_forward.5} parent=27 // pred_check_branch
              %133 = sbr.rel (0) target = $region32
            $region31: #{gcn_forward.5} parent=27 // pred_region
              loop: start=0, step=1, limit=1
              $region33: #{gcn_forward.5} parent=31 // loop_pre_header
                _
              $region34: #{gcn_forward.5} parent=31 // loop_header
                %s135 = sphi 0, %s139
                %p136 = scmp.ge.s32.totalorder %s135, 1
                %s140 = sphi %s129, %s129
                %s141 = sphi %s123, %s123
              $region35: #{gcn_forward.5} parent=31 // loop_header_branch
                %138 = sbr.rel (%p136) target = $region39
              $region36: #{gcn_forward.5} parent=31 // loop_body
                %v142 = vld [vmem:[%s140] sm:$0xff]
                %143 = vst [vmem:[%s141] sm:$0xff] %v142
                %v144 = vld [vmem:[%s140 + $0x8] sm:$0xff]
                %145 = vst [vmem:[%s141 + $0x8] sm:$0xff] %v144
                %v146 = vld [vmem:[%s140 + $0x10] sm:$0xff]
                %147 = vst [vmem:[%s141 + $0x10] sm:$0xff] %v146
                %v148 = vld [vmem:[%s140 + $0x18] sm:$0xff]
                %149 = vst [vmem:[%s141 + $0x18] sm:$0xff] %v148
                %v150 = vld [vmem:[%s140 + $0x40] sm:$0xff]
                %151 = vst [vmem:[%s141 + $0x20] sm:$0xff] %v150
                %v152 = vld [vmem:[%s140 + $0x48] sm:$0xff]
                %153 = vst [vmem:[%s141 + $0x28] sm:$0xff] %v152
                %v154 = vld [vmem:[%s140 + $0x50] sm:$0xff]
                %155 = vst [vmem:[%s141 + $0x30] sm:$0xff] %v154
                %v156 = vld [vmem:[%s140 + $0x58] sm:$0xff]
                %157 = vst [vmem:[%s141 + $0x38] sm:$0xff] %v156
                %v158 = vld [vmem:[%s140 + $0x80] sm:$0xff]
                %159 = vst [vmem:[%s141 + $0x40] sm:$0xff] %v158
                %v160 = vld [vmem:[%s140 + $0x88] sm:$0xff]
                %161 = vst [vmem:[%s141 + $0x48] sm:$0xff] %v160
                %v162 = vld [vmem:[%s140 + $0x90] sm:$0xff]
                %163 = vst [vmem:[%s141 + $0x50] sm:$0xff] %v162
                %v164 = vld [vmem:[%s140 + $0x98] sm:$0xff]
                %165 = vst [vmem:[%s141 + $0x58] sm:$0xff] %v164
                %v166 = vld [vmem:[%s140 + $0xc0] sm:$0xff]
                %167 = vst [vmem:[%s141 + $0x60] sm:$0xff] %v166
                %v168 = vld [vmem:[%s140 + $0xc8] sm:$0xff]
                %169 = vst [vmem:[%s141 + $0x68] sm:$0xff] %v168
                %v170 = vld [vmem:[%s140 + $0xd0] sm:$0xff]
                %171 = vst [vmem:[%s141 + $0x70] sm:$0xff] %v170
                %v172 = vld [vmem:[%s140 + $0xd8] sm:$0xff]
                %173 = vst [vmem:[%s141 + $0x78] sm:$0xff] %v172
                %v174 = vld [vmem:[%s140 + $0x100] sm:$0xff]
                %175 = vst [vmem:[%s141 + $0x80] sm:$0xff] %v174
                %v176 = vld [vmem:[%s140 + $0x108] sm:$0xff]
                %177 = vst [vmem:[%s141 + $0x88] sm:$0xff] %v176
                %v178 = vld [vmem:[%s140 + $0x110] sm:$0xff]
                %179 = vst [vmem:[%s141 + $0x90] sm:$0xff] %v178
                %v180 = vld [vmem:[%s140 + $0x118] sm:$0xff]
                %181 = vst [vmem:[%s141 + $0x98] sm:$0xff] %v180
                %v182 = vld [vmem:[%s140 + $0x140] sm:$0xff]
                %183 = vst [vmem:[%s141 + $0xa0] sm:$0xff] %v182
                %v184 = vld [vmem:[%s140 + $0x148] sm:$0xff]
                %185 = vst [vmem:[%s141 + $0xa8] sm:$0xff] %v184
                %v186 = vld [vmem:[%s140 + $0x150] sm:$0xff]
                %187 = vst [vmem:[%s141 + $0xb0] sm:$0xff] %v186
                %v188 = vld [vmem:[%s140 + $0x158] sm:$0xff]
                %189 = vst [vmem:[%s141 + $0xb8] sm:$0xff] %v188
                %v190 = vld [vmem:[%s140 + $0x180] sm:$0xff]
                %191 = vst [vmem:[%s141 + $0xc0] sm:$0xff] %v190
                %v192 = vld [vmem:[%s140 + $0x188] sm:$0xff]
                %193 = vst [vmem:[%s141 + $0xc8] sm:$0xff] %v192
                %v194 = vld [vmem:[%s140 + $0x190] sm:$0xff]
                %195 = vst [vmem:[%s141 + $0xd0] sm:$0xff] %v194
                %v196 = vld [vmem:[%s140 + $0x198] sm:$0xff]
                %197 = vst [vmem:[%s141 + $0xd8] sm:$0xff] %v196
                %v198 = vld [vmem:[%s140 + $0x1c0] sm:$0xff]
                %199 = vst [vmem:[%s141 + $0xe0] sm:$0xff] %v198
                %v200 = vld [vmem:[%s140 + $0x1c8] sm:$0xff]
                %201 = vst [vmem:[%s141 + $0xe8] sm:$0xff] %v200
                %v202 = vld [vmem:[%s140 + $0x1d0] sm:$0xff]
                %203 = vst [vmem:[%s141 + $0xf0] sm:$0xff] %v202
                %v204 = vld [vmem:[%s140 + $0x1d8] sm:$0xff]
                %205 = vst [vmem:[%s141 + $0xf8] sm:$0xff] %v204
                %v206 = vld [vmem:[%s140 + $0x200] sm:$0xff]
                %207 = vst [vmem:[%s141 + $0x100] sm:$0xff] %v206
                %v208 = vld [vmem:[%s140 + $0x208] sm:$0xff]
                %209 = vst [vmem:[%s141 + $0x108] sm:$0xff] %v208
                %v210 = vld [vmem:[%s140 + $0x210] sm:$0xff]
                %211 = vst [vmem:[%s141 + $0x110] sm:$0xff] %v210
                %v212 = vld [vmem:[%s140 + $0x218] sm:$0xff]
                %213 = vst [vmem:[%s141 + $0x118] sm:$0xff] %v212
                %v214 = vld [vmem:[%s140 + $0x240] sm:$0xff]
                %215 = vst [vmem:[%s141 + $0x120] sm:$0xff] %v214
                %v216 = vld [vmem:[%s140 + $0x248] sm:$0xff]
                %217 = vst [vmem:[%s141 + $0x128] sm:$0xff] %v216
                %v218 = vld [vmem:[%s140 + $0x250] sm:$0xff]
                %219 = vst [vmem:[%s141 + $0x130] sm:$0xff] %v218
                %v220 = vld [vmem:[%s140 + $0x258] sm:$0xff]
                %221 = vst [vmem:[%s141 + $0x138] sm:$0xff] %v220
                %v222 = vld [vmem:[%s140 + $0x280] sm:$0xff]
                %223 = vst [vmem:[%s141 + $0x140] sm:$0xff] %v222
                %v224 = vld [vmem:[%s140 + $0x288] sm:$0xff]
                %225 = vst [vmem:[%s141 + $0x148] sm:$0xff] %v224
                %v226 = vld [vmem:[%s140 + $0x290] sm:$0xff]
                %227 = vst [vmem:[%s141 + $0x150] sm:$0xff] %v226
                %v228 = vld [vmem:[%s140 + $0x298] sm:$0xff]
                %229 = vst [vmem:[%s141 + $0x158] sm:$0xff] %v228
                %v230 = vld [vmem:[%s140 + $0x2c0] sm:$0xff]
                %231 = vst [vmem:[%s141 + $0x160] sm:$0xff] %v230
                %v232 = vld [vmem:[%s140 + $0x2c8] sm:$0xff]
                %233 = vst [vmem:[%s141 + $0x168] sm:$0xff] %v232
                %v234 = vld [vmem:[%s140 + $0x2d0] sm:$0xff]
                %235 = vst [vmem:[%s141 + $0x170] sm:$0xff] %v234
                %v236 = vld [vmem:[%s140 + $0x2d8] sm:$0xff]
                %237 = vst [vmem:[%s141 + $0x178] sm:$0xff] %v236
                %v238 = vld [vmem:[%s140 + $0x300] sm:$0xff]
                %239 = vst [vmem:[%s141 + $0x180] sm:$0xff] %v238
                %v240 = vld [vmem:[%s140 + $0x308] sm:$0xff]
                %241 = vst [vmem:[%s141 + $0x188] sm:$0xff] %v240
                %v242 = vld [vmem:[%s140 + $0x310] sm:$0xff]
                %243 = vst [vmem:[%s141 + $0x190] sm:$0xff] %v242
                %v244 = vld [vmem:[%s140 + $0x318] sm:$0xff]
                %245 = vst [vmem:[%s141 + $0x198] sm:$0xff] %v244
                %v246 = vld [vmem:[%s140 + $0x340] sm:$0xff]
                %247 = vst [vmem:[%s141 + $0x1a0] sm:$0xff] %v246
                %v248 = vld [vmem:[%s140 + $0x348] sm:$0xff]
                %249 = vst [vmem:[%s141 + $0x1a8] sm:$0xff] %v248
                %v250 = vld [vmem:[%s140 + $0x350] sm:$0xff]
                %251 = vst [vmem:[%s141 + $0x1b0] sm:$0xff] %v250
                %v252 = vld [vmem:[%s140 + $0x358] sm:$0xff]
                %253 = vst [vmem:[%s141 + $0x1b8] sm:$0xff] %v252
                %v254 = vld [vmem:[%s140 + $0x380] sm:$0xff]
                %255 = vst [vmem:[%s141 + $0x1c0] sm:$0xff] %v254
                %v256 = vld [vmem:[%s140 + $0x388] sm:$0xff]
                %257 = vst [vmem:[%s141 + $0x1c8] sm:$0xff] %v256
                %v258 = vld [vmem:[%s140 + $0x390] sm:$0xff]
                %259 = vst [vmem:[%s141 + $0x1d0] sm:$0xff] %v258
                %v260 = vld [vmem:[%s140 + $0x398] sm:$0xff]
                %261 = vst [vmem:[%s141 + $0x1d8] sm:$0xff] %v260
                %v262 = vld [vmem:[%s140 + $0x3c0] sm:$0xff]
                %263 = vst [vmem:[%s141 + $0x1e0] sm:$0xff] %v262
                %v264 = vld [vmem:[%s140 + $0x3c8] sm:$0xff]
                %265 = vst [vmem:[%s141 + $0x1e8] sm:$0xff] %v264
                %v266 = vld [vmem:[%s140 + $0x3d0] sm:$0xff]
                %267 = vst [vmem:[%s141 + $0x1f0] sm:$0xff] %v266
                %v268 = vld [vmem:[%s140 + $0x3d8] sm:$0xff]
                %269 = vst [vmem:[%s141 + $0x1f8] sm:$0xff] %v268
                %v270 = vld [vmem:[%s140 + $0x400] sm:$0xff]
                %271 = vst [vmem:[%s141 + $0x200] sm:$0xff] %v270
                %v272 = vld [vmem:[%s140 + $0x408] sm:$0xff]
                %273 = vst [vmem:[%s141 + $0x208] sm:$0xff] %v272
                %v274 = vld [vmem:[%s140 + $0x410] sm:$0xff]
                %275 = vst [vmem:[%s141 + $0x210] sm:$0xff] %v274
                %v276 = vld [vmem:[%s140 + $0x418] sm:$0xff]
                %277 = vst [vmem:[%s141 + $0x218] sm:$0xff] %v276
                %v278 = vld [vmem:[%s140 + $0x440] sm:$0xff]
                %279 = vst [vmem:[%s141 + $0x220] sm:$0xff] %v278
                %v280 = vld [vmem:[%s140 + $0x448] sm:$0xff]
                %281 = vst [vmem:[%s141 + $0x228] sm:$0xff] %v280
                %v282 = vld [vmem:[%s140 + $0x450] sm:$0xff]
                %283 = vst [vmem:[%s141 + $0x230] sm:$0xff] %v282
                %v284 = vld [vmem:[%s140 + $0x458] sm:$0xff]
                %285 = vst [vmem:[%s141 + $0x238] sm:$0xff] %v284
                %v286 = vld [vmem:[%s140 + $0x480] sm:$0xff]
                %287 = vst [vmem:[%s141 + $0x240] sm:$0xff] %v286
                %v288 = vld [vmem:[%s140 + $0x488] sm:$0xff]
                %289 = vst [vmem:[%s141 + $0x248] sm:$0xff] %v288
                %v290 = vld [vmem:[%s140 + $0x490] sm:$0xff]
                %291 = vst [vmem:[%s141 + $0x250] sm:$0xff] %v290
                %v292 = vld [vmem:[%s140 + $0x498] sm:$0xff]
                %293 = vst [vmem:[%s141 + $0x258] sm:$0xff] %v292
                %v294 = vld [vmem:[%s140 + $0x4c0] sm:$0xff]
                %295 = vst [vmem:[%s141 + $0x260] sm:$0xff] %v294
                %v296 = vld [vmem:[%s140 + $0x4c8] sm:$0xff]
                %297 = vst [vmem:[%s141 + $0x268] sm:$0xff] %v296
                %v298 = vld [vmem:[%s140 + $0x4d0] sm:$0xff]
                %299 = vst [vmem:[%s141 + $0x270] sm:$0xff] %v298
                %v300 = vld [vmem:[%s140 + $0x4d8] sm:$0xff]
                %301 = vst [vmem:[%s141 + $0x278] sm:$0xff] %v300
                %v302 = vld [vmem:[%s140 + $0x500] sm:$0xff]
                %303 = vst [vmem:[%s141 + $0x280] sm:$0xff] %v302
                %v304 = vld [vmem:[%s140 + $0x508] sm:$0xff]
                %305 = vst [vmem:[%s141 + $0x288] sm:$0xff] %v304
                %v306 = vld [vmem:[%s140 + $0x510] sm:$0xff]
                %307 = vst [vmem:[%s141 + $0x290] sm:$0xff] %v306
                %v308 = vld [vmem:[%s140 + $0x518] sm:$0xff]
                %309 = vst [vmem:[%s141 + $0x298] sm:$0xff] %v308
                %v310 = vld [vmem:[%s140 + $0x540] sm:$0xff]
                %311 = vst [vmem:[%s141 + $0x2a0] sm:$0xff] %v310
                %v312 = vld [vmem:[%s140 + $0x548] sm:$0xff]
                %313 = vst [vmem:[%s141 + $0x2a8] sm:$0xff] %v312
                %v314 = vld [vmem:[%s140 + $0x550] sm:$0xff]
                %315 = vst [vmem:[%s141 + $0x2b0] sm:$0xff] %v314
                %v316 = vld [vmem:[%s140 + $0x558] sm:$0xff]
                %317 = vst [vmem:[%s141 + $0x2b8] sm:$0xff] %v316
                %v318 = vld [vmem:[%s140 + $0x580] sm:$0xff]
                %319 = vst [vmem:[%s141 + $0x2c0] sm:$0xff] %v318
                %v320 = vld [vmem:[%s140 + $0x588] sm:$0xff]
                %321 = vst [vmem:[%s141 + $0x2c8] sm:$0xff] %v320
                %v322 = vld [vmem:[%s140 + $0x590] sm:$0xff]
                %323 = vst [vmem:[%s141 + $0x2d0] sm:$0xff] %v322
                %v324 = vld [vmem:[%s140 + $0x598] sm:$0xff]
                %325 = vst [vmem:[%s141 + $0x2d8] sm:$0xff] %v324
                %v326 = vld [vmem:[%s140 + $0x5c0] sm:$0xff]
                %327 = vst [vmem:[%s141 + $0x2e0] sm:$0xff] %v326
                %v328 = vld [vmem:[%s140 + $0x5c8] sm:$0xff]
                %329 = vst [vmem:[%s141 + $0x2e8] sm:$0xff] %v328
                %v330 = vld [vmem:[%s140 + $0x5d0] sm:$0xff]
                %331 = vst [vmem:[%s141 + $0x2f0] sm:$0xff] %v330
                %v332 = vld [vmem:[%s140 + $0x5d8] sm:$0xff]
                %333 = vst [vmem:[%s141 + $0x2f8] sm:$0xff] %v332
                %v334 = vld [vmem:[%s140 + $0x600] sm:$0xff]
                %335 = vst [vmem:[%s141 + $0x300] sm:$0xff] %v334
                %v336 = vld [vmem:[%s140 + $0x608] sm:$0xff]
                %337 = vst [vmem:[%s141 + $0x308] sm:$0xff] %v336
                %v338 = vld [vmem:[%s140 + $0x610] sm:$0xff]
                %339 = vst [vmem:[%s141 + $0x310] sm:$0xff] %v338
                %v340 = vld [vmem:[%s140 + $0x618] sm:$0xff]
                %341 = vst [vmem:[%s141 + $0x318] sm:$0xff] %v340
                %v342 = vld [vmem:[%s140 + $0x640] sm:$0xff]
                %343 = vst [vmem:[%s141 + $0x320] sm:$0xff] %v342
                %v344 = vld [vmem:[%s140 + $0x648] sm:$0xff]
                %345 = vst [vmem:[%s141 + $0x328] sm:$0xff] %v344
                %v346 = vld [vmem:[%s140 + $0x650] sm:$0xff]
                %347 = vst [vmem:[%s141 + $0x330] sm:$0xff] %v346
                %v348 = vld [vmem:[%s140 + $0x658] sm:$0xff]
                %349 = vst [vmem:[%s141 + $0x338] sm:$0xff] %v348
                %v350 = vld [vmem:[%s140 + $0x680] sm:$0xff]
                %351 = vst [vmem:[%s141 + $0x340] sm:$0xff] %v350
                %v352 = vld [vmem:[%s140 + $0x688] sm:$0xff]
                %353 = vst [vmem:[%s141 + $0x348] sm:$0xff] %v352
                %v354 = vld [vmem:[%s140 + $0x690] sm:$0xff]
                %355 = vst [vmem:[%s141 + $0x350] sm:$0xff] %v354
                %v356 = vld [vmem:[%s140 + $0x698] sm:$0xff]
                %357 = vst [vmem:[%s141 + $0x358] sm:$0xff] %v356
                %v358 = vld [vmem:[%s140 + $0x6c0] sm:$0xff]
                %359 = vst [vmem:[%s141 + $0x360] sm:$0xff] %v358
                %v360 = vld [vmem:[%s140 + $0x6c8] sm:$0xff]
                %361 = vst [vmem:[%s141 + $0x368] sm:$0xff] %v360
                %v362 = vld [vmem:[%s140 + $0x6d0] sm:$0xff]
                %363 = vst [vmem:[%s141 + $0x370] sm:$0xff] %v362
                %v364 = vld [vmem:[%s140 + $0x6d8] sm:$0xff]
                %365 = vst [vmem:[%s141 + $0x378] sm:$0xff] %v364
                %v366 = vld [vmem:[%s140 + $0x700] sm:$0xff]
                %367 = vst [vmem:[%s141 + $0x380] sm:$0xff] %v366
                %v368 = vld [vmem:[%s140 + $0x708] sm:$0xff]
                %369 = vst [vmem:[%s141 + $0x388] sm:$0xff] %v368
                %v370 = vld [vmem:[%s140 + $0x710] sm:$0xff]
                %371 = vst [vmem:[%s141 + $0x390] sm:$0xff] %v370
                %v372 = vld [vmem:[%s140 + $0x718] sm:$0xff]
                %373 = vst [vmem:[%s141 + $0x398] sm:$0xff] %v372
                %v374 = vld [vmem:[%s140 + $0x740] sm:$0xff]
                %375 = vst [vmem:[%s141 + $0x3a0] sm:$0xff] %v374
                %v376 = vld [vmem:[%s140 + $0x748] sm:$0xff]
                %377 = vst [vmem:[%s141 + $0x3a8] sm:$0xff] %v376
                %v378 = vld [vmem:[%s140 + $0x750] sm:$0xff]
                %379 = vst [vmem:[%s141 + $0x3b0] sm:$0xff] %v378
                %v380 = vld [vmem:[%s140 + $0x758] sm:$0xff]
                %381 = vst [vmem:[%s141 + $0x3b8] sm:$0xff] %v380
                %v382 = vld [vmem:[%s140 + $0x780] sm:$0xff]
                %383 = vst [vmem:[%s141 + $0x3c0] sm:$0xff] %v382
                %v384 = vld [vmem:[%s140 + $0x788] sm:$0xff]
                %385 = vst [vmem:[%s141 + $0x3c8] sm:$0xff] %v384
                %v386 = vld [vmem:[%s140 + $0x790] sm:$0xff]
                %387 = vst [vmem:[%s141 + $0x3d0] sm:$0xff] %v386
                %v388 = vld [vmem:[%s140 + $0x798] sm:$0xff]
                %389 = vst [vmem:[%s141 + $0x3d8] sm:$0xff] %v388
                %v390 = vld [vmem:[%s140 + $0x7c0] sm:$0xff]
                %391 = vst [vmem:[%s141 + $0x3e0] sm:$0xff] %v390
                %v392 = vld [vmem:[%s140 + $0x7c8] sm:$0xff]
                %393 = vst [vmem:[%s141 + $0x3e8] sm:$0xff] %v392
                %v394 = vld [vmem:[%s140 + $0x7d0] sm:$0xff]
                %395 = vst [vmem:[%s141 + $0x3f0] sm:$0xff] %v394
                %v396 = vld [vmem:[%s140 + $0x7d8] sm:$0xff]
                %397 = vst [vmem:[%s141 + $0x3f8] sm:$0xff] %v396
                %v398 = vld [vmem:[%s140 + $0x800] sm:$0xff]
                %399 = vst [vmem:[%s141 + $0x400] sm:$0xff] %v398
                %v400 = vld [vmem:[%s140 + $0x808] sm:$0xff]
                %401 = vst [vmem:[%s141 + $0x408] sm:$0xff] %v400
                %v402 = vld [vmem:[%s140 + $0x810] sm:$0xff]
                %403 = vst [vmem:[%s141 + $0x410] sm:$0xff] %v402
                %v404 = vld [vmem:[%s140 + $0x818] sm:$0xff]
                %405 = vst [vmem:[%s141 + $0x418] sm:$0xff] %v404
                %v406 = vld [vmem:[%s140 + $0x840] sm:$0xff]
                %407 = vst [vmem:[%s141 + $0x420] sm:$0xff] %v406
                %v408 = vld [vmem:[%s140 + $0x848] sm:$0xff]
                %409 = vst [vmem:[%s141 + $0x428] sm:$0xff] %v408
                %v410 = vld [vmem:[%s140 + $0x850] sm:$0xff]
                %411 = vst [vmem:[%s141 + $0x430] sm:$0xff] %v410
                %v412 = vld [vmem:[%s140 + $0x858] sm:$0xff]
                %413 = vst [vmem:[%s141 + $0x438] sm:$0xff] %v412
                %v414 = vld [vmem:[%s140 + $0x880] sm:$0xff]
                %415 = vst [vmem:[%s141 + $0x440] sm:$0xff] %v414
                %v416 = vld [vmem:[%s140 + $0x888] sm:$0xff]
                %417 = vst [vmem:[%s141 + $0x448] sm:$0xff] %v416
                %v418 = vld [vmem:[%s140 + $0x890] sm:$0xff]
                %419 = vst [vmem:[%s141 + $0x450] sm:$0xff] %v418
                %v420 = vld [vmem:[%s140 + $0x898] sm:$0xff]
                %421 = vst [vmem:[%s141 + $0x458] sm:$0xff] %v420
                %v422 = vld [vmem:[%s140 + $0x8c0] sm:$0xff]
                %423 = vst [vmem:[%s141 + $0x460] sm:$0xff] %v422
                %v424 = vld [vmem:[%s140 + $0x8c8] sm:$0xff]
                %425 = vst [vmem:[%s141 + $0x468] sm:$0xff] %v424
                %v426 = vld [vmem:[%s140 + $0x8d0] sm:$0xff]
                %427 = vst [vmem:[%s141 + $0x470] sm:$0xff] %v426
                %v428 = vld [vmem:[%s140 + $0x8d8] sm:$0xff]
                %429 = vst [vmem:[%s141 + $0x478] sm:$0xff] %v428
                %v430 = vld [vmem:[%s140 + $0x900] sm:$0xff]
                %431 = vst [vmem:[%s141 + $0x480] sm:$0xff] %v430
                %v432 = vld [vmem:[%s140 + $0x908] sm:$0xff]
                %433 = vst [vmem:[%s141 + $0x488] sm:$0xff] %v432
                %v434 = vld [vmem:[%s140 + $0x910] sm:$0xff]
                %435 = vst [vmem:[%s141 + $0x490] sm:$0xff] %v434
                %v436 = vld [vmem:[%s140 + $0x918] sm:$0xff]
                %437 = vst [vmem:[%s141 + $0x498] sm:$0xff] %v436
                %v438 = vld [vmem:[%s140 + $0x940] sm:$0xff]
                %439 = vst [vmem:[%s141 + $0x4a0] sm:$0xff] %v438
                %v440 = vld [vmem:[%s140 + $0x948] sm:$0xff]
                %441 = vst [vmem:[%s141 + $0x4a8] sm:$0xff] %v440
                %v442 = vld [vmem:[%s140 + $0x950] sm:$0xff]
                %443 = vst [vmem:[%s141 + $0x4b0] sm:$0xff] %v442
                %v444 = vld [vmem:[%s140 + $0x958] sm:$0xff]
                %445 = vst [vmem:[%s141 + $0x4b8] sm:$0xff] %v444
                %v446 = vld [vmem:[%s140 + $0x980] sm:$0xff]
                %447 = vst [vmem:[%s141 + $0x4c0] sm:$0xff] %v446
                %v448 = vld [vmem:[%s140 + $0x988] sm:$0xff]
                %449 = vst [vmem:[%s141 + $0x4c8] sm:$0xff] %v448
                %v450 = vld [vmem:[%s140 + $0x990] sm:$0xff]
                %451 = vst [vmem:[%s141 + $0x4d0] sm:$0xff] %v450
                %v452 = vld [vmem:[%s140 + $0x998] sm:$0xff]
                %453 = vst [vmem:[%s141 + $0x4d8] sm:$0xff] %v452
                %v454 = vld [vmem:[%s140 + $0x9c0] sm:$0xff]
                %455 = vst [vmem:[%s141 + $0x4e0] sm:$0xff] %v454
                %v456 = vld [vmem:[%s140 + $0x9c8] sm:$0xff]
                %457 = vst [vmem:[%s141 + $0x4e8] sm:$0xff] %v456
                %v458 = vld [vmem:[%s140 + $0x9d0] sm:$0xff]
                %459 = vst [vmem:[%s141 + $0x4f0] sm:$0xff] %v458
                %v460 = vld [vmem:[%s140 + $0x9d8] sm:$0xff]
                %461 = vst [vmem:[%s141 + $0x4f8] sm:$0xff] %v460
                %v462 = vld [vmem:[%s140 + $0xa00] sm:$0xff]
                %463 = vst [vmem:[%s141 + $0x500] sm:$0xff] %v462
                %v464 = vld [vmem:[%s140 + $0xa08] sm:$0xff]
                %465 = vst [vmem:[%s141 + $0x508] sm:$0xff] %v464
                %v466 = vld [vmem:[%s140 + $0xa10] sm:$0xff]
                %467 = vst [vmem:[%s141 + $0x510] sm:$0xff] %v466
                %v468 = vld [vmem:[%s140 + $0xa18] sm:$0xff]
                %469 = vst [vmem:[%s141 + $0x518] sm:$0xff] %v468
                %v470 = vld [vmem:[%s140 + $0xa40] sm:$0xff]
                %471 = vst [vmem:[%s141 + $0x520] sm:$0xff] %v470
                %v472 = vld [vmem:[%s140 + $0xa48] sm:$0xff]
                %473 = vst [vmem:[%s141 + $0x528] sm:$0xff] %v472
                %v474 = vld [vmem:[%s140 + $0xa50] sm:$0xff]
                %475 = vst [vmem:[%s141 + $0x530] sm:$0xff] %v474
                %v476 = vld [vmem:[%s140 + $0xa58] sm:$0xff]
                %477 = vst [vmem:[%s141 + $0x538] sm:$0xff] %v476
                %v478 = vld [vmem:[%s140 + $0xa80] sm:$0xff]
                %479 = vst [vmem:[%s141 + $0x540] sm:$0xff] %v478
                %v480 = vld [vmem:[%s140 + $0xa88] sm:$0xff]
                %481 = vst [vmem:[%s141 + $0x548] sm:$0xff] %v480
                %v482 = vld [vmem:[%s140 + $0xa90] sm:$0xff]
                %483 = vst [vmem:[%s141 + $0x550] sm:$0xff] %v482
                %v484 = vld [vmem:[%s140 + $0xa98] sm:$0xff]
                %485 = vst [vmem:[%s141 + $0x558] sm:$0xff] %v484
                %v486 = vld [vmem:[%s140 + $0xac0] sm:$0xff]
                %487 = vst [vmem:[%s141 + $0x560] sm:$0xff] %v486
                %v488 = vld [vmem:[%s140 + $0xac8] sm:$0xff]
                %489 = vst [vmem:[%s141 + $0x568] sm:$0xff] %v488
                %v490 = vld [vmem:[%s140 + $0xad0] sm:$0xff]
                %491 = vst [vmem:[%s141 + $0x570] sm:$0xff] %v490
                %v492 = vld [vmem:[%s140 + $0xad8] sm:$0xff]
                %493 = vst [vmem:[%s141 + $0x578] sm:$0xff] %v492
                %v494 = vld [vmem:[%s140 + $0xb00] sm:$0xff]
                %495 = vst [vmem:[%s141 + $0x580] sm:$0xff] %v494
                %v496 = vld [vmem:[%s140 + $0xb08] sm:$0xff]
                %497 = vst [vmem:[%s141 + $0x588] sm:$0xff] %v496
                %v498 = vld [vmem:[%s140 + $0xb10] sm:$0xff]
                %499 = vst [vmem:[%s141 + $0x590] sm:$0xff] %v498
                %v500 = vld [vmem:[%s140 + $0xb18] sm:$0xff]
                %501 = vst [vmem:[%s141 + $0x598] sm:$0xff] %v500
                %v502 = vld [vmem:[%s140 + $0xb40] sm:$0xff]
                %503 = vst [vmem:[%s141 + $0x5a0] sm:$0xff] %v502
                %v504 = vld [vmem:[%s140 + $0xb48] sm:$0xff]
                %505 = vst [vmem:[%s141 + $0x5a8] sm:$0xff] %v504
                %v506 = vld [vmem:[%s140 + $0xb50] sm:$0xff]
                %507 = vst [vmem:[%s141 + $0x5b0] sm:$0xff] %v506
                %v508 = vld [vmem:[%s140 + $0xb58] sm:$0xff]
                %509 = vst [vmem:[%s141 + $0x5b8] sm:$0xff] %v508
                %v510 = vld [vmem:[%s140 + $0xb80] sm:$0xff]
                %511 = vst [vmem:[%s141 + $0x5c0] sm:$0xff] %v510
                %v512 = vld [vmem:[%s140 + $0xb88] sm:$0xff]
                %513 = vst [vmem:[%s141 + $0x5c8] sm:$0xff] %v512
                %v514 = vld [vmem:[%s140 + $0xb90] sm:$0xff]
                %515 = vst [vmem:[%s141 + $0x5d0] sm:$0xff] %v514
                %v516 = vld [vmem:[%s140 + $0xb98] sm:$0xff]
                %517 = vst [vmem:[%s141 + $0x5d8] sm:$0xff] %v516
                %v518 = vld [vmem:[%s140 + $0xbc0] sm:$0xff]
                %519 = vst [vmem:[%s141 + $0x5e0] sm:$0xff] %v518
                %v520 = vld [vmem:[%s140 + $0xbc8] sm:$0xff]
                %521 = vst [vmem:[%s141 + $0x5e8] sm:$0xff] %v520
                %v522 = vld [vmem:[%s140 + $0xbd0] sm:$0xff]
                %523 = vst [vmem:[%s141 + $0x5f0] sm:$0xff] %v522
                %v524 = vld [vmem:[%s140 + $0xbd8] sm:$0xff]
                %525 = vst [vmem:[%s141 + $0x5f8] sm:$0xff] %v524
                %v526 = vld [vmem:[%s140 + $0xc00] sm:$0xff]
                %527 = vst [vmem:[%s141 + $0x600] sm:$0xff] %v526
                %v528 = vld [vmem:[%s140 + $0xc08] sm:$0xff]
                %529 = vst [vmem:[%s141 + $0x608] sm:$0xff] %v528
                %v530 = vld [vmem:[%s140 + $0xc10] sm:$0xff]
                %531 = vst [vmem:[%s141 + $0x610] sm:$0xff] %v530
                %v532 = vld [vmem:[%s140 + $0xc18] sm:$0xff]
                %533 = vst [vmem:[%s141 + $0x618] sm:$0xff] %v532
                %v534 = vld [vmem:[%s140 + $0xc40] sm:$0xff]
                %535 = vst [vmem:[%s141 + $0x620] sm:$0xff] %v534
                %v536 = vld [vmem:[%s140 + $0xc48] sm:$0xff]
                %537 = vst [vmem:[%s141 + $0x628] sm:$0xff] %v536
                %v538 = vld [vmem:[%s140 + $0xc50] sm:$0xff]
                %539 = vst [vmem:[%s141 + $0x630] sm:$0xff] %v538
                %v540 = vld [vmem:[%s140 + $0xc58] sm:$0xff]
                %541 = vst [vmem:[%s141 + $0x638] sm:$0xff] %v540
                %v542 = vld [vmem:[%s140 + $0xc80] sm:$0xff]
                %543 = vst [vmem:[%s141 + $0x640] sm:$0xff] %v542
                %v544 = vld [vmem:[%s140 + $0xc88] sm:$0xff]
                %545 = vst [vmem:[%s141 + $0x648] sm:$0xff] %v544
                %v546 = vld [vmem:[%s140 + $0xc90] sm:$0xff]
                %547 = vst [vmem:[%s141 + $0x650] sm:$0xff] %v546
                %v548 = vld [vmem:[%s140 + $0xc98] sm:$0xff]
                %549 = vst [vmem:[%s141 + $0x658] sm:$0xff] %v548
                %v550 = vld [vmem:[%s140 + $0xcc0] sm:$0xff]
                %551 = vst [vmem:[%s141 + $0x660] sm:$0xff] %v550
                %v552 = vld [vmem:[%s140 + $0xcc8] sm:$0xff]
                %553 = vst [vmem:[%s141 + $0x668] sm:$0xff] %v552
                %v554 = vld [vmem:[%s140 + $0xcd0] sm:$0xff]
                %555 = vst [vmem:[%s141 + $0x670] sm:$0xff] %v554
                %v556 = vld [vmem:[%s140 + $0xcd8] sm:$0xff]
                %557 = vst [vmem:[%s141 + $0x678] sm:$0xff] %v556
                %v558 = vld [vmem:[%s140 + $0xd00] sm:$0xff]
                %559 = vst [vmem:[%s141 + $0x680] sm:$0xff] %v558
                %v560 = vld [vmem:[%s140 + $0xd08] sm:$0xff]
                %561 = vst [vmem:[%s141 + $0x688] sm:$0xff] %v560
                %v562 = vld [vmem:[%s140 + $0xd10] sm:$0xff]
                %563 = vst [vmem:[%s141 + $0x690] sm:$0xff] %v562
                %v564 = vld [vmem:[%s140 + $0xd18] sm:$0xff]
                %565 = vst [vmem:[%s141 + $0x698] sm:$0xff] %v564
                %v566 = vld [vmem:[%s140 + $0xd40] sm:$0xff]
                %567 = vst [vmem:[%s141 + $0x6a0] sm:$0xff] %v566
                %v568 = vld [vmem:[%s140 + $0xd48] sm:$0xff]
                %569 = vst [vmem:[%s141 + $0x6a8] sm:$0xff] %v568
                %v570 = vld [vmem:[%s140 + $0xd50] sm:$0xff]
                %571 = vst [vmem:[%s141 + $0x6b0] sm:$0xff] %v570
                %v572 = vld [vmem:[%s140 + $0xd58] sm:$0xff]
                %573 = vst [vmem:[%s141 + $0x6b8] sm:$0xff] %v572
                %v574 = vld [vmem:[%s140 + $0xd80] sm:$0xff]
                %575 = vst [vmem:[%s141 + $0x6c0] sm:$0xff] %v574
                %v576 = vld [vmem:[%s140 + $0xd88] sm:$0xff]
                %577 = vst [vmem:[%s141 + $0x6c8] sm:$0xff] %v576
                %v578 = vld [vmem:[%s140 + $0xd90] sm:$0xff]
                %579 = vst [vmem:[%s141 + $0x6d0] sm:$0xff] %v578
                %v580 = vld [vmem:[%s140 + $0xd98] sm:$0xff]
                %581 = vst [vmem:[%s141 + $0x6d8] sm:$0xff] %v580
                %v582 = vld [vmem:[%s140 + $0xdc0] sm:$0xff]
                %583 = vst [vmem:[%s141 + $0x6e0] sm:$0xff] %v582
                %v584 = vld [vmem:[%s140 + $0xdc8] sm:$0xff]
                %585 = vst [vmem:[%s141 + $0x6e8] sm:$0xff] %v584
                %v586 = vld [vmem:[%s140 + $0xdd0] sm:$0xff]
                %587 = vst [vmem:[%s141 + $0x6f0] sm:$0xff] %v586
                %v588 = vld [vmem:[%s140 + $0xdd8] sm:$0xff]
                %589 = vst [vmem:[%s141 + $0x6f8] sm:$0xff] %v588
                %v590 = vld [vmem:[%s140 + $0xe00] sm:$0xff]
                %591 = vst [vmem:[%s141 + $0x700] sm:$0xff] %v590
                %v592 = vld [vmem:[%s140 + $0xe08] sm:$0xff]
                %593 = vst [vmem:[%s141 + $0x708] sm:$0xff] %v592
                %v594 = vld [vmem:[%s140 + $0xe10] sm:$0xff]
                %595 = vst [vmem:[%s141 + $0x710] sm:$0xff] %v594
                %v596 = vld [vmem:[%s140 + $0xe18] sm:$0xff]
                %597 = vst [vmem:[%s141 + $0x718] sm:$0xff] %v596
                %v598 = vld [vmem:[%s140 + $0xe40] sm:$0xff]
                %599 = vst [vmem:[%s141 + $0x720] sm:$0xff] %v598
                %v600 = vld [vmem:[%s140 + $0xe48] sm:$0xff]
                %601 = vst [vmem:[%s141 + $0x728] sm:$0xff] %v600
                %v602 = vld [vmem:[%s140 + $0xe50] sm:$0xff]
                %603 = vst [vmem:[%s141 + $0x730] sm:$0xff] %v602
                %v604 = vld [vmem:[%s140 + $0xe58] sm:$0xff]
                %605 = vst [vmem:[%s141 + $0x738] sm:$0xff] %v604
                %v606 = vld [vmem:[%s140 + $0xe80] sm:$0xff]
                %607 = vst [vmem:[%s141 + $0x740] sm:$0xff] %v606
                %v608 = vld [vmem:[%s140 + $0xe88] sm:$0xff]
                %609 = vst [vmem:[%s141 + $0x748] sm:$0xff] %v608
                %v610 = vld [vmem:[%s140 + $0xe90] sm:$0xff]
                %611 = vst [vmem:[%s141 + $0x750] sm:$0xff] %v610
                %v612 = vld [vmem:[%s140 + $0xe98] sm:$0xff]
                %613 = vst [vmem:[%s141 + $0x758] sm:$0xff] %v612
                %v614 = vld [vmem:[%s140 + $0xec0] sm:$0xff]
                %615 = vst [vmem:[%s141 + $0x760] sm:$0xff] %v614
                %v616 = vld [vmem:[%s140 + $0xec8] sm:$0xff]
                %617 = vst [vmem:[%s141 + $0x768] sm:$0xff] %v616
                %v618 = vld [vmem:[%s140 + $0xed0] sm:$0xff]
                %619 = vst [vmem:[%s141 + $0x770] sm:$0xff] %v618
                %v620 = vld [vmem:[%s140 + $0xed8] sm:$0xff]
                %621 = vst [vmem:[%s141 + $0x778] sm:$0xff] %v620
                %v622 = vld [vmem:[%s140 + $0xf00] sm:$0xff]
                %623 = vst [vmem:[%s141 + $0x780] sm:$0xff] %v622
                %v624 = vld [vmem:[%s140 + $0xf08] sm:$0xff]
                %625 = vst [vmem:[%s141 + $0x788] sm:$0xff] %v624
                %v626 = vld [vmem:[%s140 + $0xf10] sm:$0xff]
                %627 = vst [vmem:[%s141 + $0x790] sm:$0xff] %v626
                %v628 = vld [vmem:[%s140 + $0xf18] sm:$0xff]
                %629 = vst [vmem:[%s141 + $0x798] sm:$0xff] %v628
                %v630 = vld [vmem:[%s140 + $0xf40] sm:$0xff]
                %631 = vst [vmem:[%s141 + $0x7a0] sm:$0xff] %v630
                %v632 = vld [vmem:[%s140 + $0xf48] sm:$0xff]
                %633 = vst [vmem:[%s141 + $0x7a8] sm:$0xff] %v632
                %v634 = vld [vmem:[%s140 + $0xf50] sm:$0xff]
                %635 = vst [vmem:[%s141 + $0x7b0] sm:$0xff] %v634
                %v636 = vld [vmem:[%s140 + $0xf58] sm:$0xff]
                %637 = vst [vmem:[%s141 + $0x7b8] sm:$0xff] %v636
                %v638 = vld [vmem:[%s140 + $0xf80] sm:$0xff]
                %639 = vst [vmem:[%s141 + $0x7c0] sm:$0xff] %v638
                %v640 = vld [vmem:[%s140 + $0xf88] sm:$0xff]
                %641 = vst [vmem:[%s141 + $0x7c8] sm:$0xff] %v640
                %v642 = vld [vmem:[%s140 + $0xf90] sm:$0xff]
                %643 = vst [vmem:[%s141 + $0x7d0] sm:$0xff] %v642
                %v644 = vld [vmem:[%s140 + $0xf98] sm:$0xff]
                %645 = vst [vmem:[%s141 + $0x7d8] sm:$0xff] %v644
                %v646 = vld [vmem:[%s140 + $0xfc0] sm:$0xff]
                %647 = vst [vmem:[%s141 + $0x7e0] sm:$0xff] %v646
                %v648 = vld [vmem:[%s140 + $0xfc8] sm:$0xff]
                %649 = vst [vmem:[%s141 + $0x7e8] sm:$0xff] %v648
                %v650 = vld [vmem:[%s140 + $0xfd0] sm:$0xff]
                %651 = vst [vmem:[%s141 + $0x7f0] sm:$0xff] %v650
                %v652 = vld [vmem:[%s140 + $0xfd8] sm:$0xff]
                %653 = vst [vmem:[%s141 + $0x7f8] sm:$0xff] %v652
              $region37: #{gcn_forward.5} parent=31 // loop_footer
                %s139 = sadd.s32 1, %s135
              $region38: #{gcn_forward.5} parent=31 // loop_footer_branch
                %134 = sbr.rel target = $region34
              $region39: #{gcn_forward.5} parent=31 // loop_exit
                _
            $region32: #{gcn_forward.5} parent=27 // pred_fallthru
              _
            // Predicated region
            $region40: #{gcn_forward.5} parent=27 // pred_check
              _
            $region41: #{gcn_forward.5} parent=27 // pred_check_branch
              %655 = sbr.rel target = $region43
            $region42: #{gcn_forward.5} parent=27 // pred_region
              _
            $region43: #{gcn_forward.5} parent=27 // pred_fallthru
              _
          $region28: #{gcn_forward.5} parent=23 // pred_fallthru
            _
          %656 = vnop
        $region24: #{gcn_forward.5} parent=19 // pred_fallthru
          _
      $region20: #{gcn_forward.5} parent=5 // pred_fallthru
        _
      %p657 = scmp.le.s32.totalorder 1, %s8
      %p658 = scmp.lt.s32.totalorder %s8, 5
      %p659 = pnand %p657, %p658
      %p660 = pneg %p659
      // Predicated region
      $region44: #{gcn_forward.5} parent=5 // pred_check
        _
      $region45: #{gcn_forward.5} parent=5 // pred_check_branch
        %662 = sbr.rel (%p659) target = $region47
      $region46: #{gcn_forward.5} parent=5 // pred_region
        %s663 = ssub.s32 %s8, 1
        %s664 = sand.u32 %s35, 1
        %s665 = sand.u32 %s35, 1
        %s666 = smul.addr %s665, 2048
        %s667 = scalar_lea.vmem [#allocation2], %s666
        // Predicated region
        $region48: #{gcn_forward.5} parent=46 // pred_check
          %p668 = pneg %p48
        $region49: #{gcn_forward.5} parent=46 // pred_check_branch
          %670 = sbr.rel (%p668) target = $region51
        $region50: #{gcn_forward.5} parent=46 // pred_region
          _
        $region51: #{gcn_forward.5} parent=46 // pred_fallthru
          _
        %s671 = sand.u32 %s35, 1
        %s672 = sand.u32 %s35, 1
        %s673 = smul.addr %s672, 2048
        %s674 = scalar_lea.vmem [#allocation2], %s673
        %p675 = pneg %p48
        %p676 = pneg %p45
        %p677 = pneg %p69
        %p678 = pneg %p66
        %p679 = pneg %p95
        %p680 = pneg %p92
        %s681 = smul.u32 64, %s17
        %p682 = scmp.lt.s32.totalorder %s681, 127
        %s683 = scalar_select %p682, %s681, 127
        %s684 = smul.addr %s683, 8
        %s685 = scalar_lea.vmem %s2, %s684
        %s686 = smul.u32 64, %s17
        %s687 = smul.u32 4, %s18
        %s688 = smul.u32 64, %s17
        %p689 = scmp.lt.s32.totalorder %s688, 127
        %s690 = scalar_select %p689, %s688, 127
        %s691 = smul.addr %s690, 8
        %s692 = scalar_lea.vmem %s2, %s691
        %s693 = smul.u32 64, %s17
        %p694 = scmp.eq.s32.totalorder %s18, 0
        // Predicated region
        $region52: #{gcn_forward.5} parent=46 // pred_check
          %p695 = pneg %p694
        $region53: #{gcn_forward.5} parent=46 // pred_check_branch
          %697 = sbr.rel (%p695) target = $region55
        $region54: #{gcn_forward.5} parent=46 // pred_region
          %698 = vst [vmem:[%s692] sm:$0xff] 0.0
          %699 = vst [vmem:[%s692 + $0x8] sm:$0xff] 0.0
          %700 = vst [vmem:[%s692 + $0x10] sm:$0xff] 0.0
          %701 = vst [vmem:[%s692 + $0x18] sm:$0xff] 0.0
          %702 = vst [vmem:[%s692 + $0x20] sm:$0xff] 0.0
          %703 = vst [vmem:[%s692 + $0x28] sm:$0xff] 0.0
          %704 = vst [vmem:[%s692 + $0x30] sm:$0xff] 0.0
          %705 = vst [vmem:[%s692 + $0x38] sm:$0xff] 0.0
          %706 = vst [vmem:[%s692 + $0x40] sm:$0xff] 0.0
          %707 = vst [vmem:[%s692 + $0x48] sm:$0xff] 0.0
          %708 = vst [vmem:[%s692 + $0x50] sm:$0xff] 0.0
          %709 = vst [vmem:[%s692 + $0x58] sm:$0xff] 0.0
          %710 = vst [vmem:[%s692 + $0x60] sm:$0xff] 0.0
          %711 = vst [vmem:[%s692 + $0x68] sm:$0xff] 0.0
          %712 = vst [vmem:[%s692 + $0x70] sm:$0xff] 0.0
          %713 = vst [vmem:[%s692 + $0x78] sm:$0xff] 0.0
          %714 = vst [vmem:[%s692 + $0x80] sm:$0xff] 0.0
          %715 = vst [vmem:[%s692 + $0x88] sm:$0xff] 0.0
          %716 = vst [vmem:[%s692 + $0x90] sm:$0xff] 0.0
          %717 = vst [vmem:[%s692 + $0x98] sm:$0xff] 0.0
          %718 = vst [vmem:[%s692 + $0xa0] sm:$0xff] 0.0
          %719 = vst [vmem:[%s692 + $0xa8] sm:$0xff] 0.0
          %720 = vst [vmem:[%s692 + $0xb0] sm:$0xff] 0.0
          %721 = vst [vmem:[%s692 + $0xb8] sm:$0xff] 0.0
          %722 = vst [vmem:[%s692 + $0xc0] sm:$0xff] 0.0
          %723 = vst [vmem:[%s692 + $0xc8] sm:$0xff] 0.0
          %724 = vst [vmem:[%s692 + $0xd0] sm:$0xff] 0.0
          %725 = vst [vmem:[%s692 + $0xd8] sm:$0xff] 0.0
          %726 = vst [vmem:[%s692 + $0xe0] sm:$0xff] 0.0
          %727 = vst [vmem:[%s692 + $0xe8] sm:$0xff] 0.0
          %728 = vst [vmem:[%s692 + $0xf0] sm:$0xff] 0.0
          %729 = vst [vmem:[%s692 + $0xf8] sm:$0xff] 0.0
          %730 = vst [vmem:[%s692 + $0x100] sm:$0xff] 0.0
          %731 = vst [vmem:[%s692 + $0x108] sm:$0xff] 0.0
          %732 = vst [vmem:[%s692 + $0x110] sm:$0xff] 0.0
          %733 = vst [vmem:[%s692 + $0x118] sm:$0xff] 0.0
          %734 = vst [vmem:[%s692 + $0x120] sm:$0xff] 0.0
          %735 = vst [vmem:[%s692 + $0x128] sm:$0xff] 0.0
          %736 = vst [vmem:[%s692 + $0x130] sm:$0xff] 0.0
          %737 = vst [vmem:[%s692 + $0x138] sm:$0xff] 0.0
          %738 = vst [vmem:[%s692 + $0x140] sm:$0xff] 0.0
          %739 = vst [vmem:[%s692 + $0x148] sm:$0xff] 0.0
          %740 = vst [vmem:[%s692 + $0x150] sm:$0xff] 0.0
          %741 = vst [vmem:[%s692 + $0x158] sm:$0xff] 0.0
          %742 = vst [vmem:[%s692 + $0x160] sm:$0xff] 0.0
          %743 = vst [vmem:[%s692 + $0x168] sm:$0xff] 0.0
          %744 = vst [vmem:[%s692 + $0x170] sm:$0xff] 0.0
          %745 = vst [vmem:[%s692 + $0x178] sm:$0xff] 0.0
          %746 = vst [vmem:[%s692 + $0x180] sm:$0xff] 0.0
          %747 = vst [vmem:[%s692 + $0x188] sm:$0xff] 0.0
          %748 = vst [vmem:[%s692 + $0x190] sm:$0xff] 0.0
          %749 = vst [vmem:[%s692 + $0x198] sm:$0xff] 0.0
          %750 = vst [vmem:[%s692 + $0x1a0] sm:$0xff] 0.0
          %751 = vst [vmem:[%s692 + $0x1a8] sm:$0xff] 0.0
          %752 = vst [vmem:[%s692 + $0x1b0] sm:$0xff] 0.0
          %753 = vst [vmem:[%s692 + $0x1b8] sm:$0xff] 0.0
          %754 = vst [vmem:[%s692 + $0x1c0] sm:$0xff] 0.0
          %755 = vst [vmem:[%s692 + $0x1c8] sm:$0xff] 0.0
          %756 = vst [vmem:[%s692 + $0x1d0] sm:$0xff] 0.0
          %757 = vst [vmem:[%s692 + $0x1d8] sm:$0xff] 0.0
          %758 = vst [vmem:[%s692 + $0x1e0] sm:$0xff] 0.0
          %759 = vst [vmem:[%s692 + $0x1e8] sm:$0xff] 0.0
          %760 = vst [vmem:[%s692 + $0x1f0] sm:$0xff] 0.0
          %761 = vst [vmem:[%s692 + $0x1f8] sm:$0xff] 0.0
        $region55: #{gcn_forward.5} parent=46 // pred_fallthru
          _
        %s762 = smul.u32 %s18, 512
        %s763 = scalar_lea.vmem %s1, %s762
        %v764 = vld [vmem:[%s763] sm:$0xff]
        %v765 = vld [vmem:[%s763 + $0x8] sm:$0xff]
        %v766 = vld [vmem:[%s763 + $0x10] sm:$0xff]
        %v767 = vld [vmem:[%s763 + $0x18] sm:$0xff]
        %v768 = vld [vmem:[%s763 + $0x20] sm:$0xff]
        %v769 = vld [vmem:[%s763 + $0x28] sm:$0xff]
        %v770 = vld [vmem:[%s763 + $0x30] sm:$0xff]
        %v771 = vld [vmem:[%s763 + $0x38] sm:$0xff]
        %v772 = vld [vmem:[%s763 + $0x40] sm:$0xff]
        %v773 = vld [vmem:[%s763 + $0x48] sm:$0xff]
        %v774 = vld [vmem:[%s763 + $0x50] sm:$0xff]
        %v775 = vld [vmem:[%s763 + $0x58] sm:$0xff]
        %v776 = vld [vmem:[%s763 + $0x60] sm:$0xff]
        %v777 = vld [vmem:[%s763 + $0x68] sm:$0xff]
        %v778 = vld [vmem:[%s763 + $0x70] sm:$0xff]
        %v779 = vld [vmem:[%s763 + $0x78] sm:$0xff]
        %v780 = vld [vmem:[%s763 + $0x80] sm:$0xff]
        %v781 = vld [vmem:[%s763 + $0x88] sm:$0xff]
        %v782 = vld [vmem:[%s763 + $0x90] sm:$0xff]
        %v783 = vld [vmem:[%s763 + $0x98] sm:$0xff]
        %v784 = vld [vmem:[%s763 + $0xa0] sm:$0xff]
        %v785 = vld [vmem:[%s763 + $0xa8] sm:$0xff]
        %v786 = vld [vmem:[%s763 + $0xb0] sm:$0xff]
        %v787 = vld [vmem:[%s763 + $0xb8] sm:$0xff]
        %v788 = vld [vmem:[%s763 + $0xc0] sm:$0xff]
        %v789 = vld [vmem:[%s763 + $0xc8] sm:$0xff]
        %v790 = vld [vmem:[%s763 + $0xd0] sm:$0xff]
        %v791 = vld [vmem:[%s763 + $0xd8] sm:$0xff]
        %v792 = vld [vmem:[%s763 + $0xe0] sm:$0xff]
        %v793 = vld [vmem:[%s763 + $0xe8] sm:$0xff]
        %v794 = vld [vmem:[%s763 + $0xf0] sm:$0xff]
        %v795 = vld [vmem:[%s763 + $0xf8] sm:$0xff]
        %v796 = vld [vmem:[%s763 + $0x100] sm:$0xff]
        %v797 = vld [vmem:[%s763 + $0x108] sm:$0xff]
        %v798 = vld [vmem:[%s763 + $0x110] sm:$0xff]
        %v799 = vld [vmem:[%s763 + $0x118] sm:$0xff]
        %v800 = vld [vmem:[%s763 + $0x120] sm:$0xff]
        %v801 = vld [vmem:[%s763 + $0x128] sm:$0xff]
        %v802 = vld [vmem:[%s763 + $0x130] sm:$0xff]
        %v803 = vld [vmem:[%s763 + $0x138] sm:$0xff]
        %v804 = vld [vmem:[%s763 + $0x140] sm:$0xff]
        %v805 = vld [vmem:[%s763 + $0x148] sm:$0xff]
        %v806 = vld [vmem:[%s763 + $0x150] sm:$0xff]
        %v807 = vld [vmem:[%s763 + $0x158] sm:$0xff]
        %v808 = vld [vmem:[%s763 + $0x160] sm:$0xff]
        %v809 = vld [vmem:[%s763 + $0x168] sm:$0xff]
        %v810 = vld [vmem:[%s763 + $0x170] sm:$0xff]
        %v811 = vld [vmem:[%s763 + $0x178] sm:$0xff]
        %v812 = vld [vmem:[%s763 + $0x180] sm:$0xff]
        %v813 = vld [vmem:[%s763 + $0x188] sm:$0xff]
        %v814 = vld [vmem:[%s763 + $0x190] sm:$0xff]
        %v815 = vld [vmem:[%s763 + $0x198] sm:$0xff]
        %v816 = vld [vmem:[%s763 + $0x1a0] sm:$0xff]
        %v817 = vld [vmem:[%s763 + $0x1a8] sm:$0xff]
        %v818 = vld [vmem:[%s763 + $0x1b0] sm:$0xff]
        %v819 = vld [vmem:[%s763 + $0x1b8] sm:$0xff]
        %v820 = vld [vmem:[%s763 + $0x1c0] sm:$0xff]
        %v821 = vld [vmem:[%s763 + $0x1c8] sm:$0xff]
        %v822 = vld [vmem:[%s763 + $0x1d0] sm:$0xff]
        %v823 = vld [vmem:[%s763 + $0x1d8] sm:$0xff]
        %v824 = vld [vmem:[%s763 + $0x1e0] sm:$0xff]
        %v825 = vld [vmem:[%s763 + $0x1e8] sm:$0xff]
        %v826 = vld [vmem:[%s763 + $0x1f0] sm:$0xff]
        %v827 = vld [vmem:[%s763 + $0x1f8] sm:$0xff]
        %v828 = vld [vmem:[%s692] sm:$0xff]
        %v829 = vld [vmem:[%s692 + $0x8] sm:$0xff]
        %v830 = vld [vmem:[%s692 + $0x10] sm:$0xff]
        %v831 = vld [vmem:[%s692 + $0x18] sm:$0xff]
        %v832 = vld [vmem:[%s692 + $0x20] sm:$0xff]
        %v833 = vld [vmem:[%s692 + $0x28] sm:$0xff]
        %v834 = vld [vmem:[%s692 + $0x30] sm:$0xff]
        %v835 = vld [vmem:[%s692 + $0x38] sm:$0xff]
        %v836 = vld [vmem:[%s692 + $0x40] sm:$0xff]
        %v837 = vld [vmem:[%s692 + $0x48] sm:$0xff]
        %v838 = vld [vmem:[%s692 + $0x50] sm:$0xff]
        %v839 = vld [vmem:[%s692 + $0x58] sm:$0xff]
        %v840 = vld [vmem:[%s692 + $0x60] sm:$0xff]
        %v841 = vld [vmem:[%s692 + $0x68] sm:$0xff]
        %v842 = vld [vmem:[%s692 + $0x70] sm:$0xff]
        %v843 = vld [vmem:[%s692 + $0x78] sm:$0xff]
        %v844 = vld [vmem:[%s692 + $0x80] sm:$0xff]
        %v845 = vld [vmem:[%s692 + $0x88] sm:$0xff]
        %v846 = vld [vmem:[%s692 + $0x90] sm:$0xff]
        %v847 = vld [vmem:[%s692 + $0x98] sm:$0xff]
        %v848 = vld [vmem:[%s692 + $0xa0] sm:$0xff]
        %v849 = vld [vmem:[%s692 + $0xa8] sm:$0xff]
        %v850 = vld [vmem:[%s692 + $0xb0] sm:$0xff]
        %v851 = vld [vmem:[%s692 + $0xb8] sm:$0xff]
        %v852 = vld [vmem:[%s692 + $0xc0] sm:$0xff]
        %v853 = vld [vmem:[%s692 + $0xc8] sm:$0xff]
        %v854 = vld [vmem:[%s692 + $0xd0] sm:$0xff]
        %v855 = vld [vmem:[%s692 + $0xd8] sm:$0xff]
        %v856 = vld [vmem:[%s692 + $0xe0] sm:$0xff]
        %v857 = vld [vmem:[%s692 + $0xe8] sm:$0xff]
        %v858 = vld [vmem:[%s692 + $0xf0] sm:$0xff]
        %v859 = vld [vmem:[%s692 + $0xf8] sm:$0xff]
        %v860 = vld [vmem:[%s692 + $0x100] sm:$0xff]
        %v861 = vld [vmem:[%s692 + $0x108] sm:$0xff]
        %v862 = vld [vmem:[%s692 + $0x110] sm:$0xff]
        %v863 = vld [vmem:[%s692 + $0x118] sm:$0xff]
        %v864 = vld [vmem:[%s692 + $0x120] sm:$0xff]
        %v865 = vld [vmem:[%s692 + $0x128] sm:$0xff]
        %v866 = vld [vmem:[%s692 + $0x130] sm:$0xff]
        %v867 = vld [vmem:[%s692 + $0x138] sm:$0xff]
        %v868 = vld [vmem:[%s692 + $0x140] sm:$0xff]
        %v869 = vld [vmem:[%s692 + $0x148] sm:$0xff]
        %v870 = vld [vmem:[%s692 + $0x150] sm:$0xff]
        %v871 = vld [vmem:[%s692 + $0x158] sm:$0xff]
        %v872 = vld [vmem:[%s692 + $0x160] sm:$0xff]
        %v873 = vld [vmem:[%s692 + $0x168] sm:$0xff]
        %v874 = vld [vmem:[%s692 + $0x170] sm:$0xff]
        %v875 = vld [vmem:[%s692 + $0x178] sm:$0xff]
        %v876 = vld [vmem:[%s692 + $0x180] sm:$0xff]
        %v877 = vld [vmem:[%s692 + $0x188] sm:$0xff]
        %v878 = vld [vmem:[%s692 + $0x190] sm:$0xff]
        %v879 = vld [vmem:[%s692 + $0x198] sm:$0xff]
        %v880 = vld [vmem:[%s692 + $0x1a0] sm:$0xff]
        %v881 = vld [vmem:[%s692 + $0x1a8] sm:$0xff]
        %v882 = vld [vmem:[%s692 + $0x1b0] sm:$0xff]
        %v883 = vld [vmem:[%s692 + $0x1b8] sm:$0xff]
        %v884 = vld [vmem:[%s692 + $0x1c0] sm:$0xff]
        %v885 = vld [vmem:[%s692 + $0x1c8] sm:$0xff]
        %v886 = vld [vmem:[%s692 + $0x1d0] sm:$0xff]
        %v887 = vld [vmem:[%s692 + $0x1d8] sm:$0xff]
        %v888 = vld [vmem:[%s692 + $0x1e0] sm:$0xff]
        %v889 = vld [vmem:[%s692 + $0x1e8] sm:$0xff]
        %v890 = vld [vmem:[%s692 + $0x1f0] sm:$0xff]
        %v891 = vld [vmem:[%s692 + $0x1f8] sm:$0xff]
        %v892 = vld [vmem:[%s667] sm:$0xff]
        %v893 = vld [vmem:[%s667 + $0x8] sm:$0xff]
        %v894 = vld [vmem:[%s667 + $0x10] sm:$0xff]
        %v895 = vld [vmem:[%s667 + $0x18] sm:$0xff]
        %v896 = vld [vmem:[%s667 + $0x20] sm:$0xff]
        %v897 = vld [vmem:[%s667 + $0x28] sm:$0xff]
        %v898 = vld [vmem:[%s667 + $0x30] sm:$0xff]
        %v899 = vld [vmem:[%s667 + $0x38] sm:$0xff]
        %v900 = vld [vmem:[%s667 + $0x40] sm:$0xff]
        %v901 = vld [vmem:[%s667 + $0x48] sm:$0xff]
        %v902 = vld [vmem:[%s667 + $0x50] sm:$0xff]
        %v903 = vld [vmem:[%s667 + $0x58] sm:$0xff]
        %v904 = vld [vmem:[%s667 + $0x60] sm:$0xff]
        %v905 = vld [vmem:[%s667 + $0x68] sm:$0xff]
        %v906 = vld [vmem:[%s667 + $0x70] sm:$0xff]
        %v907 = vld [vmem:[%s667 + $0x78] sm:$0xff]
        %v908 = vld [vmem:[%s667 + $0x80] sm:$0xff]
        %v909 = vld [vmem:[%s667 + $0x88] sm:$0xff]
        %v910 = vld [vmem:[%s667 + $0x90] sm:$0xff]
        %v911 = vld [vmem:[%s667 + $0x98] sm:$0xff]
        %v912 = vld [vmem:[%s667 + $0xa0] sm:$0xff]
        %v913 = vld [vmem:[%s667 + $0xa8] sm:$0xff]
        %v914 = vld [vmem:[%s667 + $0xb0] sm:$0xff]
        %v915 = vld [vmem:[%s667 + $0xb8] sm:$0xff]
        %v916 = vld [vmem:[%s667 + $0xc0] sm:$0xff]
        %v917 = vld [vmem:[%s667 + $0xc8] sm:$0xff]
        %v918 = vld [vmem:[%s667 + $0xd0] sm:$0xff]
        %v919 = vld [vmem:[%s667 + $0xd8] sm:$0xff]
        %v920 = vld [vmem:[%s667 + $0xe0] sm:$0xff]
        %v921 = vld [vmem:[%s667 + $0xe8] sm:$0xff]
        %v922 = vld [vmem:[%s667 + $0xf0] sm:$0xff]
        %v923 = vld [vmem:[%s667 + $0xf8] sm:$0xff]
        %v924 = vld [vmem:[%s667 + $0x100] sm:$0xff]
        %v925 = vld [vmem:[%s667 + $0x108] sm:$0xff]
        %v926 = vld [vmem:[%s667 + $0x110] sm:$0xff]
        %v927 = vld [vmem:[%s667 + $0x118] sm:$0xff]
        %v928 = vld [vmem:[%s667 + $0x120] sm:$0xff]
        %v929 = vld [vmem:[%s667 + $0x128] sm:$0xff]
        %v930 = vld [vmem:[%s667 + $0x130] sm:$0xff]
        %v931 = vld [vmem:[%s667 + $0x138] sm:$0xff]
        %v932 = vld [vmem:[%s667 + $0x140] sm:$0xff]
        %v933 = vld [vmem:[%s667 + $0x148] sm:$0xff]
        %v934 = vld [vmem:[%s667 + $0x150] sm:$0xff]
        %v935 = vld [vmem:[%s667 + $0x158] sm:$0xff]
        %v936 = vld [vmem:[%s667 + $0x160] sm:$0xff]
        %v937 = vld [vmem:[%s667 + $0x168] sm:$0xff]
        %v938 = vld [vmem:[%s667 + $0x170] sm:$0xff]
        %v939 = vld [vmem:[%s667 + $0x178] sm:$0xff]
        %v940 = vld [vmem:[%s667 + $0x180] sm:$0xff]
        %v941 = vld [vmem:[%s667 + $0x188] sm:$0xff]
        %v942 = vld [vmem:[%s667 + $0x190] sm:$0xff]
        %v943 = vld [vmem:[%s667 + $0x198] sm:$0xff]
        %v944 = vld [vmem:[%s667 + $0x1a0] sm:$0xff]
        %v945 = vld [vmem:[%s667 + $0x1a8] sm:$0xff]
        %v946 = vld [vmem:[%s667 + $0x1b0] sm:$0xff]
        %v947 = vld [vmem:[%s667 + $0x1b8] sm:$0xff]
        %v948 = vld [vmem:[%s667 + $0x1c0] sm:$0xff]
        %v949 = vld [vmem:[%s667 + $0x1c8] sm:$0xff]
        %v950 = vld [vmem:[%s667 + $0x1d0] sm:$0xff]
        %v951 = vld [vmem:[%s667 + $0x1d8] sm:$0xff]
        %v952 = vld [vmem:[%s667 + $0x1e0] sm:$0xff]
        %v953 = vld [vmem:[%s667 + $0x1e8] sm:$0xff]
        %v954 = vld [vmem:[%s667 + $0x1f0] sm:$0xff]
        %v955 = vld [vmem:[%s667 + $0x1f8] sm:$0xff]
        %v956 = vld [vmem:[%s667 + $0x200] sm:$0xff]
        %v957 = vld [vmem:[%s667 + $0x208] sm:$0xff]
        %v958 = vld [vmem:[%s667 + $0x210] sm:$0xff]
        %v959 = vld [vmem:[%s667 + $0x218] sm:$0xff]
        %v960 = vld [vmem:[%s667 + $0x220] sm:$0xff]
        %v961 = vld [vmem:[%s667 + $0x228] sm:$0xff]
        %v962 = vld [vmem:[%s667 + $0x230] sm:$0xff]
        %v963 = vld [vmem:[%s667 + $0x238] sm:$0xff]
        %v964 = vld [vmem:[%s667 + $0x240] sm:$0xff]
        %v965 = vld [vmem:[%s667 + $0x248] sm:$0xff]
        %v966 = vld [vmem:[%s667 + $0x250] sm:$0xff]
        %v967 = vld [vmem:[%s667 + $0x258] sm:$0xff]
        %v968 = vld [vmem:[%s667 + $0x260] sm:$0xff]
        %v969 = vld [vmem:[%s667 + $0x268] sm:$0xff]
        %v970 = vld [vmem:[%s667 + $0x270] sm:$0xff]
        %v971 = vld [vmem:[%s667 + $0x278] sm:$0xff]
        %v972 = vld [vmem:[%s667 + $0x280] sm:$0xff]
        %v973 = vld [vmem:[%s667 + $0x288] sm:$0xff]
        %v974 = vld [vmem:[%s667 + $0x290] sm:$0xff]
        %v975 = vld [vmem:[%s667 + $0x298] sm:$0xff]
        %v976 = vld [vmem:[%s667 + $0x2a0] sm:$0xff]
        %v977 = vld [vmem:[%s667 + $0x2a8] sm:$0xff]
        %v978 = vld [vmem:[%s667 + $0x2b0] sm:$0xff]
        %v979 = vld [vmem:[%s667 + $0x2b8] sm:$0xff]
        %v980 = vld [vmem:[%s667 + $0x2c0] sm:$0xff]
        %v981 = vld [vmem:[%s667 + $0x2c8] sm:$0xff]
        %v982 = vld [vmem:[%s667 + $0x2d0] sm:$0xff]
        %v983 = vld [vmem:[%s667 + $0x2d8] sm:$0xff]
        %v984 = vld [vmem:[%s667 + $0x2e0] sm:$0xff]
        %v985 = vld [vmem:[%s667 + $0x2e8] sm:$0xff]
        %v986 = vld [vmem:[%s667 + $0x2f0] sm:$0xff]
        %v987 = vld [vmem:[%s667 + $0x2f8] sm:$0xff]
        %v988 = vld [vmem:[%s667 + $0x300] sm:$0xff]
        %v989 = vld [vmem:[%s667 + $0x308] sm:$0xff]
        %v990 = vld [vmem:[%s667 + $0x310] sm:$0xff]
        %v991 = vld [vmem:[%s667 + $0x318] sm:$0xff]
        %v992 = vld [vmem:[%s667 + $0x320] sm:$0xff]
        %v993 = vld [vmem:[%s667 + $0x328] sm:$0xff]
        %v994 = vld [vmem:[%s667 + $0x330] sm:$0xff]
        %v995 = vld [vmem:[%s667 + $0x338] sm:$0xff]
        %v996 = vld [vmem:[%s667 + $0x340] sm:$0xff]
        %v997 = vld [vmem:[%s667 + $0x348] sm:$0xff]
        %v998 = vld [vmem:[%s667 + $0x350] sm:$0xff]
        %v999 = vld [vmem:[%s667 + $0x358] sm:$0xff]
        %v1000 = vld [vmem:[%s667 + $0x360] sm:$0xff]
        %v1001 = vld [vmem:[%s667 + $0x368] sm:$0xff]
        %v1002 = vld [vmem:[%s667 + $0x370] sm:$0xff]
        %v1003 = vld [vmem:[%s667 + $0x378] sm:$0xff]
        %v1004 = vld [vmem:[%s667 + $0x380] sm:$0xff]
        %v1005 = vld [vmem:[%s667 + $0x388] sm:$0xff]
        %v1006 = vld [vmem:[%s667 + $0x390] sm:$0xff]
        %v1007 = vld [vmem:[%s667 + $0x398] sm:$0xff]
        %v1008 = vld [vmem:[%s667 + $0x3a0] sm:$0xff]
        %v1009 = vld [vmem:[%s667 + $0x3a8] sm:$0xff]
        %v1010 = vld [vmem:[%s667 + $0x3b0] sm:$0xff]
        %v1011 = vld [vmem:[%s667 + $0x3b8] sm:$0xff]
        %v1012 = vld [vmem:[%s667 + $0x3c0] sm:$0xff]
        %v1013 = vld [vmem:[%s667 + $0x3c8] sm:$0xff]
        %v1014 = vld [vmem:[%s667 + $0x3d0] sm:$0xff]
        %v1015 = vld [vmem:[%s667 + $0x3d8] sm:$0xff]
        %v1016 = vld [vmem:[%s667 + $0x3e0] sm:$0xff]
        %v1017 = vld [vmem:[%s667 + $0x3e8] sm:$0xff]
        %v1018 = vld [vmem:[%s667 + $0x3f0] sm:$0xff]
        %v1019 = vld [vmem:[%s667 + $0x3f8] sm:$0xff]
        %v1020 = vld [vmem:[%s667 + $0x400] sm:$0xff]
        %v1021 = vld [vmem:[%s667 + $0x408] sm:$0xff]
        %v1022 = vld [vmem:[%s667 + $0x410] sm:$0xff]
        %v1023 = vld [vmem:[%s667 + $0x418] sm:$0xff]
        %v1024 = vld [vmem:[%s667 + $0x420] sm:$0xff]
        %v1025 = vld [vmem:[%s667 + $0x428] sm:$0xff]
        %v1026 = vld [vmem:[%s667 + $0x430] sm:$0xff]
        %v1027 = vld [vmem:[%s667 + $0x438] sm:$0xff]
        %v1028 = vld [vmem:[%s667 + $0x440] sm:$0xff]
        %v1029 = vld [vmem:[%s667 + $0x448] sm:$0xff]
        %v1030 = vld [vmem:[%s667 + $0x450] sm:$0xff]
        %v1031 = vld [vmem:[%s667 + $0x458] sm:$0xff]
        %v1032 = vld [vmem:[%s667 + $0x460] sm:$0xff]
        %v1033 = vld [vmem:[%s667 + $0x468] sm:$0xff]
        %v1034 = vld [vmem:[%s667 + $0x470] sm:$0xff]
        %v1035 = vld [vmem:[%s667 + $0x478] sm:$0xff]
        %v1036 = vld [vmem:[%s667 + $0x480] sm:$0xff]
        %v1037 = vld [vmem:[%s667 + $0x488] sm:$0xff]
        %v1038 = vld [vmem:[%s667 + $0x490] sm:$0xff]
        %v1039 = vld [vmem:[%s667 + $0x498] sm:$0xff]
        %v1040 = vld [vmem:[%s667 + $0x4a0] sm:$0xff]
        %v1041 = vld [vmem:[%s667 + $0x4a8] sm:$0xff]
        %v1042 = vld [vmem:[%s667 + $0x4b0] sm:$0xff]
        %v1043 = vld [vmem:[%s667 + $0x4b8] sm:$0xff]
        %v1044 = vld [vmem:[%s667 + $0x4c0] sm:$0xff]
        %v1045 = vld [vmem:[%s667 + $0x4c8] sm:$0xff]
        %v1046 = vld [vmem:[%s667 + $0x4d0] sm:$0xff]
        %v1047 = vld [vmem:[%s667 + $0x4d8] sm:$0xff]
        %v1048 = vld [vmem:[%s667 + $0x4e0] sm:$0xff]
        %v1049 = vld [vmem:[%s667 + $0x4e8] sm:$0xff]
        %v1050 = vld [vmem:[%s667 + $0x4f0] sm:$0xff]
        %v1051 = vld [vmem:[%s667 + $0x4f8] sm:$0xff]
        %v1052 = vld [vmem:[%s667 + $0x500] sm:$0xff]
        %v1053 = vld [vmem:[%s667 + $0x508] sm:$0xff]
        %v1054 = vld [vmem:[%s667 + $0x510] sm:$0xff]
        %v1055 = vld [vmem:[%s667 + $0x518] sm:$0xff]
        %v1056 = vld [vmem:[%s667 + $0x520] sm:$0xff]
        %v1057 = vld [vmem:[%s667 + $0x528] sm:$0xff]
        %v1058 = vld [vmem:[%s667 + $0x530] sm:$0xff]
        %v1059 = vld [vmem:[%s667 + $0x538] sm:$0xff]
        %v1060 = vld [vmem:[%s667 + $0x540] sm:$0xff]
        %v1061 = vld [vmem:[%s667 + $0x548] sm:$0xff]
        %v1062 = vld [vmem:[%s667 + $0x550] sm:$0xff]
        %v1063 = vld [vmem:[%s667 + $0x558] sm:$0xff]
        %v1064 = vld [vmem:[%s667 + $0x560] sm:$0xff]
        %v1065 = vld [vmem:[%s667 + $0x568] sm:$0xff]
        %v1066 = vld [vmem:[%s667 + $0x570] sm:$0xff]
        %v1067 = vld [vmem:[%s667 + $0x578] sm:$0xff]
        %v1068 = vld [vmem:[%s667 + $0x580] sm:$0xff]
        %v1069 = vld [vmem:[%s667 + $0x588] sm:$0xff]
        %v1070 = vld [vmem:[%s667 + $0x590] sm:$0xff]
        %v1071 = vld [vmem:[%s667 + $0x598] sm:$0xff]
        %v1072 = vld [vmem:[%s667 + $0x5a0] sm:$0xff]
        %v1073 = vld [vmem:[%s667 + $0x5a8] sm:$0xff]
        %v1074 = vld [vmem:[%s667 + $0x5b0] sm:$0xff]
        %v1075 = vld [vmem:[%s667 + $0x5b8] sm:$0xff]
        %v1076 = vld [vmem:[%s667 + $0x5c0] sm:$0xff]
        %v1077 = vld [vmem:[%s667 + $0x5c8] sm:$0xff]
        %v1078 = vld [vmem:[%s667 + $0x5d0] sm:$0xff]
        %v1079 = vld [vmem:[%s667 + $0x5d8] sm:$0xff]
        %v1080 = vld [vmem:[%s667 + $0x5e0] sm:$0xff]
        %v1081 = vld [vmem:[%s667 + $0x5e8] sm:$0xff]
        %v1082 = vld [vmem:[%s667 + $0x5f0] sm:$0xff]
        %v1083 = vld [vmem:[%s667 + $0x5f8] sm:$0xff]
        %v1084 = vld [vmem:[%s667 + $0x600] sm:$0xff]
        %v1085 = vld [vmem:[%s667 + $0x608] sm:$0xff]
        %v1086 = vld [vmem:[%s667 + $0x610] sm:$0xff]
        %v1087 = vld [vmem:[%s667 + $0x618] sm:$0xff]
        %v1088 = vld [vmem:[%s667 + $0x620] sm:$0xff]
        %v1089 = vld [vmem:[%s667 + $0x628] sm:$0xff]
        %v1090 = vld [vmem:[%s667 + $0x630] sm:$0xff]
        %v1091 = vld [vmem:[%s667 + $0x638] sm:$0xff]
        %v1092 = vld [vmem:[%s667 + $0x640] sm:$0xff]
        %v1093 = vld [vmem:[%s667 + $0x648] sm:$0xff]
        %v1094 = vld [vmem:[%s667 + $0x650] sm:$0xff]
        %v1095 = vld [vmem:[%s667 + $0x658] sm:$0xff]
        %v1096 = vld [vmem:[%s667 + $0x660] sm:$0xff]
        %v1097 = vld [vmem:[%s667 + $0x668] sm:$0xff]
        %v1098 = vld [vmem:[%s667 + $0x670] sm:$0xff]
        %v1099 = vld [vmem:[%s667 + $0x678] sm:$0xff]
        %v1100 = vld [vmem:[%s667 + $0x680] sm:$0xff]
        %v1101 = vld [vmem:[%s667 + $0x688] sm:$0xff]
        %v1102 = vld [vmem:[%s667 + $0x690] sm:$0xff]
        %v1103 = vld [vmem:[%s667 + $0x698] sm:$0xff]
        %v1104 = vld [vmem:[%s667 + $0x6a0] sm:$0xff]
        %v1105 = vld [vmem:[%s667 + $0x6a8] sm:$0xff]
        %v1106 = vld [vmem:[%s667 + $0x6b0] sm:$0xff]
        %v1107 = vld [vmem:[%s667 + $0x6b8] sm:$0xff]
        %v1108 = vld [vmem:[%s667 + $0x6c0] sm:$0xff]
        %v1109 = vld [vmem:[%s667 + $0x6c8] sm:$0xff]
        %v1110 = vld [vmem:[%s667 + $0x6d0] sm:$0xff]
        %v1111 = vld [vmem:[%s667 + $0x6d8] sm:$0xff]
        %v1112 = vld [vmem:[%s667 + $0x6e0] sm:$0xff]
        %v1113 = vld [vmem:[%s667 + $0x6e8] sm:$0xff]
        %v1114 = vld [vmem:[%s667 + $0x6f0] sm:$0xff]
        %v1115 = vld [vmem:[%s667 + $0x6f8] sm:$0xff]
        %v1116 = vld [vmem:[%s667 + $0x700] sm:$0xff]
        %v1117 = vld [vmem:[%s667 + $0x708] sm:$0xff]
        %v1118 = vld [vmem:[%s667 + $0x710] sm:$0xff]
        %v1119 = vld [vmem:[%s667 + $0x718] sm:$0xff]
        %v1120 = vld [vmem:[%s667 + $0x720] sm:$0xff]
        %v1121 = vld [vmem:[%s667 + $0x728] sm:$0xff]
        %v1122 = vld [vmem:[%s667 + $0x730] sm:$0xff]
        %v1123 = vld [vmem:[%s667 + $0x738] sm:$0xff]
        %v1124 = vld [vmem:[%s667 + $0x740] sm:$0xff]
        %v1125 = vld [vmem:[%s667 + $0x748] sm:$0xff]
        %v1126 = vld [vmem:[%s667 + $0x750] sm:$0xff]
        %v1127 = vld [vmem:[%s667 + $0x758] sm:$0xff]
        %v1128 = vld [vmem:[%s667 + $0x760] sm:$0xff]
        %v1129 = vld [vmem:[%s667 + $0x768] sm:$0xff]
        %v1130 = vld [vmem:[%s667 + $0x770] sm:$0xff]
        %v1131 = vld [vmem:[%s667 + $0x778] sm:$0xff]
        %v1132 = vld [vmem:[%s667 + $0x780] sm:$0xff]
        %v1133 = vld [vmem:[%s667 + $0x788] sm:$0xff]
        %v1134 = vld [vmem:[%s667 + $0x790] sm:$0xff]
        %v1135 = vld [vmem:[%s667 + $0x798] sm:$0xff]
        %v1136 = vld [vmem:[%s667 + $0x7a0] sm:$0xff]
        %v1137 = vld [vmem:[%s667 + $0x7a8] sm:$0xff]
        %v1138 = vld [vmem:[%s667 + $0x7b0] sm:$0xff]
        %v1139 = vld [vmem:[%s667 + $0x7b8] sm:$0xff]
        %v1140 = vld [vmem:[%s667 + $0x7c0] sm:$0xff]
        %v1141 = vld [vmem:[%s667 + $0x7c8] sm:$0xff]
        %v1142 = vld [vmem:[%s667 + $0x7d0] sm:$0xff]
        %v1143 = vld [vmem:[%s667 + $0x7d8] sm:$0xff]
        %v1144 = vld [vmem:[%s667 + $0x7e0] sm:$0xff]
        %v1145 = vld [vmem:[%s667 + $0x7e8] sm:$0xff]
        %v1146 = vld [vmem:[%s667 + $0x7f0] sm:$0xff]
        %v1147 = vld [vmem:[%s667 + $0x7f8] sm:$0xff]
        %1148 = vmatprep.subr.mxu0 0.0
        %1149 = vmatpush1.msra.mxu0 %v764
        %1150 = vmatprep.subr.mxu0 0.0
        %1151 = vmatpush1.msra.mxu0 %v765
        %1152 = vmatprep.subr.mxu0 0.0
        %1153 = vmatpush1.msra.mxu0 %v766
        %1154 = vmatprep.subr.mxu0 0.0
        %1155 = vmatpush1.msra.mxu0 %v767
        %1156 = vmatprep.subr.mxu0 0.0
        %1157 = vmatpush1.msra.mxu0 %v768
        %1158 = vmatprep.subr.mxu0 0.0
        %1159 = vmatpush1.msra.mxu0 %v769
        %1160 = vmatprep.subr.mxu0 0.0
        %1161 = vmatpush1.msra.mxu0 %v770
        %1162 = vmatprep.subr.mxu0 0.0
        %1163 = vmatpush1.msra.mxu0 %v771
        %1164 = vmatprep.subr.mxu0 0.0
        %1165 = vmatpush1.msra.mxu0 %v772
        %1166 = vmatprep.subr.mxu0 0.0
        %1167 = vmatpush1.msra.mxu0 %v773
        %1168 = vmatprep.subr.mxu0 0.0
        %1169 = vmatpush1.msra.mxu0 %v774
        %1170 = vmatprep.subr.mxu0 0.0
        %1171 = vmatpush1.msra.mxu0 %v775
        %1172 = vmatprep.subr.mxu0 0.0
        %1173 = vmatpush1.msra.mxu0 %v776
        %1174 = vmatprep.subr.mxu0 0.0
        %1175 = vmatpush1.msra.mxu0 %v777
        %1176 = vmatprep.subr.mxu0 0.0
        %1177 = vmatpush1.msra.mxu0 %v778
        %1178 = vmatprep.subr.mxu0 0.0
        %1179 = vmatpush1.msra.mxu0 %v779
        %1180 = vmatprep.subr.mxu0 0.0
        %1181 = vmatpush1.msra.mxu0 %v780
        %1182 = vmatprep.subr.mxu0 0.0
        %1183 = vmatpush1.msra.mxu0 %v781
        %1184 = vmatprep.subr.mxu0 0.0
        %1185 = vmatpush1.msra.mxu0 %v782
        %1186 = vmatprep.subr.mxu0 0.0
        %1187 = vmatpush1.msra.mxu0 %v783
        %1188 = vmatprep.subr.mxu0 0.0
        %1189 = vmatpush1.msra.mxu0 %v784
        %1190 = vmatprep.subr.mxu0 0.0
        %1191 = vmatpush1.msra.mxu0 %v785
        %1192 = vmatprep.subr.mxu0 0.0
        %1193 = vmatpush1.msra.mxu0 %v786
        %1194 = vmatprep.subr.mxu0 0.0
        %1195 = vmatpush1.msra.mxu0 %v787
        %1196 = vmatprep.subr.mxu0 0.0
        %1197 = vmatpush1.msra.mxu0 %v788
        %1198 = vmatprep.subr.mxu0 0.0
        %1199 = vmatpush1.msra.mxu0 %v789
        %1200 = vmatprep.subr.mxu0 0.0
        %1201 = vmatpush1.msra.mxu0 %v790
        %1202 = vmatprep.subr.mxu0 0.0
        %1203 = vmatpush1.msra.mxu0 %v791
        %1204 = vmatprep.subr.mxu0 0.0
        %1205 = vmatpush1.msra.mxu0 %v792
        %1206 = vmatprep.subr.mxu0 0.0
        %1207 = vmatpush1.msra.mxu0 %v793
        %1208 = vmatprep.subr.mxu0 0.0
        %1209 = vmatpush1.msra.mxu0 %v794
        %1210 = vmatprep.subr.mxu0 0.0
        %1211 = vmatpush1.msra.mxu0 %v795
        %1212 = vmatprep.mubr.f32.mxu0 %v893
        %1213 = vmatmul.mubr.f32.gmra.mrb[0].mxu0 %v892
        %v1214 = vpop.f32.mrb[0].mxu0
        %v1215 = vadd.f32 0.0, %v1214
        %v1216 = vpop.f32.mrb[0].mxu0
        %1217 = vmatprep.mubr.f32.mxu0 %v897
        %1218 = vmatmul.mubr.f32.gmra.mrb[0].mxu0 %v896
        %v1219 = vpop.f32.mrb[0].mxu0
        %v1220 = vadd.f32 0.0, %v1219
        %v1221 = vpop.f32.mrb[0].mxu0
        %1222 = vmatprep.mubr.f32.mxu0 %v901
        %1223 = vmatmul.mubr.f32.gmra.mrb[0].mxu0 %v900
        %v1224 = vpop.f32.mrb[0].mxu0
        %v1225 = vadd.f32 0.0, %v1224
        %v1226 = vpop.f32.mrb[0].mxu0
        %1227 = vmatprep.mubr.f32.mxu0 %v905
        %1228 = vmatmul.mubr.f32.gmra.mrb[0].mxu0 %v904
        %v1229 = vpop.f32.mrb[0].mxu0
        %v1230 = vadd.f32 0.0, %v1229
        %v1231 = vpop.f32.mrb[0].mxu0
        %1232 = vmatprep.mubr.f32.mxu0 %v909
        %1233 = vmatmul.mubr.f32.gmra.mrb[0].mxu0 %v908
        %v1234 = vpop.f32.mrb[0].mxu0
        %v1235 = vadd.f32 0.0, %v1234
        %v1236 = vpop.f32.mrb[0].mxu0
        %1237 = vmatprep.mubr.f32.mxu0 %v913
        %1238 = vmatmul.mubr.f32.gmra.mrb[0].mxu0 %v912
        %v1239 = vpop.f32.mrb[0].mxu0
        %v1240 = vadd.f32 0.0, %v1239
        %v1241 = vpop.f32.mrb[0].mxu0
        %1242 = vmatprep.mubr.f32.mxu0 %v917
        %1243 = vmatmul.mubr.f32.gmra.mrb[0].mxu0 %v916
        %v1244 = vpop.f32.mrb[0].mxu0
        %v1245 = vadd.f32 0.0, %v1244
        %v1246 = vpop.f32.mrb[0].mxu0
        %1247 = vmatprep.mubr.f32.mxu0 %v921
        %1248 = vmatmul.mubr.f32.gmra.mrb[0].mxu0 %v920
        %v1249 = vpop.f32.mrb[0].mxu0
        %v1250 = vadd.f32 0.0, %v1249
        %v1251 = vpop.f32.mrb[0].mxu0
        %1252 = vmatprep.mubr.f32.mxu0 %v925
        %1253 = vmatmul.mubr.f32.gmra.mrb[0].mxu0 %v924
        %v1254 = vpop.f32.mrb[0].mxu0
        %v1255 = vadd.f32 0.0, %v1254
        %v1256 = vpop.f32.mrb[0].mxu0
        %1257 = vmatprep.mubr.f32.mxu0 %v929
        %1258 = vmatmul.mubr.f32.gmra.mrb[0].mxu0 %v928
        %v1259 = vpop.f32.mrb[0].mxu0
        %v1260 = vadd.f32 0.0, %v1259
        %v1261 = vpop.f32.mrb[0].mxu0
        %1262 = vmatprep.mubr.f32.mxu0 %v933
        %1263 = vmatmul.mubr.f32.gmra.mrb[0].mxu0 %v932
        %v1264 = vpop.f32.mrb[0].mxu0
        %v1265 = vadd.f32 0.0, %v1264
        %v1266 = vpop.f32.mrb[0].mxu0
        %1267 = vmatprep.mubr.f32.mxu0 %v937
        %1268 = vmatmul.mubr.f32.gmra.mrb[0].mxu0 %v936
        %v1269 = vpop.f32.mrb[0].mxu0
        %v1270 = vadd.f32 0.0, %v1269
        %v1271 = vpop.f32.mrb[0].mxu0
        %1272 = vmatprep.mubr.f32.mxu0 %v941
        %1273 = vmatmul.mubr.f32.gmra.mrb[0].mxu0 %v940
        %v1274 = vpop.f32.mrb[0].mxu0
        %v1275 = vadd.f32 0.0, %v1274
        %v1276 = vpop.f32.mrb[0].mxu0
        %1277 = vmatprep.mubr.f32.mxu0 %v945
        %1278 = vmatmul.mubr.f32.gmra.mrb[0].mxu0 %v944
        %v1279 = vpop.f32.mrb[0].mxu0
        %v1280 = vadd.f32 0.0, %v1279
        %v1281 = vpop.f32.mrb[0].mxu0
        %1282 = vmatprep.mubr.f32.mxu0 %v949
        %1283 = vmatmul.mubr.f32.gmra.mrb[0].mxu0 %v948
        %v1284 = vpop.f32.mrb[0].mxu0
        %v1285 = vadd.f32 0.0, %v1284
        %v1286 = vpop.f32.mrb[0].mxu0
        %1287 = vmatprep.mubr.f32.mxu0 %v953
        %1288 = vmatmul.mubr.f32.gmra.mrb[0].mxu0 %v952
        %v1289 = vpop.f32.mrb[0].mxu0
        %v1290 = vadd.f32 0.0, %v1289
        %v1291 = vpop.f32.mrb[0].mxu0
        %1292 = vmatprep.mubr.f32.mxu0 %v957
        %1293 = vmatmul.mubr.f32.gmra.mrb[0].mxu0 %v956
        %v1294 = vpop.f32.mrb[0].mxu0
        %v1295 = vadd.f32 0.0, %v1294
        %v1296 = vpop.f32.mrb[0].mxu0
        %1297 = vmatprep.mubr.f32.mxu0 %v961
        %1298 = vmatmul.mubr.f32.gmra.mrb[0].mxu0 %v960
        %v1299 = vpop.f32.mrb[0].mxu0
        %v1300 = vadd.f32 0.0, %v1299
        %v1301 = vpop.f32.mrb[0].mxu0
        %1302 = vmatprep.mubr.f32.mxu0 %v965
        %1303 = vmatmul.mubr.f32.gmra.mrb[0].mxu0 %v964
        %v1304 = vpop.f32.mrb[0].mxu0
        %v1305 = vadd.f32 0.0, %v1304
        %v1306 = vpop.f32.mrb[0].mxu0
        %1307 = vmatprep.mubr.f32.mxu0 %v969
        %1308 = vmatmul.mubr.f32.gmra.mrb[0].mxu0 %v968
        %v1309 = vpop.f32.mrb[0].mxu0
        %v1310 = vadd.f32 0.0, %v1309
        %v1311 = vpop.f32.mrb[0].mxu0
        %1312 = vmatprep.mubr.f32.mxu0 %v973
        %1313 = vmatmul.mubr.f32.gmra.mrb[0].mxu0 %v972
        %v1314 = vpop.f32.mrb[0].mxu0
        %v1315 = vadd.f32 0.0, %v1314
        %v1316 = vpop.f32.mrb[0].mxu0
        %1317 = vmatprep.mubr.f32.mxu0 %v977
        %1318 = vmatmul.mubr.f32.gmra.mrb[0].mxu0 %v976
        %v1319 = vpop.f32.mrb[0].mxu0
        %v1320 = vadd.f32 0.0, %v1319
        %v1321 = vpop.f32.mrb[0].mxu0
        %1322 = vmatprep.mubr.f32.mxu0 %v981
        %1323 = vmatmul.mubr.f32.gmra.mrb[0].mxu0 %v980
        %v1324 = vpop.f32.mrb[0].mxu0
        %v1325 = vadd.f32 0.0, %v1324
        %v1326 = vpop.f32.mrb[0].mxu0
        %1327 = vmatprep.mubr.f32.mxu0 %v985
        %1328 = vmatmul.mubr.f32.gmra.mrb[0].mxu0 %v984
        %v1329 = vpop.f32.mrb[0].mxu0
        %v1330 = vadd.f32 0.0, %v1329
        %v1331 = vpop.f32.mrb[0].mxu0
        %1332 = vmatprep.mubr.f32.mxu0 %v989
        %1333 = vmatmul.mubr.f32.gmra.mrb[0].mxu0 %v988
        %v1334 = vpop.f32.mrb[0].mxu0
        %v1335 = vadd.f32 0.0, %v1334
        %v1336 = vpop.f32.mrb[0].mxu0
        %1337 = vmatprep.mubr.f32.mxu0 %v993
        %1338 = vmatmul.mubr.f32.gmra.mrb[0].mxu0 %v992
        %v1339 = vpop.f32.mrb[0].mxu0
        %v1340 = vadd.f32 0.0, %v1339
        %v1341 = vpop.f32.mrb[0].mxu0
        %1342 = vmatprep.mubr.f32.mxu0 %v997
        %1343 = vmatmul.mubr.f32.gmra.mrb[0].mxu0 %v996
        %v1344 = vpop.f32.mrb[0].mxu0
        %v1345 = vadd.f32 0.0, %v1344
        %v1346 = vpop.f32.mrb[0].mxu0
        %1347 = vmatprep.mubr.f32.mxu0 %v1001
        %1348 = vmatmul.mubr.f32.gmra.mrb[0].mxu0 %v1000
        %v1349 = vpop.f32.mrb[0].mxu0
        %v1350 = vadd.f32 0.0, %v1349
        %v1351 = vpop.f32.mrb[0].mxu0
        %1352 = vmatprep.mubr.f32.mxu0 %v1005
        %1353 = vmatmul.mubr.f32.gmra.mrb[0].mxu0 %v1004
        %v1354 = vpop.f32.mrb[0].mxu0
        %v1355 = vadd.f32 0.0, %v1354
        %v1356 = vpop.f32.mrb[0].mxu0
        %1357 = vmatprep.mubr.f32.mxu0 %v1009
        %1358 = vmatmul.mubr.f32.gmra.mrb[0].mxu0 %v1008
        %v1359 = vpop.f32.mrb[0].mxu0
        %v1360 = vadd.f32 0.0, %v1359
        %v1361 = vpop.f32.mrb[0].mxu0
        %1362 = vmatprep.mubr.f32.mxu0 %v1013
        %1363 = vmatmul.mubr.f32.gmra.mrb[0].mxu0 %v1012
        %v1364 = vpop.f32.mrb[0].mxu0
        %v1365 = vadd.f32 0.0, %v1364
        %v1366 = vpop.f32.mrb[0].mxu0
        %1367 = vmatprep.mubr.f32.mxu0 %v1017
        %1368 = vmatmul.mubr.f32.gmra.mrb[0].mxu0 %v1016
        %v1369 = vpop.f32.mrb[0].mxu0
        %v1370 = vadd.f32 0.0, %v1369
        %v1371 = vpop.f32.mrb[0].mxu0
        %1372 = vmatprep.mubr.f32.mxu0 %v1021
        %1373 = vmatmul.mubr.f32.gmra.mrb[0].mxu0 %v1020
        %v1374 = vpop.f32.mrb[0].mxu0
        %v1375 = vadd.f32 0.0, %v1374
        %v1376 = vpop.f32.mrb[0].mxu0
        %1377 = vmatprep.mubr.f32.mxu0 %v1025
        %1378 = vmatmul.mubr.f32.gmra.mrb[0].mxu0 %v1024
        %v1379 = vpop.f32.mrb[0].mxu0
        %v1380 = vadd.f32 0.0, %v1379
        %v1381 = vpop.f32.mrb[0].mxu0
        %1382 = vmatprep.mubr.f32.mxu0 %v1029
        %1383 = vmatmul.mubr.f32.gmra.mrb[0].mxu0 %v1028
        %v1384 = vpop.f32.mrb[0].mxu0
        %v1385 = vadd.f32 0.0, %v1384
        %v1386 = vpop.f32.mrb[0].mxu0
        %1387 = vmatprep.mubr.f32.mxu0 %v1033
        %1388 = vmatmul.mubr.f32.gmra.mrb[0].mxu0 %v1032
        %v1389 = vpop.f32.mrb[0].mxu0
        %v1390 = vadd.f32 0.0, %v1389
        %v1391 = vpop.f32.mrb[0].mxu0
        %1392 = vmatprep.mubr.f32.mxu0 %v1037
        %1393 = vmatmul.mubr.f32.gmra.mrb[0].mxu0 %v1036
        %v1394 = vpop.f32.mrb[0].mxu0
        %v1395 = vadd.f32 0.0, %v1394
        %v1396 = vpop.f32.mrb[0].mxu0
        %1397 = vmatprep.mubr.f32.mxu0 %v1041
        %1398 = vmatmul.mubr.f32.gmra.mrb[0].mxu0 %v1040
        %v1399 = vpop.f32.mrb[0].mxu0
        %v1400 = vadd.f32 0.0, %v1399
        %v1401 = vpop.f32.mrb[0].mxu0
        %1402 = vmatprep.mubr.f32.mxu0 %v1045
        %1403 = vmatmul.mubr.f32.gmra.mrb[0].mxu0 %v1044
        %v1404 = vpop.f32.mrb[0].mxu0
        %v1405 = vadd.f32 0.0, %v1404
        %v1406 = vpop.f32.mrb[0].mxu0
        %1407 = vmatprep.mubr.f32.mxu0 %v1049
        %1408 = vmatmul.mubr.f32.gmra.mrb[0].mxu0 %v1048
        %v1409 = vpop.f32.mrb[0].mxu0
        %v1410 = vadd.f32 0.0, %v1409
        %v1411 = vpop.f32.mrb[0].mxu0
        %1412 = vmatprep.mubr.f32.mxu0 %v1053
        %1413 = vmatmul.mubr.f32.gmra.mrb[0].mxu0 %v1052
        %v1414 = vpop.f32.mrb[0].mxu0
        %v1415 = vadd.f32 0.0, %v1414
        %v1416 = vpop.f32.mrb[0].mxu0
        %1417 = vmatprep.mubr.f32.mxu0 %v1057
        %1418 = vmatmul.mubr.f32.gmra.mrb[0].mxu0 %v1056
        %v1419 = vpop.f32.mrb[0].mxu0
        %v1420 = vadd.f32 0.0, %v1419
        %v1421 = vpop.f32.mrb[0].mxu0
        %1422 = vmatprep.mubr.f32.mxu0 %v1061
        %1423 = vmatmul.mubr.f32.gmra.mrb[0].mxu0 %v1060
        %v1424 = vpop.f32.mrb[0].mxu0
        %v1425 = vadd.f32 0.0, %v1424
        %v1426 = vpop.f32.mrb[0].mxu0
        %1427 = vmatprep.mubr.f32.mxu0 %v1065
        %1428 = vmatmul.mubr.f32.gmra.mrb[0].mxu0 %v1064
        %v1429 = vpop.f32.mrb[0].mxu0
        %v1430 = vadd.f32 0.0, %v1429
        %v1431 = vpop.f32.mrb[0].mxu0
        %1432 = vmatprep.mubr.f32.mxu0 %v1069
        %1433 = vmatmul.mubr.f32.gmra.mrb[0].mxu0 %v1068
        %v1434 = vpop.f32.mrb[0].mxu0
        %v1435 = vadd.f32 0.0, %v1434
        %v1436 = vpop.f32.mrb[0].mxu0
        %1437 = vmatprep.mubr.f32.mxu0 %v1073
        %1438 = vmatmul.mubr.f32.gmra.mrb[0].mxu0 %v1072
        %v1439 = vpop.f32.mrb[0].mxu0
        %v1440 = vadd.f32 0.0, %v1439
        %v1441 = vpop.f32.mrb[0].mxu0
        %1442 = vmatprep.mubr.f32.mxu0 %v1077
        %1443 = vmatmul.mubr.f32.gmra.mrb[0].mxu0 %v1076
        %v1444 = vpop.f32.mrb[0].mxu0
        %v1445 = vadd.f32 0.0, %v1444
        %v1446 = vpop.f32.mrb[0].mxu0
        %1447 = vmatprep.mubr.f32.mxu0 %v1081
        %1448 = vmatmul.mubr.f32.gmra.mrb[0].mxu0 %v1080
        %v1449 = vpop.f32.mrb[0].mxu0
        %v1450 = vadd.f32 0.0, %v1449
        %v1451 = vpop.f32.mrb[0].mxu0
        %1452 = vmatprep.mubr.f32.mxu0 %v1085
        %1453 = vmatmul.mubr.f32.gmra.mrb[0].mxu0 %v1084
        %v1454 = vpop.f32.mrb[0].mxu0
        %v1455 = vadd.f32 0.0, %v1454
        %v1456 = vpop.f32.mrb[0].mxu0
        %1457 = vmatprep.mubr.f32.mxu0 %v1089
        %1458 = vmatmul.mubr.f32.gmra.mrb[0].mxu0 %v1088
        %v1459 = vpop.f32.mrb[0].mxu0
        %v1460 = vadd.f32 0.0, %v1459
        %v1461 = vpop.f32.mrb[0].mxu0
        %1462 = vmatprep.mubr.f32.mxu0 %v1093
        %1463 = vmatmul.mubr.f32.gmra.mrb[0].mxu0 %v1092
        %v1464 = vpop.f32.mrb[0].mxu0
        %v1465 = vadd.f32 0.0, %v1464
        %v1466 = vpop.f32.mrb[0].mxu0
        %1467 = vmatprep.mubr.f32.mxu0 %v1097
        %1468 = vmatmul.mubr.f32.gmra.mrb[0].mxu0 %v1096
        %v1469 = vpop.f32.mrb[0].mxu0
        %v1470 = vadd.f32 0.0, %v1469
        %v1471 = vpop.f32.mrb[0].mxu0
        %1472 = vmatprep.mubr.f32.mxu0 %v1101
        %1473 = vmatmul.mubr.f32.gmra.mrb[0].mxu0 %v1100
        %v1474 = vpop.f32.mrb[0].mxu0
        %v1475 = vadd.f32 0.0, %v1474
        %v1476 = vpop.f32.mrb[0].mxu0
        %1477 = vmatprep.mubr.f32.mxu0 %v1105
        %1478 = vmatmul.mubr.f32.gmra.mrb[0].mxu0 %v1104
        %v1479 = vpop.f32.mrb[0].mxu0
        %v1480 = vadd.f32 0.0, %v1479
        %v1481 = vpop.f32.mrb[0].mxu0
        %1482 = vmatprep.mubr.f32.mxu0 %v1109
        %1483 = vmatmul.mubr.f32.gmra.mrb[0].mxu0 %v1108
        %v1484 = vpop.f32.mrb[0].mxu0
        %v1485 = vadd.f32 0.0, %v1484
        %v1486 = vpop.f32.mrb[0].mxu0
        %1487 = vmatprep.mubr.f32.mxu0 %v1113
        %1488 = vmatmul.mubr.f32.gmra.mrb[0].mxu0 %v1112
        %v1489 = vpop.f32.mrb[0].mxu0
        %v1490 = vadd.f32 0.0, %v1489
        %v1491 = vpop.f32.mrb[0].mxu0
        %1492 = vmatprep.mubr.f32.mxu0 %v1117
        %1493 = vmatmul.mubr.f32.gmra.mrb[0].mxu0 %v1116
        %v1494 = vpop.f32.mrb[0].mxu0
        %v1495 = vadd.f32 0.0, %v1494
        %v1496 = vpop.f32.mrb[0].mxu0
        %1497 = vmatprep.mubr.f32.mxu0 %v1121
        %1498 = vmatmul.mubr.f32.gmra.mrb[0].mxu0 %v1120
        %v1499 = vpop.f32.mrb[0].mxu0
        %v1500 = vadd.f32 0.0, %v1499
        %v1501 = vpop.f32.mrb[0].mxu0
        %1502 = vmatprep.mubr.f32.mxu0 %v1125
        %1503 = vmatmul.mubr.f32.gmra.mrb[0].mxu0 %v1124
        %v1504 = vpop.f32.mrb[0].mxu0
        %v1505 = vadd.f32 0.0, %v1504
        %v1506 = vpop.f32.mrb[0].mxu0
        %1507 = vmatprep.mubr.f32.mxu0 %v1129
        %1508 = vmatmul.mubr.f32.gmra.mrb[0].mxu0 %v1128
        %v1509 = vpop.f32.mrb[0].mxu0
        %v1510 = vadd.f32 0.0, %v1509
        %v1511 = vpop.f32.mrb[0].mxu0
        %1512 = vmatprep.mubr.f32.mxu0 %v1133
        %1513 = vmatmul.mubr.f32.gmra.mrb[0].mxu0 %v1132
        %v1514 = vpop.f32.mrb[0].mxu0
        %v1515 = vadd.f32 0.0, %v1514
        %v1516 = vpop.f32.mrb[0].mxu0
        %1517 = vmatprep.mubr.f32.mxu0 %v1137
        %1518 = vmatmul.mubr.f32.gmra.mrb[0].mxu0 %v1136
        %v1519 = vpop.f32.mrb[0].mxu0
        %v1520 = vadd.f32 0.0, %v1519
        %v1521 = vpop.f32.mrb[0].mxu0
        %1522 = vmatprep.mubr.f32.mxu0 %v1141
        %1523 = vmatmul.mubr.f32.gmra.mrb[0].mxu0 %v1140
        %v1524 = vpop.f32.mrb[0].mxu0
        %v1525 = vadd.f32 0.0, %v1524
        %v1526 = vpop.f32.mrb[0].mxu0
        %1527 = vmatprep.mubr.f32.mxu0 %v1145
        %1528 = vmatmul.mubr.f32.gmra.mrb[0].mxu0 %v1144
        %v1529 = vpop.f32.mrb[0].mxu0
        %v1530 = vadd.f32 0.0, %v1529
        %v1531 = vpop.f32.mrb[0].mxu0
        %1532 = vdwg.mxu0
        %1533 = vmatprep.subr.mxu0 0.0
        %1534 = vmatpush1.msra.mxu0 %v796
        %1535 = vmatprep.subr.mxu0 0.0
        %1536 = vmatpush1.msra.mxu0 %v797
        %1537 = vmatprep.subr.mxu0 0.0
        %1538 = vmatpush1.msra.mxu0 %v798
        %1539 = vmatprep.subr.mxu0 0.0
        %1540 = vmatpush1.msra.mxu0 %v799
        %1541 = vmatprep.subr.mxu0 0.0
        %1542 = vmatpush1.msra.mxu0 %v800
        %1543 = vmatprep.subr.mxu0 0.0
        %1544 = vmatpush1.msra.mxu0 %v801
        %1545 = vmatprep.subr.mxu0 0.0
        %1546 = vmatpush1.msra.mxu0 %v802
        %1547 = vmatprep.subr.mxu0 0.0
        %1548 = vmatpush1.msra.mxu0 %v803
        %1549 = vmatprep.subr.mxu0 0.0
        %1550 = vmatpush1.msra.mxu0 %v804
        %1551 = vmatprep.subr.mxu0 0.0
        %1552 = vmatpush1.msra.mxu0 %v805
        %1553 = vmatprep.subr.mxu0 0.0
        %1554 = vmatpush1.msra.mxu0 %v806
        %1555 = vmatprep.subr.mxu0 0.0
        %1556 = vmatpush1.msra.mxu0 %v807
        %1557 = vmatprep.subr.mxu0 0.0
        %1558 = vmatpush1.msra.mxu0 %v808
        %1559 = vmatprep.subr.mxu0 0.0
        %1560 = vmatpush1.msra.mxu0 %v809
        %1561 = vmatprep.subr.mxu0 0.0
        %1562 = vmatpush1.msra.mxu0 %v810
        %1563 = vmatprep.subr.mxu0 0.0
        %1564 = vmatpush1.msra.mxu0 %v811
        %1565 = vmatprep.subr.mxu0 0.0
        %1566 = vmatpush1.msra.mxu0 %v812
        %1567 = vmatprep.subr.mxu0 0.0
        %1568 = vmatpush1.msra.mxu0 %v813
        %1569 = vmatprep.subr.mxu0 0.0
        %1570 = vmatpush1.msra.mxu0 %v814
        %1571 = vmatprep.subr.mxu0 0.0
        %1572 = vmatpush1.msra.mxu0 %v815
        %1573 = vmatprep.subr.mxu0 0.0
        %1574 = vmatpush1.msra.mxu0 %v816
        %1575 = vmatprep.subr.mxu0 0.0
        %1576 = vmatpush1.msra.mxu0 %v817
        %1577 = vmatprep.subr.mxu0 0.0
        %1578 = vmatpush1.msra.mxu0 %v818
        %1579 = vmatprep.subr.mxu0 0.0
        %1580 = vmatpush1.msra.mxu0 %v819
        %1581 = vmatprep.subr.mxu0 0.0
        %1582 = vmatpush1.msra.mxu0 %v820
        %1583 = vmatprep.subr.mxu0 0.0
        %1584 = vmatpush1.msra.mxu0 %v821
        %1585 = vmatprep.subr.mxu0 0.0
        %1586 = vmatpush1.msra.mxu0 %v822
        %1587 = vmatprep.subr.mxu0 0.0
        %1588 = vmatpush1.msra.mxu0 %v823
        %1589 = vmatprep.subr.mxu0 0.0
        %1590 = vmatpush1.msra.mxu0 %v824
        %1591 = vmatprep.subr.mxu0 0.0
        %1592 = vmatpush1.msra.mxu0 %v825
        %1593 = vmatprep.subr.mxu0 0.0
        %1594 = vmatpush1.msra.mxu0 %v826
        %1595 = vmatprep.subr.mxu0 0.0
        %1596 = vmatpush1.msra.mxu0 %v827
        %1597 = vmatprep.mubr.f32.mxu0 %v895
        %1598 = vmatmul.mubr.f32.gmra.mrb[0].mxu0 %v894
        %v1599 = vpop.f32.mrb[0].mxu0
        %v1600 = vadd.f32 %v1215, %v1599
        %v1601 = vpop.f32.mrb[0].mxu0
        %1602 = vmatprep.mubr.f32.mxu0 %v899
        %1603 = vmatmul.mubr.f32.gmra.mrb[0].mxu0 %v898
        %v1604 = vpop.f32.mrb[0].mxu0
        %v1605 = vadd.f32 %v1220, %v1604
        %v1606 = vpop.f32.mrb[0].mxu0
        %1607 = vmatprep.mubr.f32.mxu0 %v903
        %1608 = vmatmul.mubr.f32.gmra.mrb[0].mxu0 %v902
        %v1609 = vpop.f32.mrb[0].mxu0
        %v1610 = vadd.f32 %v1225, %v1609
        %v1611 = vpop.f32.mrb[0].mxu0
        %1612 = vmatprep.mubr.f32.mxu0 %v907
        %1613 = vmatmul.mubr.f32.gmra.mrb[0].mxu0 %v906
        %v1614 = vpop.f32.mrb[0].mxu0
        %v1615 = vadd.f32 %v1230, %v1614
        %v1616 = vpop.f32.mrb[0].mxu0
        %1617 = vmatprep.mubr.f32.mxu0 %v911
        %1618 = vmatmul.mubr.f32.gmra.mrb[0].mxu0 %v910
        %v1619 = vpop.f32.mrb[0].mxu0
        %v1620 = vadd.f32 %v1235, %v1619
        %v1621 = vpop.f32.mrb[0].mxu0
        %1622 = vmatprep.mubr.f32.mxu0 %v915
        %1623 = vmatmul.mubr.f32.gmra.mrb[0].mxu0 %v914
        %v1624 = vpop.f32.mrb[0].mxu0
        %v1625 = vadd.f32 %v1240, %v1624
        %v1626 = vpop.f32.mrb[0].mxu0
        %1627 = vmatprep.mubr.f32.mxu0 %v919
        %1628 = vmatmul.mubr.f32.gmra.mrb[0].mxu0 %v918
        %v1629 = vpop.f32.mrb[0].mxu0
        %v1630 = vadd.f32 %v1245, %v1629
        %v1631 = vpop.f32.mrb[0].mxu0
        %1632 = vmatprep.mubr.f32.mxu0 %v923
        %1633 = vmatmul.mubr.f32.gmra.mrb[0].mxu0 %v922
        %v1634 = vpop.f32.mrb[0].mxu0
        %v1635 = vadd.f32 %v1250, %v1634
        %v1636 = vpop.f32.mrb[0].mxu0
        %1637 = vmatprep.mubr.f32.mxu0 %v927
        %1638 = vmatmul.mubr.f32.gmra.mrb[0].mxu0 %v926
        %v1639 = vpop.f32.mrb[0].mxu0
        %v1640 = vadd.f32 %v1255, %v1639
        %v1641 = vpop.f32.mrb[0].mxu0
        %1642 = vmatprep.mubr.f32.mxu0 %v931
        %1643 = vmatmul.mubr.f32.gmra.mrb[0].mxu0 %v930
        %v1644 = vpop.f32.mrb[0].mxu0
        %v1645 = vadd.f32 %v1260, %v1644
        %v1646 = vpop.f32.mrb[0].mxu0
        %1647 = vmatprep.mubr.f32.mxu0 %v935
        %1648 = vmatmul.mubr.f32.gmra.mrb[0].mxu0 %v934
        %v1649 = vpop.f32.mrb[0].mxu0
        %v1650 = vadd.f32 %v1265, %v1649
        %v1651 = vpop.f32.mrb[0].mxu0
        %1652 = vmatprep.mubr.f32.mxu0 %v939
        %1653 = vmatmul.mubr.f32.gmra.mrb[0].mxu0 %v938
        %v1654 = vpop.f32.mrb[0].mxu0
        %v1655 = vadd.f32 %v1270, %v1654
        %v1656 = vpop.f32.mrb[0].mxu0
        %1657 = vmatprep.mubr.f32.mxu0 %v943
        %1658 = vmatmul.mubr.f32.gmra.mrb[0].mxu0 %v942
        %v1659 = vpop.f32.mrb[0].mxu0
        %v1660 = vadd.f32 %v1275, %v1659
        %v1661 = vpop.f32.mrb[0].mxu0
        %1662 = vmatprep.mubr.f32.mxu0 %v947
        %1663 = vmatmul.mubr.f32.gmra.mrb[0].mxu0 %v946
        %v1664 = vpop.f32.mrb[0].mxu0
        %v1665 = vadd.f32 %v1280, %v1664
        %v1666 = vpop.f32.mrb[0].mxu0
        %1667 = vmatprep.mubr.f32.mxu0 %v951
        %1668 = vmatmul.mubr.f32.gmra.mrb[0].mxu0 %v950
        %v1669 = vpop.f32.mrb[0].mxu0
        %v1670 = vadd.f32 %v1285, %v1669
        %v1671 = vpop.f32.mrb[0].mxu0
        %1672 = vmatprep.mubr.f32.mxu0 %v955
        %1673 = vmatmul.mubr.f32.gmra.mrb[0].mxu0 %v954
        %v1674 = vpop.f32.mrb[0].mxu0
        %v1675 = vadd.f32 %v1290, %v1674
        %v1676 = vpop.f32.mrb[0].mxu0
        %1677 = vmatprep.mubr.f32.mxu0 %v959
        %1678 = vmatmul.mubr.f32.gmra.mrb[0].mxu0 %v958
        %v1679 = vpop.f32.mrb[0].mxu0
        %v1680 = vadd.f32 %v1295, %v1679
        %v1681 = vpop.f32.mrb[0].mxu0
        %1682 = vmatprep.mubr.f32.mxu0 %v963
        %1683 = vmatmul.mubr.f32.gmra.mrb[0].mxu0 %v962
        %v1684 = vpop.f32.mrb[0].mxu0
        %v1685 = vadd.f32 %v1300, %v1684
        %v1686 = vpop.f32.mrb[0].mxu0
        %1687 = vmatprep.mubr.f32.mxu0 %v967
        %1688 = vmatmul.mubr.f32.gmra.mrb[0].mxu0 %v966
        %v1689 = vpop.f32.mrb[0].mxu0
        %v1690 = vadd.f32 %v1305, %v1689
        %v1691 = vpop.f32.mrb[0].mxu0
        %1692 = vmatprep.mubr.f32.mxu0 %v971
        %1693 = vmatmul.mubr.f32.gmra.mrb[0].mxu0 %v970
        %v1694 = vpop.f32.mrb[0].mxu0
        %v1695 = vadd.f32 %v1310, %v1694
        %v1696 = vpop.f32.mrb[0].mxu0
        %1697 = vmatprep.mubr.f32.mxu0 %v975
        %1698 = vmatmul.mubr.f32.gmra.mrb[0].mxu0 %v974
        %v1699 = vpop.f32.mrb[0].mxu0
        %v1700 = vadd.f32 %v1315, %v1699
        %v1701 = vpop.f32.mrb[0].mxu0
        %1702 = vmatprep.mubr.f32.mxu0 %v979
        %1703 = vmatmul.mubr.f32.gmra.mrb[0].mxu0 %v978
        %v1704 = vpop.f32.mrb[0].mxu0
        %v1705 = vadd.f32 %v1320, %v1704
        %v1706 = vpop.f32.mrb[0].mxu0
        %1707 = vmatprep.mubr.f32.mxu0 %v983
        %1708 = vmatmul.mubr.f32.gmra.mrb[0].mxu0 %v982
        %v1709 = vpop.f32.mrb[0].mxu0
        %v1710 = vadd.f32 %v1325, %v1709
        %v1711 = vpop.f32.mrb[0].mxu0
        %1712 = vmatprep.mubr.f32.mxu0 %v987
        %1713 = vmatmul.mubr.f32.gmra.mrb[0].mxu0 %v986
        %v1714 = vpop.f32.mrb[0].mxu0
        %v1715 = vadd.f32 %v1330, %v1714
        %v1716 = vpop.f32.mrb[0].mxu0
        %1717 = vmatprep.mubr.f32.mxu0 %v991
        %1718 = vmatmul.mubr.f32.gmra.mrb[0].mxu0 %v990
        %v1719 = vpop.f32.mrb[0].mxu0
        %v1720 = vadd.f32 %v1335, %v1719
        %v1721 = vpop.f32.mrb[0].mxu0
        %1722 = vmatprep.mubr.f32.mxu0 %v995
        %1723 = vmatmul.mubr.f32.gmra.mrb[0].mxu0 %v994
        %v1724 = vpop.f32.mrb[0].mxu0
        %v1725 = vadd.f32 %v1340, %v1724
        %v1726 = vpop.f32.mrb[0].mxu0
        %1727 = vmatprep.mubr.f32.mxu0 %v999
        %1728 = vmatmul.mubr.f32.gmra.mrb[0].mxu0 %v998
        %v1729 = vpop.f32.mrb[0].mxu0
        %v1730 = vadd.f32 %v1345, %v1729
        %v1731 = vpop.f32.mrb[0].mxu0
        %1732 = vmatprep.mubr.f32.mxu0 %v1003
        %1733 = vmatmul.mubr.f32.gmra.mrb[0].mxu0 %v1002
        %v1734 = vpop.f32.mrb[0].mxu0
        %v1735 = vadd.f32 %v1350, %v1734
        %v1736 = vpop.f32.mrb[0].mxu0
        %1737 = vmatprep.mubr.f32.mxu0 %v1007
        %1738 = vmatmul.mubr.f32.gmra.mrb[0].mxu0 %v1006
        %v1739 = vpop.f32.mrb[0].mxu0
        %v1740 = vadd.f32 %v1355, %v1739
        %v1741 = vpop.f32.mrb[0].mxu0
        %1742 = vmatprep.mubr.f32.mxu0 %v1011
        %1743 = vmatmul.mubr.f32.gmra.mrb[0].mxu0 %v1010
        %v1744 = vpop.f32.mrb[0].mxu0
        %v1745 = vadd.f32 %v1360, %v1744
        %v1746 = vpop.f32.mrb[0].mxu0
        %1747 = vmatprep.mubr.f32.mxu0 %v1015
        %1748 = vmatmul.mubr.f32.gmra.mrb[0].mxu0 %v1014
        %v1749 = vpop.f32.mrb[0].mxu0
        %v1750 = vadd.f32 %v1365, %v1749
        %v1751 = vpop.f32.mrb[0].mxu0
        %1752 = vmatprep.mubr.f32.mxu0 %v1019
        %1753 = vmatmul.mubr.f32.gmra.mrb[0].mxu0 %v1018
        %v1754 = vpop.f32.mrb[0].mxu0
        %v1755 = vadd.f32 %v1370, %v1754
        %v1756 = vpop.f32.mrb[0].mxu0
        %1757 = vmatprep.mubr.f32.mxu0 %v1023
        %1758 = vmatmul.mubr.f32.gmra.mrb[0].mxu0 %v1022
        %v1759 = vpop.f32.mrb[0].mxu0
        %v1760 = vadd.f32 %v1375, %v1759
        %v1761 = vpop.f32.mrb[0].mxu0
        %1762 = vmatprep.mubr.f32.mxu0 %v1027
        %1763 = vmatmul.mubr.f32.gmra.mrb[0].mxu0 %v1026
        %v1764 = vpop.f32.mrb[0].mxu0
        %v1765 = vadd.f32 %v1380, %v1764
        %v1766 = vpop.f32.mrb[0].mxu0
        %1767 = vmatprep.mubr.f32.mxu0 %v1031
        %1768 = vmatmul.mubr.f32.gmra.mrb[0].mxu0 %v1030
        %v1769 = vpop.f32.mrb[0].mxu0
        %v1770 = vadd.f32 %v1385, %v1769
        %v1771 = vpop.f32.mrb[0].mxu0
        %1772 = vmatprep.mubr.f32.mxu0 %v1035
        %1773 = vmatmul.mubr.f32.gmra.mrb[0].mxu0 %v1034
        %v1774 = vpop.f32.mrb[0].mxu0
        %v1775 = vadd.f32 %v1390, %v1774
        %v1776 = vpop.f32.mrb[0].mxu0
        %1777 = vmatprep.mubr.f32.mxu0 %v1039
        %1778 = vmatmul.mubr.f32.gmra.mrb[0].mxu0 %v1038
        %v1779 = vpop.f32.mrb[0].mxu0
        %v1780 = vadd.f32 %v1395, %v1779
        %v1781 = vpop.f32.mrb[0].mxu0
        %1782 = vmatprep.mubr.f32.mxu0 %v1043
        %1783 = vmatmul.mubr.f32.gmra.mrb[0].mxu0 %v1042
        %v1784 = vpop.f32.mrb[0].mxu0
        %v1785 = vadd.f32 %v1400, %v1784
        %v1786 = vpop.f32.mrb[0].mxu0
        %1787 = vmatprep.mubr.f32.mxu0 %v1047
        %1788 = vmatmul.mubr.f32.gmra.mrb[0].mxu0 %v1046
        %v1789 = vpop.f32.mrb[0].mxu0
        %v1790 = vadd.f32 %v1405, %v1789
        %v1791 = vpop.f32.mrb[0].mxu0
        %1792 = vmatprep.mubr.f32.mxu0 %v1051
        %1793 = vmatmul.mubr.f32.gmra.mrb[0].mxu0 %v1050
        %v1794 = vpop.f32.mrb[0].mxu0
        %v1795 = vadd.f32 %v1410, %v1794
        %v1796 = vpop.f32.mrb[0].mxu0
        %1797 = vmatprep.mubr.f32.mxu0 %v1055
        %1798 = vmatmul.mubr.f32.gmra.mrb[0].mxu0 %v1054
        %v1799 = vpop.f32.mrb[0].mxu0
        %v1800 = vadd.f32 %v1415, %v1799
        %v1801 = vpop.f32.mrb[0].mxu0
        %1802 = vmatprep.mubr.f32.mxu0 %v1059
        %1803 = vmatmul.mubr.f32.gmra.mrb[0].mxu0 %v1058
        %v1804 = vpop.f32.mrb[0].mxu0
        %v1805 = vadd.f32 %v1420, %v1804
        %v1806 = vpop.f32.mrb[0].mxu0
        %1807 = vmatprep.mubr.f32.mxu0 %v1063
        %1808 = vmatmul.mubr.f32.gmra.mrb[0].mxu0 %v1062
        %v1809 = vpop.f32.mrb[0].mxu0
        %v1810 = vadd.f32 %v1425, %v1809
        %v1811 = vpop.f32.mrb[0].mxu0
        %1812 = vmatprep.mubr.f32.mxu0 %v1067
        %1813 = vmatmul.mubr.f32.gmra.mrb[0].mxu0 %v1066
        %v1814 = vpop.f32.mrb[0].mxu0
        %v1815 = vadd.f32 %v1430, %v1814
        %v1816 = vpop.f32.mrb[0].mxu0
        %1817 = vmatprep.mubr.f32.mxu0 %v1071
        %1818 = vmatmul.mubr.f32.gmra.mrb[0].mxu0 %v1070
        %v1819 = vpop.f32.mrb[0].mxu0
        %v1820 = vadd.f32 %v1435, %v1819
        %v1821 = vpop.f32.mrb[0].mxu0
        %1822 = vmatprep.mubr.f32.mxu0 %v1075
        %1823 = vmatmul.mubr.f32.gmra.mrb[0].mxu0 %v1074
        %v1824 = vpop.f32.mrb[0].mxu0
        %v1825 = vadd.f32 %v1440, %v1824
        %v1826 = vpop.f32.mrb[0].mxu0
        %1827 = vmatprep.mubr.f32.mxu0 %v1079
        %1828 = vmatmul.mubr.f32.gmra.mrb[0].mxu0 %v1078
        %v1829 = vpop.f32.mrb[0].mxu0
        %v1830 = vadd.f32 %v1445, %v1829
        %v1831 = vpop.f32.mrb[0].mxu0
        %1832 = vmatprep.mubr.f32.mxu0 %v1083
        %1833 = vmatmul.mubr.f32.gmra.mrb[0].mxu0 %v1082
        %v1834 = vpop.f32.mrb[0].mxu0
        %v1835 = vadd.f32 %v1450, %v1834
        %v1836 = vpop.f32.mrb[0].mxu0
        %1837 = vmatprep.mubr.f32.mxu0 %v1087
        %1838 = vmatmul.mubr.f32.gmra.mrb[0].mxu0 %v1086
        %v1839 = vpop.f32.mrb[0].mxu0
        %v1840 = vadd.f32 %v1455, %v1839
        %v1841 = vpop.f32.mrb[0].mxu0
        %1842 = vmatprep.mubr.f32.mxu0 %v1091
        %1843 = vmatmul.mubr.f32.gmra.mrb[0].mxu0 %v1090
        %v1844 = vpop.f32.mrb[0].mxu0
        %v1845 = vadd.f32 %v1460, %v1844
        %v1846 = vpop.f32.mrb[0].mxu0
        %1847 = vmatprep.mubr.f32.mxu0 %v1095
        %1848 = vmatmul.mubr.f32.gmra.mrb[0].mxu0 %v1094
        %v1849 = vpop.f32.mrb[0].mxu0
        %v1850 = vadd.f32 %v1465, %v1849
        %v1851 = vpop.f32.mrb[0].mxu0
        %1852 = vmatprep.mubr.f32.mxu0 %v1099
        %1853 = vmatmul.mubr.f32.gmra.mrb[0].mxu0 %v1098
        %v1854 = vpop.f32.mrb[0].mxu0
        %v1855 = vadd.f32 %v1470, %v1854
        %v1856 = vpop.f32.mrb[0].mxu0
        %1857 = vmatprep.mubr.f32.mxu0 %v1103
        %1858 = vmatmul.mubr.f32.gmra.mrb[0].mxu0 %v1102
        %v1859 = vpop.f32.mrb[0].mxu0
        %v1860 = vadd.f32 %v1475, %v1859
        %v1861 = vpop.f32.mrb[0].mxu0
        %1862 = vmatprep.mubr.f32.mxu0 %v1107
        %1863 = vmatmul.mubr.f32.gmra.mrb[0].mxu0 %v1106
        %v1864 = vpop.f32.mrb[0].mxu0
        %v1865 = vadd.f32 %v1480, %v1864
        %v1866 = vpop.f32.mrb[0].mxu0
        %1867 = vmatprep.mubr.f32.mxu0 %v1111
        %1868 = vmatmul.mubr.f32.gmra.mrb[0].mxu0 %v1110
        %v1869 = vpop.f32.mrb[0].mxu0
        %v1870 = vadd.f32 %v1485, %v1869
        %v1871 = vpop.f32.mrb[0].mxu0
        %1872 = vmatprep.mubr.f32.mxu0 %v1115
        %1873 = vmatmul.mubr.f32.gmra.mrb[0].mxu0 %v1114
        %v1874 = vpop.f32.mrb[0].mxu0
        %v1875 = vadd.f32 %v1490, %v1874
        %v1876 = vpop.f32.mrb[0].mxu0
        %1877 = vmatprep.mubr.f32.mxu0 %v1119
        %1878 = vmatmul.mubr.f32.gmra.mrb[0].mxu0 %v1118
        %v1879 = vpop.f32.mrb[0].mxu0
        %v1880 = vadd.f32 %v1495, %v1879
        %v1881 = vpop.f32.mrb[0].mxu0
        %1882 = vmatprep.mubr.f32.mxu0 %v1123
        %1883 = vmatmul.mubr.f32.gmra.mrb[0].mxu0 %v1122
        %v1884 = vpop.f32.mrb[0].mxu0
        %v1885 = vadd.f32 %v1500, %v1884
        %v1886 = vpop.f32.mrb[0].mxu0
        %1887 = vmatprep.mubr.f32.mxu0 %v1127
        %1888 = vmatmul.mubr.f32.gmra.mrb[0].mxu0 %v1126
        %v1889 = vpop.f32.mrb[0].mxu0
        %v1890 = vadd.f32 %v1505, %v1889
        %v1891 = vpop.f32.mrb[0].mxu0
        %1892 = vmatprep.mubr.f32.mxu0 %v1131
        %1893 = vmatmul.mubr.f32.gmra.mrb[0].mxu0 %v1130
        %v1894 = vpop.f32.mrb[0].mxu0
        %v1895 = vadd.f32 %v1510, %v1894
        %v1896 = vpop.f32.mrb[0].mxu0
        %1897 = vmatprep.mubr.f32.mxu0 %v1135
        %1898 = vmatmul.mubr.f32.gmra.mrb[0].mxu0 %v1134
        %v1899 = vpop.f32.mrb[0].mxu0
        %v1900 = vadd.f32 %v1515, %v1899
        %v1901 = vpop.f32.mrb[0].mxu0
        %1902 = vmatprep.mubr.f32.mxu0 %v1139
        %1903 = vmatmul.mubr.f32.gmra.mrb[0].mxu0 %v1138
        %v1904 = vpop.f32.mrb[0].mxu0
        %v1905 = vadd.f32 %v1520, %v1904
        %v1906 = vpop.f32.mrb[0].mxu0
        %1907 = vmatprep.mubr.f32.mxu0 %v1143
        %1908 = vmatmul.mubr.f32.gmra.mrb[0].mxu0 %v1142
        %v1909 = vpop.f32.mrb[0].mxu0
        %v1910 = vadd.f32 %v1525, %v1909
        %v1911 = vpop.f32.mrb[0].mxu0
        %1912 = vmatprep.mubr.f32.mxu0 %v1147
        %1913 = vmatmul.mubr.f32.gmra.mrb[0].mxu0 %v1146
        %v1914 = vpop.f32.mrb[0].mxu0
        %v1915 = vadd.f32 %v1530, %v1914
        %v1916 = vpop.f32.mrb[0].mxu0
        %1917 = vdwg.mxu0
        %v1918 = vadd.f32 %v828, %v1600
        %v1919 = vadd.f32 %v829, %v1605
        %v1920 = vadd.f32 %v830, %v1610
        %v1921 = vadd.f32 %v831, %v1615
        %v1922 = vadd.f32 %v832, %v1620
        %v1923 = vadd.f32 %v833, %v1625
        %v1924 = vadd.f32 %v834, %v1630
        %v1925 = vadd.f32 %v835, %v1635
        %v1926 = vadd.f32 %v836, %v1640
        %v1927 = vadd.f32 %v837, %v1645
        %v1928 = vadd.f32 %v838, %v1650
        %v1929 = vadd.f32 %v839, %v1655
        %v1930 = vadd.f32 %v840, %v1660
        %v1931 = vadd.f32 %v841, %v1665
        %v1932 = vadd.f32 %v842, %v1670
        %v1933 = vadd.f32 %v843, %v1675
        %v1934 = vadd.f32 %v844, %v1680
        %v1935 = vadd.f32 %v845, %v1685
        %v1936 = vadd.f32 %v846, %v1690
        %v1937 = vadd.f32 %v847, %v1695
        %v1938 = vadd.f32 %v848, %v1700
        %v1939 = vadd.f32 %v849, %v1705
        %v1940 = vadd.f32 %v850, %v1710
        %v1941 = vadd.f32 %v851, %v1715
        %v1942 = vadd.f32 %v852, %v1720
        %v1943 = vadd.f32 %v853, %v1725
        %v1944 = vadd.f32 %v854, %v1730
        %v1945 = vadd.f32 %v855, %v1735
        %v1946 = vadd.f32 %v856, %v1740
        %v1947 = vadd.f32 %v857, %v1745
        %v1948 = vadd.f32 %v858, %v1750
        %v1949 = vadd.f32 %v859, %v1755
        %v1950 = vadd.f32 %v860, %v1760
        %v1951 = vadd.f32 %v861, %v1765
        %v1952 = vadd.f32 %v862, %v1770
        %v1953 = vadd.f32 %v863, %v1775
        %v1954 = vadd.f32 %v864, %v1780
        %v1955 = vadd.f32 %v865, %v1785
        %v1956 = vadd.f32 %v866, %v1790
        %v1957 = vadd.f32 %v867, %v1795
        %v1958 = vadd.f32 %v868, %v1800
        %v1959 = vadd.f32 %v869, %v1805
        %v1960 = vadd.f32 %v870, %v1810
        %v1961 = vadd.f32 %v871, %v1815
        %v1962 = vadd.f32 %v872, %v1820
        %v1963 = vadd.f32 %v873, %v1825
        %v1964 = vadd.f32 %v874, %v1830
        %v1965 = vadd.f32 %v875, %v1835
        %v1966 = vadd.f32 %v876, %v1840
        %v1967 = vadd.f32 %v877, %v1845
        %v1968 = vadd.f32 %v878, %v1850
        %v1969 = vadd.f32 %v879, %v1855
        %v1970 = vadd.f32 %v880, %v1860
        %v1971 = vadd.f32 %v881, %v1865
        %v1972 = vadd.f32 %v882, %v1870
        %v1973 = vadd.f32 %v883, %v1875
        %v1974 = vadd.f32 %v884, %v1880
        %v1975 = vadd.f32 %v885, %v1885
        %v1976 = vadd.f32 %v886, %v1890
        %v1977 = vadd.f32 %v887, %v1895
        %v1978 = vadd.f32 %v888, %v1900
        %v1979 = vadd.f32 %v889, %v1905
        %v1980 = vadd.f32 %v890, %v1910
        %v1981 = vadd.f32 %v891, %v1915
        %1982 = vst [vmem:[%s692] sm:$0xff] %v1918
        %1983 = vst [vmem:[%s692 + $0x8] sm:$0xff] %v1919
        %1984 = vst [vmem:[%s692 + $0x10] sm:$0xff] %v1920
        %1985 = vst [vmem:[%s692 + $0x18] sm:$0xff] %v1921
        %1986 = vst [vmem:[%s692 + $0x20] sm:$0xff] %v1922
        %1987 = vst [vmem:[%s692 + $0x28] sm:$0xff] %v1923
        %1988 = vst [vmem:[%s692 + $0x30] sm:$0xff] %v1924
        %1989 = vst [vmem:[%s692 + $0x38] sm:$0xff] %v1925
        %1990 = vst [vmem:[%s692 + $0x40] sm:$0xff] %v1926
        %1991 = vst [vmem:[%s692 + $0x48] sm:$0xff] %v1927
        %1992 = vst [vmem:[%s692 + $0x50] sm:$0xff] %v1928
        %1993 = vst [vmem:[%s692 + $0x58] sm:$0xff] %v1929
        %1994 = vst [vmem:[%s692 + $0x60] sm:$0xff] %v1930
        %1995 = vst [vmem:[%s692 + $0x68] sm:$0xff] %v1931
        %1996 = vst [vmem:[%s692 + $0x70] sm:$0xff] %v1932
        %1997 = vst [vmem:[%s692 + $0x78] sm:$0xff] %v1933
        %1998 = vst [vmem:[%s692 + $0x80] sm:$0xff] %v1934
        %1999 = vst [vmem:[%s692 + $0x88] sm:$0xff] %v1935
        %2000 = vst [vmem:[%s692 + $0x90] sm:$0xff] %v1936
        %2001 = vst [vmem:[%s692 + $0x98] sm:$0xff] %v1937
        %2002 = vst [vmem:[%s692 + $0xa0] sm:$0xff] %v1938
        %2003 = vst [vmem:[%s692 + $0xa8] sm:$0xff] %v1939
        %2004 = vst [vmem:[%s692 + $0xb0] sm:$0xff] %v1940
        %2005 = vst [vmem:[%s692 + $0xb8] sm:$0xff] %v1941
        %2006 = vst [vmem:[%s692 + $0xc0] sm:$0xff] %v1942
        %2007 = vst [vmem:[%s692 + $0xc8] sm:$0xff] %v1943
        %2008 = vst [vmem:[%s692 + $0xd0] sm:$0xff] %v1944
        %2009 = vst [vmem:[%s692 + $0xd8] sm:$0xff] %v1945
        %2010 = vst [vmem:[%s692 + $0xe0] sm:$0xff] %v1946
        %2011 = vst [vmem:[%s692 + $0xe8] sm:$0xff] %v1947
        %2012 = vst [vmem:[%s692 + $0xf0] sm:$0xff] %v1948
        %2013 = vst [vmem:[%s692 + $0xf8] sm:$0xff] %v1949
        %2014 = vst [vmem:[%s692 + $0x100] sm:$0xff] %v1950
        %2015 = vst [vmem:[%s692 + $0x108] sm:$0xff] %v1951
        %2016 = vst [vmem:[%s692 + $0x110] sm:$0xff] %v1952
        %2017 = vst [vmem:[%s692 + $0x118] sm:$0xff] %v1953
        %2018 = vst [vmem:[%s692 + $0x120] sm:$0xff] %v1954
        %2019 = vst [vmem:[%s692 + $0x128] sm:$0xff] %v1955
        %2020 = vst [vmem:[%s692 + $0x130] sm:$0xff] %v1956
        %2021 = vst [vmem:[%s692 + $0x138] sm:$0xff] %v1957
        %2022 = vst [vmem:[%s692 + $0x140] sm:$0xff] %v1958
        %2023 = vst [vmem:[%s692 + $0x148] sm:$0xff] %v1959
        %2024 = vst [vmem:[%s692 + $0x150] sm:$0xff] %v1960
        %2025 = vst [vmem:[%s692 + $0x158] sm:$0xff] %v1961
        %2026 = vst [vmem:[%s692 + $0x160] sm:$0xff] %v1962
        %2027 = vst [vmem:[%s692 + $0x168] sm:$0xff] %v1963
        %2028 = vst [vmem:[%s692 + $0x170] sm:$0xff] %v1964
        %2029 = vst [vmem:[%s692 + $0x178] sm:$0xff] %v1965
        %2030 = vst [vmem:[%s692 + $0x180] sm:$0xff] %v1966
        %2031 = vst [vmem:[%s692 + $0x188] sm:$0xff] %v1967
        %2032 = vst [vmem:[%s692 + $0x190] sm:$0xff] %v1968
        %2033 = vst [vmem:[%s692 + $0x198] sm:$0xff] %v1969
        %2034 = vst [vmem:[%s692 + $0x1a0] sm:$0xff] %v1970
        %2035 = vst [vmem:[%s692 + $0x1a8] sm:$0xff] %v1971
        %2036 = vst [vmem:[%s692 + $0x1b0] sm:$0xff] %v1972
        %2037 = vst [vmem:[%s692 + $0x1b8] sm:$0xff] %v1973
        %2038 = vst [vmem:[%s692 + $0x1c0] sm:$0xff] %v1974
        %2039 = vst [vmem:[%s692 + $0x1c8] sm:$0xff] %v1975
        %2040 = vst [vmem:[%s692 + $0x1d0] sm:$0xff] %v1976
        %2041 = vst [vmem:[%s692 + $0x1d8] sm:$0xff] %v1977
        %2042 = vst [vmem:[%s692 + $0x1e0] sm:$0xff] %v1978
        %2043 = vst [vmem:[%s692 + $0x1e8] sm:$0xff] %v1979
        %2044 = vst [vmem:[%s692 + $0x1f0] sm:$0xff] %v1980
        %2045 = vst [vmem:[%s692 + $0x1f8] sm:$0xff] %v1981
        %p2046 = scmp.eq.s32.totalorder %s18, 1
        // Predicated region
        $region56: #{gcn_forward.5} parent=46 // pred_check
          %p2047 = pneg %p2046
        $region57: #{gcn_forward.5} parent=46 // pred_check_branch
          %2049 = sbr.rel (%p2047) target = $region59
        $region58: #{gcn_forward.5} parent=46 // pred_region
          %v2050 = vld [vmem:[%s692] sm:$0xff]
          %v2051 = vld [vmem:[%s692 + $0x8] sm:$0xff]
          %v2052 = vld [vmem:[%s692 + $0x10] sm:$0xff]
          %v2053 = vld [vmem:[%s692 + $0x18] sm:$0xff]
          %v2054 = vld [vmem:[%s692 + $0x20] sm:$0xff]
          %v2055 = vld [vmem:[%s692 + $0x28] sm:$0xff]
          %v2056 = vld [vmem:[%s692 + $0x30] sm:$0xff]
          %v2057 = vld [vmem:[%s692 + $0x38] sm:$0xff]
          %v2058 = vld [vmem:[%s692 + $0x40] sm:$0xff]
          %v2059 = vld [vmem:[%s692 + $0x48] sm:$0xff]
          %v2060 = vld [vmem:[%s692 + $0x50] sm:$0xff]
          %v2061 = vld [vmem:[%s692 + $0x58] sm:$0xff]
          %v2062 = vld [vmem:[%s692 + $0x60] sm:$0xff]
          %v2063 = vld [vmem:[%s692 + $0x68] sm:$0xff]
          %v2064 = vld [vmem:[%s692 + $0x70] sm:$0xff]
          %v2065 = vld [vmem:[%s692 + $0x78] sm:$0xff]
          %v2066 = vld [vmem:[%s692 + $0x80] sm:$0xff]
          %v2067 = vld [vmem:[%s692 + $0x88] sm:$0xff]
          %v2068 = vld [vmem:[%s692 + $0x90] sm:$0xff]
          %v2069 = vld [vmem:[%s692 + $0x98] sm:$0xff]
          %v2070 = vld [vmem:[%s692 + $0xa0] sm:$0xff]
          %v2071 = vld [vmem:[%s692 + $0xa8] sm:$0xff]
          %v2072 = vld [vmem:[%s692 + $0xb0] sm:$0xff]
          %v2073 = vld [vmem:[%s692 + $0xb8] sm:$0xff]
          %v2074 = vld [vmem:[%s692 + $0xc0] sm:$0xff]
          %v2075 = vld [vmem:[%s692 + $0xc8] sm:$0xff]
          %v2076 = vld [vmem:[%s692 + $0xd0] sm:$0xff]
          %v2077 = vld [vmem:[%s692 + $0xd8] sm:$0xff]
          %v2078 = vld [vmem:[%s692 + $0xe0] sm:$0xff]
          %v2079 = vld [vmem:[%s692 + $0xe8] sm:$0xff]
          %v2080 = vld [vmem:[%s692 + $0xf0] sm:$0xff]
          %v2081 = vld [vmem:[%s692 + $0xf8] sm:$0xff]
          %v2082 = vld [vmem:[%s692 + $0x100] sm:$0xff]
          %v2083 = vld [vmem:[%s692 + $0x108] sm:$0xff]
          %v2084 = vld [vmem:[%s692 + $0x110] sm:$0xff]
          %v2085 = vld [vmem:[%s692 + $0x118] sm:$0xff]
          %v2086 = vld [vmem:[%s692 + $0x120] sm:$0xff]
          %v2087 = vld [vmem:[%s692 + $0x128] sm:$0xff]
          %v2088 = vld [vmem:[%s692 + $0x130] sm:$0xff]
          %v2089 = vld [vmem:[%s692 + $0x138] sm:$0xff]
          %v2090 = vld [vmem:[%s692 + $0x140] sm:$0xff]
          %v2091 = vld [vmem:[%s692 + $0x148] sm:$0xff]
          %v2092 = vld [vmem:[%s692 + $0x150] sm:$0xff]
          %v2093 = vld [vmem:[%s692 + $0x158] sm:$0xff]
          %v2094 = vld [vmem:[%s692 + $0x160] sm:$0xff]
          %v2095 = vld [vmem:[%s692 + $0x168] sm:$0xff]
          %v2096 = vld [vmem:[%s692 + $0x170] sm:$0xff]
          %v2097 = vld [vmem:[%s692 + $0x178] sm:$0xff]
          %v2098 = vld [vmem:[%s692 + $0x180] sm:$0xff]
          %v2099 = vld [vmem:[%s692 + $0x188] sm:$0xff]
          %v2100 = vld [vmem:[%s692 + $0x190] sm:$0xff]
          %v2101 = vld [vmem:[%s692 + $0x198] sm:$0xff]
          %v2102 = vld [vmem:[%s692 + $0x1a0] sm:$0xff]
          %v2103 = vld [vmem:[%s692 + $0x1a8] sm:$0xff]
          %v2104 = vld [vmem:[%s692 + $0x1b0] sm:$0xff]
          %v2105 = vld [vmem:[%s692 + $0x1b8] sm:$0xff]
          %v2106 = vld [vmem:[%s692 + $0x1c0] sm:$0xff]
          %v2107 = vld [vmem:[%s692 + $0x1c8] sm:$0xff]
          %v2108 = vld [vmem:[%s692 + $0x1d0] sm:$0xff]
          %v2109 = vld [vmem:[%s692 + $0x1d8] sm:$0xff]
          %v2110 = vld [vmem:[%s692 + $0x1e0] sm:$0xff]
          %v2111 = vld [vmem:[%s692 + $0x1e8] sm:$0xff]
          %v2112 = vld [vmem:[%s692 + $0x1f0] sm:$0xff]
          %v2113 = vld [vmem:[%s692 + $0x1f8] sm:$0xff]
          %v2114 = vmax.f32 %v2050, 0.0
          %v2115 = vmax.f32 %v2051, 0.0
          %v2116 = vmax.f32 %v2052, 0.0
          %v2117 = vmax.f32 %v2053, 0.0
          %v2118 = vmax.f32 %v2054, 0.0
          %v2119 = vmax.f32 %v2055, 0.0
          %v2120 = vmax.f32 %v2056, 0.0
          %v2121 = vmax.f32 %v2057, 0.0
          %v2122 = vmax.f32 %v2058, 0.0
          %v2123 = vmax.f32 %v2059, 0.0
          %v2124 = vmax.f32 %v2060, 0.0
          %v2125 = vmax.f32 %v2061, 0.0
          %v2126 = vmax.f32 %v2062, 0.0
          %v2127 = vmax.f32 %v2063, 0.0
          %v2128 = vmax.f32 %v2064, 0.0
          %v2129 = vmax.f32 %v2065, 0.0
          %v2130 = vmax.f32 %v2066, 0.0
          %v2131 = vmax.f32 %v2067, 0.0
          %v2132 = vmax.f32 %v2068, 0.0
          %v2133 = vmax.f32 %v2069, 0.0
          %v2134 = vmax.f32 %v2070, 0.0
          %v2135 = vmax.f32 %v2071, 0.0
          %v2136 = vmax.f32 %v2072, 0.0
          %v2137 = vmax.f32 %v2073, 0.0
          %v2138 = vmax.f32 %v2074, 0.0
          %v2139 = vmax.f32 %v2075, 0.0
          %v2140 = vmax.f32 %v2076, 0.0
          %v2141 = vmax.f32 %v2077, 0.0
          %v2142 = vmax.f32 %v2078, 0.0
          %v2143 = vmax.f32 %v2079, 0.0
          %v2144 = vmax.f32 %v2080, 0.0
          %v2145 = vmax.f32 %v2081, 0.0
          %v2146 = vmax.f32 %v2082, 0.0
          %v2147 = vmax.f32 %v2083, 0.0
          %v2148 = vmax.f32 %v2084, 0.0
          %v2149 = vmax.f32 %v2085, 0.0
          %v2150 = vmax.f32 %v2086, 0.0
          %v2151 = vmax.f32 %v2087, 0.0
          %v2152 = vmax.f32 %v2088, 0.0
          %v2153 = vmax.f32 %v2089, 0.0
          %v2154 = vmax.f32 %v2090, 0.0
          %v2155 = vmax.f32 %v2091, 0.0
          %v2156 = vmax.f32 %v2092, 0.0
          %v2157 = vmax.f32 %v2093, 0.0
          %v2158 = vmax.f32 %v2094, 0.0
          %v2159 = vmax.f32 %v2095, 0.0
          %v2160 = vmax.f32 %v2096, 0.0
          %v2161 = vmax.f32 %v2097, 0.0
          %v2162 = vmax.f32 %v2098, 0.0
          %v2163 = vmax.f32 %v2099, 0.0
          %v2164 = vmax.f32 %v2100, 0.0
          %v2165 = vmax.f32 %v2101, 0.0
          %v2166 = vmax.f32 %v2102, 0.0
          %v2167 = vmax.f32 %v2103, 0.0
          %v2168 = vmax.f32 %v2104, 0.0
          %v2169 = vmax.f32 %v2105, 0.0
          %v2170 = vmax.f32 %v2106, 0.0
          %v2171 = vmax.f32 %v2107, 0.0
          %v2172 = vmax.f32 %v2108, 0.0
          %v2173 = vmax.f32 %v2109, 0.0
          %v2174 = vmax.f32 %v2110, 0.0
          %v2175 = vmax.f32 %v2111, 0.0
          %v2176 = vmax.f32 %v2112, 0.0
          %v2177 = vmax.f32 %v2113, 0.0
          %2178 = vst [vmem:[%s692] sm:$0xff] %v2114
          %2179 = vst [vmem:[%s692 + $0x8] sm:$0xff] %v2115
          %2180 = vst [vmem:[%s692 + $0x10] sm:$0xff] %v2116
          %2181 = vst [vmem:[%s692 + $0x18] sm:$0xff] %v2117
          %2182 = vst [vmem:[%s692 + $0x20] sm:$0xff] %v2118
          %2183 = vst [vmem:[%s692 + $0x28] sm:$0xff] %v2119
          %2184 = vst [vmem:[%s692 + $0x30] sm:$0xff] %v2120
          %2185 = vst [vmem:[%s692 + $0x38] sm:$0xff] %v2121
          %2186 = vst [vmem:[%s692 + $0x40] sm:$0xff] %v2122
          %2187 = vst [vmem:[%s692 + $0x48] sm:$0xff] %v2123
          %2188 = vst [vmem:[%s692 + $0x50] sm:$0xff] %v2124
          %2189 = vst [vmem:[%s692 + $0x58] sm:$0xff] %v2125
          %2190 = vst [vmem:[%s692 + $0x60] sm:$0xff] %v2126
          %2191 = vst [vmem:[%s692 + $0x68] sm:$0xff] %v2127
          %2192 = vst [vmem:[%s692 + $0x70] sm:$0xff] %v2128
          %2193 = vst [vmem:[%s692 + $0x78] sm:$0xff] %v2129
          %2194 = vst [vmem:[%s692 + $0x80] sm:$0xff] %v2130
          %2195 = vst [vmem:[%s692 + $0x88] sm:$0xff] %v2131
          %2196 = vst [vmem:[%s692 + $0x90] sm:$0xff] %v2132
          %2197 = vst [vmem:[%s692 + $0x98] sm:$0xff] %v2133
          %2198 = vst [vmem:[%s692 + $0xa0] sm:$0xff] %v2134
          %2199 = vst [vmem:[%s692 + $0xa8] sm:$0xff] %v2135
          %2200 = vst [vmem:[%s692 + $0xb0] sm:$0xff] %v2136
          %2201 = vst [vmem:[%s692 + $0xb8] sm:$0xff] %v2137
          %2202 = vst [vmem:[%s692 + $0xc0] sm:$0xff] %v2138
          %2203 = vst [vmem:[%s692 + $0xc8] sm:$0xff] %v2139
          %2204 = vst [vmem:[%s692 + $0xd0] sm:$0xff] %v2140
          %2205 = vst [vmem:[%s692 + $0xd8] sm:$0xff] %v2141
          %2206 = vst [vmem:[%s692 + $0xe0] sm:$0xff] %v2142
          %2207 = vst [vmem:[%s692 + $0xe8] sm:$0xff] %v2143
          %2208 = vst [vmem:[%s692 + $0xf0] sm:$0xff] %v2144
          %2209 = vst [vmem:[%s692 + $0xf8] sm:$0xff] %v2145
          %2210 = vst [vmem:[%s692 + $0x100] sm:$0xff] %v2146
          %2211 = vst [vmem:[%s692 + $0x108] sm:$0xff] %v2147
          %2212 = vst [vmem:[%s692 + $0x110] sm:$0xff] %v2148
          %2213 = vst [vmem:[%s692 + $0x118] sm:$0xff] %v2149
          %2214 = vst [vmem:[%s692 + $0x120] sm:$0xff] %v2150
          %2215 = vst [vmem:[%s692 + $0x128] sm:$0xff] %v2151
          %2216 = vst [vmem:[%s692 + $0x130] sm:$0xff] %v2152
          %2217 = vst [vmem:[%s692 + $0x138] sm:$0xff] %v2153
          %2218 = vst [vmem:[%s692 + $0x140] sm:$0xff] %v2154
          %2219 = vst [vmem:[%s692 + $0x148] sm:$0xff] %v2155
          %2220 = vst [vmem:[%s692 + $0x150] sm:$0xff] %v2156
          %2221 = vst [vmem:[%s692 + $0x158] sm:$0xff] %v2157
          %2222 = vst [vmem:[%s692 + $0x160] sm:$0xff] %v2158
          %2223 = vst [vmem:[%s692 + $0x168] sm:$0xff] %v2159
          %2224 = vst [vmem:[%s692 + $0x170] sm:$0xff] %v2160
          %2225 = vst [vmem:[%s692 + $0x178] sm:$0xff] %v2161
          %2226 = vst [vmem:[%s692 + $0x180] sm:$0xff] %v2162
          %2227 = vst [vmem:[%s692 + $0x188] sm:$0xff] %v2163
          %2228 = vst [vmem:[%s692 + $0x190] sm:$0xff] %v2164
          %2229 = vst [vmem:[%s692 + $0x198] sm:$0xff] %v2165
          %2230 = vst [vmem:[%s692 + $0x1a0] sm:$0xff] %v2166
          %2231 = vst [vmem:[%s692 + $0x1a8] sm:$0xff] %v2167
          %2232 = vst [vmem:[%s692 + $0x1b0] sm:$0xff] %v2168
          %2233 = vst [vmem:[%s692 + $0x1b8] sm:$0xff] %v2169
          %2234 = vst [vmem:[%s692 + $0x1c0] sm:$0xff] %v2170
          %2235 = vst [vmem:[%s692 + $0x1c8] sm:$0xff] %v2171
          %2236 = vst [vmem:[%s692 + $0x1d0] sm:$0xff] %v2172
          %2237 = vst [vmem:[%s692 + $0x1d8] sm:$0xff] %v2173
          %2238 = vst [vmem:[%s692 + $0x1e0] sm:$0xff] %v2174
          %2239 = vst [vmem:[%s692 + $0x1e8] sm:$0xff] %v2175
          %2240 = vst [vmem:[%s692 + $0x1f0] sm:$0xff] %v2176
          %2241 = vst [vmem:[%s692 + $0x1f8] sm:$0xff] %v2177
        $region59: #{gcn_forward.5} parent=46 // pred_fallthru
          _
        %s2242 = smul.u32 64, %s17
        %p2243 = scmp.lt.s32.totalorder %s2242, 127
        %s2244 = scalar_select %p2243, %s2242, 127
        %s2245 = smul.addr %s2244, 8
        %s2246 = scalar_lea.vmem %s2, %s2245
        // Predicated region
        $region60: #{gcn_forward.5} parent=46 // pred_check
          %p2247 = pneg %p92
        $region61: #{gcn_forward.5} parent=46 // pred_check_branch
          %2249 = sbr.rel (%p2247) target = $region63
        $region62: #{gcn_forward.5} parent=46 // pred_region
          %s2250 = smul.u32 64, %s17
        $region63: #{gcn_forward.5} parent=46 // pred_fallthru
          _
      $region47: #{gcn_forward.5} parent=5 // pred_fallthru
        _
      %p2251 = scmp.le.s32.totalorder 2, %s8
      // Predicated region
      $region64: #{gcn_forward.5} parent=5 // pred_check
        %p2252 = pneg %p2251
      $region65: #{gcn_forward.5} parent=5 // pred_check_branch
        %2254 = sbr.rel (%p2252) target = $region67
      $region66: #{gcn_forward.5} parent=5 // pred_region
        %s2255 = ssub.s32 %s8, 2
        // Predicated region
        $region68: #{gcn_forward.5} parent=66 // pred_check
          %p2256 = pneg %p98
        $region69: #{gcn_forward.5} parent=66 // pred_check_branch
          %2258 = sbr.rel (%p2256) target = $region71
        $region70: #{gcn_forward.5} parent=66 // pred_region
          %s2259 = smul.u32 64, %s19
          %p2260 = scmp.lt.s32.totalorder %s2259, 127
          %s2261 = scalar_select %p2260, %s2259, 127
          %s2262 = smul.addr %s2261, 8
          %s2263 = scalar_lea.vmem %s2, %s2262
        $region71: #{gcn_forward.5} parent=66 // pred_fallthru
          _
      $region67: #{gcn_forward.5} parent=5 // pred_fallthru
        _
    $region6: #{gcn_forward.5} parent=1 // loop_footer
      %s12 = sadd.s32 1, %s8
    $region7: #{gcn_forward.5} parent=1 // loop_footer_branch
      %7 = sbr.rel target = $region3
    $region8: #{gcn_forward.5} parent=1 // loop_exit
      _

// kernel: gcn_forward.7
$region0: #{gcn_forward.7}
  #allocation0 [shape = 'u32[]', space=smem, size = 0x4, offset = 0x4, fixed_abs, tag = 'smem constant byte address 0x4 - core index']
  #allocation1 [shape = 'u32[144,128]{1,0:T(1,128)}', space=vmem, size = 0x12000, scoped, tag = 'internal scratch']
  %s0 = inlined_call_operand.vmem [shape: f32[1024,1024], index: 0, kind: input, shape index: {}]
  %s1 = inlined_call_operand.vmem [shape: f32[1024,128], index: 1, kind: input, shape index: {}]
  %s2 = inlined_call_operand.vmem [shape: f32[1024,128], index: 2, kind: output, shape index: {}]
  %s3 = sld [smem:[#allocation0]]
  $region72: #{gcn_forward.7} parent=0
    _
  %s5 = ssub.s32 1, %s3
  %s6 = scalar_select 0, %s5, %s3
  $region1: #{gcn_forward.7} parent=0
    #allocation2 [shape = 'u8[2097152]{0}', space=vmem, size = 0x200000, scoped, tag = 'input window, operand 0']
    loop: start=0, step=1, limit=6
    $region2: #{gcn_forward.7} parent=1 // loop_pre_header
      _
    $region3: #{gcn_forward.7} parent=1 // loop_header
      %s8 = sphi 0, %s12
      %p9 = scmp.ge.s32.totalorder %s8, 6
      %s15 = sphi 0, %s27
      %s16 = sphi 0, %s23
      %s17 = sphi 0, %s15
      %s18 = sphi 0, %s16
      %s19 = sphi 0, %s17
      %s20 = sphi 0, %s18
      %s32 = sphi 0, %s34
      %s35 = sphi 0, %s32
      %s36 = sphi 0, %s35
      %s52 = sphi 0, %s36
      %s56 = sphi 0, %s56
      %s58 = sphi 0, %s56
      %s59 = sphi 0, %s58
      %s73 = sphi 0, %s59
      %s79 = sphi 0, %s81
      %s82 = sphi 0, %s79
      %s83 = sphi 0, %s82
      %s99 = sphi 0, %s83
    $region4: #{gcn_forward.7} parent=1 // loop_header_branch
      %11 = sbr.rel (%p9) target = $region8
    $region5: #{gcn_forward.7} parent=1 // loop_body
      %s13 = ssub.s32 %s8, 1
      %s14 = ssub.s32 %s8, 2
      %s21 = sadd.s32 1, %s16
      %p22 = scmp.ge.s32.totalorder %s21, 2
      %s23 = scalar_select %p22, 0, %s21
      %s24 = sadd.s32 1, %s15
      %s25 = scalar_select %p22, %s24, %s15
      %p26 = scmp.ge.s32.totalorder %s25, 2
      %s27 = scalar_select %p26, 0, %s25
      %s28 = ssub.s32 %s15, %s27
      %s29 = ssub.s32 %s16, %s23
      %s30 = sor.u32 %s28, %s29
      %p31 = scmp.eq.s32.totalorder %s30, 0
      %s33 = sadd.s32 %s32, 1
      %s34 = scalar_select %p31, %s32, %s33
      %p37 = pneg %p31
      %p38 = scmp.eq.s32.totalorder %s8, 3
      %p39 = por %p37, %p38
      %p40 = scmp.ne.s32.totalorder %s32, %s35
      %p41 = scmp.eq.s32.totalorder %s8, 0
      %p42 = por %p40, %p41
      %p43 = scmp.ne.s32.totalorder %s32, %s35
      %p44 = scmp.eq.s32.totalorder %s13, 3
      %p45 = por %p43, %p44
      %p46 = scmp.ne.s32.totalorder %s35, %s36
      %p47 = scmp.eq.s32.totalorder %s13, 0
      %p48 = por %p46, %p47
      %p49 = scmp.ne.s32.totalorder %s35, %s36
      %p50 = scmp.eq.s32.totalorder %s14, 3
      %p51 = por %p49, %p50
      %p53 = scmp.ne.s32.totalorder %s36, %s52
      %p54 = scmp.eq.s32.totalorder %s14, 0
      %p55 = por %p53, %p54
      %s57 = sadd.s32 %s56, 1
      %p60 = scmp.eq.s32.totalorder %s8, 3
      %p61 = scmp.ne.s32.totalorder %s56, %s58
      %p62 = scmp.eq.s32.totalorder %s8, 0
      %p63 = por %p61, %p62
      %p64 = scmp.ne.s32.totalorder %s56, %s58
      %p65 = scmp.eq.s32.totalorder %s13, 3
      %p66 = por %p64, %p65
      %p67 = scmp.ne.s32.totalorder %s58, %s59
      %p68 = scmp.eq.s32.totalorder %s13, 0
      %p69 = por %p67, %p68
      %p70 = scmp.ne.s32.totalorder %s58, %s59
      %p71 = scmp.eq.s32.totalorder %s14, 3
      %p72 = por %p70, %p71
      %p74 = scmp.ne.s32.totalorder %s59, %s73
      %p75 = scmp.eq.s32.totalorder %s14, 0
      %p76 = por %p74, %p75
      %s77 = ssub.s32 %s15, %s27
      %p78 = scmp.eq.s32.totalorder %s77, 0
      %s80 = sadd.s32 %s79, 1
      %s81 = scalar_select %p78, %s79, %s80
      %p84 = pneg %p78
      %p85 = scmp.eq.s32.totalorder %s8, 3
      %p86 = por %p84, %p85
      %p87 = scmp.ne.s32.totalorder %s79, %s82
      %p88 = scmp.eq.s32.totalorder %s8, 0
      %p89 = por %p87, %p88
      %p90 = scmp.ne.s32.totalorder %s79, %s82
      %p91 = scmp.eq.s32.totalorder %s13, 3
      %p92 = por %p90, %p91
      %p93 = scmp.ne.s32.totalorder %s82, %s83
      %p94 = scmp.eq.s32.totalorder %s13, 0
      %p95 = por %p93, %p94
      %p96 = scmp.ne.s32.totalorder %s82, %s83
      %p97 = scmp.eq.s32.totalorder %s14, 3
      %p98 = por %p96, %p97
      %p100 = scmp.ne.s32.totalorder %s83, %s99
      %p101 = scmp.eq.s32.totalorder %s14, 0
      %p102 = por %p100, %p101
      %p103 = scmp.le.s32.totalorder 1, %s8
      %p104 = scmp.lt.s32.totalorder %s8, 5
      %p105 = pnand %p103, %p104
      %p106 = pneg %p105
      // Predicated region
      $region9: #{gcn_forward.7} parent=5 // pred_check
        _
      $region10: #{gcn_forward.7} parent=5 // pred_check_branch
        %108 = sbr.rel (%p105) target = $region12
      $region11: #{gcn_forward.7} parent=5 // pred_region
        %s109 = ssub.s32 %s8, 1
        // Predicated region
        $region13: #{gcn_forward.7} parent=11 // pred_check
          %p110 = pneg %p69
        $region14: #{gcn_forward.7} parent=11 // pred_check_branch
          %112 = sbr.rel (%p110) target = $region16
        $region15: #{gcn_forward.7} parent=11 // pred_region
          _
        $region16: #{gcn_forward.7} parent=11 // pred_fallthru
          _
      $region12: #{gcn_forward.7} parent=5 // pred_fallthru
        _
      %p113 = scmp.lt.s32.totalorder %s8, 4
      // Predicated region
      $region17: #{gcn_forward.7} parent=5 // pred_check
        %p114 = pneg %p113
      $region18: #{gcn_forward.7} parent=5 // pred_check_branch
        %116 = sbr.rel (%p114) target = $region20
      $region19: #{gcn_forward.7} parent=5 // pred_region
        // Predicated region
        $region21: #{gcn_forward.7} parent=19 // pred_check
          %p117 = pneg %p42
        $region22: #{gcn_forward.7} parent=19 // pred_check_branch
          %119 = sbr.rel (%p117) target = $region24
        $region23: #{gcn_forward.7} parent=19 // pred_region
          %s120 = sand.u32 %s32, 1
          %s121 = sand.u32 %s32, 1
          %s122 = smul.addr %s121, 2048
          %s123 = scalar_lea.vmem [#allocation2], %s122
          %s124 = smul.u32 64, %s15
          %s125 = smul.u32 4, %s16
          %s126 = smul.addr %s124, 8
          %s127 = sadd.s32 %s125, %s126
          %s128 = smul.addr %s127, 8
          %s129 = scalar_lea.vmem %s0, %s128
          // Predicated region
          $region25: #{gcn_forward.7} parent=23 // pred_check
            _
          $region26: #{gcn_forward.7} parent=23 // pred_check_branch
            %131 = sbr.rel (0) target = $region28
          $region27: #{gcn_forward.7} parent=23 // pred_region
            // Predicated region
            $region29: #{gcn_forward.7} parent=27 // pred_check
              _
            $region30: #{gcn_forward.7} parent=27 // pred_check_branch
              %133 = sbr.rel (0) target = $region32
            $region31: #{gcn_forward.7} parent=27 // pred_region
              loop: start=0, step=1, limit=1
              $region33: #{gcn_forward.7} parent=31 // loop_pre_header
                _
              $region34: #{gcn_forward.7} parent=31 // loop_header
                %s135 = sphi 0, %s139
                %p136 = scmp.ge.s32.totalorder %s135, 1
                %s140 = sphi %s129, %s129
                %s141 = sphi %s123, %s123
              $region35: #{gcn_forward.7} parent=31 // loop_header_branch
                %138 = sbr.rel (%p136) target = $region39
              $region36: #{gcn_forward.7} parent=31 // loop_body
                %v142 = vld [vmem:[%s140] sm:$0xff]
                %143 = vst [vmem:[%s141] sm:$0xff] %v142
                %v144 = vld [vmem:[%s140 + $0x8] sm:$0xff]
                %145 = vst [vmem:[%s141 + $0x8] sm:$0xff] %v144
                %v146 = vld [vmem:[%s140 + $0x10] sm:$0xff]
                %147 = vst [vmem:[%s141 + $0x10] sm:$0xff] %v146
                %v148 = vld [vmem:[%s140 + $0x18] sm:$0xff]
                %149 = vst [vmem:[%s141 + $0x18] sm:$0xff] %v148
                %v150 = vld [vmem:[%s140 + $0x40] sm:$0xff]
                %151 = vst [vmem:[%s141 + $0x20] sm:$0xff] %v150
                %v152 = vld [vmem:[%s140 + $0x48] sm:$0xff]
                %153 = vst [vmem:[%s141 + $0x28] sm:$0xff] %v152
                %v154 = vld [vmem:[%s140 + $0x50] sm:$0xff]
                %155 = vst [vmem:[%s141 + $0x30] sm:$0xff] %v154
                %v156 = vld [vmem:[%s140 + $0x58] sm:$0xff]
                %157 = vst [vmem:[%s141 + $0x38] sm:$0xff] %v156
                %v158 = vld [vmem:[%s140 + $0x80] sm:$0xff]
                %159 = vst [vmem:[%s141 + $0x40] sm:$0xff] %v158
                %v160 = vld [vmem:[%s140 + $0x88] sm:$0xff]
                %161 = vst [vmem:[%s141 + $0x48] sm:$0xff] %v160
                %v162 = vld [vmem:[%s140 + $0x90] sm:$0xff]
                %163 = vst [vmem:[%s141 + $0x50] sm:$0xff] %v162
                %v164 = vld [vmem:[%s140 + $0x98] sm:$0xff]
                %165 = vst [vmem:[%s141 + $0x58] sm:$0xff] %v164
                %v166 = vld [vmem:[%s140 + $0xc0] sm:$0xff]
                %167 = vst [vmem:[%s141 + $0x60] sm:$0xff] %v166
                %v168 = vld [vmem:[%s140 + $0xc8] sm:$0xff]
                %169 = vst [vmem:[%s141 + $0x68] sm:$0xff] %v168
                %v170 = vld [vmem:[%s140 + $0xd0] sm:$0xff]
                %171 = vst [vmem:[%s141 + $0x70] sm:$0xff] %v170
                %v172 = vld [vmem:[%s140 + $0xd8] sm:$0xff]
                %173 = vst [vmem:[%s141 + $0x78] sm:$0xff] %v172
                %v174 = vld [vmem:[%s140 + $0x100] sm:$0xff]
                %175 = vst [vmem:[%s141 + $0x80] sm:$0xff] %v174
                %v176 = vld [vmem:[%s140 + $0x108] sm:$0xff]
                %177 = vst [vmem:[%s141 + $0x88] sm:$0xff] %v176
                %v178 = vld [vmem:[%s140 + $0x110] sm:$0xff]
                %179 = vst [vmem:[%s141 + $0x90] sm:$0xff] %v178
                %v180 = vld [vmem:[%s140 + $0x118] sm:$0xff]
                %181 = vst [vmem:[%s141 + $0x98] sm:$0xff] %v180
                %v182 = vld [vmem:[%s140 + $0x140] sm:$0xff]
                %183 = vst [vmem:[%s141 + $0xa0] sm:$0xff] %v182
                %v184 = vld [vmem:[%s140 + $0x148] sm:$0xff]
                %185 = vst [vmem:[%s141 + $0xa8] sm:$0xff] %v184
                %v186 = vld [vmem:[%s140 + $0x150] sm:$0xff]
                %187 = vst [vmem:[%s141 + $0xb0] sm:$0xff] %v186
                %v188 = vld [vmem:[%s140 + $0x158] sm:$0xff]
                %189 = vst [vmem:[%s141 + $0xb8] sm:$0xff] %v188
                %v190 = vld [vmem:[%s140 + $0x180] sm:$0xff]
                %191 = vst [vmem:[%s141 + $0xc0] sm:$0xff] %v190
                %v192 = vld [vmem:[%s140 + $0x188] sm:$0xff]
                %193 = vst [vmem:[%s141 + $0xc8] sm:$0xff] %v192
                %v194 = vld [vmem:[%s140 + $0x190] sm:$0xff]
                %195 = vst [vmem:[%s141 + $0xd0] sm:$0xff] %v194
                %v196 = vld [vmem:[%s140 + $0x198] sm:$0xff]
                %197 = vst [vmem:[%s141 + $0xd8] sm:$0xff] %v196
                %v198 = vld [vmem:[%s140 + $0x1c0] sm:$0xff]
                %199 = vst [vmem:[%s141 + $0xe0] sm:$0xff] %v198
                %v200 = vld [vmem:[%s140 + $0x1c8] sm:$0xff]
                %201 = vst [vmem:[%s141 + $0xe8] sm:$0xff] %v200
                %v202 = vld [vmem:[%s140 + $0x1d0] sm:$0xff]
                %203 = vst [vmem:[%s141 + $0xf0] sm:$0xff] %v202
                %v204 = vld [vmem:[%s140 + $0x1d8] sm:$0xff]
                %205 = vst [vmem:[%s141 + $0xf8] sm:$0xff] %v204
                %v206 = vld [vmem:[%s140 + $0x200] sm:$0xff]
                %207 = vst [vmem:[%s141 + $0x100] sm:$0xff] %v206
                %v208 = vld [vmem:[%s140 + $0x208] sm:$0xff]
                %209 = vst [vmem:[%s141 + $0x108] sm:$0xff] %v208
                %v210 = vld [vmem:[%s140 + $0x210] sm:$0xff]
                %211 = vst [vmem:[%s141 + $0x110] sm:$0xff] %v210
                %v212 = vld [vmem:[%s140 + $0x218] sm:$0xff]
                %213 = vst [vmem:[%s141 + $0x118] sm:$0xff] %v212
                %v214 = vld [vmem:[%s140 + $0x240] sm:$0xff]
                %215 = vst [vmem:[%s141 + $0x120] sm:$0xff] %v214
                %v216 = vld [vmem:[%s140 + $0x248] sm:$0xff]
                %217 = vst [vmem:[%s141 + $0x128] sm:$0xff] %v216
                %v218 = vld [vmem:[%s140 + $0x250] sm:$0xff]
                %219 = vst [vmem:[%s141 + $0x130] sm:$0xff] %v218
                %v220 = vld [vmem:[%s140 + $0x258] sm:$0xff]
                %221 = vst [vmem:[%s141 + $0x138] sm:$0xff] %v220
                %v222 = vld [vmem:[%s140 + $0x280] sm:$0xff]
                %223 = vst [vmem:[%s141 + $0x140] sm:$0xff] %v222
                %v224 = vld [vmem:[%s140 + $0x288] sm:$0xff]
                %225 = vst [vmem:[%s141 + $0x148] sm:$0xff] %v224
                %v226 = vld [vmem:[%s140 + $0x290] sm:$0xff]
                %227 = vst [vmem:[%s141 + $0x150] sm:$0xff] %v226
                %v228 = vld [vmem:[%s140 + $0x298] sm:$0xff]
                %229 = vst [vmem:[%s141 + $0x158] sm:$0xff] %v228
                %v230 = vld [vmem:[%s140 + $0x2c0] sm:$0xff]
                %231 = vst [vmem:[%s141 + $0x160] sm:$0xff] %v230
                %v232 = vld [vmem:[%s140 + $0x2c8] sm:$0xff]
                %233 = vst [vmem:[%s141 + $0x168] sm:$0xff] %v232
                %v234 = vld [vmem:[%s140 + $0x2d0] sm:$0xff]
                %235 = vst [vmem:[%s141 + $0x170] sm:$0xff] %v234
                %v236 = vld [vmem:[%s140 + $0x2d8] sm:$0xff]
                %237 = vst [vmem:[%s141 + $0x178] sm:$0xff] %v236
                %v238 = vld [vmem:[%s140 + $0x300] sm:$0xff]
                %239 = vst [vmem:[%s141 + $0x180] sm:$0xff] %v238
                %v240 = vld [vmem:[%s140 + $0x308] sm:$0xff]
                %241 = vst [vmem:[%s141 + $0x188] sm:$0xff] %v240
                %v242 = vld [vmem:[%s140 + $0x310] sm:$0xff]
                %243 = vst [vmem:[%s141 + $0x190] sm:$0xff] %v242
                %v244 = vld [vmem:[%s140 + $0x318] sm:$0xff]
                %245 = vst [vmem:[%s141 + $0x198] sm:$0xff] %v244
                %v246 = vld [vmem:[%s140 + $0x340] sm:$0xff]
                %247 = vst [vmem:[%s141 + $0x1a0] sm:$0xff] %v246
                %v248 = vld [vmem:[%s140 + $0x348] sm:$0xff]
                %249 = vst [vmem:[%s141 + $0x1a8] sm:$0xff] %v248
                %v250 = vld [vmem:[%s140 + $0x350] sm:$0xff]
                %251 = vst [vmem:[%s141 + $0x1b0] sm:$0xff] %v250
                %v252 = vld [vmem:[%s140 + $0x358] sm:$0xff]
                %253 = vst [vmem:[%s141 + $0x1b8] sm:$0xff] %v252
                %v254 = vld [vmem:[%s140 + $0x380] sm:$0xff]
                %255 = vst [vmem:[%s141 + $0x1c0] sm:$0xff] %v254
                %v256 = vld [vmem:[%s140 + $0x388] sm:$0xff]
                %257 = vst [vmem:[%s141 + $0x1c8] sm:$0xff] %v256
                %v258 = vld [vmem:[%s140 + $0x390] sm:$0xff]
                %259 = vst [vmem:[%s141 + $0x1d0] sm:$0xff] %v258
                %v260 = vld [vmem:[%s140 + $0x398] sm:$0xff]
                %261 = vst [vmem:[%s141 + $0x1d8] sm:$0xff] %v260
                %v262 = vld [vmem:[%s140 + $0x3c0] sm:$0xff]
                %263 = vst [vmem:[%s141 + $0x1e0] sm:$0xff] %v262
                %v264 = vld [vmem:[%s140 + $0x3c8] sm:$0xff]
                %265 = vst [vmem:[%s141 + $0x1e8] sm:$0xff] %v264
                %v266 = vld [vmem:[%s140 + $0x3d0] sm:$0xff]
                %267 = vst [vmem:[%s141 + $0x1f0] sm:$0xff] %v266
                %v268 = vld [vmem:[%s140 + $0x3d8] sm:$0xff]
                %269 = vst [vmem:[%s141 + $0x1f8] sm:$0xff] %v268
                %v270 = vld [vmem:[%s140 + $0x400] sm:$0xff]
                %271 = vst [vmem:[%s141 + $0x200] sm:$0xff] %v270
                %v272 = vld [vmem:[%s140 + $0x408] sm:$0xff]
                %273 = vst [vmem:[%s141 + $0x208] sm:$0xff] %v272
                %v274 = vld [vmem:[%s140 + $0x410] sm:$0xff]
                %275 = vst [vmem:[%s141 + $0x210] sm:$0xff] %v274
                %v276 = vld [vmem:[%s140 + $0x418] sm:$0xff]
                %277 = vst [vmem:[%s141 + $0x218] sm:$0xff] %v276
                %v278 = vld [vmem:[%s140 + $0x440] sm:$0xff]
                %279 = vst [vmem:[%s141 + $0x220] sm:$0xff] %v278
                %v280 = vld [vmem:[%s140 + $0x448] sm:$0xff]
                %281 = vst [vmem:[%s141 + $0x228] sm:$0xff] %v280
                %v282 = vld [vmem:[%s140 + $0x450] sm:$0xff]
                %283 = vst [vmem:[%s141 + $0x230] sm:$0xff] %v282
                %v284 = vld [vmem:[%s140 + $0x458] sm:$0xff]
                %285 = vst [vmem:[%s141 + $0x238] sm:$0xff] %v284
                %v286 = vld [vmem:[%s140 + $0x480] sm:$0xff]
                %287 = vst [vmem:[%s141 + $0x240] sm:$0xff] %v286
                %v288 = vld [vmem:[%s140 + $0x488] sm:$0xff]
                %289 = vst [vmem:[%s141 + $0x248] sm:$0xff] %v288
                %v290 = vld [vmem:[%s140 + $0x490] sm:$0xff]
                %291 = vst [vmem:[%s141 + $0x250] sm:$0xff] %v290
                %v292 = vld [vmem:[%s140 + $0x498] sm:$0xff]
                %293 = vst [vmem:[%s141 + $0x258] sm:$0xff] %v292
                %v294 = vld [vmem:[%s140 + $0x4c0] sm:$0xff]
                %295 = vst [vmem:[%s141 + $0x260] sm:$0xff] %v294
                %v296 = vld [vmem:[%s140 + $0x4c8] sm:$0xff]
                %297 = vst [vmem:[%s141 + $0x268] sm:$0xff] %v296
                %v298 = vld [vmem:[%s140 + $0x4d0] sm:$0xff]
                %299 = vst [vmem:[%s141 + $0x270] sm:$0xff] %v298
                %v300 = vld [vmem:[%s140 + $0x4d8] sm:$0xff]
                %301 = vst [vmem:[%s141 + $0x278] sm:$0xff] %v300
                %v302 = vld [vmem:[%s140 + $0x500] sm:$0xff]
                %303 = vst [vmem:[%s141 + $0x280] sm:$0xff] %v302
                %v304 = vld [vmem:[%s140 + $0x508] sm:$0xff]
                %305 = vst [vmem:[%s141 + $0x288] sm:$0xff] %v304
                %v306 = vld [vmem:[%s140 + $0x510] sm:$0xff]
                %307 = vst [vmem:[%s141 + $0x290] sm:$0xff] %v306
                %v308 = vld [vmem:[%s140 + $0x518] sm:$0xff]
                %309 = vst [vmem:[%s141 + $0x298] sm:$0xff] %v308
                %v310 = vld [vmem:[%s140 + $0x540] sm:$0xff]
                %311 = vst [vmem:[%s141 + $0x2a0] sm:$0xff] %v310
                %v312 = vld [vmem:[%s140 + $0x548] sm:$0xff]
                %313 = vst [vmem:[%s141 + $0x2a8] sm:$0xff] %v312
                %v314 = vld [vmem:[%s140 + $0x550] sm:$0xff]
                %315 = vst [vmem:[%s141 + $0x2b0] sm:$0xff] %v314
                %v316 = vld [vmem:[%s140 + $0x558] sm:$0xff]
                %317 = vst [vmem:[%s141 + $0x2b8] sm:$0xff] %v316
                %v318 = vld [vmem:[%s140 + $0x580] sm:$0xff]
                %319 = vst [vmem:[%s141 + $0x2c0] sm:$0xff] %v318
                %v320 = vld [vmem:[%s140 + $0x588] sm:$0xff]
                %321 = vst [vmem:[%s141 + $0x2c8] sm:$0xff] %v320
                %v322 = vld [vmem:[%s140 + $0x590] sm:$0xff]
                %323 = vst [vmem:[%s141 + $0x2d0] sm:$0xff] %v322
                %v324 = vld [vmem:[%s140 + $0x598] sm:$0xff]
                %325 = vst [vmem:[%s141 + $0x2d8] sm:$0xff] %v324
                %v326 = vld [vmem:[%s140 + $0x5c0] sm:$0xff]
                %327 = vst [vmem:[%s141 + $0x2e0] sm:$0xff] %v326
                %v328 = vld [vmem:[%s140 + $0x5c8] sm:$0xff]
                %329 = vst [vmem:[%s141 + $0x2e8] sm:$0xff] %v328
                %v330 = vld [vmem:[%s140 + $0x5d0] sm:$0xff]
                %331 = vst [vmem:[%s141 + $0x2f0] sm:$0xff] %v330
                %v332 = vld [vmem:[%s140 + $0x5d8] sm:$0xff]
                %333 = vst [vmem:[%s141 + $0x2f8] sm:$0xff] %v332
                %v334 = vld [vmem:[%s140 + $0x600] sm:$0xff]
                %335 = vst [vmem:[%s141 + $0x300] sm:$0xff] %v334
                %v336 = vld [vmem:[%s140 + $0x608] sm:$0xff]
                %337 = vst [vmem:[%s141 + $0x308] sm:$0xff] %v336
                %v338 = vld [vmem:[%s140 + $0x610] sm:$0xff]
                %339 = vst [vmem:[%s141 + $0x310] sm:$0xff] %v338
                %v340 = vld [vmem:[%s140 + $0x618] sm:$0xff]
                %341 = vst [vmem:[%s141 + $0x318] sm:$0xff] %v340
                %v342 = vld [vmem:[%s140 + $0x640] sm:$0xff]
                %343 = vst [vmem:[%s141 + $0x320] sm:$0xff] %v342
                %v344 = vld [vmem:[%s140 + $0x648] sm:$0xff]
                %345 = vst [vmem:[%s141 + $0x328] sm:$0xff] %v344
                %v346 = vld [vmem:[%s140 + $0x650] sm:$0xff]
                %347 = vst [vmem:[%s141 + $0x330] sm:$0xff] %v346
                %v348 = vld [vmem:[%s140 + $0x658] sm:$0xff]
                %349 = vst [vmem:[%s141 + $0x338] sm:$0xff] %v348
                %v350 = vld [vmem:[%s140 + $0x680] sm:$0xff]
                %351 = vst [vmem:[%s141 + $0x340] sm:$0xff] %v350
                %v352 = vld [vmem:[%s140 + $0x688] sm:$0xff]
                %353 = vst [vmem:[%s141 + $0x348] sm:$0xff] %v352
                %v354 = vld [vmem:[%s140 + $0x690] sm:$0xff]
                %355 = vst [vmem:[%s141 + $0x350] sm:$0xff] %v354
                %v356 = vld [vmem:[%s140 + $0x698] sm:$0xff]
                %357 = vst [vmem:[%s141 + $0x358] sm:$0xff] %v356
                %v358 = vld [vmem:[%s140 + $0x6c0] sm:$0xff]
                %359 = vst [vmem:[%s141 + $0x360] sm:$0xff] %v358
                %v360 = vld [vmem:[%s140 + $0x6c8] sm:$0xff]
                %361 = vst [vmem:[%s141 + $0x368] sm:$0xff] %v360
                %v362 = vld [vmem:[%s140 + $0x6d0] sm:$0xff]
                %363 = vst [vmem:[%s141 + $0x370] sm:$0xff] %v362
                %v364 = vld [vmem:[%s140 + $0x6d8] sm:$0xff]
                %365 = vst [vmem:[%s141 + $0x378] sm:$0xff] %v364
                %v366 = vld [vmem:[%s140 + $0x700] sm:$0xff]
                %367 = vst [vmem:[%s141 + $0x380] sm:$0xff] %v366
                %v368 = vld [vmem:[%s140 + $0x708] sm:$0xff]
                %369 = vst [vmem:[%s141 + $0x388] sm:$0xff] %v368
                %v370 = vld [vmem:[%s140 + $0x710] sm:$0xff]
                %371 = vst [vmem:[%s141 + $0x390] sm:$0xff] %v370
                %v372 = vld [vmem:[%s140 + $0x718] sm:$0xff]
                %373 = vst [vmem:[%s141 + $0x398] sm:$0xff] %v372
                %v374 = vld [vmem:[%s140 + $0x740] sm:$0xff]
                %375 = vst [vmem:[%s141 + $0x3a0] sm:$0xff] %v374
                %v376 = vld [vmem:[%s140 + $0x748] sm:$0xff]
                %377 = vst [vmem:[%s141 + $0x3a8] sm:$0xff] %v376
                %v378 = vld [vmem:[%s140 + $0x750] sm:$0xff]
                %379 = vst [vmem:[%s141 + $0x3b0] sm:$0xff] %v378
                %v380 = vld [vmem:[%s140 + $0x758] sm:$0xff]
                %381 = vst [vmem:[%s141 + $0x3b8] sm:$0xff] %v380
                %v382 = vld [vmem:[%s140 + $0x780] sm:$0xff]
                %383 = vst [vmem:[%s141 + $0x3c0] sm:$0xff] %v382
                %v384 = vld [vmem:[%s140 + $0x788] sm:$0xff]
                %385 = vst [vmem:[%s141 + $0x3c8] sm:$0xff] %v384
                %v386 = vld [vmem:[%s140 + $0x790] sm:$0xff]
                %387 = vst [vmem:[%s141 + $0x3d0] sm:$0xff] %v386
                %v388 = vld [vmem:[%s140 + $0x798] sm:$0xff]
                %389 = vst [vmem:[%s141 + $0x3d8] sm:$0xff] %v388
                %v390 = vld [vmem:[%s140 + $0x7c0] sm:$0xff]
                %391 = vst [vmem:[%s141 + $0x3e0] sm:$0xff] %v390
                %v392 = vld [vmem:[%s140 + $0x7c8] sm:$0xff]
                %393 = vst [vmem:[%s141 + $0x3e8] sm:$0xff] %v392
                %v394 = vld [vmem:[%s140 + $0x7d0] sm:$0xff]
                %395 = vst [vmem:[%s141 + $0x3f0] sm:$0xff] %v394
                %v396 = vld [vmem:[%s140 + $0x7d8] sm:$0xff]
                %397 = vst [vmem:[%s141 + $0x3f8] sm:$0xff] %v396
                %v398 = vld [vmem:[%s140 + $0x800] sm:$0xff]
                %399 = vst [vmem:[%s141 + $0x400] sm:$0xff] %v398
                %v400 = vld [vmem:[%s140 + $0x808] sm:$0xff]
                %401 = vst [vmem:[%s141 + $0x408] sm:$0xff] %v400
                %v402 = vld [vmem:[%s140 + $0x810] sm:$0xff]
                %403 = vst [vmem:[%s141 + $0x410] sm:$0xff] %v402
                %v404 = vld [vmem:[%s140 + $0x818] sm:$0xff]
                %405 = vst [vmem:[%s141 + $0x418] sm:$0xff] %v404
                %v406 = vld [vmem:[%s140 + $0x840] sm:$0xff]
                %407 = vst [vmem:[%s141 + $0x420] sm:$0xff] %v406
                %v408 = vld [vmem:[%s140 + $0x848] sm:$0xff]
                %409 = vst [vmem:[%s141 + $0x428] sm:$0xff] %v408
                %v410 = vld [vmem:[%s140 + $0x850] sm:$0xff]
                %411 = vst [vmem:[%s141 + $0x430] sm:$0xff] %v410
                %v412 = vld [vmem:[%s140 + $0x858] sm:$0xff]
                %413 = vst [vmem:[%s141 + $0x438] sm:$0xff] %v412
                %v414 = vld [vmem:[%s140 + $0x880] sm:$0xff]
                %415 = vst [vmem:[%s141 + $0x440] sm:$0xff] %v414
                %v416 = vld [vmem:[%s140 + $0x888] sm:$0xff]
                %417 = vst [vmem:[%s141 + $0x448] sm:$0xff] %v416
                %v418 = vld [vmem:[%s140 + $0x890] sm:$0xff]
                %419 = vst [vmem:[%s141 + $0x450] sm:$0xff] %v418
                %v420 = vld [vmem:[%s140 + $0x898] sm:$0xff]
                %421 = vst [vmem:[%s141 + $0x458] sm:$0xff] %v420
                %v422 = vld [vmem:[%s140 + $0x8c0] sm:$0xff]
                %423 = vst [vmem:[%s141 + $0x460] sm:$0xff] %v422
                %v424 = vld [vmem:[%s140 + $0x8c8] sm:$0xff]
                %425 = vst [vmem:[%s141 + $0x468] sm:$0xff] %v424
                %v426 = vld [vmem:[%s140 + $0x8d0] sm:$0xff]
                %427 = vst [vmem:[%s141 + $0x470] sm:$0xff] %v426
                %v428 = vld [vmem:[%s140 + $0x8d8] sm:$0xff]
                %429 = vst [vmem:[%s141 + $0x478] sm:$0xff] %v428
                %v430 = vld [vmem:[%s140 + $0x900] sm:$0xff]
                %431 = vst [vmem:[%s141 + $0x480] sm:$0xff] %v430
                %v432 = vld [vmem:[%s140 + $0x908] sm:$0xff]
                %433 = vst [vmem:[%s141 + $0x488] sm:$0xff] %v432
                %v434 = vld [vmem:[%s140 + $0x910] sm:$0xff]
                %435 = vst [vmem:[%s141 + $0x490] sm:$0xff] %v434
                %v436 = vld [vmem:[%s140 + $0x918] sm:$0xff]
                %437 = vst [vmem:[%s141 + $0x498] sm:$0xff] %v436
                %v438 = vld [vmem:[%s140 + $0x940] sm:$0xff]
                %439 = vst [vmem:[%s141 + $0x4a0] sm:$0xff] %v438
                %v440 = vld [vmem:[%s140 + $0x948] sm:$0xff]
                %441 = vst [vmem:[%s141 + $0x4a8] sm:$0xff] %v440
                %v442 = vld [vmem:[%s140 + $0x950] sm:$0xff]
                %443 = vst [vmem:[%s141 + $0x4b0] sm:$0xff] %v442
                %v444 = vld [vmem:[%s140 + $0x958] sm:$0xff]
                %445 = vst [vmem:[%s141 + $0x4b8] sm:$0xff] %v444
                %v446 = vld [vmem:[%s140 + $0x980] sm:$0xff]
                %447 = vst [vmem:[%s141 + $0x4c0] sm:$0xff] %v446
                %v448 = vld [vmem:[%s140 + $0x988] sm:$0xff]
                %449 = vst [vmem:[%s141 + $0x4c8] sm:$0xff] %v448
                %v450 = vld [vmem:[%s140 + $0x990] sm:$0xff]
                %451 = vst [vmem:[%s141 + $0x4d0] sm:$0xff] %v450
                %v452 = vld [vmem:[%s140 + $0x998] sm:$0xff]
                %453 = vst [vmem:[%s141 + $0x4d8] sm:$0xff] %v452
                %v454 = vld [vmem:[%s140 + $0x9c0] sm:$0xff]
                %455 = vst [vmem:[%s141 + $0x4e0] sm:$0xff] %v454
                %v456 = vld [vmem:[%s140 + $0x9c8] sm:$0xff]
                %457 = vst [vmem:[%s141 + $0x4e8] sm:$0xff] %v456
                %v458 = vld [vmem:[%s140 + $0x9d0] sm:$0xff]
                %459 = vst [vmem:[%s141 + $0x4f0] sm:$0xff] %v458
                %v460 = vld [vmem:[%s140 + $0x9d8] sm:$0xff]
                %461 = vst [vmem:[%s141 + $0x4f8] sm:$0xff] %v460
                %v462 = vld [vmem:[%s140 + $0xa00] sm:$0xff]
                %463 = vst [vmem:[%s141 + $0x500] sm:$0xff] %v462
                %v464 = vld [vmem:[%s140 + $0xa08] sm:$0xff]
                %465 = vst [vmem:[%s141 + $0x508] sm:$0xff] %v464
                %v466 = vld [vmem:[%s140 + $0xa10] sm:$0xff]
                %467 = vst [vmem:[%s141 + $0x510] sm:$0xff] %v466
                %v468 = vld [vmem:[%s140 + $0xa18] sm:$0xff]
                %469 = vst [vmem:[%s141 + $0x518] sm:$0xff] %v468
                %v470 = vld [vmem:[%s140 + $0xa40] sm:$0xff]
                %471 = vst [vmem:[%s141 + $0x520] sm:$0xff] %v470
                %v472 = vld [vmem:[%s140 + $0xa48] sm:$0xff]
                %473 = vst [vmem:[%s141 + $0x528] sm:$0xff] %v472
                %v474 = vld [vmem:[%s140 + $0xa50] sm:$0xff]
                %475 = vst [vmem:[%s141 + $0x530] sm:$0xff] %v474
                %v476 = vld [vmem:[%s140 + $0xa58] sm:$0xff]
                %477 = vst [vmem:[%s141 + $0x538] sm:$0xff] %v476
                %v478 = vld [vmem:[%s140 + $0xa80] sm:$0xff]
                %479 = vst [vmem:[%s141 + $0x540] sm:$0xff] %v478
                %v480 = vld [vmem:[%s140 + $0xa88] sm:$0xff]
                %481 = vst [vmem:[%s141 + $0x548] sm:$0xff] %v480
                %v482 = vld [vmem:[%s140 + $0xa90] sm:$0xff]
                %483 = vst [vmem:[%s141 + $0x550] sm:$0xff] %v482
                %v484 = vld [vmem:[%s140 + $0xa98] sm:$0xff]
                %485 = vst [vmem:[%s141 + $0x558] sm:$0xff] %v484
                %v486 = vld [vmem:[%s140 + $0xac0] sm:$0xff]
                %487 = vst [vmem:[%s141 + $0x560] sm:$0xff] %v486
                %v488 = vld [vmem:[%s140 + $0xac8] sm:$0xff]
                %489 = vst [vmem:[%s141 + $0x568] sm:$0xff] %v488
                %v490 = vld [vmem:[%s140 + $0xad0] sm:$0xff]
                %491 = vst [vmem:[%s141 + $0x570] sm:$0xff] %v490
                %v492 = vld [vmem:[%s140 + $0xad8] sm:$0xff]
                %493 = vst [vmem:[%s141 + $0x578] sm:$0xff] %v492
                %v494 = vld [vmem:[%s140 + $0xb00] sm:$0xff]
                %495 = vst [vmem:[%s141 + $0x580] sm:$0xff] %v494
                %v496 = vld [vmem:[%s140 + $0xb08] sm:$0xff]
                %497 = vst [vmem:[%s141 + $0x588] sm:$0xff] %v496
                %v498 = vld [vmem:[%s140 + $0xb10] sm:$0xff]
                %499 = vst [vmem:[%s141 + $0x590] sm:$0xff] %v498
                %v500 = vld [vmem:[%s140 + $0xb18] sm:$0xff]
                %501 = vst [vmem:[%s141 + $0x598] sm:$0xff] %v500
                %v502 = vld [vmem:[%s140 + $0xb40] sm:$0xff]
                %503 = vst [vmem:[%s141 + $0x5a0] sm:$0xff] %v502
                %v504 = vld [vmem:[%s140 + $0xb48] sm:$0xff]
                %505 = vst [vmem:[%s141 + $0x5a8] sm:$0xff] %v504
                %v506 = vld [vmem:[%s140 + $0xb50] sm:$0xff]
                %507 = vst [vmem:[%s141 + $0x5b0] sm:$0xff] %v506
                %v508 = vld [vmem:[%s140 + $0xb58] sm:$0xff]
                %509 = vst [vmem:[%s141 + $0x5b8] sm:$0xff] %v508
                %v510 = vld [vmem:[%s140 + $0xb80] sm:$0xff]
                %511 = vst [vmem:[%s141 + $0x5c0] sm:$0xff] %v510
                %v512 = vld [vmem:[%s140 + $0xb88] sm:$0xff]
                %513 = vst [vmem:[%s141 + $0x5c8] sm:$0xff] %v512
                %v514 = vld [vmem:[%s140 + $0xb90] sm:$0xff]
                %515 = vst [vmem:[%s141 + $0x5d0] sm:$0xff] %v514
                %v516 = vld [vmem:[%s140 + $0xb98] sm:$0xff]
                %517 = vst [vmem:[%s141 + $0x5d8] sm:$0xff] %v516
                %v518 = vld [vmem:[%s140 + $0xbc0] sm:$0xff]
                %519 = vst [vmem:[%s141 + $0x5e0] sm:$0xff] %v518
                %v520 = vld [vmem:[%s140 + $0xbc8] sm:$0xff]
                %521 = vst [vmem:[%s141 + $0x5e8] sm:$0xff] %v520
                %v522 = vld [vmem:[%s140 + $0xbd0] sm:$0xff]
                %523 = vst [vmem:[%s141 + $0x5f0] sm:$0xff] %v522
                %v524 = vld [vmem:[%s140 + $0xbd8] sm:$0xff]
                %525 = vst [vmem:[%s141 + $0x5f8] sm:$0xff] %v524
                %v526 = vld [vmem:[%s140 + $0xc00] sm:$0xff]
                %527 = vst [vmem:[%s141 + $0x600] sm:$0xff] %v526
                %v528 = vld [vmem:[%s140 + $0xc08] sm:$0xff]
                %529 = vst [vmem:[%s141 + $0x608] sm:$0xff] %v528
                %v530 = vld [vmem:[%s140 + $0xc10] sm:$0xff]
                %531 = vst [vmem:[%s141 + $0x610] sm:$0xff] %v530
                %v532 = vld [vmem:[%s140 + $0xc18] sm:$0xff]
                %533 = vst [vmem:[%s141 + $0x618] sm:$0xff] %v532
                %v534 = vld [vmem:[%s140 + $0xc40] sm:$0xff]
                %535 = vst [vmem:[%s141 + $0x620] sm:$0xff] %v534
                %v536 = vld [vmem:[%s140 + $0xc48] sm:$0xff]
                %537 = vst [vmem:[%s141 + $0x628] sm:$0xff] %v536
                %v538 = vld [vmem:[%s140 + $0xc50] sm:$0xff]
                %539 = vst [vmem:[%s141 + $0x630] sm:$0xff] %v538
                %v540 = vld [vmem:[%s140 + $0xc58] sm:$0xff]
                %541 = vst [vmem:[%s141 + $0x638] sm:$0xff] %v540
                %v542 = vld [vmem:[%s140 + $0xc80] sm:$0xff]
                %543 = vst [vmem:[%s141 + $0x640] sm:$0xff] %v542
                %v544 = vld [vmem:[%s140 + $0xc88] sm:$0xff]
                %545 = vst [vmem:[%s141 + $0x648] sm:$0xff] %v544
                %v546 = vld [vmem:[%s140 + $0xc90] sm:$0xff]
                %547 = vst [vmem:[%s141 + $0x650] sm:$0xff] %v546
                %v548 = vld [vmem:[%s140 + $0xc98] sm:$0xff]
                %549 = vst [vmem:[%s141 + $0x658] sm:$0xff] %v548
                %v550 = vld [vmem:[%s140 + $0xcc0] sm:$0xff]
                %551 = vst [vmem:[%s141 + $0x660] sm:$0xff] %v550
                %v552 = vld [vmem:[%s140 + $0xcc8] sm:$0xff]
                %553 = vst [vmem:[%s141 + $0x668] sm:$0xff] %v552
                %v554 = vld [vmem:[%s140 + $0xcd0] sm:$0xff]
                %555 = vst [vmem:[%s141 + $0x670] sm:$0xff] %v554
                %v556 = vld [vmem:[%s140 + $0xcd8] sm:$0xff]
                %557 = vst [vmem:[%s141 + $0x678] sm:$0xff] %v556
                %v558 = vld [vmem:[%s140 + $0xd00] sm:$0xff]
                %559 = vst [vmem:[%s141 + $0x680] sm:$0xff] %v558
                %v560 = vld [vmem:[%s140 + $0xd08] sm:$0xff]
                %561 = vst [vmem:[%s141 + $0x688] sm:$0xff] %v560
                %v562 = vld [vmem:[%s140 + $0xd10] sm:$0xff]
                %563 = vst [vmem:[%s141 + $0x690] sm:$0xff] %v562
                %v564 = vld [vmem:[%s140 + $0xd18] sm:$0xff]
                %565 = vst [vmem:[%s141 + $0x698] sm:$0xff] %v564
                %v566 = vld [vmem:[%s140 + $0xd40] sm:$0xff]
                %567 = vst [vmem:[%s141 + $0x6a0] sm:$0xff] %v566
                %v568 = vld [vmem:[%s140 + $0xd48] sm:$0xff]
                %569 = vst [vmem:[%s141 + $0x6a8] sm:$0xff] %v568
                %v570 = vld [vmem:[%s140 + $0xd50] sm:$0xff]
                %571 = vst [vmem:[%s141 + $0x6b0] sm:$0xff] %v570
                %v572 = vld [vmem:[%s140 + $0xd58] sm:$0xff]
                %573 = vst [vmem:[%s141 + $0x6b8] sm:$0xff] %v572
                %v574 = vld [vmem:[%s140 + $0xd80] sm:$0xff]
                %575 = vst [vmem:[%s141 + $0x6c0] sm:$0xff] %v574
                %v576 = vld [vmem:[%s140 + $0xd88] sm:$0xff]
                %577 = vst [vmem:[%s141 + $0x6c8] sm:$0xff] %v576
                %v578 = vld [vmem:[%s140 + $0xd90] sm:$0xff]
                %579 = vst [vmem:[%s141 + $0x6d0] sm:$0xff] %v578
                %v580 = vld [vmem:[%s140 + $0xd98] sm:$0xff]
                %581 = vst [vmem:[%s141 + $0x6d8] sm:$0xff] %v580
                %v582 = vld [vmem:[%s140 + $0xdc0] sm:$0xff]
                %583 = vst [vmem:[%s141 + $0x6e0] sm:$0xff] %v582
                %v584 = vld [vmem:[%s140 + $0xdc8] sm:$0xff]
                %585 = vst [vmem:[%s141 + $0x6e8] sm:$0xff] %v584
                %v586 = vld [vmem:[%s140 + $0xdd0] sm:$0xff]
                %587 = vst [vmem:[%s141 + $0x6f0] sm:$0xff] %v586
                %v588 = vld [vmem:[%s140 + $0xdd8] sm:$0xff]
                %589 = vst [vmem:[%s141 + $0x6f8] sm:$0xff] %v588
                %v590 = vld [vmem:[%s140 + $0xe00] sm:$0xff]
                %591 = vst [vmem:[%s141 + $0x700] sm:$0xff] %v590
                %v592 = vld [vmem:[%s140 + $0xe08] sm:$0xff]
                %593 = vst [vmem:[%s141 + $0x708] sm:$0xff] %v592
                %v594 = vld [vmem:[%s140 + $0xe10] sm:$0xff]
                %595 = vst [vmem:[%s141 + $0x710] sm:$0xff] %v594
                %v596 = vld [vmem:[%s140 + $0xe18] sm:$0xff]
                %597 = vst [vmem:[%s141 + $0x718] sm:$0xff] %v596
                %v598 = vld [vmem:[%s140 + $0xe40] sm:$0xff]
                %599 = vst [vmem:[%s141 + $0x720] sm:$0xff] %v598
                %v600 = vld [vmem:[%s140 + $0xe48] sm:$0xff]
                %601 = vst [vmem:[%s141 + $0x728] sm:$0xff] %v600
                %v602 = vld [vmem:[%s140 + $0xe50] sm:$0xff]
                %603 = vst [vmem:[%s141 + $0x730] sm:$0xff] %v602
                %v604 = vld [vmem:[%s140 + $0xe58] sm:$0xff]
                %605 = vst [vmem:[%s141 + $0x738] sm:$0xff] %v604
                %v606 = vld [vmem:[%s140 + $0xe80] sm:$0xff]
                %607 = vst [vmem:[%s141 + $0x740] sm:$0xff] %v606
                %v608 = vld [vmem:[%s140 + $0xe88] sm:$0xff]
                %609 = vst [vmem:[%s141 + $0x748] sm:$0xff] %v608
                %v610 = vld [vmem:[%s140 + $0xe90] sm:$0xff]
                %611 = vst [vmem:[%s141 + $0x750] sm:$0xff] %v610
                %v612 = vld [vmem:[%s140 + $0xe98] sm:$0xff]
                %613 = vst [vmem:[%s141 + $0x758] sm:$0xff] %v612
                %v614 = vld [vmem:[%s140 + $0xec0] sm:$0xff]
                %615 = vst [vmem:[%s141 + $0x760] sm:$0xff] %v614
                %v616 = vld [vmem:[%s140 + $0xec8] sm:$0xff]
                %617 = vst [vmem:[%s141 + $0x768] sm:$0xff] %v616
                %v618 = vld [vmem:[%s140 + $0xed0] sm:$0xff]
                %619 = vst [vmem:[%s141 + $0x770] sm:$0xff] %v618
                %v620 = vld [vmem:[%s140 + $0xed8] sm:$0xff]
                %621 = vst [vmem:[%s141 + $0x778] sm:$0xff] %v620
                %v622 = vld [vmem:[%s140 + $0xf00] sm:$0xff]
                %623 = vst [vmem:[%s141 + $0x780] sm:$0xff] %v622
                %v624 = vld [vmem:[%s140 + $0xf08] sm:$0xff]
                %625 = vst [vmem:[%s141 + $0x788] sm:$0xff] %v624
                %v626 = vld [vmem:[%s140 + $0xf10] sm:$0xff]
                %627 = vst [vmem:[%s141 + $0x790] sm:$0xff] %v626
                %v628 = vld [vmem:[%s140 + $0xf18] sm:$0xff]
                %629 = vst [vmem:[%s141 + $0x798] sm:$0xff] %v628
                %v630 = vld [vmem:[%s140 + $0xf40] sm:$0xff]
                %631 = vst [vmem:[%s141 + $0x7a0] sm:$0xff] %v630
                %v632 = vld [vmem:[%s140 + $0xf48] sm:$0xff]
                %633 = vst [vmem:[%s141 + $0x7a8] sm:$0xff] %v632
                %v634 = vld [vmem:[%s140 + $0xf50] sm:$0xff]
                %635 = vst [vmem:[%s141 + $0x7b0] sm:$0xff] %v634
                %v636 = vld [vmem:[%s140 + $0xf58] sm:$0xff]
                %637 = vst [vmem:[%s141 + $0x7b8] sm:$0xff] %v636
                %v638 = vld [vmem:[%s140 + $0xf80] sm:$0xff]
                %639 = vst [vmem:[%s141 + $0x7c0] sm:$0xff] %v638
                %v640 = vld [vmem:[%s140 + $0xf88] sm:$0xff]
                %641 = vst [vmem:[%s141 + $0x7c8] sm:$0xff] %v640
                %v642 = vld [vmem:[%s140 + $0xf90] sm:$0xff]
                %643 = vst [vmem:[%s141 + $0x7d0] sm:$0xff] %v642
                %v644 = vld [vmem:[%s140 + $0xf98] sm:$0xff]
                %645 = vst [vmem:[%s141 + $0x7d8] sm:$0xff] %v644
                %v646 = vld [vmem:[%s140 + $0xfc0] sm:$0xff]
                %647 = vst [vmem:[%s141 + $0x7e0] sm:$0xff] %v646
                %v648 = vld [vmem:[%s140 + $0xfc8] sm:$0xff]
                %649 = vst [vmem:[%s141 + $0x7e8] sm:$0xff] %v648
                %v650 = vld [vmem:[%s140 + $0xfd0] sm:$0xff]
                %651 = vst [vmem:[%s141 + $0x7f0] sm:$0xff] %v650
                %v652 = vld [vmem:[%s140 + $0xfd8] sm:$0xff]
                %653 = vst [vmem:[%s141 + $0x7f8] sm:$0xff] %v652
              $region37: #{gcn_forward.7} parent=31 // loop_footer
                %s139 = sadd.s32 1, %s135
              $region38: #{gcn_forward.7} parent=31 // loop_footer_branch
                %134 = sbr.rel target = $region34
              $region39: #{gcn_forward.7} parent=31 // loop_exit
                _
            $region32: #{gcn_forward.7} parent=27 // pred_fallthru
              _
            // Predicated region
            $region40: #{gcn_forward.7} parent=27 // pred_check
              _
            $region41: #{gcn_forward.7} parent=27 // pred_check_branch
              %655 = sbr.rel target = $region43
            $region42: #{gcn_forward.7} parent=27 // pred_region
              _
            $region43: #{gcn_forward.7} parent=27 // pred_fallthru
              _
          $region28: #{gcn_forward.7} parent=23 // pred_fallthru
            _
          %656 = vnop
        $region24: #{gcn_forward.7} parent=19 // pred_fallthru
          _
      $region20: #{gcn_forward.7} parent=5 // pred_fallthru
        _
      %p657 = scmp.le.s32.totalorder 1, %s8
      %p658 = scmp.lt.s32.totalorder %s8, 5
      %p659 = pnand %p657, %p658
      %p660 = pneg %p659
      // Predicated region
      $region44: #{gcn_forward.7} parent=5 // pred_check
        _
      $region45: #{gcn_forward.7} parent=5 // pred_check_branch
        %662 = sbr.rel (%p659) target = $region47
      $region46: #{gcn_forward.7} parent=5 // pred_region
        %s663 = ssub.s32 %s8, 1
        %s664 = sand.u32 %s35, 1
        %s665 = sand.u32 %s35, 1
        %s666 = smul.addr %s665, 2048
        %s667 = scalar_lea.vmem [#allocation2], %s666
        // Predicated region
        $region48: #{gcn_forward.7} parent=46 // pred_check
          %p668 = pneg %p48
        $region49: #{gcn_forward.7} parent=46 // pred_check_branch
          %670 = sbr.rel (%p668) target = $region51
        $region50: #{gcn_forward.7} parent=46 // pred_region
          _
        $region51: #{gcn_forward.7} parent=46 // pred_fallthru
          _
        %s671 = sand.u32 %s35, 1
        %s672 = sand.u32 %s35, 1
        %s673 = smul.addr %s672, 2048
        %s674 = scalar_lea.vmem [#allocation2], %s673
        %p675 = pneg %p48
        %p676 = pneg %p45
        %p677 = pneg %p69
        %p678 = pneg %p66
        %p679 = pneg %p95
        %p680 = pneg %p92
        %s681 = smul.u32 64, %s17
        %p682 = scmp.lt.s32.totalorder %s681, 127
        %s683 = scalar_select %p682, %s681, 127
        %s684 = smul.addr %s683, 8
        %s685 = scalar_lea.vmem %s2, %s684
        %s686 = smul.u32 64, %s17
        %s687 = smul.u32 4, %s18
        %s688 = smul.u32 64, %s17
        %p689 = scmp.lt.s32.totalorder %s688, 127
        %s690 = scalar_select %p689, %s688, 127
        %s691 = smul.addr %s690, 8
        %s692 = scalar_lea.vmem %s2, %s691
        %s693 = smul.u32 64, %s17
        %p694 = scmp.eq.s32.totalorder %s18, 0
        // Predicated region
        $region52: #{gcn_forward.7} parent=46 // pred_check
          %p695 = pneg %p694
        $region53: #{gcn_forward.7} parent=46 // pred_check_branch
          %697 = sbr.rel (%p695) target = $region55
        $region54: #{gcn_forward.7} parent=46 // pred_region
          %698 = vst [vmem:[%s692] sm:$0xff] 0.0
          %699 = vst [vmem:[%s692 + $0x8] sm:$0xff] 0.0
          %700 = vst [vmem:[%s692 + $0x10] sm:$0xff] 0.0
          %701 = vst [vmem:[%s692 + $0x18] sm:$0xff] 0.0
          %702 = vst [vmem:[%s692 + $0x20] sm:$0xff] 0.0
          %703 = vst [vmem:[%s692 + $0x28] sm:$0xff] 0.0
          %704 = vst [vmem:[%s692 + $0x30] sm:$0xff] 0.0
          %705 = vst [vmem:[%s692 + $0x38] sm:$0xff] 0.0
          %706 = vst [vmem:[%s692 + $0x40] sm:$0xff] 0.0
          %707 = vst [vmem:[%s692 + $0x48] sm:$0xff] 0.0
          %708 = vst [vmem:[%s692 + $0x50] sm:$0xff] 0.0
          %709 = vst [vmem:[%s692 + $0x58] sm:$0xff] 0.0
          %710 = vst [vmem:[%s692 + $0x60] sm:$0xff] 0.0
          %711 = vst [vmem:[%s692 + $0x68] sm:$0xff] 0.0
          %712 = vst [vmem:[%s692 + $0x70] sm:$0xff] 0.0
          %713 = vst [vmem:[%s692 + $0x78] sm:$0xff] 0.0
          %714 = vst [vmem:[%s692 + $0x80] sm:$0xff] 0.0
          %715 = vst [vmem:[%s692 + $0x88] sm:$0xff] 0.0
          %716 = vst [vmem:[%s692 + $0x90] sm:$0xff] 0.0
          %717 = vst [vmem:[%s692 + $0x98] sm:$0xff] 0.0
          %718 = vst [vmem:[%s692 + $0xa0] sm:$0xff] 0.0
          %719 = vst [vmem:[%s692 + $0xa8] sm:$0xff] 0.0
          %720 = vst [vmem:[%s692 + $0xb0] sm:$0xff] 0.0
          %721 = vst [vmem:[%s692 + $0xb8] sm:$0xff] 0.0
          %722 = vst [vmem:[%s692 + $0xc0] sm:$0xff] 0.0
          %723 = vst [vmem:[%s692 + $0xc8] sm:$0xff] 0.0
          %724 = vst [vmem:[%s692 + $0xd0] sm:$0xff] 0.0
          %725 = vst [vmem:[%s692 + $0xd8] sm:$0xff] 0.0
          %726 = vst [vmem:[%s692 + $0xe0] sm:$0xff] 0.0
          %727 = vst [vmem:[%s692 + $0xe8] sm:$0xff] 0.0
          %728 = vst [vmem:[%s692 + $0xf0] sm:$0xff] 0.0
          %729 = vst [vmem:[%s692 + $0xf8] sm:$0xff] 0.0
          %730 = vst [vmem:[%s692 + $0x100] sm:$0xff] 0.0
          %731 = vst [vmem:[%s692 + $0x108] sm:$0xff] 0.0
          %732 = vst [vmem:[%s692 + $0x110] sm:$0xff] 0.0
          %733 = vst [vmem:[%s692 + $0x118] sm:$0xff] 0.0
          %734 = vst [vmem:[%s692 + $0x120] sm:$0xff] 0.0
          %735 = vst [vmem:[%s692 + $0x128] sm:$0xff] 0.0
          %736 = vst [vmem:[%s692 + $0x130] sm:$0xff] 0.0
          %737 = vst [vmem:[%s692 + $0x138] sm:$0xff] 0.0
          %738 = vst [vmem:[%s692 + $0x140] sm:$0xff] 0.0
          %739 = vst [vmem:[%s692 + $0x148] sm:$0xff] 0.0
          %740 = vst [vmem:[%s692 + $0x150] sm:$0xff] 0.0
          %741 = vst [vmem:[%s692 + $0x158] sm:$0xff] 0.0
          %742 = vst [vmem:[%s692 + $0x160] sm:$0xff] 0.0
          %743 = vst [vmem:[%s692 + $0x168] sm:$0xff] 0.0
          %744 = vst [vmem:[%s692 + $0x170] sm:$0xff] 0.0
          %745 = vst [vmem:[%s692 + $0x178] sm:$0xff] 0.0
          %746 = vst [vmem:[%s692 + $0x180] sm:$0xff] 0.0
          %747 = vst [vmem:[%s692 + $0x188] sm:$0xff] 0.0
          %748 = vst [vmem:[%s692 + $0x190] sm:$0xff] 0.0
          %749 = vst [vmem:[%s692 + $0x198] sm:$0xff] 0.0
          %750 = vst [vmem:[%s692 + $0x1a0] sm:$0xff] 0.0
          %751 = vst [vmem:[%s692 + $0x1a8] sm:$0xff] 0.0
          %752 = vst [vmem:[%s692 + $0x1b0] sm:$0xff] 0.0
          %753 = vst [vmem:[%s692 + $0x1b8] sm:$0xff] 0.0
          %754 = vst [vmem:[%s692 + $0x1c0] sm:$0xff] 0.0
          %755 = vst [vmem:[%s692 + $0x1c8] sm:$0xff] 0.0
          %756 = vst [vmem:[%s692 + $0x1d0] sm:$0xff] 0.0
          %757 = vst [vmem:[%s692 + $0x1d8] sm:$0xff] 0.0
          %758 = vst [vmem:[%s692 + $0x1e0] sm:$0xff] 0.0
          %759 = vst [vmem:[%s692 + $0x1e8] sm:$0xff] 0.0
          %760 = vst [vmem:[%s692 + $0x1f0] sm:$0xff] 0.0
          %761 = vst [vmem:[%s692 + $0x1f8] sm:$0xff] 0.0
        $region55: #{gcn_forward.7} parent=46 // pred_fallthru
          _
        %s762 = smul.u32 %s18, 512
        %s763 = scalar_lea.vmem %s1, %s762
        %v764 = vld [vmem:[%s763] sm:$0xff]
        %v765 = vld [vmem:[%s763 + $0x8] sm:$0xff]
        %v766 = vld [vmem:[%s763 + $0x10] sm:$0xff]
        %v767 = vld [vmem:[%s763 + $0x18] sm:$0xff]
        %v768 = vld [vmem:[%s763 + $0x20] sm:$0xff]
        %v769 = vld [vmem:[%s763 + $0x28] sm:$0xff]
        %v770 = vld [vmem:[%s763 + $0x30] sm:$0xff]
        %v771 = vld [vmem:[%s763 + $0x38] sm:$0xff]
        %v772 = vld [vmem:[%s763 + $0x40] sm:$0xff]
        %v773 = vld [vmem:[%s763 + $0x48] sm:$0xff]
        %v774 = vld [vmem:[%s763 + $0x50] sm:$0xff]
        %v775 = vld [vmem:[%s763 + $0x58] sm:$0xff]
        %v776 = vld [vmem:[%s763 + $0x60] sm:$0xff]
        %v777 = vld [vmem:[%s763 + $0x68] sm:$0xff]
        %v778 = vld [vmem:[%s763 + $0x70] sm:$0xff]
        %v779 = vld [vmem:[%s763 + $0x78] sm:$0xff]
        %v780 = vld [vmem:[%s763 + $0x80] sm:$0xff]
        %v781 = vld [vmem:[%s763 + $0x88] sm:$0xff]
        %v782 = vld [vmem:[%s763 + $0x90] sm:$0xff]
        %v783 = vld [vmem:[%s763 + $0x98] sm:$0xff]
        %v784 = vld [vmem:[%s763 + $0xa0] sm:$0xff]
        %v785 = vld [vmem:[%s763 + $0xa8] sm:$0xff]
        %v786 = vld [vmem:[%s763 + $0xb0] sm:$0xff]
        %v787 = vld [vmem:[%s763 + $0xb8] sm:$0xff]
        %v788 = vld [vmem:[%s763 + $0xc0] sm:$0xff]
        %v789 = vld [vmem:[%s763 + $0xc8] sm:$0xff]
        %v790 = vld [vmem:[%s763 + $0xd0] sm:$0xff]
        %v791 = vld [vmem:[%s763 + $0xd8] sm:$0xff]
        %v792 = vld [vmem:[%s763 + $0xe0] sm:$0xff]
        %v793 = vld [vmem:[%s763 + $0xe8] sm:$0xff]
        %v794 = vld [vmem:[%s763 + $0xf0] sm:$0xff]
        %v795 = vld [vmem:[%s763 + $0xf8] sm:$0xff]
        %v796 = vld [vmem:[%s763 + $0x100] sm:$0xff]
        %v797 = vld [vmem:[%s763 + $0x108] sm:$0xff]
        %v798 = vld [vmem:[%s763 + $0x110] sm:$0xff]
        %v799 = vld [vmem:[%s763 + $0x118] sm:$0xff]
        %v800 = vld [vmem:[%s763 + $0x120] sm:$0xff]
        %v801 = vld [vmem:[%s763 + $0x128] sm:$0xff]
        %v802 = vld [vmem:[%s763 + $0x130] sm:$0xff]
        %v803 = vld [vmem:[%s763 + $0x138] sm:$0xff]
        %v804 = vld [vmem:[%s763 + $0x140] sm:$0xff]
        %v805 = vld [vmem:[%s763 + $0x148] sm:$0xff]
        %v806 = vld [vmem:[%s763 + $0x150] sm:$0xff]
        %v807 = vld [vmem:[%s763 + $0x158] sm:$0xff]
        %v808 = vld [vmem:[%s763 + $0x160] sm:$0xff]
        %v809 = vld [vmem:[%s763 + $0x168] sm:$0xff]
        %v810 = vld [vmem:[%s763 + $0x170] sm:$0xff]
        %v811 = vld [vmem:[%s763 + $0x178] sm:$0xff]
        %v812 = vld [vmem:[%s763 + $0x180] sm:$0xff]
        %v813 = vld [vmem:[%s763 + $0x188] sm:$0xff]
        %v814 = vld [vmem:[%s763 + $0x190] sm:$0xff]
        %v815 = vld [vmem:[%s763 + $0x198] sm:$0xff]
        %v816 = vld [vmem:[%s763 + $0x1a0] sm:$0xff]
        %v817 = vld [vmem:[%s763 + $0x1a8] sm:$0xff]
        %v818 = vld [vmem:[%s763 + $0x1b0] sm:$0xff]
        %v819 = vld [vmem:[%s763 + $0x1b8] sm:$0xff]
        %v820 = vld [vmem:[%s763 + $0x1c0] sm:$0xff]
        %v821 = vld [vmem:[%s763 + $0x1c8] sm:$0xff]
        %v822 = vld [vmem:[%s763 + $0x1d0] sm:$0xff]
        %v823 = vld [vmem:[%s763 + $0x1d8] sm:$0xff]
        %v824 = vld [vmem:[%s763 + $0x1e0] sm:$0xff]
        %v825 = vld [vmem:[%s763 + $0x1e8] sm:$0xff]
        %v826 = vld [vmem:[%s763 + $0x1f0] sm:$0xff]
        %v827 = vld [vmem:[%s763 + $0x1f8] sm:$0xff]
        %v828 = vld [vmem:[%s692] sm:$0xff]
        %v829 = vld [vmem:[%s692 + $0x8] sm:$0xff]
        %v830 = vld [vmem:[%s692 + $0x10] sm:$0xff]
        %v831 = vld [vmem:[%s692 + $0x18] sm:$0xff]
        %v832 = vld [vmem:[%s692 + $0x20] sm:$0xff]
        %v833 = vld [vmem:[%s692 + $0x28] sm:$0xff]
        %v834 = vld [vmem:[%s692 + $0x30] sm:$0xff]
        %v835 = vld [vmem:[%s692 + $0x38] sm:$0xff]
        %v836 = vld [vmem:[%s692 + $0x40] sm:$0xff]
        %v837 = vld [vmem:[%s692 + $0x48] sm:$0xff]
        %v838 = vld [vmem:[%s692 + $0x50] sm:$0xff]
        %v839 = vld [vmem:[%s692 + $0x58] sm:$0xff]
        %v840 = vld [vmem:[%s692 + $0x60] sm:$0xff]
        %v841 = vld [vmem:[%s692 + $0x68] sm:$0xff]
        %v842 = vld [vmem:[%s692 + $0x70] sm:$0xff]
        %v843 = vld [vmem:[%s692 + $0x78] sm:$0xff]
        %v844 = vld [vmem:[%s692 + $0x80] sm:$0xff]
        %v845 = vld [vmem:[%s692 + $0x88] sm:$0xff]
        %v846 = vld [vmem:[%s692 + $0x90] sm:$0xff]
        %v847 = vld [vmem:[%s692 + $0x98] sm:$0xff]
        %v848 = vld [vmem:[%s692 + $0xa0] sm:$0xff]
        %v849 = vld [vmem:[%s692 + $0xa8] sm:$0xff]
        %v850 = vld [vmem:[%s692 + $0xb0] sm:$0xff]
        %v851 = vld [vmem:[%s692 + $0xb8] sm:$0xff]
        %v852 = vld [vmem:[%s692 + $0xc0] sm:$0xff]
        %v853 = vld [vmem:[%s692 + $0xc8] sm:$0xff]
        %v854 = vld [vmem:[%s692 + $0xd0] sm:$0xff]
        %v855 = vld [vmem:[%s692 + $0xd8] sm:$0xff]
        %v856 = vld [vmem:[%s692 + $0xe0] sm:$0xff]
        %v857 = vld [vmem:[%s692 + $0xe8] sm:$0xff]
        %v858 = vld [vmem:[%s692 + $0xf0] sm:$0xff]
        %v859 = vld [vmem:[%s692 + $0xf8] sm:$0xff]
        %v860 = vld [vmem:[%s692 + $0x100] sm:$0xff]
        %v861 = vld [vmem:[%s692 + $0x108] sm:$0xff]
        %v862 = vld [vmem:[%s692 + $0x110] sm:$0xff]
        %v863 = vld [vmem:[%s692 + $0x118] sm:$0xff]
        %v864 = vld [vmem:[%s692 + $0x120] sm:$0xff]
        %v865 = vld [vmem:[%s692 + $0x128] sm:$0xff]
        %v866 = vld [vmem:[%s692 + $0x130] sm:$0xff]
        %v867 = vld [vmem:[%s692 + $0x138] sm:$0xff]
        %v868 = vld [vmem:[%s692 + $0x140] sm:$0xff]
        %v869 = vld [vmem:[%s692 + $0x148] sm:$0xff]
        %v870 = vld [vmem:[%s692 + $0x150] sm:$0xff]
        %v871 = vld [vmem:[%s692 + $0x158] sm:$0xff]
        %v872 = vld [vmem:[%s692 + $0x160] sm:$0xff]
        %v873 = vld [vmem:[%s692 + $0x168] sm:$0xff]
        %v874 = vld [vmem:[%s692 + $0x170] sm:$0xff]
        %v875 = vld [vmem:[%s692 + $0x178] sm:$0xff]
        %v876 = vld [vmem:[%s692 + $0x180] sm:$0xff]
        %v877 = vld [vmem:[%s692 + $0x188] sm:$0xff]
        %v878 = vld [vmem:[%s692 + $0x190] sm:$0xff]
        %v879 = vld [vmem:[%s692 + $0x198] sm:$0xff]
        %v880 = vld [vmem:[%s692 + $0x1a0] sm:$0xff]
        %v881 = vld [vmem:[%s692 + $0x1a8] sm:$0xff]
        %v882 = vld [vmem:[%s692 + $0x1b0] sm:$0xff]
        %v883 = vld [vmem:[%s692 + $0x1b8] sm:$0xff]
        %v884 = vld [vmem:[%s692 + $0x1c0] sm:$0xff]
        %v885 = vld [vmem:[%s692 + $0x1c8] sm:$0xff]
        %v886 = vld [vmem:[%s692 + $0x1d0] sm:$0xff]
        %v887 = vld [vmem:[%s692 + $0x1d8] sm:$0xff]
        %v888 = vld [vmem:[%s692 + $0x1e0] sm:$0xff]
        %v889 = vld [vmem:[%s692 + $0x1e8] sm:$0xff]
        %v890 = vld [vmem:[%s692 + $0x1f0] sm:$0xff]
        %v891 = vld [vmem:[%s692 + $0x1f8] sm:$0xff]
        %v892 = vld [vmem:[%s667] sm:$0xff]
        %v893 = vld [vmem:[%s667 + $0x8] sm:$0xff]
        %v894 = vld [vmem:[%s667 + $0x10] sm:$0xff]
        %v895 = vld [vmem:[%s667 + $0x18] sm:$0xff]
        %v896 = vld [vmem:[%s667 + $0x20] sm:$0xff]
        %v897 = vld [vmem:[%s667 + $0x28] sm:$0xff]
        %v898 = vld [vmem:[%s667 + $0x30] sm:$0xff]
        %v899 = vld [vmem:[%s667 + $0x38] sm:$0xff]
        %v900 = vld [vmem:[%s667 + $0x40] sm:$0xff]
        %v901 = vld [vmem:[%s667 + $0x48] sm:$0xff]
        %v902 = vld [vmem:[%s667 + $0x50] sm:$0xff]
        %v903 = vld [vmem:[%s667 + $0x58] sm:$0xff]
        %v904 = vld [vmem:[%s667 + $0x60] sm:$0xff]
        %v905 = vld [vmem:[%s667 + $0x68] sm:$0xff]
        %v906 = vld [vmem:[%s667 + $0x70] sm:$0xff]
        %v907 = vld [vmem:[%s667 + $0x78] sm:$0xff]
        %v908 = vld [vmem:[%s667 + $0x80] sm:$0xff]
        %v909 = vld [vmem:[%s667 + $0x88] sm:$0xff]
        %v910 = vld [vmem:[%s667 + $0x90] sm:$0xff]
        %v911 = vld [vmem:[%s667 + $0x98] sm:$0xff]
        %v912 = vld [vmem:[%s667 + $0xa0] sm:$0xff]
        %v913 = vld [vmem:[%s667 + $0xa8] sm:$0xff]
        %v914 = vld [vmem:[%s667 + $0xb0] sm:$0xff]
        %v915 = vld [vmem:[%s667 + $0xb8] sm:$0xff]
        %v916 = vld [vmem:[%s667 + $0xc0] sm:$0xff]
        %v917 = vld [vmem:[%s667 + $0xc8] sm:$0xff]
        %v918 = vld [vmem:[%s667 + $0xd0] sm:$0xff]
        %v919 = vld [vmem:[%s667 + $0xd8] sm:$0xff]
        %v920 = vld [vmem:[%s667 + $0xe0] sm:$0xff]
        %v921 = vld [vmem:[%s667 + $0xe8] sm:$0xff]
        %v922 = vld [vmem:[%s667 + $0xf0] sm:$0xff]
        %v923 = vld [vmem:[%s667 + $0xf8] sm:$0xff]
        %v924 = vld [vmem:[%s667 + $0x100] sm:$0xff]
        %v925 = vld [vmem:[%s667 + $0x108] sm:$0xff]
        %v926 = vld [vmem:[%s667 + $0x110] sm:$0xff]
        %v927 = vld [vmem:[%s667 + $0x118] sm:$0xff]
        %v928 = vld [vmem:[%s667 + $0x120] sm:$0xff]
        %v929 = vld [vmem:[%s667 + $0x128] sm:$0xff]
        %v930 = vld [vmem:[%s667 + $0x130] sm:$0xff]
        %v931 = vld [vmem:[%s667 + $0x138] sm:$0xff]
        %v932 = vld [vmem:[%s667 + $0x140] sm:$0xff]
        %v933 = vld [vmem:[%s667 + $0x148] sm:$0xff]
        %v934 = vld [vmem:[%s667 + $0x150] sm:$0xff]
        %v935 = vld [vmem:[%s667 + $0x158] sm:$0xff]
        %v936 = vld [vmem:[%s667 + $0x160] sm:$0xff]
        %v937 = vld [vmem:[%s667 + $0x168] sm:$0xff]
        %v938 = vld [vmem:[%s667 + $0x170] sm:$0xff]
        %v939 = vld [vmem:[%s667 + $0x178] sm:$0xff]
        %v940 = vld [vmem:[%s667 + $0x180] sm:$0xff]
        %v941 = vld [vmem:[%s667 + $0x188] sm:$0xff]
        %v942 = vld [vmem:[%s667 + $0x190] sm:$0xff]
        %v943 = vld [vmem:[%s667 + $0x198] sm:$0xff]
        %v944 = vld [vmem:[%s667 + $0x1a0] sm:$0xff]
        %v945 = vld [vmem:[%s667 + $0x1a8] sm:$0xff]
        %v946 = vld [vmem:[%s667 + $0x1b0] sm:$0xff]
        %v947 = vld [vmem:[%s667 + $0x1b8] sm:$0xff]
        %v948 = vld [vmem:[%s667 + $0x1c0] sm:$0xff]
        %v949 = vld [vmem:[%s667 + $0x1c8] sm:$0xff]
        %v950 = vld [vmem:[%s667 + $0x1d0] sm:$0xff]
        %v951 = vld [vmem:[%s667 + $0x1d8] sm:$0xff]
        %v952 = vld [vmem:[%s667 + $0x1e0] sm:$0xff]
        %v953 = vld [vmem:[%s667 + $0x1e8] sm:$0xff]
        %v954 = vld [vmem:[%s667 + $0x1f0] sm:$0xff]
        %v955 = vld [vmem:[%s667 + $0x1f8] sm:$0xff]
        %v956 = vld [vmem:[%s667 + $0x200] sm:$0xff]
        %v957 = vld [vmem:[%s667 + $0x208] sm:$0xff]
        %v958 = vld [vmem:[%s667 + $0x210] sm:$0xff]
        %v959 = vld [vmem:[%s667 + $0x218] sm:$0xff]
        %v960 = vld [vmem:[%s667 + $0x220] sm:$0xff]
        %v961 = vld [vmem:[%s667 + $0x228] sm:$0xff]
        %v962 = vld [vmem:[%s667 + $0x230] sm:$0xff]
        %v963 = vld [vmem:[%s667 + $0x238] sm:$0xff]
        %v964 = vld [vmem:[%s667 + $0x240] sm:$0xff]
        %v965 = vld [vmem:[%s667 + $0x248] sm:$0xff]
        %v966 = vld [vmem:[%s667 + $0x250] sm:$0xff]
        %v967 = vld [vmem:[%s667 + $0x258] sm:$0xff]
        %v968 = vld [vmem:[%s667 + $0x260] sm:$0xff]
        %v969 = vld [vmem:[%s667 + $0x268] sm:$0xff]
        %v970 = vld [vmem:[%s667 + $0x270] sm:$0xff]
        %v971 = vld [vmem:[%s667 + $0x278] sm:$0xff]
        %v972 = vld [vmem:[%s667 + $0x280] sm:$0xff]
        %v973 = vld [vmem:[%s667 + $0x288] sm:$0xff]
        %v974 = vld [vmem:[%s667 + $0x290] sm:$0xff]
        %v975 = vld [vmem:[%s667 + $0x298] sm:$0xff]
        %v976 = vld [vmem:[%s667 + $0x2a0] sm:$0xff]
        %v977 = vld [vmem:[%s667 + $0x2a8] sm:$0xff]
        %v978 = vld [vmem:[%s667 + $0x2b0] sm:$0xff]
        %v979 = vld [vmem:[%s667 + $0x2b8] sm:$0xff]
        %v980 = vld [vmem:[%s667 + $0x2c0] sm:$0xff]
        %v981 = vld [vmem:[%s667 + $0x2c8] sm:$0xff]
        %v982 = vld [vmem:[%s667 + $0x2d0] sm:$0xff]
        %v983 = vld [vmem:[%s667 + $0x2d8] sm:$0xff]
        %v984 = vld [vmem:[%s667 + $0x2e0] sm:$0xff]
        %v985 = vld [vmem:[%s667 + $0x2e8] sm:$0xff]
        %v986 = vld [vmem:[%s667 + $0x2f0] sm:$0xff]
        %v987 = vld [vmem:[%s667 + $0x2f8] sm:$0xff]
        %v988 = vld [vmem:[%s667 + $0x300] sm:$0xff]
        %v989 = vld [vmem:[%s667 + $0x308] sm:$0xff]
        %v990 = vld [vmem:[%s667 + $0x310] sm:$0xff]
        %v991 = vld [vmem:[%s667 + $0x318] sm:$0xff]
        %v992 = vld [vmem:[%s667 + $0x320] sm:$0xff]
        %v993 = vld [vmem:[%s667 + $0x328] sm:$0xff]
        %v994 = vld [vmem:[%s667 + $0x330] sm:$0xff]
        %v995 = vld [vmem:[%s667 + $0x338] sm:$0xff]
        %v996 = vld [vmem:[%s667 + $0x340] sm:$0xff]
        %v997 = vld [vmem:[%s667 + $0x348] sm:$0xff]
        %v998 = vld [vmem:[%s667 + $0x350] sm:$0xff]
        %v999 = vld [vmem:[%s667 + $0x358] sm:$0xff]
        %v1000 = vld [vmem:[%s667 + $0x360] sm:$0xff]
        %v1001 = vld [vmem:[%s667 + $0x368] sm:$0xff]
        %v1002 = vld [vmem:[%s667 + $0x370] sm:$0xff]
        %v1003 = vld [vmem:[%s667 + $0x378] sm:$0xff]
        %v1004 = vld [vmem:[%s667 + $0x380] sm:$0xff]
        %v1005 = vld [vmem:[%s667 + $0x388] sm:$0xff]
        %v1006 = vld [vmem:[%s667 + $0x390] sm:$0xff]
        %v1007 = vld [vmem:[%s667 + $0x398] sm:$0xff]
        %v1008 = vld [vmem:[%s667 + $0x3a0] sm:$0xff]
        %v1009 = vld [vmem:[%s667 + $0x3a8] sm:$0xff]
        %v1010 = vld [vmem:[%s667 + $0x3b0] sm:$0xff]
        %v1011 = vld [vmem:[%s667 + $0x3b8] sm:$0xff]
        %v1012 = vld [vmem:[%s667 + $0x3c0] sm:$0xff]
        %v1013 = vld [vmem:[%s667 + $0x3c8] sm:$0xff]
        %v1014 = vld [vmem:[%s667 + $0x3d0] sm:$0xff]
        %v1015 = vld [vmem:[%s667 + $0x3d8] sm:$0xff]
        %v1016 = vld [vmem:[%s667 + $0x3e0] sm:$0xff]
        %v1017 = vld [vmem:[%s667 + $0x3e8] sm:$0xff]
        %v1018 = vld [vmem:[%s667 + $0x3f0] sm:$0xff]
        %v1019 = vld [vmem:[%s667 + $0x3f8] sm:$0xff]
        %v1020 = vld [vmem:[%s667 + $0x400] sm:$0xff]
        %v1021 = vld [vmem:[%s667 + $0x408] sm:$0xff]
        %v1022 = vld [vmem:[%s667 + $0x410] sm:$0xff]
        %v1023 = vld [vmem:[%s667 + $0x418] sm:$0xff]
        %v1024 = vld [vmem:[%s667 + $0x420] sm:$0xff]
        %v1025 = vld [vmem:[%s667 + $0x428] sm:$0xff]
        %v1026 = vld [vmem:[%s667 + $0x430] sm:$0xff]
        %v1027 = vld [vmem:[%s667 + $0x438] sm:$0xff]
        %v1028 = vld [vmem:[%s667 + $0x440] sm:$0xff]
        %v1029 = vld [vmem:[%s667 + $0x448] sm:$0xff]
        %v1030 = vld [vmem:[%s667 + $0x450] sm:$0xff]
        %v1031 = vld [vmem:[%s667 + $0x458] sm:$0xff]
        %v1032 = vld [vmem:[%s667 + $0x460] sm:$0xff]
        %v1033 = vld [vmem:[%s667 + $0x468] sm:$0xff]
        %v1034 = vld [vmem:[%s667 + $0x470] sm:$0xff]
        %v1035 = vld [vmem:[%s667 + $0x478] sm:$0xff]
        %v1036 = vld [vmem:[%s667 + $0x480] sm:$0xff]
        %v1037 = vld [vmem:[%s667 + $0x488] sm:$0xff]
        %v1038 = vld [vmem:[%s667 + $0x490] sm:$0xff]
        %v1039 = vld [vmem:[%s667 + $0x498] sm:$0xff]
        %v1040 = vld [vmem:[%s667 + $0x4a0] sm:$0xff]
        %v1041 = vld [vmem:[%s667 + $0x4a8] sm:$0xff]
        %v1042 = vld [vmem:[%s667 + $0x4b0] sm:$0xff]
        %v1043 = vld [vmem:[%s667 + $0x4b8] sm:$0xff]
        %v1044 = vld [vmem:[%s667 + $0x4c0] sm:$0xff]
        %v1045 = vld [vmem:[%s667 + $0x4c8] sm:$0xff]
        %v1046 = vld [vmem:[%s667 + $0x4d0] sm:$0xff]
        %v1047 = vld [vmem:[%s667 + $0x4d8] sm:$0xff]
        %v1048 = vld [vmem:[%s667 + $0x4e0] sm:$0xff]
        %v1049 = vld [vmem:[%s667 + $0x4e8] sm:$0xff]
        %v1050 = vld [vmem:[%s667 + $0x4f0] sm:$0xff]
        %v1051 = vld [vmem:[%s667 + $0x4f8] sm:$0xff]
        %v1052 = vld [vmem:[%s667 + $0x500] sm:$0xff]
        %v1053 = vld [vmem:[%s667 + $0x508] sm:$0xff]
        %v1054 = vld [vmem:[%s667 + $0x510] sm:$0xff]
        %v1055 = vld [vmem:[%s667 + $0x518] sm:$0xff]
        %v1056 = vld [vmem:[%s667 + $0x520] sm:$0xff]
        %v1057 = vld [vmem:[%s667 + $0x528] sm:$0xff]
        %v1058 = vld [vmem:[%s667 + $0x530] sm:$0xff]
        %v1059 = vld [vmem:[%s667 + $0x538] sm:$0xff]
        %v1060 = vld [vmem:[%s667 + $0x540] sm:$0xff]
        %v1061 = vld [vmem:[%s667 + $0x548] sm:$0xff]
        %v1062 = vld [vmem:[%s667 + $0x550] sm:$0xff]
        %v1063 = vld [vmem:[%s667 + $0x558] sm:$0xff]
        %v1064 = vld [vmem:[%s667 + $0x560] sm:$0xff]
        %v1065 = vld [vmem:[%s667 + $0x568] sm:$0xff]
        %v1066 = vld [vmem:[%s667 + $0x570] sm:$0xff]
        %v1067 = vld [vmem:[%s667 + $0x578] sm:$0xff]
        %v1068 = vld [vmem:[%s667 + $0x580] sm:$0xff]
        %v1069 = vld [vmem:[%s667 + $0x588] sm:$0xff]
        %v1070 = vld [vmem:[%s667 + $0x590] sm:$0xff]
        %v1071 = vld [vmem:[%s667 + $0x598] sm:$0xff]
        %v1072 = vld [vmem:[%s667 + $0x5a0] sm:$0xff]
        %v1073 = vld [vmem:[%s667 + $0x5a8] sm:$0xff]
        %v1074 = vld [vmem:[%s667 + $0x5b0] sm:$0xff]
        %v1075 = vld [vmem:[%s667 + $0x5b8] sm:$0xff]
        %v1076 = vld [vmem:[%s667 + $0x5c0] sm:$0xff]
        %v1077 = vld [vmem:[%s667 + $0x5c8] sm:$0xff]
        %v1078 = vld [vmem:[%s667 + $0x5d0] sm:$0xff]
        %v1079 = vld [vmem:[%s667 + $0x5d8] sm:$0xff]
        %v1080 = vld [vmem:[%s667 + $0x5e0] sm:$0xff]
        %v1081 = vld [vmem:[%s667 + $0x5e8] sm:$0xff]
        %v1082 = vld [vmem:[%s667 + $0x5f0] sm:$0xff]
        %v1083 = vld [vmem:[%s667 + $0x5f8] sm:$0xff]
        %v1084 = vld [vmem:[%s667 + $0x600] sm:$0xff]
        %v1085 = vld [vmem:[%s667 + $0x608] sm:$0xff]
        %v1086 = vld [vmem:[%s667 + $0x610] sm:$0xff]
        %v1087 = vld [vmem:[%s667 + $0x618] sm:$0xff]
        %v1088 = vld [vmem:[%s667 + $0x620] sm:$0xff]
        %v1089 = vld [vmem:[%s667 + $0x628] sm:$0xff]
        %v1090 = vld [vmem:[%s667 + $0x630] sm:$0xff]
        %v1091 = vld [vmem:[%s667 + $0x638] sm:$0xff]
        %v1092 = vld [vmem:[%s667 + $0x640] sm:$0xff]
        %v1093 = vld [vmem:[%s667 + $0x648] sm:$0xff]
        %v1094 = vld [vmem:[%s667 + $0x650] sm:$0xff]
        %v1095 = vld [vmem:[%s667 + $0x658] sm:$0xff]
        %v1096 = vld [vmem:[%s667 + $0x660] sm:$0xff]
        %v1097 = vld [vmem:[%s667 + $0x668] sm:$0xff]
        %v1098 = vld [vmem:[%s667 + $0x670] sm:$0xff]
        %v1099 = vld [vmem:[%s667 + $0x678] sm:$0xff]
        %v1100 = vld [vmem:[%s667 + $0x680] sm:$0xff]
        %v1101 = vld [vmem:[%s667 + $0x688] sm:$0xff]
        %v1102 = vld [vmem:[%s667 + $0x690] sm:$0xff]
        %v1103 = vld [vmem:[%s667 + $0x698] sm:$0xff]
        %v1104 = vld [vmem:[%s667 + $0x6a0] sm:$0xff]
        %v1105 = vld [vmem:[%s667 + $0x6a8] sm:$0xff]
        %v1106 = vld [vmem:[%s667 + $0x6b0] sm:$0xff]
        %v1107 = vld [vmem:[%s667 + $0x6b8] sm:$0xff]
        %v1108 = vld [vmem:[%s667 + $0x6c0] sm:$0xff]
        %v1109 = vld [vmem:[%s667 + $0x6c8] sm:$0xff]
        %v1110 = vld [vmem:[%s667 + $0x6d0] sm:$0xff]
        %v1111 = vld [vmem:[%s667 + $0x6d8] sm:$0xff]
        %v1112 = vld [vmem:[%s667 + $0x6e0] sm:$0xff]
        %v1113 = vld [vmem:[%s667 + $0x6e8] sm:$0xff]
        %v1114 = vld [vmem:[%s667 + $0x6f0] sm:$0xff]
        %v1115 = vld [vmem:[%s667 + $0x6f8] sm:$0xff]
        %v1116 = vld [vmem:[%s667 + $0x700] sm:$0xff]
        %v1117 = vld [vmem:[%s667 + $0x708] sm:$0xff]
        %v1118 = vld [vmem:[%s667 + $0x710] sm:$0xff]
        %v1119 = vld [vmem:[%s667 + $0x718] sm:$0xff]
        %v1120 = vld [vmem:[%s667 + $0x720] sm:$0xff]
        %v1121 = vld [vmem:[%s667 + $0x728] sm:$0xff]
        %v1122 = vld [vmem:[%s667 + $0x730] sm:$0xff]
        %v1123 = vld [vmem:[%s667 + $0x738] sm:$0xff]
        %v1124 = vld [vmem:[%s667 + $0x740] sm:$0xff]
        %v1125 = vld [vmem:[%s667 + $0x748] sm:$0xff]
        %v1126 = vld [vmem:[%s667 + $0x750] sm:$0xff]
        %v1127 = vld [vmem:[%s667 + $0x758] sm:$0xff]
        %v1128 = vld [vmem:[%s667 + $0x760] sm:$0xff]
        %v1129 = vld [vmem:[%s667 + $0x768] sm:$0xff]
        %v1130 = vld [vmem:[%s667 + $0x770] sm:$0xff]
        %v1131 = vld [vmem:[%s667 + $0x778] sm:$0xff]
        %v1132 = vld [vmem:[%s667 + $0x780] sm:$0xff]
        %v1133 = vld [vmem:[%s667 + $0x788] sm:$0xff]
        %v1134 = vld [vmem:[%s667 + $0x790] sm:$0xff]
        %v1135 = vld [vmem:[%s667 + $0x798] sm:$0xff]
        %v1136 = vld [vmem:[%s667 + $0x7a0] sm:$0xff]
        %v1137 = vld [vmem:[%s667 + $0x7a8] sm:$0xff]
        %v1138 = vld [vmem:[%s667 + $0x7b0] sm:$0xff]
        %v1139 = vld [vmem:[%s667 + $0x7b8] sm:$0xff]
        %v1140 = vld [vmem:[%s667 + $0x7c0] sm:$0xff]
        %v1141 = vld [vmem:[%s667 + $0x7c8] sm:$0xff]
        %v1142 = vld [vmem:[%s667 + $0x7d0] sm:$0xff]
        %v1143 = vld [vmem:[%s667 + $0x7d8] sm:$0xff]
        %v1144 = vld [vmem:[%s667 + $0x7e0] sm:$0xff]
        %v1145 = vld [vmem:[%s667 + $0x7e8] sm:$0xff]
        %v1146 = vld [vmem:[%s667 + $0x7f0] sm:$0xff]
        %v1147 = vld [vmem:[%s667 + $0x7f8] sm:$0xff]
        %1148 = vmatprep.subr.mxu0 0.0
        %1149 = vmatpush1.msra.mxu0 %v764
        %1150 = vmatprep.subr.mxu0 0.0
        %1151 = vmatpush1.msra.mxu0 %v765
        %1152 = vmatprep.subr.mxu0 0.0
        %1153 = vmatpush1.msra.mxu0 %v766
        %1154 = vmatprep.subr.mxu0 0.0
        %1155 = vmatpush1.msra.mxu0 %v767
        %1156 = vmatprep.subr.mxu0 0.0
        %1157 = vmatpush1.msra.mxu0 %v768
        %1158 = vmatprep.subr.mxu0 0.0
        %1159 = vmatpush1.msra.mxu0 %v769
        %1160 = vmatprep.subr.mxu0 0.0
        %1161 = vmatpush1.msra.mxu0 %v770
        %1162 = vmatprep.subr.mxu0 0.0
        %1163 = vmatpush1.msra.mxu0 %v771
        %1164 = vmatprep.subr.mxu0 0.0
        %1165 = vmatpush1.msra.mxu0 %v772
        %1166 = vmatprep.subr.mxu0 0.0
        %1167 = vmatpush1.msra.mxu0 %v773
        %1168 = vmatprep.subr.mxu0 0.0
        %1169 = vmatpush1.msra.mxu0 %v774
        %1170 = vmatprep.subr.mxu0 0.0
        %1171 = vmatpush1.msra.mxu0 %v775
        %1172 = vmatprep.subr.mxu0 0.0
        %1173 = vmatpush1.msra.mxu0 %v776
        %1174 = vmatprep.subr.mxu0 0.0
        %1175 = vmatpush1.msra.mxu0 %v777
        %1176 = vmatprep.subr.mxu0 0.0
        %1177 = vmatpush1.msra.mxu0 %v778
        %1178 = vmatprep.subr.mxu0 0.0
        %1179 = vmatpush1.msra.mxu0 %v779
        %1180 = vmatprep.subr.mxu0 0.0
        %1181 = vmatpush1.msra.mxu0 %v780
        %1182 = vmatprep.subr.mxu0 0.0
        %1183 = vmatpush1.msra.mxu0 %v781
        %1184 = vmatprep.subr.mxu0 0.0
        %1185 = vmatpush1.msra.mxu0 %v782
        %1186 = vmatprep.subr.mxu0 0.0
        %1187 = vmatpush1.msra.mxu0 %v783
        %1188 = vmatprep.subr.mxu0 0.0
        %1189 = vmatpush1.msra.mxu0 %v784
        %1190 = vmatprep.subr.mxu0 0.0
        %1191 = vmatpush1.msra.mxu0 %v785
        %1192 = vmatprep.subr.mxu0 0.0
        %1193 = vmatpush1.msra.mxu0 %v786
        %1194 = vmatprep.subr.mxu0 0.0
        %1195 = vmatpush1.msra.mxu0 %v787
        %1196 = vmatprep.subr.mxu0 0.0
        %1197 = vmatpush1.msra.mxu0 %v788
        %1198 = vmatprep.subr.mxu0 0.0
        %1199 = vmatpush1.msra.mxu0 %v789
        %1200 = vmatprep.subr.mxu0 0.0
        %1201 = vmatpush1.msra.mxu0 %v790
        %1202 = vmatprep.subr.mxu0 0.0
        %1203 = vmatpush1.msra.mxu0 %v791
        %1204 = vmatprep.subr.mxu0 0.0
        %1205 = vmatpush1.msra.mxu0 %v792
        %1206 = vmatprep.subr.mxu0 0.0
        %1207 = vmatpush1.msra.mxu0 %v793
        %1208 = vmatprep.subr.mxu0 0.0
        %1209 = vmatpush1.msra.mxu0 %v794
        %1210 = vmatprep.subr.mxu0 0.0
        %1211 = vmatpush1.msra.mxu0 %v795
        %1212 = vmatprep.mubr.f32.mxu0 %v893
        %1213 = vmatmul.mubr.f32.gmra.mrb[0].mxu0 %v892
        %v1214 = vpop.f32.mrb[0].mxu0
        %v1215 = vadd.f32 0.0, %v1214
        %v1216 = vpop.f32.mrb[0].mxu0
        %1217 = vmatprep.mubr.f32.mxu0 %v897
        %1218 = vmatmul.mubr.f32.gmra.mrb[0].mxu0 %v896
        %v1219 = vpop.f32.mrb[0].mxu0
        %v1220 = vadd.f32 0.0, %v1219
        %v1221 = vpop.f32.mrb[0].mxu0
        %1222 = vmatprep.mubr.f32.mxu0 %v901
        %1223 = vmatmul.mubr.f32.gmra.mrb[0].mxu0 %v900
        %v1224 = vpop.f32.mrb[0].mxu0
        %v1225 = vadd.f32 0.0, %v1224
        %v1226 = vpop.f32.mrb[0].mxu0
        %1227 = vmatprep.mubr.f32.mxu0 %v905
        %1228 = vmatmul.mubr.f32.gmra.mrb[0].mxu0 %v904
        %v1229 = vpop.f32.mrb[0].mxu0
        %v1230 = vadd.f32 0.0, %v1229
        %v1231 = vpop.f32.mrb[0].mxu0
        %1232 = vmatprep.mubr.f32.mxu0 %v909
        %1233 = vmatmul.mubr.f32.gmra.mrb[0].mxu0 %v908
        %v1234 = vpop.f32.mrb[0].mxu0
        %v1235 = vadd.f32 0.0, %v1234
        %v1236 = vpop.f32.mrb[0].mxu0
        %1237 = vmatprep.mubr.f32.mxu0 %v913
        %1238 = vmatmul.mubr.f32.gmra.mrb[0].mxu0 %v912
        %v1239 = vpop.f32.mrb[0].mxu0
        %v1240 = vadd.f32 0.0, %v1239
        %v1241 = vpop.f32.mrb[0].mxu0
        %1242 = vmatprep.mubr.f32.mxu0 %v917
        %1243 = vmatmul.mubr.f32.gmra.mrb[0].mxu0 %v916
        %v1244 = vpop.f32.mrb[0].mxu0
        %v1245 = vadd.f32 0.0, %v1244
        %v1246 = vpop.f32.mrb[0].mxu0
        %1247 = vmatprep.mubr.f32.mxu0 %v921
        %1248 = vmatmul.mubr.f32.gmra.mrb[0].mxu0 %v920
        %v1249 = vpop.f32.mrb[0].mxu0
        %v1250 = vadd.f32 0.0, %v1249
        %v1251 = vpop.f32.mrb[0].mxu0
        %1252 = vmatprep.mubr.f32.mxu0 %v925
        %1253 = vmatmul.mubr.f32.gmra.mrb[0].mxu0 %v924
        %v1254 = vpop.f32.mrb[0].mxu0
        %v1255 = vadd.f32 0.0, %v1254
        %v1256 = vpop.f32.mrb[0].mxu0
        %1257 = vmatprep.mubr.f32.mxu0 %v929
        %1258 = vmatmul.mubr.f32.gmra.mrb[0].mxu0 %v928
        %v1259 = vpop.f32.mrb[0].mxu0
        %v1260 = vadd.f32 0.0, %v1259
        %v1261 = vpop.f32.mrb[0].mxu0
        %1262 = vmatprep.mubr.f32.mxu0 %v933
        %1263 = vmatmul.mubr.f32.gmra.mrb[0].mxu0 %v932
        %v1264 = vpop.f32.mrb[0].mxu0
        %v1265 = vadd.f32 0.0, %v1264
        %v1266 = vpop.f32.mrb[0].mxu0
        %1267 = vmatprep.mubr.f32.mxu0 %v937
        %1268 = vmatmul.mubr.f32.gmra.mrb[0].mxu0 %v936
        %v1269 = vpop.f32.mrb[0].mxu0
        %v1270 = vadd.f32 0.0, %v1269
        %v1271 = vpop.f32.mrb[0].mxu0
        %1272 = vmatprep.mubr.f32.mxu0 %v941
        %1273 = vmatmul.mubr.f32.gmra.mrb[0].mxu0 %v940
        %v1274 = vpop.f32.mrb[0].mxu0
        %v1275 = vadd.f32 0.0, %v1274
        %v1276 = vpop.f32.mrb[0].mxu0
        %1277 = vmatprep.mubr.f32.mxu0 %v945
        %1278 = vmatmul.mubr.f32.gmra.mrb[0].mxu0 %v944
        %v1279 = vpop.f32.mrb[0].mxu0
        %v1280 = vadd.f32 0.0, %v1279
        %v1281 = vpop.f32.mrb[0].mxu0
        %1282 = vmatprep.mubr.f32.mxu0 %v949
        %1283 = vmatmul.mubr.f32.gmra.mrb[0].mxu0 %v948
        %v1284 = vpop.f32.mrb[0].mxu0
        %v1285 = vadd.f32 0.0, %v1284
        %v1286 = vpop.f32.mrb[0].mxu0
        %1287 = vmatprep.mubr.f32.mxu0 %v953
        %1288 = vmatmul.mubr.f32.gmra.mrb[0].mxu0 %v952
        %v1289 = vpop.f32.mrb[0].mxu0
        %v1290 = vadd.f32 0.0, %v1289
        %v1291 = vpop.f32.mrb[0].mxu0
        %1292 = vmatprep.mubr.f32.mxu0 %v957
        %1293 = vmatmul.mubr.f32.gmra.mrb[0].mxu0 %v956
        %v1294 = vpop.f32.mrb[0].mxu0
        %v1295 = vadd.f32 0.0, %v1294
        %v1296 = vpop.f32.mrb[0].mxu0
        %1297 = vmatprep.mubr.f32.mxu0 %v961
        %1298 = vmatmul.mubr.f32.gmra.mrb[0].mxu0 %v960
        %v1299 = vpop.f32.mrb[0].mxu0
        %v1300 = vadd.f32 0.0, %v1299
        %v1301 = vpop.f32.mrb[0].mxu0
        %1302 = vmatprep.mubr.f32.mxu0 %v965
        %1303 = vmatmul.mubr.f32.gmra.mrb[0].mxu0 %v964
        %v1304 = vpop.f32.mrb[0].mxu0
        %v1305 = vadd.f32 0.0, %v1304
        %v1306 = vpop.f32.mrb[0].mxu0
        %1307 = vmatprep.mubr.f32.mxu0 %v969
        %1308 = vmatmul.mubr.f32.gmra.mrb[0].mxu0 %v968
        %v1309 = vpop.f32.mrb[0].mxu0
        %v1310 = vadd.f32 0.0, %v1309
        %v1311 = vpop.f32.mrb[0].mxu0
        %1312 = vmatprep.mubr.f32.mxu0 %v973
        %1313 = vmatmul.mubr.f32.gmra.mrb[0].mxu0 %v972
        %v1314 = vpop.f32.mrb[0].mxu0
        %v1315 = vadd.f32 0.0, %v1314
        %v1316 = vpop.f32.mrb[0].mxu0
        %1317 = vmatprep.mubr.f32.mxu0 %v977
        %1318 = vmatmul.mubr.f32.gmra.mrb[0].mxu0 %v976
        %v1319 = vpop.f32.mrb[0].mxu0
        %v1320 = vadd.f32 0.0, %v1319
        %v1321 = vpop.f32.mrb[0].mxu0
        %1322 = vmatprep.mubr.f32.mxu0 %v981
        %1323 = vmatmul.mubr.f32.gmra.mrb[0].mxu0 %v980
        %v1324 = vpop.f32.mrb[0].mxu0
        %v1325 = vadd.f32 0.0, %v1324
        %v1326 = vpop.f32.mrb[0].mxu0
        %1327 = vmatprep.mubr.f32.mxu0 %v985
        %1328 = vmatmul.mubr.f32.gmra.mrb[0].mxu0 %v984
        %v1329 = vpop.f32.mrb[0].mxu0
        %v1330 = vadd.f32 0.0, %v1329
        %v1331 = vpop.f32.mrb[0].mxu0
        %1332 = vmatprep.mubr.f32.mxu0 %v989
        %1333 = vmatmul.mubr.f32.gmra.mrb[0].mxu0 %v988
        %v1334 = vpop.f32.mrb[0].mxu0
        %v1335 = vadd.f32 0.0, %v1334
        %v1336 = vpop.f32.mrb[0].mxu0
        %1337 = vmatprep.mubr.f32.mxu0 %v993
        %1338 = vmatmul.mubr.f32.gmra.mrb[0].mxu0 %v992
        %v1339 = vpop.f32.mrb[0].mxu0
        %v1340 = vadd.f32 0.0, %v1339
        %v1341 = vpop.f32.mrb[0].mxu0
        %1342 = vmatprep.mubr.f32.mxu0 %v997
        %1343 = vmatmul.mubr.f32.gmra.mrb[0].mxu0 %v996
        %v1344 = vpop.f32.mrb[0].mxu0
        %v1345 = vadd.f32 0.0, %v1344
        %v1346 = vpop.f32.mrb[0].mxu0
        %1347 = vmatprep.mubr.f32.mxu0 %v1001
        %1348 = vmatmul.mubr.f32.gmra.mrb[0].mxu0 %v1000
        %v1349 = vpop.f32.mrb[0].mxu0
        %v1350 = vadd.f32 0.0, %v1349
        %v1351 = vpop.f32.mrb[0].mxu0
        %1352 = vmatprep.mubr.f32.mxu0 %v1005
        %1353 = vmatmul.mubr.f32.gmra.mrb[0].mxu0 %v1004
        %v1354 = vpop.f32.mrb[0].mxu0
        %v1355 = vadd.f32 0.0, %v1354
        %v1356 = vpop.f32.mrb[0].mxu0
        %1357 = vmatprep.mubr.f32.mxu0 %v1009
        %1358 = vmatmul.mubr.f32.gmra.mrb[0].mxu0 %v1008
        %v1359 = vpop.f32.mrb[0].mxu0
        %v1360 = vadd.f32 0.0, %v1359
        %v1361 = vpop.f32.mrb[0].mxu0
        %1362 = vmatprep.mubr.f32.mxu0 %v1013
        %1363 = vmatmul.mubr.f32.gmra.mrb[0].mxu0 %v1012
        %v1364 = vpop.f32.mrb[0].mxu0
        %v1365 = vadd.f32 0.0, %v1364
        %v1366 = vpop.f32.mrb[0].mxu0
        %1367 = vmatprep.mubr.f32.mxu0 %v1017
        %1368 = vmatmul.mubr.f32.gmra.mrb[0].mxu0 %v1016
        %v1369 = vpop.f32.mrb[0].mxu0
        %v1370 = vadd.f32 0.0, %v1369
        %v1371 = vpop.f32.mrb[0].mxu0
        %1372 = vmatprep.mubr.f32.mxu0 %v1021
        %1373 = vmatmul.mubr.f32.gmra.mrb[0].mxu0 %v1020
        %v1374 = vpop.f32.mrb[0].mxu0
        %v1375 = vadd.f32 0.0, %v1374
        %v1376 = vpop.f32.mrb[0].mxu0
        %1377 = vmatprep.mubr.f32.mxu0 %v1025
        %1378 = vmatmul.mubr.f32.gmra.mrb[0].mxu0 %v1024
        %v1379 = vpop.f32.mrb[0].mxu0
        %v1380 = vadd.f32 0.0, %v1379
        %v1381 = vpop.f32.mrb[0].mxu0
        %1382 = vmatprep.mubr.f32.mxu0 %v1029
        %1383 = vmatmul.mubr.f32.gmra.mrb[0].mxu0 %v1028
        %v1384 = vpop.f32.mrb[0].mxu0
        %v1385 = vadd.f32 0.0, %v1384
        %v1386 = vpop.f32.mrb[0].mxu0
        %1387 = vmatprep.mubr.f32.mxu0 %v1033
        %1388 = vmatmul.mubr.f32.gmra.mrb[0].mxu0 %v1032
        %v1389 = vpop.f32.mrb[0].mxu0
        %v1390 = vadd.f32 0.0, %v1389
        %v1391 = vpop.f32.mrb[0].mxu0
        %1392 = vmatprep.mubr.f32.mxu0 %v1037
        %1393 = vmatmul.mubr.f32.gmra.mrb[0].mxu0 %v1036
        %v1394 = vpop.f32.mrb[0].mxu0
        %v1395 = vadd.f32 0.0, %v1394
        %v1396 = vpop.f32.mrb[0].mxu0
        %1397 = vmatprep.mubr.f32.mxu0 %v1041
        %1398 = vmatmul.mubr.f32.gmra.mrb[0].mxu0 %v1040
        %v1399 = vpop.f32.mrb[0].mxu0
        %v1400 = vadd.f32 0.0, %v1399
        %v1401 = vpop.f32.mrb[0].mxu0
        %1402 = vmatprep.mubr.f32.mxu0 %v1045
        %1403 = vmatmul.mubr.f32.gmra.mrb[0].mxu0 %v1044
        %v1404 = vpop.f32.mrb[0].mxu0
        %v1405 = vadd.f32 0.0, %v1404
        %v1406 = vpop.f32.mrb[0].mxu0
        %1407 = vmatprep.mubr.f32.mxu0 %v1049
        %1408 = vmatmul.mubr.f32.gmra.mrb[0].mxu0 %v1048
        %v1409 = vpop.f32.mrb[0].mxu0
        %v1410 = vadd.f32 0.0, %v1409
        %v1411 = vpop.f32.mrb[0].mxu0
        %1412 = vmatprep.mubr.f32.mxu0 %v1053
        %1413 = vmatmul.mubr.f32.gmra.mrb[0].mxu0 %v1052
        %v1414 = vpop.f32.mrb[0].mxu0
        %v1415 = vadd.f32 0.0, %v1414
        %v1416 = vpop.f32.mrb[0].mxu0
        %1417 = vmatprep.mubr.f32.mxu0 %v1057
        %1418 = vmatmul.mubr.f32.gmra.mrb[0].mxu0 %v1056
        %v1419 = vpop.f32.mrb[0].mxu0
        %v1420 = vadd.f32 0.0, %v1419
        %v1421 = vpop.f32.mrb[0].mxu0
        %1422 = vmatprep.mubr.f32.mxu0 %v1061
        %1423 = vmatmul.mubr.f32.gmra.mrb[0].mxu0 %v1060
        %v1424 = vpop.f32.mrb[0].mxu0
        %v1425 = vadd.f32 0.0, %v1424
        %v1426 = vpop.f32.mrb[0].mxu0
        %1427 = vmatprep.mubr.f32.mxu0 %v1065
        %1428 = vmatmul.mubr.f32.gmra.mrb[0].mxu0 %v1064
        %v1429 = vpop.f32.mrb[0].mxu0
        %v1430 = vadd.f32 0.0, %v1429
        %v1431 = vpop.f32.mrb[0].mxu0
        %1432 = vmatprep.mubr.f32.mxu0 %v1069
        %1433 = vmatmul.mubr.f32.gmra.mrb[0].mxu0 %v1068
        %v1434 = vpop.f32.mrb[0].mxu0
        %v1435 = vadd.f32 0.0, %v1434
        %v1436 = vpop.f32.mrb[0].mxu0
        %1437 = vmatprep.mubr.f32.mxu0 %v1073
        %1438 = vmatmul.mubr.f32.gmra.mrb[0].mxu0 %v1072
        %v1439 = vpop.f32.mrb[0].mxu0
        %v1440 = vadd.f32 0.0, %v1439
        %v1441 = vpop.f32.mrb[0].mxu0
        %1442 = vmatprep.mubr.f32.mxu0 %v1077
        %1443 = vmatmul.mubr.f32.gmra.mrb[0].mxu0 %v1076
        %v1444 = vpop.f32.mrb[0].mxu0
        %v1445 = vadd.f32 0.0, %v1444
        %v1446 = vpop.f32.mrb[0].mxu0
        %1447 = vmatprep.mubr.f32.mxu0 %v1081
        %1448 = vmatmul.mubr.f32.gmra.mrb[0].mxu0 %v1080
        %v1449 = vpop.f32.mrb[0].mxu0
        %v1450 = vadd.f32 0.0, %v1449
        %v1451 = vpop.f32.mrb[0].mxu0
        %1452 = vmatprep.mubr.f32.mxu0 %v1085
        %1453 = vmatmul.mubr.f32.gmra.mrb[0].mxu0 %v1084
        %v1454 = vpop.f32.mrb[0].mxu0
        %v1455 = vadd.f32 0.0, %v1454
        %v1456 = vpop.f32.mrb[0].mxu0
        %1457 = vmatprep.mubr.f32.mxu0 %v1089
        %1458 = vmatmul.mubr.f32.gmra.mrb[0].mxu0 %v1088
        %v1459 = vpop.f32.mrb[0].mxu0
        %v1460 = vadd.f32 0.0, %v1459
        %v1461 = vpop.f32.mrb[0].mxu0
        %1462 = vmatprep.mubr.f32.mxu0 %v1093
        %1463 = vmatmul.mubr.f32.gmra.mrb[0].mxu0 %v1092
        %v1464 = vpop.f32.mrb[0].mxu0
        %v1465 = vadd.f32 0.0, %v1464
        %v1466 = vpop.f32.mrb[0].mxu0
        %1467 = vmatprep.mubr.f32.mxu0 %v1097
        %1468 = vmatmul.mubr.f32.gmra.mrb[0].mxu0 %v1096
        %v1469 = vpop.f32.mrb[0].mxu0
        %v1470 = vadd.f32 0.0, %v1469
        %v1471 = vpop.f32.mrb[0].mxu0
        %1472 = vmatprep.mubr.f32.mxu0 %v1101
        %1473 = vmatmul.mubr.f32.gmra.mrb[0].mxu0 %v1100
        %v1474 = vpop.f32.mrb[0].mxu0
        %v1475 = vadd.f32 0.0, %v1474
        %v1476 = vpop.f32.mrb[0].mxu0
        %1477 = vmatprep.mubr.f32.mxu0 %v1105
        %1478 = vmatmul.mubr.f32.gmra.mrb[0].mxu0 %v1104
        %v1479 = vpop.f32.mrb[0].mxu0
        %v1480 = vadd.f32 0.0, %v1479
        %v1481 = vpop.f32.mrb[0].mxu0
        %1482 = vmatprep.mubr.f32.mxu0 %v1109
        %1483 = vmatmul.mubr.f32.gmra.mrb[0].mxu0 %v1108
        %v1484 = vpop.f32.mrb[0].mxu0
        %v1485 = vadd.f32 0.0, %v1484
        %v1486 = vpop.f32.mrb[0].mxu0
        %1487 = vmatprep.mubr.f32.mxu0 %v1113
        %1488 = vmatmul.mubr.f32.gmra.mrb[0].mxu0 %v1112
        %v1489 = vpop.f32.mrb[0].mxu0
        %v1490 = vadd.f32 0.0, %v1489
        %v1491 = vpop.f32.mrb[0].mxu0
        %1492 = vmatprep.mubr.f32.mxu0 %v1117
        %1493 = vmatmul.mubr.f32.gmra.mrb[0].mxu0 %v1116
        %v1494 = vpop.f32.mrb[0].mxu0
        %v1495 = vadd.f32 0.0, %v1494
        %v1496 = vpop.f32.mrb[0].mxu0
        %1497 = vmatprep.mubr.f32.mxu0 %v1121
        %1498 = vmatmul.mubr.f32.gmra.mrb[0].mxu0 %v1120
        %v1499 = vpop.f32.mrb[0].mxu0
        %v1500 = vadd.f32 0.0, %v1499
        %v1501 = vpop.f32.mrb[0].mxu0
        %1502 = vmatprep.mubr.f32.mxu0 %v1125
        %1503 = vmatmul.mubr.f32.gmra.mrb[0].mxu0 %v1124
        %v1504 = vpop.f32.mrb[0].mxu0
        %v1505 = vadd.f32 0.0, %v1504
        %v1506 = vpop.f32.mrb[0].mxu0
        %1507 = vmatprep.mubr.f32.mxu0 %v1129
        %1508 = vmatmul.mubr.f32.gmra.mrb[0].mxu0 %v1128
        %v1509 = vpop.f32.mrb[0].mxu0
        %v1510 = vadd.f32 0.0, %v1509
        %v1511 = vpop.f32.mrb[0].mxu0
        %1512 = vmatprep.mubr.f32.mxu0 %v1133
        %1513 = vmatmul.mubr.f32.gmra.mrb[0].mxu0 %v1132
        %v1514 = vpop.f32.mrb[0].mxu0
        %v1515 = vadd.f32 0.0, %v1514
        %v1516 = vpop.f32.mrb[0].mxu0
        %1517 = vmatprep.mubr.f32.mxu0 %v1137
        %1518 = vmatmul.mubr.f32.gmra.mrb[0].mxu0 %v1136
        %v1519 = vpop.f32.mrb[0].mxu0
        %v1520 = vadd.f32 0.0, %v1519
        %v1521 = vpop.f32.mrb[0].mxu0
        %1522 = vmatprep.mubr.f32.mxu0 %v1141
        %1523 = vmatmul.mubr.f32.gmra.mrb[0].mxu0 %v1140
        %v1524 = vpop.f32.mrb[0].mxu0
        %v1525 = vadd.f32 0.0, %v1524
        %v1526 = vpop.f32.mrb[0].mxu0
        %1527 = vmatprep.mubr.f32.mxu0 %v1145
        %1528 = vmatmul.mubr.f32.gmra.mrb[0].mxu0 %v1144
        %v1529 = vpop.f32.mrb[0].mxu0
        %v1530 = vadd.f32 0.0, %v1529
        %v1531 = vpop.f32.mrb[0].mxu0
        %1532 = vdwg.mxu0
        %1533 = vmatprep.subr.mxu0 0.0
        %1534 = vmatpush1.msra.mxu0 %v796
        %1535 = vmatprep.subr.mxu0 0.0
        %1536 = vmatpush1.msra.mxu0 %v797
        %1537 = vmatprep.subr.mxu0 0.0
        %1538 = vmatpush1.msra.mxu0 %v798
        %1539 = vmatprep.subr.mxu0 0.0
        %1540 = vmatpush1.msra.mxu0 %v799
        %1541 = vmatprep.subr.mxu0 0.0
        %1542 = vmatpush1.msra.mxu0 %v800
        %1543 = vmatprep.subr.mxu0 0.0
        %1544 = vmatpush1.msra.mxu0 %v801
        %1545 = vmatprep.subr.mxu0 0.0
        %1546 = vmatpush1.msra.mxu0 %v802
        %1547 = vmatprep.subr.mxu0 0.0
        %1548 = vmatpush1.msra.mxu0 %v803
        %1549 = vmatprep.subr.mxu0 0.0
        %1550 = vmatpush1.msra.mxu0 %v804
        %1551 = vmatprep.subr.mxu0 0.0
        %1552 = vmatpush1.msra.mxu0 %v805
        %1553 = vmatprep.subr.mxu0 0.0
        %1554 = vmatpush1.msra.mxu0 %v806
        %1555 = vmatprep.subr.mxu0 0.0
        %1556 = vmatpush1.msra.mxu0 %v807
        %1557 = vmatprep.subr.mxu0 0.0
        %1558 = vmatpush1.msra.mxu0 %v808
        %1559 = vmatprep.subr.mxu0 0.0
        %1560 = vmatpush1.msra.mxu0 %v809
        %1561 = vmatprep.subr.mxu0 0.0
        %1562 = vmatpush1.msra.mxu0 %v810
        %1563 = vmatprep.subr.mxu0 0.0
        %1564 = vmatpush1.msra.mxu0 %v811
        %1565 = vmatprep.subr.mxu0 0.0
        %1566 = vmatpush1.msra.mxu0 %v812
        %1567 = vmatprep.subr.mxu0 0.0
        %1568 = vmatpush1.msra.mxu0 %v813
        %1569 = vmatprep.subr.mxu0 0.0
        %1570 = vmatpush1.msra.mxu0 %v814
        %1571 = vmatprep.subr.mxu0 0.0
        %1572 = vmatpush1.msra.mxu0 %v815
        %1573 = vmatprep.subr.mxu0 0.0
        %1574 = vmatpush1.msra.mxu0 %v816
        %1575 = vmatprep.subr.mxu0 0.0
        %1576 = vmatpush1.msra.mxu0 %v817
        %1577 = vmatprep.subr.mxu0 0.0
        %1578 = vmatpush1.msra.mxu0 %v818
        %1579 = vmatprep.subr.mxu0 0.0
        %1580 = vmatpush1.msra.mxu0 %v819
        %1581 = vmatprep.subr.mxu0 0.0
        %1582 = vmatpush1.msra.mxu0 %v820
        %1583 = vmatprep.subr.mxu0 0.0
        %1584 = vmatpush1.msra.mxu0 %v821
        %1585 = vmatprep.subr.mxu0 0.0
        %1586 = vmatpush1.msra.mxu0 %v822
        %1587 = vmatprep.subr.mxu0 0.0
        %1588 = vmatpush1.msra.mxu0 %v823
        %1589 = vmatprep.subr.mxu0 0.0
        %1590 = vmatpush1.msra.mxu0 %v824
        %1591 = vmatprep.subr.mxu0 0.0
        %1592 = vmatpush1.msra.mxu0 %v825
        %1593 = vmatprep.subr.mxu0 0.0
        %1594 = vmatpush1.msra.mxu0 %v826
        %1595 = vmatprep.subr.mxu0 0.0
        %1596 = vmatpush1.msra.mxu0 %v827
        %1597 = vmatprep.mubr.f32.mxu0 %v895
        %1598 = vmatmul.mubr.f32.gmra.mrb[0].mxu0 %v894
        %v1599 = vpop.f32.mrb[0].mxu0
        %v1600 = vadd.f32 %v1215, %v1599
        %v1601 = vpop.f32.mrb[0].mxu0
        %1602 = vmatprep.mubr.f32.mxu0 %v899
        %1603 = vmatmul.mubr.f32.gmra.mrb[0].mxu0 %v898
        %v1604 = vpop.f32.mrb[0].mxu0
        %v1605 = vadd.f32 %v1220, %v1604
        %v1606 = vpop.f32.mrb[0].mxu0
        %1607 = vmatprep.mubr.f32.mxu0 %v903
        %1608 = vmatmul.mubr.f32.gmra.mrb[0].mxu0 %v902
        %v1609 = vpop.f32.mrb[0].mxu0
        %v1610 = vadd.f32 %v1225, %v1609
        %v1611 = vpop.f32.mrb[0].mxu0
        %1612 = vmatprep.mubr.f32.mxu0 %v907
        %1613 = vmatmul.mubr.f32.gmra.mrb[0].mxu0 %v906
        %v1614 = vpop.f32.mrb[0].mxu0
        %v1615 = vadd.f32 %v1230, %v1614
        %v1616 = vpop.f32.mrb[0].mxu0
        %1617 = vmatprep.mubr.f32.mxu0 %v911
        %1618 = vmatmul.mubr.f32.gmra.mrb[0].mxu0 %v910
        %v1619 = vpop.f32.mrb[0].mxu0
        %v1620 = vadd.f32 %v1235, %v1619
        %v1621 = vpop.f32.mrb[0].mxu0
        %1622 = vmatprep.mubr.f32.mxu0 %v915
        %1623 = vmatmul.mubr.f32.gmra.mrb[0].mxu0 %v914
        %v1624 = vpop.f32.mrb[0].mxu0
        %v1625 = vadd.f32 %v1240, %v1624
        %v1626 = vpop.f32.mrb[0].mxu0
        %1627 = vmatprep.mubr.f32.mxu0 %v919
        %1628 = vmatmul.mubr.f32.gmra.mrb[0].mxu0 %v918
        %v1629 = vpop.f32.mrb[0].mxu0
        %v1630 = vadd.f32 %v1245, %v1629
        %v1631 = vpop.f32.mrb[0].mxu0
        %1632 = vmatprep.mubr.f32.mxu0 %v923
        %1633 = vmatmul.mubr.f32.gmra.mrb[0].mxu0 %v922
        %v1634 = vpop.f32.mrb[0].mxu0
        %v1635 = vadd.f32 %v1250, %v1634
        %v1636 = vpop.f32.mrb[0].mxu0
        %1637 = vmatprep.mubr.f32.mxu0 %v927
        %1638 = vmatmul.mubr.f32.gmra.mrb[0].mxu0 %v926
        %v1639 = vpop.f32.mrb[0].mxu0
        %v1640 = vadd.f32 %v1255, %v1639
        %v1641 = vpop.f32.mrb[0].mxu0
        %1642 = vmatprep.mubr.f32.mxu0 %v931
        %1643 = vmatmul.mubr.f32.gmra.mrb[0].mxu0 %v930
        %v1644 = vpop.f32.mrb[0].mxu0
        %v1645 = vadd.f32 %v1260, %v1644
        %v1646 = vpop.f32.mrb[0].mxu0
        %1647 = vmatprep.mubr.f32.mxu0 %v935
        %1648 = vmatmul.mubr.f32.gmra.mrb[0].mxu0 %v934
        %v1649 = vpop.f32.mrb[0].mxu0
        %v1650 = vadd.f32 %v1265, %v1649
        %v1651 = vpop.f32.mrb[0].mxu0
        %1652 = vmatprep.mubr.f32.mxu0 %v939
        %1653 = vmatmul.mubr.f32.gmra.mrb[0].mxu0 %v938
        %v1654 = vpop.f32.mrb[0].mxu0
        %v1655 = vadd.f32 %v1270, %v1654
        %v1656 = vpop.f32.mrb[0].mxu0
        %1657 = vmatprep.mubr.f32.mxu0 %v943
        %1658 = vmatmul.mubr.f32.gmra.mrb[0].mxu0 %v942
        %v1659 = vpop.f32.mrb[0].mxu0
        %v1660 = vadd.f32 %v1275, %v1659
        %v1661 = vpop.f32.mrb[0].mxu0
        %1662 = vmatprep.mubr.f32.mxu0 %v947
        %1663 = vmatmul.mubr.f32.gmra.mrb[0].mxu0 %v946
        %v1664 = vpop.f32.mrb[0].mxu0
        %v1665 = vadd.f32 %v1280, %v1664
        %v1666 = vpop.f32.mrb[0].mxu0
        %1667 = vmatprep.mubr.f32.mxu0 %v951
        %1668 = vmatmul.mubr.f32.gmra.mrb[0].mxu0 %v950
        %v1669 = vpop.f32.mrb[0].mxu0
        %v1670 = vadd.f32 %v1285, %v1669
        %v1671 = vpop.f32.mrb[0].mxu0
        %1672 = vmatprep.mubr.f32.mxu0 %v955
        %1673 = vmatmul.mubr.f32.gmra.mrb[0].mxu0 %v954
        %v1674 = vpop.f32.mrb[0].mxu0
        %v1675 = vadd.f32 %v1290, %v1674
        %v1676 = vpop.f32.mrb[0].mxu0
        %1677 = vmatprep.mubr.f32.mxu0 %v959
        %1678 = vmatmul.mubr.f32.gmra.mrb[0].mxu0 %v958
        %v1679 = vpop.f32.mrb[0].mxu0
        %v1680 = vadd.f32 %v1295, %v1679
        %v1681 = vpop.f32.mrb[0].mxu0
        %1682 = vmatprep.mubr.f32.mxu0 %v963
        %1683 = vmatmul.mubr.f32.gmra.mrb[0].mxu0 %v962
        %v1684 = vpop.f32.mrb[0].mxu0
        %v1685 = vadd.f32 %v1300, %v1684
        %v1686 = vpop.f32.mrb[0].mxu0
        %1687 = vmatprep.mubr.f32.mxu0 %v967
        %1688 = vmatmul.mubr.f32.gmra.mrb[0].mxu0 %v966
        %v1689 = vpop.f32.mrb[0].mxu0
        %v1690 = vadd.f32 %v1305, %v1689
        %v1691 = vpop.f32.mrb[0].mxu0
        %1692 = vmatprep.mubr.f32.mxu0 %v971
        %1693 = vmatmul.mubr.f32.gmra.mrb[0].mxu0 %v970
        %v1694 = vpop.f32.mrb[0].mxu0
        %v1695 = vadd.f32 %v1310, %v1694
        %v1696 = vpop.f32.mrb[0].mxu0
        %1697 = vmatprep.mubr.f32.mxu0 %v975
        %1698 = vmatmul.mubr.f32.gmra.mrb[0].mxu0 %v974
        %v1699 = vpop.f32.mrb[0].mxu0
        %v1700 = vadd.f32 %v1315, %v1699
        %v1701 = vpop.f32.mrb[0].mxu0
        %1702 = vmatprep.mubr.f32.mxu0 %v979
        %1703 = vmatmul.mubr.f32.gmra.mrb[0].mxu0 %v978
        %v1704 = vpop.f32.mrb[0].mxu0
        %v1705 = vadd.f32 %v1320, %v1704
        %v1706 = vpop.f32.mrb[0].mxu0
        %1707 = vmatprep.mubr.f32.mxu0 %v983
        %1708 = vmatmul.mubr.f32.gmra.mrb[0].mxu0 %v982
        %v1709 = vpop.f32.mrb[0].mxu0
        %v1710 = vadd.f32 %v1325, %v1709
        %v1711 = vpop.f32.mrb[0].mxu0
        %1712 = vmatprep.mubr.f32.mxu0 %v987
        %1713 = vmatmul.mubr.f32.gmra.mrb[0].mxu0 %v986
        %v1714 = vpop.f32.mrb[0].mxu0
        %v1715 = vadd.f32 %v1330, %v1714
        %v1716 = vpop.f32.mrb[0].mxu0
        %1717 = vmatprep.mubr.f32.mxu0 %v991
        %1718 = vmatmul.mubr.f32.gmra.mrb[0].mxu0 %v990
        %v1719 = vpop.f32.mrb[0].mxu0
        %v1720 = vadd.f32 %v1335, %v1719
        %v1721 = vpop.f32.mrb[0].mxu0
        %1722 = vmatprep.mubr.f32.mxu0 %v995
        %1723 = vmatmul.mubr.f32.gmra.mrb[0].mxu0 %v994
        %v1724 = vpop.f32.mrb[0].mxu0
        %v1725 = vadd.f32 %v1340, %v1724
        %v1726 = vpop.f32.mrb[0].mxu0
        %1727 = vmatprep.mubr.f32.mxu0 %v999
        %1728 = vmatmul.mubr.f32.gmra.mrb[0].mxu0 %v998
        %v1729 = vpop.f32.mrb[0].mxu0
        %v1730 = vadd.f32 %v1345, %v1729
        %v1731 = vpop.f32.mrb[0].mxu0
        %1732 = vmatprep.mubr.f32.mxu0 %v1003
        %1733 = vmatmul.mubr.f32.gmra.mrb[0].mxu0 %v1002
        %v1734 = vpop.f32.mrb[0].mxu0
        %v1735 = vadd.f32 %v1350, %v1734
        %v1736 = vpop.f32.mrb[0].mxu0
        %1737 = vmatprep.mubr.f32.mxu0 %v1007
        %1738 = vmatmul.mubr.f32.gmra.mrb[0].mxu0 %v1006
        %v1739 = vpop.f32.mrb[0].mxu0
        %v1740 = vadd.f32 %v1355, %v1739
        %v1741 = vpop.f32.mrb[0].mxu0
        %1742 = vmatprep.mubr.f32.mxu0 %v1011
        %1743 = vmatmul.mubr.f32.gmra.mrb[0].mxu0 %v1010
        %v1744 = vpop.f32.mrb[0].mxu0
        %v1745 = vadd.f32 %v1360, %v1744
        %v1746 = vpop.f32.mrb[0].mxu0
        %1747 = vmatprep.mubr.f32.mxu0 %v1015
        %1748 = vmatmul.mubr.f32.gmra.mrb[0].mxu0 %v1014
        %v1749 = vpop.f32.mrb[0].mxu0
        %v1750 = vadd.f32 %v1365, %v1749
        %v1751 = vpop.f32.mrb[0].mxu0
        %1752 = vmatprep.mubr.f32.mxu0 %v1019
        %1753 = vmatmul.mubr.f32.gmra.mrb[0].mxu0 %v1018
        %v1754 = vpop.f32.mrb[0].mxu0
        %v1755 = vadd.f32 %v1370, %v1754
        %v1756 = vpop.f32.mrb[0].mxu0
        %1757 = vmatprep.mubr.f32.mxu0 %v1023
        %1758 = vmatmul.mubr.f32.gmra.mrb[0].mxu0 %v1022
        %v1759 = vpop.f32.mrb[0].mxu0
        %v1760 = vadd.f32 %v1375, %v1759
        %v1761 = vpop.f32.mrb[0].mxu0
        %1762 = vmatprep.mubr.f32.mxu0 %v1027
        %1763 = vmatmul.mubr.f32.gmra.mrb[0].mxu0 %v1026
        %v1764 = vpop.f32.mrb[0].mxu0
        %v1765 = vadd.f32 %v1380, %v1764
        %v1766 = vpop.f32.mrb[0].mxu0
        %1767 = vmatprep.mubr.f32.mxu0 %v1031
        %1768 = vmatmul.mubr.f32.gmra.mrb[0].mxu0 %v1030
        %v1769 = vpop.f32.mrb[0].mxu0
        %v1770 = vadd.f32 %v1385, %v1769
        %v1771 = vpop.f32.mrb[0].mxu0
        %1772 = vmatprep.mubr.f32.mxu0 %v1035
        %1773 = vmatmul.mubr.f32.gmra.mrb[0].mxu0 %v1034
        %v1774 = vpop.f32.mrb[0].mxu0
        %v1775 = vadd.f32 %v1390, %v1774
        %v1776 = vpop.f32.mrb[0].mxu0
        %1777 = vmatprep.mubr.f32.mxu0 %v1039
        %1778 = vmatmul.mubr.f32.gmra.mrb[0].mxu0 %v1038
        %v1779 = vpop.f32.mrb[0].mxu0
        %v1780 = vadd.f32 %v1395, %v1779
        %v1781 = vpop.f32.mrb[0].mxu0
        %1782 = vmatprep.mubr.f32.mxu0 %v1043
        %1783 = vmatmul.mubr.f32.gmra.mrb[0].mxu0 %v1042
        %v1784 = vpop.f32.mrb[0].mxu0
        %v1785 = vadd.f32 %v1400, %v1784
        %v1786 = vpop.f32.mrb[0].mxu0
        %1787 = vmatprep.mubr.f32.mxu0 %v1047
        %1788 = vmatmul.mubr.f32.gmra.mrb[0].mxu0 %v1046
        %v1789 = vpop.f32.mrb[0].mxu0
        %v1790 = vadd.f32 %v1405, %v1789
        %v1791 = vpop.f32.mrb[0].mxu0
        %1792 = vmatprep.mubr.f32.mxu0 %v1051
        %1793 = vmatmul.mubr.f32.gmra.mrb[0].mxu0 %v1050
        %v1794 = vpop.f32.mrb[0].mxu0
        %v1795 = vadd.f32 %v1410, %v1794
        %v1796 = vpop.f32.mrb[0].mxu0
        %1797 = vmatprep.mubr.f32.mxu0 %v1055
        %1798 = vmatmul.mubr.f32.gmra.mrb[0].mxu0 %v1054
        %v1799 = vpop.f32.mrb[0].mxu0
        %v1800 = vadd.f32 %v1415, %v1799
        %v1801 = vpop.f32.mrb[0].mxu0
        %1802 = vmatprep.mubr.f32.mxu0 %v1059
        %1803 = vmatmul.mubr.f32.gmra.mrb[0].mxu0 %v1058
        %v1804 = vpop.f32.mrb[0].mxu0
        %v1805 = vadd.f32 %v1420, %v1804
        %v1806 = vpop.f32.mrb[0].mxu0
        %1807 = vmatprep.mubr.f32.mxu0 %v1063
        %1808 = vmatmul.mubr.f32.gmra.mrb[0].mxu0 %v1062
        %v1809 = vpop.f32.mrb[0].mxu0
        %v1810 = vadd.f32 %v1425, %v1809
        %v1811 = vpop.f32.mrb[0].mxu0
        %1812 = vmatprep.mubr.f32.mxu0 %v1067
        %1813 = vmatmul.mubr.f32.gmra.mrb[0].mxu0 %v1066
        %v1814 = vpop.f32.mrb[0].mxu0
        %v1815 = vadd.f32 %v1430, %v1814
        %v1816 = vpop.f32.mrb[0].mxu0
        %1817 = vmatprep.mubr.f32.mxu0 %v1071
        %1818 = vmatmul.mubr.f32.gmra.mrb[0].mxu0 %v1070
        %v1819 = vpop.f32.mrb[0].mxu0
        %v1820 = vadd.f32 %v1435, %v1819
        %v1821 = vpop.f32.mrb[0].mxu0
        %1822 = vmatprep.mubr.f32.mxu0 %v1075
        %1823 = vmatmul.mubr.f32.gmra.mrb[0].mxu0 %v1074
        %v1824 = vpop.f32.mrb[0].mxu0
        %v1825 = vadd.f32 %v1440, %v1824
        %v1826 = vpop.f32.mrb[0].mxu0
        %1827 = vmatprep.mubr.f32.mxu0 %v1079
        %1828 = vmatmul.mubr.f32.gmra.mrb[0].mxu0 %v1078
        %v1829 = vpop.f32.mrb[0].mxu0
        %v1830 = vadd.f32 %v1445, %v1829
        %v1831 = vpop.f32.mrb[0].mxu0
        %1832 = vmatprep.mubr.f32.mxu0 %v1083
        %1833 = vmatmul.mubr.f32.gmra.mrb[0].mxu0 %v1082
        %v1834 = vpop.f32.mrb[0].mxu0
        %v1835 = vadd.f32 %v1450, %v1834
        %v1836 = vpop.f32.mrb[0].mxu0
        %1837 = vmatprep.mubr.f32.mxu0 %v1087
        %1838 = vmatmul.mubr.f32.gmra.mrb[0].mxu0 %v1086
        %v1839 = vpop.f32.mrb[0].mxu0
        %v1840 = vadd.f32 %v1455, %v1839
        %v1841 = vpop.f32.mrb[0].mxu0
        %1842 = vmatprep.mubr.f32.mxu0 %v1091
        %1843 = vmatmul.mubr.f32.gmra.mrb[0].mxu0 %v1090
        %v1844 = vpop.f32.mrb[0].mxu0
        %v1845 = vadd.f32 %v1460, %v1844
        %v1846 = vpop.f32.mrb[0].mxu0
        %1847 = vmatprep.mubr.f32.mxu0 %v1095
        %1848 = vmatmul.mubr.f32.gmra.mrb[0].mxu0 %v1094
        %v1849 = vpop.f32.mrb[0].mxu0
        %v1850 = vadd.f32 %v1465, %v1849
        %v1851 = vpop.f32.mrb[0].mxu0
        %1852 = vmatprep.mubr.f32.mxu0 %v1099
        %1853 = vmatmul.mubr.f32.gmra.mrb[0].mxu0 %v1098
        %v1854 = vpop.f32.mrb[0].mxu0
        %v1855 = vadd.f32 %v1470, %v1854
        %v1856 = vpop.f32.mrb[0].mxu0
        %1857 = vmatprep.mubr.f32.mxu0 %v1103
        %1858 = vmatmul.mubr.f32.gmra.mrb[0].mxu0 %v1102
        %v1859 = vpop.f32.mrb[0].mxu0
        %v1860 = vadd.f32 %v1475, %v1859
        %v1861 = vpop.f32.mrb[0].mxu0
        %1862 = vmatprep.mubr.f32.mxu0 %v1107
        %1863 = vmatmul.mubr.f32.gmra.mrb[0].mxu0 %v1106
        %v1864 = vpop.f32.mrb[0].mxu0
        %v1865 = vadd.f32 %v1480, %v1864
        %v1866 = vpop.f32.mrb[0].mxu0
        %1867 = vmatprep.mubr.f32.mxu0 %v1111
        %1868 = vmatmul.mubr.f32.gmra.mrb[0].mxu0 %v1110
        %v1869 = vpop.f32.mrb[0].mxu0
        %v1870 = vadd.f32 %v1485, %v1869
        %v1871 = vpop.f32.mrb[0].mxu0
        %1872 = vmatprep.mubr.f32.mxu0 %v1115
        %1873 = vmatmul.mubr.f32.gmra.mrb[0].mxu0 %v1114
        %v1874 = vpop.f32.mrb[0].mxu0
        %v1875 = vadd.f32 %v1490, %v1874
        %v1876 = vpop.f32.mrb[0].mxu0
        %1877 = vmatprep.mubr.f32.mxu0 %v1119
        %1878 = vmatmul.mubr.f32.gmra.mrb[0].mxu0 %v1118
        %v1879 = vpop.f32.mrb[0].mxu0
        %v1880 = vadd.f32 %v1495, %v1879
        %v1881 = vpop.f32.mrb[0].mxu0
        %1882 = vmatprep.mubr.f32.mxu0 %v1123
        %1883 = vmatmul.mubr.f32.gmra.mrb[0].mxu0 %v1122
        %v1884 = vpop.f32.mrb[0].mxu0
        %v1885 = vadd.f32 %v1500, %v1884
        %v1886 = vpop.f32.mrb[0].mxu0
        %1887 = vmatprep.mubr.f32.mxu0 %v1127
        %1888 = vmatmul.mubr.f32.gmra.mrb[0].mxu0 %v1126
        %v1889 = vpop.f32.mrb[0].mxu0
        %v1890 = vadd.f32 %v1505, %v1889
        %v1891 = vpop.f32.mrb[0].mxu0
        %1892 = vmatprep.mubr.f32.mxu0 %v1131
        %1893 = vmatmul.mubr.f32.gmra.mrb[0].mxu0 %v1130
        %v1894 = vpop.f32.mrb[0].mxu0
        %v1895 = vadd.f32 %v1510, %v1894
        %v1896 = vpop.f32.mrb[0].mxu0
        %1897 = vmatprep.mubr.f32.mxu0 %v1135
        %1898 = vmatmul.mubr.f32.gmra.mrb[0].mxu0 %v1134
        %v1899 = vpop.f32.mrb[0].mxu0
        %v1900 = vadd.f32 %v1515, %v1899
        %v1901 = vpop.f32.mrb[0].mxu0
        %1902 = vmatprep.mubr.f32.mxu0 %v1139
        %1903 = vmatmul.mubr.f32.gmra.mrb[0].mxu0 %v1138
        %v1904 = vpop.f32.mrb[0].mxu0
        %v1905 = vadd.f32 %v1520, %v1904
        %v1906 = vpop.f32.mrb[0].mxu0
        %1907 = vmatprep.mubr.f32.mxu0 %v1143
        %1908 = vmatmul.mubr.f32.gmra.mrb[0].mxu0 %v1142
        %v1909 = vpop.f32.mrb[0].mxu0
        %v1910 = vadd.f32 %v1525, %v1909
        %v1911 = vpop.f32.mrb[0].mxu0
        %1912 = vmatprep.mubr.f32.mxu0 %v1147
        %1913 = vmatmul.mubr.f32.gmra.mrb[0].mxu0 %v1146
        %v1914 = vpop.f32.mrb[0].mxu0
        %v1915 = vadd.f32 %v1530, %v1914
        %v1916 = vpop.f32.mrb[0].mxu0
        %1917 = vdwg.mxu0
        %v1918 = vadd.f32 %v828, %v1600
        %v1919 = vadd.f32 %v829, %v1605
        %v1920 = vadd.f32 %v830, %v1610
        %v1921 = vadd.f32 %v831, %v1615
        %v1922 = vadd.f32 %v832, %v1620
        %v1923 = vadd.f32 %v833, %v1625
        %v1924 = vadd.f32 %v834, %v1630
        %v1925 = vadd.f32 %v835, %v1635
        %v1926 = vadd.f32 %v836, %v1640
        %v1927 = vadd.f32 %v837, %v1645
        %v1928 = vadd.f32 %v838, %v1650
        %v1929 = vadd.f32 %v839, %v1655
        %v1930 = vadd.f32 %v840, %v1660
        %v1931 = vadd.f32 %v841, %v1665
        %v1932 = vadd.f32 %v842, %v1670
        %v1933 = vadd.f32 %v843, %v1675
        %v1934 = vadd.f32 %v844, %v1680
        %v1935 = vadd.f32 %v845, %v1685
        %v1936 = vadd.f32 %v846, %v1690
        %v1937 = vadd.f32 %v847, %v1695
        %v1938 = vadd.f32 %v848, %v1700
        %v1939 = vadd.f32 %v849, %v1705
        %v1940 = vadd.f32 %v850, %v1710
        %v1941 = vadd.f32 %v851, %v1715
        %v1942 = vadd.f32 %v852, %v1720
        %v1943 = vadd.f32 %v853, %v1725
        %v1944 = vadd.f32 %v854, %v1730
        %v1945 = vadd.f32 %v855, %v1735
        %v1946 = vadd.f32 %v856, %v1740
        %v1947 = vadd.f32 %v857, %v1745
        %v1948 = vadd.f32 %v858, %v1750
        %v1949 = vadd.f32 %v859, %v1755
        %v1950 = vadd.f32 %v860, %v1760
        %v1951 = vadd.f32 %v861, %v1765
        %v1952 = vadd.f32 %v862, %v1770
        %v1953 = vadd.f32 %v863, %v1775
        %v1954 = vadd.f32 %v864, %v1780
        %v1955 = vadd.f32 %v865, %v1785
        %v1956 = vadd.f32 %v866, %v1790
        %v1957 = vadd.f32 %v867, %v1795
        %v1958 = vadd.f32 %v868, %v1800
        %v1959 = vadd.f32 %v869, %v1805
        %v1960 = vadd.f32 %v870, %v1810
        %v1961 = vadd.f32 %v871, %v1815
        %v1962 = vadd.f32 %v872, %v1820
        %v1963 = vadd.f32 %v873, %v1825
        %v1964 = vadd.f32 %v874, %v1830
        %v1965 = vadd.f32 %v875, %v1835
        %v1966 = vadd.f32 %v876, %v1840
        %v1967 = vadd.f32 %v877, %v1845
        %v1968 = vadd.f32 %v878, %v1850
        %v1969 = vadd.f32 %v879, %v1855
        %v1970 = vadd.f32 %v880, %v1860
        %v1971 = vadd.f32 %v881, %v1865
        %v1972 = vadd.f32 %v882, %v1870
        %v1973 = vadd.f32 %v883, %v1875
        %v1974 = vadd.f32 %v884, %v1880
        %v1975 = vadd.f32 %v885, %v1885
        %v1976 = vadd.f32 %v886, %v1890
        %v1977 = vadd.f32 %v887, %v1895
        %v1978 = vadd.f32 %v888, %v1900
        %v1979 = vadd.f32 %v889, %v1905
        %v1980 = vadd.f32 %v890, %v1910
        %v1981 = vadd.f32 %v891, %v1915
        %1982 = vst [vmem:[%s692] sm:$0xff] %v1918
        %1983 = vst [vmem:[%s692 + $0x8] sm:$0xff] %v1919
        %1984 = vst [vmem:[%s692 + $0x10] sm:$0xff] %v1920
        %1985 = vst [vmem:[%s692 + $0x18] sm:$0xff] %v1921
        %1986 = vst [vmem:[%s692 + $0x20] sm:$0xff] %v1922
        %1987 = vst [vmem:[%s692 + $0x28] sm:$0xff] %v1923
        %1988 = vst [vmem:[%s692 + $0x30] sm:$0xff] %v1924
        %1989 = vst [vmem:[%s692 + $0x38] sm:$0xff] %v1925
        %1990 = vst [vmem:[%s692 + $0x40] sm:$0xff] %v1926
        %1991 = vst [vmem:[%s692 + $0x48] sm:$0xff] %v1927
        %1992 = vst [vmem:[%s692 + $0x50] sm:$0xff] %v1928
        %1993 = vst [vmem:[%s692 + $0x58] sm:$0xff] %v1929
        %1994 = vst [vmem:[%s692 + $0x60] sm:$0xff] %v1930
        %1995 = vst [vmem:[%s692 + $0x68] sm:$0xff] %v1931
        %1996 = vst [vmem:[%s692 + $0x70] sm:$0xff] %v1932
        %1997 = vst [vmem:[%s692 + $0x78] sm:$0xff] %v1933
        %1998 = vst [vmem:[%s692 + $0x80] sm:$0xff] %v1934
        %1999 = vst [vmem:[%s692 + $0x88] sm:$0xff] %v1935
        %2000 = vst [vmem:[%s692 + $0x90] sm:$0xff] %v1936
        %2001 = vst [vmem:[%s692 + $0x98] sm:$0xff] %v1937
        %2002 = vst [vmem:[%s692 + $0xa0] sm:$0xff] %v1938
        %2003 = vst [vmem:[%s692 + $0xa8] sm:$0xff] %v1939
        %2004 = vst [vmem:[%s692 + $0xb0] sm:$0xff] %v1940
        %2005 = vst [vmem:[%s692 + $0xb8] sm:$0xff] %v1941
        %2006 = vst [vmem:[%s692 + $0xc0] sm:$0xff] %v1942
        %2007 = vst [vmem:[%s692 + $0xc8] sm:$0xff] %v1943
        %2008 = vst [vmem:[%s692 + $0xd0] sm:$0xff] %v1944
        %2009 = vst [vmem:[%s692 + $0xd8] sm:$0xff] %v1945
        %2010 = vst [vmem:[%s692 + $0xe0] sm:$0xff] %v1946
        %2011 = vst [vmem:[%s692 + $0xe8] sm:$0xff] %v1947
        %2012 = vst [vmem:[%s692 + $0xf0] sm:$0xff] %v1948
        %2013 = vst [vmem:[%s692 + $0xf8] sm:$0xff] %v1949
        %2014 = vst [vmem:[%s692 + $0x100] sm:$0xff] %v1950
        %2015 = vst [vmem:[%s692 + $0x108] sm:$0xff] %v1951
        %2016 = vst [vmem:[%s692 + $0x110] sm:$0xff] %v1952
        %2017 = vst [vmem:[%s692 + $0x118] sm:$0xff] %v1953
        %2018 = vst [vmem:[%s692 + $0x120] sm:$0xff] %v1954
        %2019 = vst [vmem:[%s692 + $0x128] sm:$0xff] %v1955
        %2020 = vst [vmem:[%s692 + $0x130] sm:$0xff] %v1956
        %2021 = vst [vmem:[%s692 + $0x138] sm:$0xff] %v1957
        %2022 = vst [vmem:[%s692 + $0x140] sm:$0xff] %v1958
        %2023 = vst [vmem:[%s692 + $0x148] sm:$0xff] %v1959
        %2024 = vst [vmem:[%s692 + $0x150] sm:$0xff] %v1960
        %2025 = vst [vmem:[%s692 + $0x158] sm:$0xff] %v1961
        %2026 = vst [vmem:[%s692 + $0x160] sm:$0xff] %v1962
        %2027 = vst [vmem:[%s692 + $0x168] sm:$0xff] %v1963
        %2028 = vst [vmem:[%s692 + $0x170] sm:$0xff] %v1964
        %2029 = vst [vmem:[%s692 + $0x178] sm:$0xff] %v1965
        %2030 = vst [vmem:[%s692 + $0x180] sm:$0xff] %v1966
        %2031 = vst [vmem:[%s692 + $0x188] sm:$0xff] %v1967
        %2032 = vst [vmem:[%s692 + $0x190] sm:$0xff] %v1968
        %2033 = vst [vmem:[%s692 + $0x198] sm:$0xff] %v1969
        %2034 = vst [vmem:[%s692 + $0x1a0] sm:$0xff] %v1970
        %2035 = vst [vmem:[%s692 + $0x1a8] sm:$0xff] %v1971
        %2036 = vst [vmem:[%s692 + $0x1b0] sm:$0xff] %v1972
        %2037 = vst [vmem:[%s692 + $0x1b8] sm:$0xff] %v1973
        %2038 = vst [vmem:[%s692 + $0x1c0] sm:$0xff] %v1974
        %2039 = vst [vmem:[%s692 + $0x1c8] sm:$0xff] %v1975
        %2040 = vst [vmem:[%s692 + $0x1d0] sm:$0xff] %v1976
        %2041 = vst [vmem:[%s692 + $0x1d8] sm:$0xff] %v1977
        %2042 = vst [vmem:[%s692 + $0x1e0] sm:$0xff] %v1978
        %2043 = vst [vmem:[%s692 + $0x1e8] sm:$0xff] %v1979
        %2044 = vst [vmem:[%s692 + $0x1f0] sm:$0xff] %v1980
        %2045 = vst [vmem:[%s692 + $0x1f8] sm:$0xff] %v1981
        %p2046 = scmp.eq.s32.totalorder %s18, 1
        // Predicated region
        $region56: #{gcn_forward.7} parent=46 // pred_check
          %p2047 = pneg %p2046
        $region57: #{gcn_forward.7} parent=46 // pred_check_branch
          %2049 = sbr.rel (%p2047) target = $region59
        $region58: #{gcn_forward.7} parent=46 // pred_region
          %v2050 = vld [vmem:[%s692] sm:$0xff]
          %v2051 = vld [vmem:[%s692 + $0x8] sm:$0xff]
          %v2052 = vld [vmem:[%s692 + $0x10] sm:$0xff]
          %v2053 = vld [vmem:[%s692 + $0x18] sm:$0xff]
          %v2054 = vld [vmem:[%s692 + $0x20] sm:$0xff]
          %v2055 = vld [vmem:[%s692 + $0x28] sm:$0xff]
          %v2056 = vld [vmem:[%s692 + $0x30] sm:$0xff]
          %v2057 = vld [vmem:[%s692 + $0x38] sm:$0xff]
          %v2058 = vld [vmem:[%s692 + $0x40] sm:$0xff]
          %v2059 = vld [vmem:[%s692 + $0x48] sm:$0xff]
          %v2060 = vld [vmem:[%s692 + $0x50] sm:$0xff]
          %v2061 = vld [vmem:[%s692 + $0x58] sm:$0xff]
          %v2062 = vld [vmem:[%s692 + $0x60] sm:$0xff]
          %v2063 = vld [vmem:[%s692 + $0x68] sm:$0xff]
          %v2064 = vld [vmem:[%s692 + $0x70] sm:$0xff]
          %v2065 = vld [vmem:[%s692 + $0x78] sm:$0xff]
          %v2066 = vld [vmem:[%s692 + $0x80] sm:$0xff]
          %v2067 = vld [vmem:[%s692 + $0x88] sm:$0xff]
          %v2068 = vld [vmem:[%s692 + $0x90] sm:$0xff]
          %v2069 = vld [vmem:[%s692 + $0x98] sm:$0xff]
          %v2070 = vld [vmem:[%s692 + $0xa0] sm:$0xff]
          %v2071 = vld [vmem:[%s692 + $0xa8] sm:$0xff]
          %v2072 = vld [vmem:[%s692 + $0xb0] sm:$0xff]
          %v2073 = vld [vmem:[%s692 + $0xb8] sm:$0xff]
          %v2074 = vld [vmem:[%s692 + $0xc0] sm:$0xff]
          %v2075 = vld [vmem:[%s692 + $0xc8] sm:$0xff]
          %v2076 = vld [vmem:[%s692 + $0xd0] sm:$0xff]
          %v2077 = vld [vmem:[%s692 + $0xd8] sm:$0xff]
          %v2078 = vld [vmem:[%s692 + $0xe0] sm:$0xff]
          %v2079 = vld [vmem:[%s692 + $0xe8] sm:$0xff]
          %v2080 = vld [vmem:[%s692 + $0xf0] sm:$0xff]
          %v2081 = vld [vmem:[%s692 + $0xf8] sm:$0xff]
          %v2082 = vld [vmem:[%s692 + $0x100] sm:$0xff]
          %v2083 = vld [vmem:[%s692 + $0x108] sm:$0xff]
          %v2084 = vld [vmem:[%s692 + $0x110] sm:$0xff]
          %v2085 = vld [vmem:[%s692 + $0x118] sm:$0xff]
          %v2086 = vld [vmem:[%s692 + $0x120] sm:$0xff]
          %v2087 = vld [vmem:[%s692 + $0x128] sm:$0xff]
          %v2088 = vld [vmem:[%s692 + $0x130] sm:$0xff]
          %v2089 = vld [vmem:[%s692 + $0x138] sm:$0xff]
          %v2090 = vld [vmem:[%s692 + $0x140] sm:$0xff]
          %v2091 = vld [vmem:[%s692 + $0x148] sm:$0xff]
          %v2092 = vld [vmem:[%s692 + $0x150] sm:$0xff]
          %v2093 = vld [vmem:[%s692 + $0x158] sm:$0xff]
          %v2094 = vld [vmem:[%s692 + $0x160] sm:$0xff]
          %v2095 = vld [vmem:[%s692 + $0x168] sm:$0xff]
          %v2096 = vld [vmem:[%s692 + $0x170] sm:$0xff]
          %v2097 = vld [vmem:[%s692 + $0x178] sm:$0xff]
          %v2098 = vld [vmem:[%s692 + $0x180] sm:$0xff]
          %v2099 = vld [vmem:[%s692 + $0x188] sm:$0xff]
          %v2100 = vld [vmem:[%s692 + $0x190] sm:$0xff]
          %v2101 = vld [vmem:[%s692 + $0x198] sm:$0xff]
          %v2102 = vld [vmem:[%s692 + $0x1a0] sm:$0xff]
          %v2103 = vld [vmem:[%s692 + $0x1a8] sm:$0xff]
          %v2104 = vld [vmem:[%s692 + $0x1b0] sm:$0xff]
          %v2105 = vld [vmem:[%s692 + $0x1b8] sm:$0xff]
          %v2106 = vld [vmem:[%s692 + $0x1c0] sm:$0xff]
          %v2107 = vld [vmem:[%s692 + $0x1c8] sm:$0xff]
          %v2108 = vld [vmem:[%s692 + $0x1d0] sm:$0xff]
          %v2109 = vld [vmem:[%s692 + $0x1d8] sm:$0xff]
          %v2110 = vld [vmem:[%s692 + $0x1e0] sm:$0xff]
          %v2111 = vld [vmem:[%s692 + $0x1e8] sm:$0xff]
          %v2112 = vld [vmem:[%s692 + $0x1f0] sm:$0xff]
          %v2113 = vld [vmem:[%s692 + $0x1f8] sm:$0xff]
          %v2114 = vlaneseq
          %v2115 = vand.u32 %v2114, 127
          %vm2116 = vcmp.lt.s32.totalorder %v2115, 8
          %v2117 = vsel %vm2116, %v2050, -1e+30
          %v2118 = vsel %vm2116, %v2051, -1e+30
          %v2119 = vsel %vm2116, %v2052, -1e+30
          %v2120 = vsel %vm2116, %v2053, -1e+30
          %v2121 = vsel %vm2116, %v2054, -1e+30
          %v2122 = vsel %vm2116, %v2055, -1e+30
          %v2123 = vsel %vm2116, %v2056, -1e+30
          %v2124 = vsel %vm2116, %v2057, -1e+30
          %v2125 = vsel %vm2116, %v2058, -1e+30
          %v2126 = vsel %vm2116, %v2059, -1e+30
          %v2127 = vsel %vm2116, %v2060, -1e+30
          %v2128 = vsel %vm2116, %v2061, -1e+30
          %v2129 = vsel %vm2116, %v2062, -1e+30
          %v2130 = vsel %vm2116, %v2063, -1e+30
          %v2131 = vsel %vm2116, %v2064, -1e+30
          %v2132 = vsel %vm2116, %v2065, -1e+30
          %v2133 = vsel %vm2116, %v2066, -1e+30
          %v2134 = vsel %vm2116, %v2067, -1e+30
          %v2135 = vsel %vm2116, %v2068, -1e+30
          %v2136 = vsel %vm2116, %v2069, -1e+30
          %v2137 = vsel %vm2116, %v2070, -1e+30
          %v2138 = vsel %vm2116, %v2071, -1e+30
          %v2139 = vsel %vm2116, %v2072, -1e+30
          %v2140 = vsel %vm2116, %v2073, -1e+30
          %v2141 = vsel %vm2116, %v2074, -1e+30
          %v2142 = vsel %vm2116, %v2075, -1e+30
          %v2143 = vsel %vm2116, %v2076, -1e+30
          %v2144 = vsel %vm2116, %v2077, -1e+30
          %v2145 = vsel %vm2116, %v2078, -1e+30
          %v2146 = vsel %vm2116, %v2079, -1e+30
          %v2147 = vsel %vm2116, %v2080, -1e+30
          %v2148 = vsel %vm2116, %v2081, -1e+30
          %v2149 = vsel %vm2116, %v2082, -1e+30
          %v2150 = vsel %vm2116, %v2083, -1e+30
          %v2151 = vsel %vm2116, %v2084, -1e+30
          %v2152 = vsel %vm2116, %v2085, -1e+30
          %v2153 = vsel %vm2116, %v2086, -1e+30
          %v2154 = vsel %vm2116, %v2087, -1e+30
          %v2155 = vsel %vm2116, %v2088, -1e+30
          %v2156 = vsel %vm2116, %v2089, -1e+30
          %v2157 = vsel %vm2116, %v2090, -1e+30
          %v2158 = vsel %vm2116, %v2091, -1e+30
          %v2159 = vsel %vm2116, %v2092, -1e+30
          %v2160 = vsel %vm2116, %v2093, -1e+30
          %v2161 = vsel %vm2116, %v2094, -1e+30
          %v2162 = vsel %vm2116, %v2095, -1e+30
          %v2163 = vsel %vm2116, %v2096, -1e+30
          %v2164 = vsel %vm2116, %v2097, -1e+30
          %v2165 = vsel %vm2116, %v2098, -1e+30
          %v2166 = vsel %vm2116, %v2099, -1e+30
          %v2167 = vsel %vm2116, %v2100, -1e+30
          %v2168 = vsel %vm2116, %v2101, -1e+30
          %v2169 = vsel %vm2116, %v2102, -1e+30
          %v2170 = vsel %vm2116, %v2103, -1e+30
          %v2171 = vsel %vm2116, %v2104, -1e+30
          %v2172 = vsel %vm2116, %v2105, -1e+30
          %v2173 = vsel %vm2116, %v2106, -1e+30
          %v2174 = vsel %vm2116, %v2107, -1e+30
          %v2175 = vsel %vm2116, %v2108, -1e+30
          %v2176 = vsel %vm2116, %v2109, -1e+30
          %v2177 = vsel %vm2116, %v2110, -1e+30
          %v2178 = vsel %vm2116, %v2111, -1e+30
          %v2179 = vsel %vm2116, %v2112, -1e+30
          %v2180 = vsel %vm2116, %v2113, -1e+30
          %2181 = vmax.xlane.f32.xlu0 %v2117
          %v2182 = vpop.xlane.xlu0 %2181
          %2183 = vmax.xlane.f32.xlu0 %v2118
          %v2184 = vpop.xlane.xlu0 %2183
          %2185 = vmax.xlane.f32.xlu0 %v2119
          %v2186 = vpop.xlane.xlu0 %2185
          %2187 = vmax.xlane.f32.xlu0 %v2120
          %v2188 = vpop.xlane.xlu0 %2187
          %2189 = vmax.xlane.f32.xlu0 %v2121
          %v2190 = vpop.xlane.xlu0 %2189
          %2191 = vmax.xlane.f32.xlu0 %v2122
          %v2192 = vpop.xlane.xlu0 %2191
          %2193 = vmax.xlane.f32.xlu0 %v2123
          %v2194 = vpop.xlane.xlu0 %2193
          %2195 = vmax.xlane.f32.xlu0 %v2124
          %v2196 = vpop.xlane.xlu0 %2195
          %2197 = vmax.xlane.f32.xlu0 %v2125
          %v2198 = vpop.xlane.xlu0 %2197
          %2199 = vmax.xlane.f32.xlu0 %v2126
          %v2200 = vpop.xlane.xlu0 %2199
          %2201 = vmax.xlane.f32.xlu0 %v2127
          %v2202 = vpop.xlane.xlu0 %2201
          %2203 = vmax.xlane.f32.xlu0 %v2128
          %v2204 = vpop.xlane.xlu0 %2203
          %2205 = vmax.xlane.f32.xlu0 %v2129
          %v2206 = vpop.xlane.xlu0 %2205
          %2207 = vmax.xlane.f32.xlu0 %v2130
          %v2208 = vpop.xlane.xlu0 %2207
          %2209 = vmax.xlane.f32.xlu0 %v2131
          %v2210 = vpop.xlane.xlu0 %2209
          %2211 = vmax.xlane.f32.xlu0 %v2132
          %v2212 = vpop.xlane.xlu0 %2211
          %2213 = vmax.xlane.f32.xlu0 %v2133
          %v2214 = vpop.xlane.xlu0 %2213
          %2215 = vmax.xlane.f32.xlu0 %v2134
          %v2216 = vpop.xlane.xlu0 %2215
          %2217 = vmax.xlane.f32.xlu0 %v2135
          %v2218 = vpop.xlane.xlu0 %2217
          %2219 = vmax.xlane.f32.xlu0 %v2136
          %v2220 = vpop.xlane.xlu0 %2219
          %2221 = vmax.xlane.f32.xlu0 %v2137
          %v2222 = vpop.xlane.xlu0 %2221
          %2223 = vmax.xlane.f32.xlu0 %v2138
          %v2224 = vpop.xlane.xlu0 %2223
          %2225 = vmax.xlane.f32.xlu0 %v2139
          %v2226 = vpop.xlane.xlu0 %2225
          %2227 = vmax.xlane.f32.xlu0 %v2140
          %v2228 = vpop.xlane.xlu0 %2227
          %2229 = vmax.xlane.f32.xlu0 %v2141
          %v2230 = vpop.xlane.xlu0 %2229
          %2231 = vmax.xlane.f32.xlu0 %v2142
          %v2232 = vpop.xlane.xlu0 %2231
          %2233 = vmax.xlane.f32.xlu0 %v2143
          %v2234 = vpop.xlane.xlu0 %2233
          %2235 = vmax.xlane.f32.xlu0 %v2144
          %v2236 = vpop.xlane.xlu0 %2235
          %2237 = vmax.xlane.f32.xlu0 %v2145
          %v2238 = vpop.xlane.xlu0 %2237
          %2239 = vmax.xlane.f32.xlu0 %v2146
          %v2240 = vpop.xlane.xlu0 %2239
          %2241 = vmax.xlane.f32.xlu0 %v2147
          %v2242 = vpop.xlane.xlu0 %2241
          %2243 = vmax.xlane.f32.xlu0 %v2148
          %v2244 = vpop.xlane.xlu0 %2243
          %2245 = vmax.xlane.f32.xlu0 %v2149
          %v2246 = vpop.xlane.xlu0 %2245
          %2247 = vmax.xlane.f32.xlu0 %v2150
          %v2248 = vpop.xlane.xlu0 %2247
          %2249 = vmax.xlane.f32.xlu0 %v2151
          %v2250 = vpop.xlane.xlu0 %2249
          %2251 = vmax.xlane.f32.xlu0 %v2152
          %v2252 = vpop.xlane.xlu0 %2251
          %2253 = vmax.xlane.f32.xlu0 %v2153
          %v2254 = vpop.xlane.xlu0 %2253
          %2255 = vmax.xlane.f32.xlu0 %v2154
          %v2256 = vpop.xlane.xlu0 %2255
          %2257 = vmax.xlane.f32.xlu0 %v2155
          %v2258 = vpop.xlane.xlu0 %2257
          %2259 = vmax.xlane.f32.xlu0 %v2156
          %v2260 = vpop.xlane.xlu0 %2259
          %2261 = vmax.xlane.f32.xlu0 %v2157
          %v2262 = vpop.xlane.xlu0 %2261
          %2263 = vmax.xlane.f32.xlu0 %v2158
          %v2264 = vpop.xlane.xlu0 %2263
          %2265 = vmax.xlane.f32.xlu0 %v2159
          %v2266 = vpop.xlane.xlu0 %2265
          %2267 = vmax.xlane.f32.xlu0 %v2160
          %v2268 = vpop.xlane.xlu0 %2267
          %2269 = vmax.xlane.f32.xlu0 %v2161
          %v2270 = vpop.xlane.xlu0 %2269
          %2271 = vmax.xlane.f32.xlu0 %v2162
          %v2272 = vpop.xlane.xlu0 %2271
          %2273 = vmax.xlane.f32.xlu0 %v2163
          %v2274 = vpop.xlane.xlu0 %2273
          %2275 = vmax.xlane.f32.xlu0 %v2164
          %v2276 = vpop.xlane.xlu0 %2275
          %2277 = vmax.xlane.f32.xlu0 %v2165
          %v2278 = vpop.xlane.xlu0 %2277
          %2279 = vmax.xlane.f32.xlu0 %v2166
          %v2280 = vpop.xlane.xlu0 %2279
          %2281 = vmax.xlane.f32.xlu0 %v2167
          %v2282 = vpop.xlane.xlu0 %2281
          %2283 = vmax.xlane.f32.xlu0 %v2168
          %v2284 = vpop.xlane.xlu0 %2283
          %2285 = vmax.xlane.f32.xlu0 %v2169
          %v2286 = vpop.xlane.xlu0 %2285
          %2287 = vmax.xlane.f32.xlu0 %v2170
          %v2288 = vpop.xlane.xlu0 %2287
          %2289 = vmax.xlane.f32.xlu0 %v2171
          %v2290 = vpop.xlane.xlu0 %2289
          %2291 = vmax.xlane.f32.xlu0 %v2172
          %v2292 = vpop.xlane.xlu0 %2291
          %2293 = vmax.xlane.f32.xlu0 %v2173
          %v2294 = vpop.xlane.xlu0 %2293
          %2295 = vmax.xlane.f32.xlu0 %v2174
          %v2296 = vpop.xlane.xlu0 %2295
          %2297 = vmax.xlane.f32.xlu0 %v2175
          %v2298 = vpop.xlane.xlu0 %2297
          %2299 = vmax.xlane.f32.xlu0 %v2176
          %v2300 = vpop.xlane.xlu0 %2299
          %2301 = vmax.xlane.f32.xlu0 %v2177
          %v2302 = vpop.xlane.xlu0 %2301
          %2303 = vmax.xlane.f32.xlu0 %v2178
          %v2304 = vpop.xlane.xlu0 %2303
          %2305 = vmax.xlane.f32.xlu0 %v2179
          %v2306 = vpop.xlane.xlu0 %2305
          %2307 = vmax.xlane.f32.xlu0 %v2180
          %v2308 = vpop.xlane.xlu0 %2307
          %v2309 = vsub.f32 %v2117, %v2182
          %v2310 = vsub.f32 %v2118, %v2184
          %v2311 = vsub.f32 %v2119, %v2186
          %v2312 = vsub.f32 %v2120, %v2188
          %v2313 = vsub.f32 %v2121, %v2190
          %v2314 = vsub.f32 %v2122, %v2192
          %v2315 = vsub.f32 %v2123, %v2194
          %v2316 = vsub.f32 %v2124, %v2196
          %v2317 = vsub.f32 %v2125, %v2198
          %v2318 = vsub.f32 %v2126, %v2200
          %v2319 = vsub.f32 %v2127, %v2202
          %v2320 = vsub.f32 %v2128, %v2204
          %v2321 = vsub.f32 %v2129, %v2206
          %v2322 = vsub.f32 %v2130, %v2208
          %v2323 = vsub.f32 %v2131, %v2210
          %v2324 = vsub.f32 %v2132, %v2212
          %v2325 = vsub.f32 %v2133, %v2214
          %v2326 = vsub.f32 %v2134, %v2216
          %v2327 = vsub.f32 %v2135, %v2218
          %v2328 = vsub.f32 %v2136, %v2220
          %v2329 = vsub.f32 %v2137, %v2222
          %v2330 = vsub.f32 %v2138, %v2224
          %v2331 = vsub.f32 %v2139, %v2226
          %v2332 = vsub.f32 %v2140, %v2228
          %v2333 = vsub.f32 %v2141, %v2230
          %v2334 = vsub.f32 %v2142, %v2232
          %v2335 = vsub.f32 %v2143, %v2234
          %v2336 = vsub.f32 %v2144, %v2236
          %v2337 = vsub.f32 %v2145, %v2238
          %v2338 = vsub.f32 %v2146, %v2240
          %v2339 = vsub.f32 %v2147, %v2242
          %v2340 = vsub.f32 %v2148, %v2244
          %v2341 = vsub.f32 %v2149, %v2246
          %v2342 = vsub.f32 %v2150, %v2248
          %v2343 = vsub.f32 %v2151, %v2250
          %v2344 = vsub.f32 %v2152, %v2252
          %v2345 = vsub.f32 %v2153, %v2254
          %v2346 = vsub.f32 %v2154, %v2256
          %v2347 = vsub.f32 %v2155, %v2258
          %v2348 = vsub.f32 %v2156, %v2260
          %v2349 = vsub.f32 %v2157, %v2262
          %v2350 = vsub.f32 %v2158, %v2264
          %v2351 = vsub.f32 %v2159, %v2266
          %v2352 = vsub.f32 %v2160, %v2268
          %v2353 = vsub.f32 %v2161, %v2270
          %v2354 = vsub.f32 %v2162, %v2272
          %v2355 = vsub.f32 %v2163, %v2274
          %v2356 = vsub.f32 %v2164, %v2276
          %v2357 = vsub.f32 %v2165, %v2278
          %v2358 = vsub.f32 %v2166, %v2280
          %v2359 = vsub.f32 %v2167, %v2282
          %v2360 = vsub.f32 %v2168, %v2284
          %v2361 = vsub.f32 %v2169, %v2286
          %v2362 = vsub.f32 %v2170, %v2288
          %v2363 = vsub.f32 %v2171, %v2290
          %v2364 = vsub.f32 %v2172, %v2292
          %v2365 = vsub.f32 %v2173, %v2294
          %v2366 = vsub.f32 %v2174, %v2296
          %v2367 = vsub.f32 %v2175, %v2298
          %v2368 = vsub.f32 %v2176, %v2300
          %v2369 = vsub.f32 %v2177, %v2302
          %v2370 = vsub.f32 %v2178, %v2304
          %v2371 = vsub.f32 %v2179, %v2306
          %v2372 = vsub.f32 %v2180, %v2308
          %v2373 = vmul.f32 %v2309, 1.442695
          %v2374 = vpow.pop %v2373
          %v2375 = vmul.f32 %v2310, 1.442695
          %v2376 = vpow.pop %v2375
          %v2377 = vmul.f32 %v2311, 1.442695
          %v2378 = vpow.pop %v2377
          %v2379 = vmul.f32 %v2312, 1.442695
          %v2380 = vpow.pop %v2379
          %v2381 = vmul.f32 %v2313, 1.442695
          %v2382 = vpow.pop %v2381
          %v2383 = vmul.f32 %v2314, 1.442695
          %v2384 = vpow.pop %v2383
          %v2385 = vmul.f32 %v2315, 1.442695
          %v2386 = vpow.pop %v2385
          %v2387 = vmul.f32 %v2316, 1.442695
          %v2388 = vpow.pop %v2387
          %v2389 = vmul.f32 %v2317, 1.442695
          %v2390 = vpow.pop %v2389
          %v2391 = vmul.f32 %v2318, 1.442695
          %v2392 = vpow.pop %v2391
          %v2393 = vmul.f32 %v2319, 1.442695
          %v2394 = vpow.pop %v2393
          %v2395 = vmul.f32 %v2320, 1.442695
          %v2396 = vpow.pop %v2395
          %v2397 = vmul.f32 %v2321, 1.442695
          %v2398 = vpow.pop %v2397
          %v2399 = vmul.f32 %v2322, 1.442695
          %v2400 = vpow.pop %v2399
          %v2401 = vmul.f32 %v2323, 1.442695
          %v2402 = vpow.pop %v2401
          %v2403 = vmul.f32 %v2324, 1.442695
          %v2404 = vpow.pop %v2403
          %v2405 = vmul.f32 %v2325, 1.442695
          %v2406 = vpow.pop %v2405
          %v2407 = vmul.f32 %v2326, 1.442695
          %v2408 = vpow.pop %v2407
          %v2409 = vmul.f32 %v2327, 1.442695
          %v2410 = vpow.pop %v2409
          %v2411 = vmul.f32 %v2328, 1.442695
          %v2412 = vpow.pop %v2411
          %v2413 = vmul.f32 %v2329, 1.442695
          %v2414 = vpow.pop %v2413
          %v2415 = vmul.f32 %v2330, 1.442695
          %v2416 = vpow.pop %v2415
          %v2417 = vmul.f32 %v2331, 1.442695
          %v2418 = vpow.pop %v2417
          %v2419 = vmul.f32 %v2332, 1.442695
          %v2420 = vpow.pop %v2419
          %v2421 = vmul.f32 %v2333, 1.442695
          %v2422 = vpow.pop %v2421
          %v2423 = vmul.f32 %v2334, 1.442695
          %v2424 = vpow.pop %v2423
          %v2425 = vmul.f32 %v2335, 1.442695
          %v2426 = vpow.pop %v2425
          %v2427 = vmul.f32 %v2336, 1.442695
          %v2428 = vpow.pop %v2427
          %v2429 = vmul.f32 %v2337, 1.442695
          %v2430 = vpow.pop %v2429
          %v2431 = vmul.f32 %v2338, 1.442695
          %v2432 = vpow.pop %v2431
          %v2433 = vmul.f32 %v2339, 1.442695
          %v2434 = vpow.pop %v2433
          %v2435 = vmul.f32 %v2340, 1.442695
          %v2436 = vpow.pop %v2435
          %v2437 = vmul.f32 %v2341, 1.442695
          %v2438 = vpow.pop %v2437
          %v2439 = vmul.f32 %v2342, 1.442695
          %v2440 = vpow.pop %v2439
          %v2441 = vmul.f32 %v2343, 1.442695
          %v2442 = vpow.pop %v2441
          %v2443 = vmul.f32 %v2344, 1.442695
          %v2444 = vpow.pop %v2443
          %v2445 = vmul.f32 %v2345, 1.442695
          %v2446 = vpow.pop %v2445
          %v2447 = vmul.f32 %v2346, 1.442695
          %v2448 = vpow.pop %v2447
          %v2449 = vmul.f32 %v2347, 1.442695
          %v2450 = vpow.pop %v2449
          %v2451 = vmul.f32 %v2348, 1.442695
          %v2452 = vpow.pop %v2451
          %v2453 = vmul.f32 %v2349, 1.442695
          %v2454 = vpow.pop %v2453
          %v2455 = vmul.f32 %v2350, 1.442695
          %v2456 = vpow.pop %v2455
          %v2457 = vmul.f32 %v2351, 1.442695
          %v2458 = vpow.pop %v2457
          %v2459 = vmul.f32 %v2352, 1.442695
          %v2460 = vpow.pop %v2459
          %v2461 = vmul.f32 %v2353, 1.442695
          %v2462 = vpow.pop %v2461
          %v2463 = vmul.f32 %v2354, 1.442695
          %v2464 = vpow.pop %v2463
          %v2465 = vmul.f32 %v2355, 1.442695
          %v2466 = vpow.pop %v2465
          %v2467 = vmul.f32 %v2356, 1.442695
          %v2468 = vpow.pop %v2467
          %v2469 = vmul.f32 %v2357, 1.442695
          %v2470 = vpow.pop %v2469
          %v2471 = vmul.f32 %v2358, 1.442695
          %v2472 = vpow.pop %v2471
          %v2473 = vmul.f32 %v2359, 1.442695
          %v2474 = vpow.pop %v2473
          %v2475 = vmul.f32 %v2360, 1.442695
          %v2476 = vpow.pop %v2475
          %v2477 = vmul.f32 %v2361, 1.442695
          %v2478 = vpow.pop %v2477
          %v2479 = vmul.f32 %v2362, 1.442695
          %v2480 = vpow.pop %v2479
          %v2481 = vmul.f32 %v2363, 1.442695
          %v2482 = vpow.pop %v2481
          %v2483 = vmul.f32 %v2364, 1.442695
          %v2484 = vpow.pop %v2483
          %v2485 = vmul.f32 %v2365, 1.442695
          %v2486 = vpow.pop %v2485
          %v2487 = vmul.f32 %v2366, 1.442695
          %v2488 = vpow.pop %v2487
          %v2489 = vmul.f32 %v2367, 1.442695
          %v2490 = vpow.pop %v2489
          %v2491 = vmul.f32 %v2368, 1.442695
          %v2492 = vpow.pop %v2491
          %v2493 = vmul.f32 %v2369, 1.442695
          %v2494 = vpow.pop %v2493
          %v2495 = vmul.f32 %v2370, 1.442695
          %v2496 = vpow.pop %v2495
          %v2497 = vmul.f32 %v2371, 1.442695
          %v2498 = vpow.pop %v2497
          %v2499 = vmul.f32 %v2372, 1.442695
          %v2500 = vpow.pop %v2499
          %2501 = vadd.xlane.f32.xlu0 %v2374
          %v2502 = vpop.xlane.xlu0 %2501
          %2503 = vadd.xlane.f32.xlu0 %v2376
          %v2504 = vpop.xlane.xlu0 %2503
          %2505 = vadd.xlane.f32.xlu0 %v2378
          %v2506 = vpop.xlane.xlu0 %2505
          %2507 = vadd.xlane.f32.xlu0 %v2380
          %v2508 = vpop.xlane.xlu0 %2507
          %2509 = vadd.xlane.f32.xlu0 %v2382
          %v2510 = vpop.xlane.xlu0 %2509
          %2511 = vadd.xlane.f32.xlu0 %v2384
          %v2512 = vpop.xlane.xlu0 %2511
          %2513 = vadd.xlane.f32.xlu0 %v2386
          %v2514 = vpop.xlane.xlu0 %2513
          %2515 = vadd.xlane.f32.xlu0 %v2388
          %v2516 = vpop.xlane.xlu0 %2515
          %2517 = vadd.xlane.f32.xlu0 %v2390
          %v2518 = vpop.xlane.xlu0 %2517
          %2519 = vadd.xlane.f32.xlu0 %v2392
          %v2520 = vpop.xlane.xlu0 %2519
          %2521 = vadd.xlane.f32.xlu0 %v2394
          %v2522 = vpop.xlane.xlu0 %2521
          %2523 = vadd.xlane.f32.xlu0 %v2396
          %v2524 = vpop.xlane.xlu0 %2523
          %2525 = vadd.xlane.f32.xlu0 %v2398
          %v2526 = vpop.xlane.xlu0 %2525
          %2527 = vadd.xlane.f32.xlu0 %v2400
          %v2528 = vpop.xlane.xlu0 %2527
          %2529 = vadd.xlane.f32.xlu0 %v2402
          %v2530 = vpop.xlane.xlu0 %2529
          %2531 = vadd.xlane.f32.xlu0 %v2404
          %v2532 = vpop.xlane.xlu0 %2531
          %2533 = vadd.xlane.f32.xlu0 %v2406
          %v2534 = vpop.xlane.xlu0 %2533
          %2535 = vadd.xlane.f32.xlu0 %v2408
          %v2536 = vpop.xlane.xlu0 %2535
          %2537 = vadd.xlane.f32.xlu0 %v2410
          %v2538 = vpop.xlane.xlu0 %2537
          %2539 = vadd.xlane.f32.xlu0 %v2412
          %v2540 = vpop.xlane.xlu0 %2539
          %2541 = vadd.xlane.f32.xlu0 %v2414
          %v2542 = vpop.xlane.xlu0 %2541
          %2543 = vadd.xlane.f32.xlu0 %v2416
          %v2544 = vpop.xlane.xlu0 %2543
          %2545 = vadd.xlane.f32.xlu0 %v2418
          %v2546 = vpop.xlane.xlu0 %2545
          %2547 = vadd.xlane.f32.xlu0 %v2420
          %v2548 = vpop.xlane.xlu0 %2547
          %2549 = vadd.xlane.f32.xlu0 %v2422
          %v2550 = vpop.xlane.xlu0 %2549
          %2551 = vadd.xlane.f32.xlu0 %v2424
          %v2552 = vpop.xlane.xlu0 %2551
          %2553 = vadd.xlane.f32.xlu0 %v2426
          %v2554 = vpop.xlane.xlu0 %2553
          %2555 = vadd.xlane.f32.xlu0 %v2428
          %v2556 = vpop.xlane.xlu0 %2555
          %2557 = vadd.xlane.f32.xlu0 %v2430
          %v2558 = vpop.xlane.xlu0 %2557
          %2559 = vadd.xlane.f32.xlu0 %v2432
          %v2560 = vpop.xlane.xlu0 %2559
          %2561 = vadd.xlane.f32.xlu0 %v2434
          %v2562 = vpop.xlane.xlu0 %2561
          %2563 = vadd.xlane.f32.xlu0 %v2436
          %v2564 = vpop.xlane.xlu0 %2563
          %2565 = vadd.xlane.f32.xlu0 %v2438
          %v2566 = vpop.xlane.xlu0 %2565
          %2567 = vadd.xlane.f32.xlu0 %v2440
          %v2568 = vpop.xlane.xlu0 %2567
          %2569 = vadd.xlane.f32.xlu0 %v2442
          %v2570 = vpop.xlane.xlu0 %2569
          %2571 = vadd.xlane.f32.xlu0 %v2444
          %v2572 = vpop.xlane.xlu0 %2571
          %2573 = vadd.xlane.f32.xlu0 %v2446
          %v2574 = vpop.xlane.xlu0 %2573
          %2575 = vadd.xlane.f32.xlu0 %v2448
          %v2576 = vpop.xlane.xlu0 %2575
          %2577 = vadd.xlane.f32.xlu0 %v2450
          %v2578 = vpop.xlane.xlu0 %2577
          %2579 = vadd.xlane.f32.xlu0 %v2452
          %v2580 = vpop.xlane.xlu0 %2579
          %2581 = vadd.xlane.f32.xlu0 %v2454
          %v2582 = vpop.xlane.xlu0 %2581
          %2583 = vadd.xlane.f32.xlu0 %v2456
          %v2584 = vpop.xlane.xlu0 %2583
          %2585 = vadd.xlane.f32.xlu0 %v2458
          %v2586 = vpop.xlane.xlu0 %2585
          %2587 = vadd.xlane.f32.xlu0 %v2460
          %v2588 = vpop.xlane.xlu0 %2587
          %2589 = vadd.xlane.f32.xlu0 %v2462
          %v2590 = vpop.xlane.xlu0 %2589
          %2591 = vadd.xlane.f32.xlu0 %v2464
          %v2592 = vpop.xlane.xlu0 %2591
          %2593 = vadd.xlane.f32.xlu0 %v2466
          %v2594 = vpop.xlane.xlu0 %2593
          %2595 = vadd.xlane.f32.xlu0 %v2468
          %v2596 = vpop.xlane.xlu0 %2595
          %2597 = vadd.xlane.f32.xlu0 %v2470
          %v2598 = vpop.xlane.xlu0 %2597
          %2599 = vadd.xlane.f32.xlu0 %v2472
          %v2600 = vpop.xlane.xlu0 %2599
          %2601 = vadd.xlane.f32.xlu0 %v2474
          %v2602 = vpop.xlane.xlu0 %2601
          %2603 = vadd.xlane.f32.xlu0 %v2476
          %v2604 = vpop.xlane.xlu0 %2603
          %2605 = vadd.xlane.f32.xlu0 %v2478
          %v2606 = vpop.xlane.xlu0 %2605
          %2607 = vadd.xlane.f32.xlu0 %v2480
          %v2608 = vpop.xlane.xlu0 %2607
          %2609 = vadd.xlane.f32.xlu0 %v2482
          %v2610 = vpop.xlane.xlu0 %2609
          %2611 = vadd.xlane.f32.xlu0 %v2484
          %v2612 = vpop.xlane.xlu0 %2611
          %2613 = vadd.xlane.f32.xlu0 %v2486
          %v2614 = vpop.xlane.xlu0 %2613
          %2615 = vadd.xlane.f32.xlu0 %v2488
          %v2616 = vpop.xlane.xlu0 %2615
          %2617 = vadd.xlane.f32.xlu0 %v2490
          %v2618 = vpop.xlane.xlu0 %2617
          %2619 = vadd.xlane.f32.xlu0 %v2492
          %v2620 = vpop.xlane.xlu0 %2619
          %2621 = vadd.xlane.f32.xlu0 %v2494
          %v2622 = vpop.xlane.xlu0 %2621
          %2623 = vadd.xlane.f32.xlu0 %v2496
          %v2624 = vpop.xlane.xlu0 %2623
          %2625 = vadd.xlane.f32.xlu0 %v2498
          %v2626 = vpop.xlane.xlu0 %2625
          %2627 = vadd.xlane.f32.xlu0 %v2500
          %v2628 = vpop.xlane.xlu0 %2627
          %v2629 = vlog2.pop %v2502
          %v2630 = vmul.f32 %v2629, 0.6931472
          %v2631 = vlog2.pop %v2504
          %v2632 = vmul.f32 %v2631, 0.6931472
          %v2633 = vlog2.pop %v2506
          %v2634 = vmul.f32 %v2633, 0.6931472
          %v2635 = vlog2.pop %v2508
          %v2636 = vmul.f32 %v2635, 0.6931472
          %v2637 = vlog2.pop %v2510
          %v2638 = vmul.f32 %v2637, 0.6931472
          %v2639 = vlog2.pop %v2512
          %v2640 = vmul.f32 %v2639, 0.6931472
          %v2641 = vlog2.pop %v2514
          %v2642 = vmul.f32 %v2641, 0.6931472
          %v2643 = vlog2.pop %v2516
          %v2644 = vmul.f32 %v2643, 0.6931472
          %v2645 = vlog2.pop %v2518
          %v2646 = vmul.f32 %v2645, 0.6931472
          %v2647 = vlog2.pop %v2520
          %v2648 = vmul.f32 %v2647, 0.6931472
          %v2649 = vlog2.pop %v2522
          %v2650 = vmul.f32 %v2649, 0.6931472
          %v2651 = vlog2.pop %v2524
          %v2652 = vmul.f32 %v2651, 0.6931472
          %v2653 = vlog2.pop %v2526
          %v2654 = vmul.f32 %v2653, 0.6931472
          %v2655 = vlog2.pop %v2528
          %v2656 = vmul.f32 %v2655, 0.6931472
          %v2657 = vlog2.pop %v2530
          %v2658 = vmul.f32 %v2657, 0.6931472
          %v2659 = vlog2.pop %v2532
          %v2660 = vmul.f32 %v2659, 0.6931472
          %v2661 = vlog2.pop %v2534
          %v2662 = vmul.f32 %v2661, 0.6931472
          %v2663 = vlog2.pop %v2536
          %v2664 = vmul.f32 %v2663, 0.6931472
          %v2665 = vlog2.pop %v2538
          %v2666 = vmul.f32 %v2665, 0.6931472
          %v2667 = vlog2.pop %v2540
          %v2668 = vmul.f32 %v2667, 0.6931472
          %v2669 = vlog2.pop %v2542
          %v2670 = vmul.f32 %v2669, 0.6931472
          %v2671 = vlog2.pop %v2544
          %v2672 = vmul.f32 %v2671, 0.6931472
          %v2673 = vlog2.pop %v2546
          %v2674 = vmul.f32 %v2673, 0.6931472
          %v2675 = vlog2.pop %v2548
          %v2676 = vmul.f32 %v2675, 0.6931472
          %v2677 = vlog2.pop %v2550
          %v2678 = vmul.f32 %v2677, 0.6931472
          %v2679 = vlog2.pop %v2552
          %v2680 = vmul.f32 %v2679, 0.6931472
          %v2681 = vlog2.pop %v2554
          %v2682 = vmul.f32 %v2681, 0.6931472
          %v2683 = vlog2.pop %v2556
          %v2684 = vmul.f32 %v2683, 0.6931472
          %v2685 = vlog2.pop %v2558
          %v2686 = vmul.f32 %v2685, 0.6931472
          %v2687 = vlog2.pop %v2560
          %v2688 = vmul.f32 %v2687, 0.6931472
          %v2689 = vlog2.pop %v2562
          %v2690 = vmul.f32 %v2689, 0.6931472
          %v2691 = vlog2.pop %v2564
          %v2692 = vmul.f32 %v2691, 0.6931472
          %v2693 = vlog2.pop %v2566
          %v2694 = vmul.f32 %v2693, 0.6931472
          %v2695 = vlog2.pop %v2568
          %v2696 = vmul.f32 %v2695, 0.6931472
          %v2697 = vlog2.pop %v2570
          %v2698 = vmul.f32 %v2697, 0.6931472
          %v2699 = vlog2.pop %v2572
          %v2700 = vmul.f32 %v2699, 0.6931472
          %v2701 = vlog2.pop %v2574
          %v2702 = vmul.f32 %v2701, 0.6931472
          %v2703 = vlog2.pop %v2576
          %v2704 = vmul.f32 %v2703, 0.6931472
          %v2705 = vlog2.pop %v2578
          %v2706 = vmul.f32 %v2705, 0.6931472
          %v2707 = vlog2.pop %v2580
          %v2708 = vmul.f32 %v2707, 0.6931472
          %v2709 = vlog2.pop %v2582
          %v2710 = vmul.f32 %v2709, 0.6931472
          %v2711 = vlog2.pop %v2584
          %v2712 = vmul.f32 %v2711, 0.6931472
          %v2713 = vlog2.pop %v2586
          %v2714 = vmul.f32 %v2713, 0.6931472
          %v2715 = vlog2.pop %v2588
          %v2716 = vmul.f32 %v2715, 0.6931472
          %v2717 = vlog2.pop %v2590
          %v2718 = vmul.f32 %v2717, 0.6931472
          %v2719 = vlog2.pop %v2592
          %v2720 = vmul.f32 %v2719, 0.6931472
          %v2721 = vlog2.pop %v2594
          %v2722 = vmul.f32 %v2721, 0.6931472
          %v2723 = vlog2.pop %v2596
          %v2724 = vmul.f32 %v2723, 0.6931472
          %v2725 = vlog2.pop %v2598
          %v2726 = vmul.f32 %v2725, 0.6931472
          %v2727 = vlog2.pop %v2600
          %v2728 = vmul.f32 %v2727, 0.6931472
          %v2729 = vlog2.pop %v2602
          %v2730 = vmul.f32 %v2729, 0.6931472
          %v2731 = vlog2.pop %v2604
          %v2732 = vmul.f32 %v2731, 0.6931472
          %v2733 = vlog2.pop %v2606
          %v2734 = vmul.f32 %v2733, 0.6931472
          %v2735 = vlog2.pop %v2608
          %v2736 = vmul.f32 %v2735, 0.6931472
          %v2737 = vlog2.pop %v2610
          %v2738 = vmul.f32 %v2737, 0.6931472
          %v2739 = vlog2.pop %v2612
          %v2740 = vmul.f32 %v2739, 0.6931472
          %v2741 = vlog2.pop %v2614
          %v2742 = vmul.f32 %v2741, 0.6931472
          %v2743 = vlog2.pop %v2616
          %v2744 = vmul.f32 %v2743, 0.6931472
          %v2745 = vlog2.pop %v2618
          %v2746 = vmul.f32 %v2745, 0.6931472
          %v2747 = vlog2.pop %v2620
          %v2748 = vmul.f32 %v2747, 0.6931472
          %v2749 = vlog2.pop %v2622
          %v2750 = vmul.f32 %v2749, 0.6931472
          %v2751 = vlog2.pop %v2624
          %v2752 = vmul.f32 %v2751, 0.6931472
          %v2753 = vlog2.pop %v2626
          %v2754 = vmul.f32 %v2753, 0.6931472
          %v2755 = vlog2.pop %v2628
          %v2756 = vmul.f32 %v2755, 0.6931472
          %v2757 = vsub.f32 %v2309, %v2630
          %v2758 = vsub.f32 %v2310, %v2632
          %v2759 = vsub.f32 %v2311, %v2634
          %v2760 = vsub.f32 %v2312, %v2636
          %v2761 = vsub.f32 %v2313, %v2638
          %v2762 = vsub.f32 %v2314, %v2640
          %v2763 = vsub.f32 %v2315, %v2642
          %v2764 = vsub.f32 %v2316, %v2644
          %v2765 = vsub.f32 %v2317, %v2646
          %v2766 = vsub.f32 %v2318, %v2648
          %v2767 = vsub.f32 %v2319, %v2650
          %v2768 = vsub.f32 %v2320, %v2652
          %v2769 = vsub.f32 %v2321, %v2654
          %v2770 = vsub.f32 %v2322, %v2656
          %v2771 = vsub.f32 %v2323, %v2658
          %v2772 = vsub.f32 %v2324, %v2660
          %v2773 = vsub.f32 %v2325, %v2662
          %v2774 = vsub.f32 %v2326, %v2664
          %v2775 = vsub.f32 %v2327, %v2666
          %v2776 = vsub.f32 %v2328, %v2668
          %v2777 = vsub.f32 %v2329, %v2670
          %v2778 = vsub.f32 %v2330, %v2672
          %v2779 = vsub.f32 %v2331, %v2674
          %v2780 = vsub.f32 %v2332, %v2676
          %v2781 = vsub.f32 %v2333, %v2678
          %v2782 = vsub.f32 %v2334, %v2680
          %v2783 = vsub.f32 %v2335, %v2682
          %v2784 = vsub.f32 %v2336, %v2684
          %v2785 = vsub.f32 %v2337, %v2686
          %v2786 = vsub.f32 %v2338, %v2688
          %v2787 = vsub.f32 %v2339, %v2690
          %v2788 = vsub.f32 %v2340, %v2692
          %v2789 = vsub.f32 %v2341, %v2694
          %v2790 = vsub.f32 %v2342, %v2696
          %v2791 = vsub.f32 %v2343, %v2698
          %v2792 = vsub.f32 %v2344, %v2700
          %v2793 = vsub.f32 %v2345, %v2702
          %v2794 = vsub.f32 %v2346, %v2704
          %v2795 = vsub.f32 %v2347, %v2706
          %v2796 = vsub.f32 %v2348, %v2708
          %v2797 = vsub.f32 %v2349, %v2710
          %v2798 = vsub.f32 %v2350, %v2712
          %v2799 = vsub.f32 %v2351, %v2714
          %v2800 = vsub.f32 %v2352, %v2716
          %v2801 = vsub.f32 %v2353, %v2718
          %v2802 = vsub.f32 %v2354, %v2720
          %v2803 = vsub.f32 %v2355, %v2722
          %v2804 = vsub.f32 %v2356, %v2724
          %v2805 = vsub.f32 %v2357, %v2726
          %v2806 = vsub.f32 %v2358, %v2728
          %v2807 = vsub.f32 %v2359, %v2730
          %v2808 = vsub.f32 %v2360, %v2732
          %v2809 = vsub.f32 %v2361, %v2734
          %v2810 = vsub.f32 %v2362, %v2736
          %v2811 = vsub.f32 %v2363, %v2738
          %v2812 = vsub.f32 %v2364, %v2740
          %v2813 = vsub.f32 %v2365, %v2742
          %v2814 = vsub.f32 %v2366, %v2744
          %v2815 = vsub.f32 %v2367, %v2746
          %v2816 = vsub.f32 %v2368, %v2748
          %v2817 = vsub.f32 %v2369, %v2750
          %v2818 = vsub.f32 %v2370, %v2752
          %v2819 = vsub.f32 %v2371, %v2754
          %v2820 = vsub.f32 %v2372, %v2756
          %2821 = vst [vmem:[%s692] sm:$0xff] %v2757
          %2822 = vst [vmem:[%s692 + $0x8] sm:$0xff] %v2758
          %2823 = vst [vmem:[%s692 + $0x10] sm:$0xff] %v2759
          %2824 = vst [vmem:[%s692 + $0x18] sm:$0xff] %v2760
          %2825 = vst [vmem:[%s692 + $0x20] sm:$0xff] %v2761
          %2826 = vst [vmem:[%s692 + $0x28] sm:$0xff] %v2762
          %2827 = vst [vmem:[%s692 + $0x30] sm:$0xff] %v2763
          %2828 = vst [vmem:[%s692 + $0x38] sm:$0xff] %v2764
          %2829 = vst [vmem:[%s692 + $0x40] sm:$0xff] %v2765
          %2830 = vst [vmem:[%s692 + $0x48] sm:$0xff] %v2766
          %2831 = vst [vmem:[%s692 + $0x50] sm:$0xff] %v2767
          %2832 = vst [vmem:[%s692 + $0x58] sm:$0xff] %v2768
          %2833 = vst [vmem:[%s692 + $0x60] sm:$0xff] %v2769
          %2834 = vst [vmem:[%s692 + $0x68] sm:$0xff] %v2770
          %2835 = vst [vmem:[%s692 + $0x70] sm:$0xff] %v2771
          %2836 = vst [vmem:[%s692 + $0x78] sm:$0xff] %v2772
          %2837 = vst [vmem:[%s692 + $0x80] sm:$0xff] %v2773
          %2838 = vst [vmem:[%s692 + $0x88] sm:$0xff] %v2774
          %2839 = vst [vmem:[%s692 + $0x90] sm:$0xff] %v2775
          %2840 = vst [vmem:[%s692 + $0x98] sm:$0xff] %v2776
          %2841 = vst [vmem:[%s692 + $0xa0] sm:$0xff] %v2777
          %2842 = vst [vmem:[%s692 + $0xa8] sm:$0xff] %v2778
          %2843 = vst [vmem:[%s692 + $0xb0] sm:$0xff] %v2779
          %2844 = vst [vmem:[%s692 + $0xb8] sm:$0xff] %v2780
          %2845 = vst [vmem:[%s692 + $0xc0] sm:$0xff] %v2781
          %2846 = vst [vmem:[%s692 + $0xc8] sm:$0xff] %v2782
          %2847 = vst [vmem:[%s692 + $0xd0] sm:$0xff] %v2783
          %2848 = vst [vmem:[%s692 + $0xd8] sm:$0xff] %v2784
          %2849 = vst [vmem:[%s692 + $0xe0] sm:$0xff] %v2785
          %2850 = vst [vmem:[%s692 + $0xe8] sm:$0xff] %v2786
          %2851 = vst [vmem:[%s692 + $0xf0] sm:$0xff] %v2787
          %2852 = vst [vmem:[%s692 + $0xf8] sm:$0xff] %v2788
          %2853 = vst [vmem:[%s692 + $0x100] sm:$0xff] %v2789
          %2854 = vst [vmem:[%s692 + $0x108] sm:$0xff] %v2790
          %2855 = vst [vmem:[%s692 + $0x110] sm:$0xff] %v2791
          %2856 = vst [vmem:[%s692 + $0x118] sm:$0xff] %v2792
          %2857 = vst [vmem:[%s692 + $0x120] sm:$0xff] %v2793
          %2858 = vst [vmem:[%s692 + $0x128] sm:$0xff] %v2794
          %2859 = vst [vmem:[%s692 + $0x130] sm:$0xff] %v2795
          %2860 = vst [vmem:[%s692 + $0x138] sm:$0xff] %v2796
          %2861 = vst [vmem:[%s692 + $0x140] sm:$0xff] %v2797
          %2862 = vst [vmem:[%s692 + $0x148] sm:$0xff] %v2798
          %2863 = vst [vmem:[%s692 + $0x150] sm:$0xff] %v2799
          %2864 = vst [vmem:[%s692 + $0x158] sm:$0xff] %v2800
          %2865 = vst [vmem:[%s692 + $0x160] sm:$0xff] %v2801
          %2866 = vst [vmem:[%s692 + $0x168] sm:$0xff] %v2802
          %2867 = vst [vmem:[%s692 + $0x170] sm:$0xff] %v2803
          %2868 = vst [vmem:[%s692 + $0x178] sm:$0xff] %v2804
          %2869 = vst [vmem:[%s692 + $0x180] sm:$0xff] %v2805
          %2870 = vst [vmem:[%s692 + $0x188] sm:$0xff] %v2806
          %2871 = vst [vmem:[%s692 + $0x190] sm:$0xff] %v2807
          %2872 = vst [vmem:[%s692 + $0x198] sm:$0xff] %v2808
          %2873 = vst [vmem:[%s692 + $0x1a0] sm:$0xff] %v2809
          %2874 = vst [vmem:[%s692 + $0x1a8] sm:$0xff] %v2810
          %2875 = vst [vmem:[%s692 + $0x1b0] sm:$0xff] %v2811
          %2876 = vst [vmem:[%s692 + $0x1b8] sm:$0xff] %v2812
          %2877 = vst [vmem:[%s692 + $0x1c0] sm:$0xff] %v2813
          %2878 = vst [vmem:[%s692 + $0x1c8] sm:$0xff] %v2814
          %2879 = vst [vmem:[%s692 + $0x1d0] sm:$0xff] %v2815
          %2880 = vst [vmem:[%s692 + $0x1d8] sm:$0xff] %v2816
          %2881 = vst [vmem:[%s692 + $0x1e0] sm:$0xff] %v2817
          %2882 = vst [vmem:[%s692 + $0x1e8] sm:$0xff] %v2818
          %2883 = vst [vmem:[%s692 + $0x1f0] sm:$0xff] %v2819
          %2884 = vst [vmem:[%s692 + $0x1f8] sm:$0xff] %v2820
        $region59: #{gcn_forward.7} parent=46 // pred_fallthru
          _
        %s2885 = smul.u32 64, %s17
        %p2886 = scmp.lt.s32.totalorder %s2885, 127
        %s2887 = scalar_select %p2886, %s2885, 127
        %s2888 = smul.addr %s2887, 8
        %s2889 = scalar_lea.vmem %s2, %s2888
        // Predicated region
        $region60: #{gcn_forward.7} parent=46 // pred_check
          %p2890 = pneg %p92
        $region61: #{gcn_forward.7} parent=46 // pred_check_branch
          %2892 = sbr.rel (%p2890) target = $region63
        $region62: #{gcn_forward.7} parent=46 // pred_region
          %s2893 = smul.u32 64, %s17
        $region63: #{gcn_forward.7} parent=46 // pred_fallthru
          _
      $region47: #{gcn_forward.7} parent=5 // pred_fallthru
        _
      %p2894 = scmp.le.s32.totalorder 2, %s8
      // Predicated region
      $region64: #{gcn_forward.7} parent=5 // pred_check
        %p2895 = pneg %p2894
      $region65: #{gcn_forward.7} parent=5 // pred_check_branch
        %2897 = sbr.rel (%p2895) target = $region67
      $region66: #{gcn_forward.7} parent=5 // pred_region
        %s2898 = ssub.s32 %s8, 2
        // Predicated region
        $region68: #{gcn_forward.7} parent=66 // pred_check
          %p2899 = pneg %p98
        $region69: #{gcn_forward.7} parent=66 // pred_check_branch
          %2901 = sbr.rel (%p2899) target = $region71
        $region70: #{gcn_forward.7} parent=66 // pred_region
          %s2902 = smul.u32 64, %s19
          %p2903 = scmp.lt.s32.totalorder %s2902, 127
          %s2904 = scalar_select %p2903, %s2902, 127
          %s2905 = smul.addr %s2904, 8
          %s2906 = scalar_lea.vmem %s2, %s2905
        $region71: #{gcn_forward.7} parent=66 // pred_fallthru
          _
      $region67: #{gcn_forward.7} parent=5 // pred_fallthru
        _
    $region6: #{gcn_forward.7} parent=1 // loop_footer
      %s12 = sadd.s32 1, %s8
    $region7: #{gcn_forward.7} parent=1 // loop_footer_branch
      %7 = sbr.rel target = $region3
    $region8: #{gcn_forward.7} parent=1 // loop_exit
      _

</llo_original>
